<compile_context>
chip_gen: v7x
topology: tpu7x:2x2x1
jax: 0.10.0
libtpu: 0.0.40
codegen_flags: <defaults>
</compile_context>

<pallas_src>
import jax
import jax.numpy as jnp
import numpy as np
from jax.experimental import pallas as pl
from jax.experimental.pallas import tpu as pltpu

LANE = 128        # channel dims padded to the 128-lane vreg width (lane-dense stores)
BN_EPS = 1e-5


def _round_up(x, m):
    return ((x + m - 1) // m) * m


def _vmem_budget_bytes():
    """Per-chip usable VMEM budget (~48 MiB on v7x, ~96 MiB on v5e/v6e)."""
    cap = 64 << 20
    try:
        fn = getattr(pltpu, "get_tpu_info", None)
        if fn is not None:
            cap = int(getattr(fn(), "vmem_capacity_bytes", cap)) or cap
    except Exception:
        pass
    return int(min(cap * 3 // 4, 96 << 20))


def _co_tile(co_pad):
    return 256 if (co_pad >= 256 and co_pad % 256 == 0) else LANE


def _est_vmem(th, w, ci, co_t):
    """Rough per-step VMEM footprint of the conv kernel for a (th, w) row tile."""
    halo = (th + 2) * (w + 2) * ci * 2
    v = 2 * halo                  # bf16 halo scratch + padded/shifted bf16 copy
    v += 2 * halo                 # f32 temp of the fused BN+ReLU transform
    v += 9 * ci * co_t * 2 * 2    # im2col weight (bf16), double-buffered
    v += th * w * ci * 2          # one per-tap patch temp
    v += th * w * co_t * 4        # f32 accumulator
    v += 2 * th * w * co_t * 2    # bf16 output block, double-buffered
    return v


def _pick_row_tile(n, h, w, ci, co_t, budget):
    """Largest row tile fitting the VMEM budget; keep total grid >= 2 for v7x megacore."""
    divs = [t for t in range(h, 0, -1) if h % t == 0]
    aligned = [t for t in divs if t % 8 == 0]
    cands = aligned if aligned else divs
    fitting = [t for t in cands if _est_vmem(t, w, ci, co_t) <= budget]
    if not fitting:
        # TODO(synk): W / channels too large even for the smallest row tile; add a W axis.
        fitting = [min(cands)]
    for t in fitting:
        if n * (h // t) >= 2:
            return t
    return fitting[0]


# --------------------------------------------------------------------------- conv kernel
def _make_conv_kernel(*, nh, th, w, ci, co_t, fuse):
    """3x3 conv on a (th, w) row tile with manual halo DMA from HBM.

    Refs (fuse=True):  x_hbm(ANY), w_ref(9*Ci,Co_t), scale(1,Ci), shift(1,Ci),
                       y(1,th,w,Co_t) bf16, stats(1,1,2,Co_t) f32, xbuf scratch, sem.
    """
    nt = th * w

    def kernel(*refs):
        if fuse:
            x_hbm, w_ref, scale_ref, shift_ref, y_ref, st_ref, xbuf, sem = refs
        else:
            x_hbm, w_ref, y_ref, st_ref, xbuf, sem = refs
            scale_ref = shift_ref = None
        b = pl.program_id(0)
        j = pl.program_id(1)

        # --- zero the rows that implement conv's top/bottom zero padding ----------
        zrow = jnp.zeros((1, w, ci), jnp.bfloat16)
        if nh == 1:
            xbuf[0:1, :, :] = zrow
            xbuf[th + 1:th + 2, :, :] = zrow
        else:
            @pl.when(j == 0)
            def _():
                xbuf[0:1, :, :] = zrow

            @pl.when(j == nh - 1)
            def _():
                xbuf[th + 1:th + 2, :, :] = zrow

        # --- manual halo DMA: rows [j*th-1, j*th+th+1) clipped to [0, H) -----------
        # Whole (W, C) planes only -> aligned DMA windows.
        # TODO(synk): double-buffer this DMA across grid steps (P4) to hide it.
        def copy(src_row, dst_row, rows):
            cp = pltpu.make_async_copy(
                x_hbm.at[b, pl.ds(src_row, rows)],
                xbuf.at[pl.ds(dst_row, rows)],
                sem)
            cp.start()
            cp.wait()

        if nh == 1:
            copy(0, 1, th)
        else:
            @pl.when(j == 0)
            def _():
                copy(0, 1, th + 1)

            @pl.when(j == nh - 1)
            def _():
                copy(j * th - 1, 0, th + 1)

            @pl.when(jnp.logical_and(j > 0, j < nh - 1))
            def _():
                copy(j * th - 1, 0, th + 2)

        # --- load tile; optionally apply the previous stage's BN + ReLU ------------
        xv = xbuf[...]                                                # (th+2, w, ci) bf16
        if fuse:
            s = scale_ref[...].reshape(1, 1, ci)
            t = shift_ref[...].reshape(1, 1, ci)
            xv = jnp.maximum(xv.astype(jnp.float32) * s + t, 0.0)
            # rows that are conv zero padding must stay zero AFTER BN+ReLU
            rows_i = jax.lax.broadcasted_iota(jnp.int32, xv.shape, 0)
            valid = jnp.logical_or(j > 0, rows_i >= 1)
            valid &= jnp.logical_or(j < nh - 1, rows_i <= th)
            xv = jnp.where(valid, xv, 0.0).astype(jnp.bfloat16)

        # left/right zero-padding columns (conv padding=1 along W)
        zc = jnp.zeros((th + 2, 1, ci), jnp.bfloat16)
        xv = jnp.concatenate([zc, xv, zc], axis=1)                    # (th+2, w+2, ci)

        def tap(dy, dx):
            return xv[dy:dy + th, dx:dx + w, :].reshape(nt, ci)

        # --- 3x3 conv = 9 accumulated per-tap MXU dots (no 9x im2col buffer) -------
        acc = None
        for k in range(9):
            dy, dx = divmod(k, 3)
            d = jnp.dot(tap(dy, dx), w_ref[k * ci:(k + 1) * ci, :],
                        preferred_element_type=jnp.float32)
            acc = d if acc is None else acc + d
        # NOTE: conv bias intentionally omitted — train-mode BN cancels it exactly.

        y_ref[...] = acc.reshape(1, th, w, co_t).astype(y_ref.dtype)

        # Per-tile BN partials: channel sum + M2 about the tile mean (merged with the
        # parallel-variance formula in the wrapper; avoids E[x^2]-E[x]^2 cancellation).
        ssum = jnp.sum(acc, axis=0, keepdims=True)                    # (1, co_t)
        mu = ssum * (1.0 / nt)
        m2 = jnp.sum(jnp.square(acc - mu), axis=0, keepdims=True)     # (1, co_t)
        st_ref[0, 0, :, :] = jnp.concatenate([ssum, m2], axis=0)

    return kernel


def _conv_bn_stats(x, w_mat, scale, shift, th, co_t, vmem_limit):
    """3x3 conv (+optional fused BN+ReLU of the input) -> bf16 output + BN partials."""
    n, h, w, ci = x.shape
    nh = h // th
    k9, co_pad = w_mat.shape
    nco = co_pad // co_t
    fuse = scale is not None

    in_specs = [pl.BlockSpec(memory_space=pl.ANY),                      # activation in HBM
                pl.BlockSpec((k9, co_t), lambda i, j, c: (0, c))]       # im2col weight
    args = [x, w_mat]
    if fuse:
        in_specs += [pl.BlockSpec((1, ci), lambda i, j, c: (0, 0)),
                     pl.BlockSpec((1, ci), lambda i, j, c: (0, 0))]
        args += [scale.reshape(1, -1), shift.reshape(1, -1)]

    return pl.pallas_call(
        _make_conv_kernel(nh=nh, th=th, w=w, ci=ci, co_t=co_t, fuse=fuse),
        grid_spec=pltpu.PrefetchScalarGridSpec(
            num_scalar_prefetch=0,
            grid=(n, nh, nco),
            in_specs=in_specs,
            out_specs=[
                pl.BlockSpec((1, th, w, co_t), lambda i, j, c: (i, j, 0, c)),
                pl.BlockSpec((1, 1, 2, co_t), lambda i, j, c: (i, j, 0, c)),
            ],
            scratch_shapes=[
                pltpu.VMEM((th + 2, w, ci), jnp.bfloat16),    # halo row-window scratch
                pltpu.SemaphoreType.DMA(()),
            ],
        ),
        out_shape=(
            jax.ShapeDtypeStruct((n, h, w, co_pad), jnp.bfloat16),
            jax.ShapeDtypeStruct((n, nh, 2, co_pad), jnp.float32),
        ),
        compiler_params=pltpu.CompilerParams(
            dimension_semantics=("parallel", "parallel", "arbitrary"),
            vmem_limit_bytes=vmem_limit,
        ),
    )(*args)


# --------------------------------------------------------------------------- final BN+ReLU
def _bn_relu_kernel(y_ref, scale_ref, shift_ref, o_ref):
    s = scale_ref[...].reshape(1, 1, 1, -1)
    t = shift_ref[...].reshape(1, 1, 1, -1)
    o_ref[...] = jnp.maximum(y_ref[...].astype(jnp.float32) * s + t, 0.0)


def _bn_relu(y, scale, shift, th, vmem_limit):
    n, h, w, c = y.shape
    nh = h // th
    return pl.pallas_call(
        _bn_relu_kernel,
        grid_spec=pltpu.PrefetchScalarGridSpec(
            num_scalar_prefetch=0,
            grid=(n, nh),
            in_specs=[
                pl.BlockSpec((1, th, w, c), lambda i, j: (i, j, 0, 0)),
                pl.BlockSpec((1, c), lambda i, j: (0, 0)),
                pl.BlockSpec((1, c), lambda i, j: (0, 0)),
            ],
            out_specs=pl.BlockSpec((1, th, w, c), lambda i, j: (i, j, 0, 0)),
        ),
        out_shape=jax.ShapeDtypeStruct((n, h, w, c), jnp.float32),
        compiler_params=pltpu.CompilerParams(
            dimension_semantics=("parallel", "parallel"),
            vmem_limit_bytes=vmem_limit,
        ),
    )(y, scale.reshape(1, -1), shift.reshape(1, -1))


# --------------------------------------------------------------------------- glue
def _pad_channels(a, c_to):
    pad = c_to - a.shape[-1]
    if pad == 0:
        return a
    return jnp.pad(a, [(0, 0)] * (a.ndim - 1) + [(0, pad)])


def _im2col_weight(w_hwio, ci_pad, co_pad):
    """(3,3,Ci,Co) f32 -> (9*ci_pad, co_pad) bf16 matching the kernel's tap order."""
    w = jnp.pad(w_hwio, ((0, 0), (0, 0),
                         (0, ci_pad - w_hwio.shape[2]),
                         (0, co_pad - w_hwio.shape[3])))
    return w.reshape(9 * ci_pad, co_pad).astype(jnp.bfloat16)


def _bn_scale_shift(stats, gamma, beta, total, c_pad, nt):
    """Merge per-tile (sum, M2) partials into per-channel fp32 scale/shift
    (PyTorch train-mode BatchNorm: biased variance)."""
    s = stats[:, :, 0, :]                       # (N, nH, C) per-tile sums
    m2 = stats[:, :, 1, :]                      # per-tile M2 about the tile mean
    mean = jnp.sum(s, axis=(0, 1)) / total
    mu_t = s / nt
    var = (jnp.sum(m2, axis=(0, 1))
           + nt * jnp.sum(jnp.square(mu_t - mean), axis=(0, 1))) / total
    var = jnp.maximum(var, 0.0)
    g = _pad_channels(gamma, c_pad)
    b = _pad_channels(beta, c_pad)
    scale = g * jax.lax.rsqrt(var + BN_EPS)
    shift = b - mean * scale
    return scale.astype(jnp.float32), shift.astype(jnp.float32)


@jax.jit
def double_conv(x_nchw, params):
    """DoubleConv forward.  NCHW in / NCHW out, like the PyTorch module."""
    n, cin, h, w = x_nchw.shape
    cmid, cout = params["w1"].shape[3], params["w2"].shape[3]
    ci_p, cm_p, co_p = (_round_up(c, LANE) for c in (cin, cmid, cout))
    budget = _vmem_budget_bytes()
    th = _pick_row_tile(n, h, w, max(ci_p, cm_p),
                        max(_co_tile(cm_p), _co_tile(co_p)), budget)
    count = n * h * w
    nt = th * w

    # ---- stage 1: conv1 (+ batch-stat partials), bf16 output --------------------
    x = jnp.transpose(x_nchw, (0, 2, 3, 1)).astype(jnp.bfloat16)      # NCHW -> NHWC
    x = _pad_channels(x, ci_p)
    w1 = _im2col_weight(params["w1"], ci_p, cm_p)
    y1, st1 = _conv_bn_stats(x, w1, None, None, th, _co_tile(cm_p), budget)
    scale1, shift1 = _bn_scale_shift(st1, params["g1"], params["beta1"], count, cm_p, nt)

    # ---- stage 2: BN1+ReLU fused into conv2's input path, then conv2 ------------
    w2 = _im2col_weight(params["w2"], cm_p, co_p)
    y2, st2 = _conv_bn_stats(y1, w2, scale1, shift1, th, _co_tile(co_p), budget)
    scale2, shift2 = _bn_scale_shift(st2, params["g2"], params["beta2"], count, co_p, nt)

    # ---- final BN2 + ReLU (tiled Pallas kernel), unpad channels, back to NCHW ----
    out = _bn_relu(y2, scale2, shift2, th, budget)                    # (N,H,W,co_p) f32
    return jnp.transpose(out[..., :cout], (0, 3, 1, 2))


# --------------------------------------------------------------------------- reference
def init_params(key, in_ch, mid_ch, out_ch):
    ks = jax.random.split(key, 8)

    def conv_w(k, ci, co):
        fan_in = ci * 9
        return jax.random.normal(k, (3, 3, ci, co), jnp.float32) / np.sqrt(fan_in)

    return {
        "w1": conv_w(ks[0], in_ch, mid_ch),
        "b1": 0.1 * jax.random.normal(ks[1], (mid_ch,), jnp.float32),
        "g1": 1.0 + 0.1 * jax.random.normal(ks[2], (mid_ch,), jnp.float32),
        "beta1": 0.1 * jax.random.normal(ks[3], (mid_ch,), jnp.float32),
        "w2": conv_w(ks[4], mid_ch, out_ch),
        "b2": 0.1 * jax.random.normal(ks[5], (out_ch,), jnp.float32),
        "g2": 1.0 + 0.1 * jax.random.normal(ks[6], (out_ch,), jnp.float32),
        "beta2": 0.1 * jax.random.normal(ks[7], (out_ch,), jnp.float32),
    }


def ref_double_conv(x_nchw, params):
    """Pure-JAX reference (PyTorch train-mode semantics, conv bias included;
    bf16 conv operands to mirror the kernel's MXU precision, rest fp32)."""
    def block(x, w, b, g, beta):
        y = jax.lax.conv_general_dilated(
            x.astype(jnp.bfloat16), w.astype(jnp.bfloat16),
            window_strides=(1, 1), padding="SAME",
            dimension_numbers=("NHWC", "HWIO", "NHWC"),
            preferred_element_type=jnp.float32) + b
        mean = y.mean(axis=(0, 1, 2))
        var = jnp.square(y - mean).mean(axis=(0, 1, 2))
        y = (y - mean) * jax.lax.rsqrt(var + BN_EPS) * g + beta
        return jnp.maximum(y, 0.0)

    x = jnp.transpose(x_nchw, (0, 2, 3, 1))
    h1 = block(x, params["w1"], params["b1"], params["g1"], params["beta1"])
    y = block(h1, params["w2"], params["b2"], params["g2"], params["beta2"])
    return jnp.transpose(y, (0, 3, 1, 2))


if __name__ == "__main__":
    key = jax.random.PRNGKey(0)
    k_x, k_p = jax.random.split(key)

    N, in_ch, mid_ch, out_ch, H, W = 2, 4, 8, 8, 16, 16
    x = jax.random.normal(k_x, (N, in_ch, H, W), jnp.float32)   # NCHW like torch
    params = init_params(k_p, in_ch, mid_ch, out_ch)

    out = jax.block_until_ready(double_conv(x, params))
    assert out.shape == (N, out_ch, H, W), out.shape

    ref = jax.block_until_ready(ref_double_conv(x, params))
    # bf16 MXU operands + bf16 inter-stage activations -> a few bf16 ulps of slack.
    np.testing.assert_allclose(np.asarray(out), np.asarray(ref),
                               atol=3e-2, rtol=3e-2)

    print("KERNEL_OK")
</pallas_src>

<mosaic_0001>
module attributes {stable_mosaic.version = 11 : i64} {
  func.func @kernel(%arg0: i32, %arg1: i32, %arg2: i32, %arg3: memref<2x16x16x128xbf16, #tpu.memory_space<any>>, %arg4: memref<1152x128xbf16, #tpu.memory_space<vmem>>, %arg5: memref<1x16x16x128xbf16, #tpu.memory_space<vmem>>, %arg6: memref<1x1x2x128xf32, #tpu.memory_space<vmem>>, %arg7: memref<18x16x128xbf16, #tpu.memory_space<vmem>>, %arg8: memref<!tpu.dma_semaphore, #tpu.memory_space<semaphore_mem>>) attributes {dimension_semantics = [#tpu.dimension_semantics<parallel>, #tpu.dimension_semantics<parallel>, #tpu.dimension_semantics<arbitrary>], iteration_bounds = array<i64: 2, 1, 1>, scalar_prefetch = 0 : i64, scratch_operands = 2 : i64, tpu.core_type = #tpu.core_type<tc>, window_params = [{}, {transform_indices = @transform_1, window_bounds = array<i64: 1152, 128>}, {transform_indices = @transform_2, window_bounds = array<i64: 1, 16, 16, 128>}, {transform_indices = @transform_3, window_bounds = array<i64: 1, 1, 2, 128>}]} {
    %cst = arith.constant 0.000000e+00 : bf16
    %0 = vector.broadcast %cst : bf16 to vector<1x16x128xbf16>
    %c0 = arith.constant 0 : index
    %c0_0 = arith.constant 0 : index
    %c0_1 = arith.constant 0 : index
    %1 = vector.load %arg7[%c0, %c0_0, %c0_1] : memref<18x16x128xbf16, #tpu.memory_space<vmem>>, vector<1x16x128xbf16>
    tpu.vector_store %arg7[%c0, %c0_0, %c0_1], %0 {strides = array<i32>} : memref<18x16x128xbf16, #tpu.memory_space<vmem>>, vector<1x16x128xbf16>,
    %c17 = arith.constant 17 : index
    %c0_2 = arith.constant 0 : index
    %c0_3 = arith.constant 0 : index
    %2 = vector.load %arg7[%c17, %c0_2, %c0_3] : memref<18x16x128xbf16, #tpu.memory_space<vmem>>, vector<1x16x128xbf16>
    tpu.vector_store %arg7[%c17, %c0_2, %c0_3], %0 {strides = array<i32>} : memref<18x16x128xbf16, #tpu.memory_space<vmem>>, vector<1x16x128xbf16>,
    %c0_i32 = arith.constant 0 : i32
    %c0_i32_4 = arith.constant 0 : i32
    %c0_i32_5 = arith.constant 0 : i32
    %3 = tpu.memref_slice %arg3[%arg0, %c0_i32, %c0_i32_4, %c0_i32_5] : memref<2x16x16x128xbf16, #tpu.memory_space<any>> -> memref<1x16x16x128xbf16, #tpu.memory_space<any>>
    %4 = tpu.memref_squeeze %3 : memref<1x16x16x128xbf16, #tpu.memory_space<any>> -> memref<16x16x128xbf16, #tpu.memory_space<any>>
    %c1_i32 = arith.constant 1 : i32
    %c0_i32_6 = arith.constant 0 : i32
    %c0_i32_7 = arith.constant 0 : i32
    %5 = tpu.memref_slice %arg7[%c1_i32, %c0_i32_6, %c0_i32_7] : memref<18x16x128xbf16, #tpu.memory_space<vmem>> -> memref<16x16x128xbf16, #tpu.memory_space<vmem>>
    tpu.enqueue_dma source(%4 : memref<16x16x128xbf16, #tpu.memory_space<any>>) target(%5 : memref<16x16x128xbf16, #tpu.memory_space<vmem>>) target_semaphore(%arg8 : memref<!tpu.dma_semaphore, #tpu.memory_space<semaphore_mem>>)
    %c0_i32_8 = arith.constant 0 : i32
    %c0_i32_9 = arith.constant 0 : i32
    %c0_i32_10 = arith.constant 0 : i32
    %6 = tpu.memref_slice %arg3[%arg0, %c0_i32_8, %c0_i32_9, %c0_i32_10] : memref<2x16x16x128xbf16, #tpu.memory_space<any>> -> memref<1x16x16x128xbf16, #tpu.memory_space<any>>
    %7 = tpu.memref_squeeze %6 : memref<1x16x16x128xbf16, #tpu.memory_space<any>> -> memref<16x16x128xbf16, #tpu.memory_space<any>>
    %c1_i32_11 = arith.constant 1 : i32
    %c0_i32_12 = arith.constant 0 : i32
    %c0_i32_13 = arith.constant 0 : i32
    %8 = tpu.memref_slice %arg7[%c1_i32_11, %c0_i32_12, %c0_i32_13] : memref<18x16x128xbf16, #tpu.memory_space<vmem>> -> memref<16x16x128xbf16, #tpu.memory_space<vmem>>
    tpu.wait_dma2 semaphore(%arg8 : memref<!tpu.dma_semaphore, #tpu.memory_space<semaphore_mem>>) src(%7 : memref<16x16x128xbf16, #tpu.memory_space<any>>) dst(%8 : memref<16x16x128xbf16, #tpu.memory_space<vmem>>)
    %c0_14 = arith.constant 0 : index
    %c0_15 = arith.constant 0 : index
    %c0_16 = arith.constant 0 : index
    %9 = vector.load %arg7[%c0_14, %c0_15, %c0_16] : memref<18x16x128xbf16, #tpu.memory_space<vmem>>, vector<18x16x128xbf16>
    %cst_17 = arith.constant 0.000000e+00 : bf16
    %10 = vector.broadcast %cst_17 : bf16 to vector<18x1x128xbf16>
    %11 = tpu.concatenate %10, %9, %10 in 1 : vector<18x1x128xbf16>, vector<18x16x128xbf16>, vector<18x1x128xbf16> -> vector<18x18x128xbf16>
    %12 = vector.extract_strided_slice %11 {offsets = [0, 0, 0], sizes = [16, 16, 128], strides = [1, 1, 1]} : vector<18x18x128xbf16> to vector<16x16x128xbf16>
    %13 = vector.shape_cast %12 : vector<16x16x128xbf16> to vector<256x128xbf16>
    %c0_18 = arith.constant 0 : index
    %c0_19 = arith.constant 0 : index
    %14 = vector.load %arg4[%c0_18, %c0_19] : memref<1152x128xbf16, #tpu.memory_space<vmem>>, vector<128x128xbf16>
    %cst_20 = arith.constant dense<0.000000e+00> : vector<256x128xf32>
    %15 = tpu.matmul %13, %14, %cst_20 {dimension_numbers = #tpu.dot_dimension_numbers<[1], [0], [0], [1], [0, 0, 1, 1], [], []>} : vector<256x128xbf16>, vector<128x128xbf16>, vector<256x128xf32> -> vector<256x128xf32>
    %16 = vector.extract_strided_slice %11 {offsets = [0, 1, 0], sizes = [16, 16, 128], strides = [1, 1, 1]} : vector<18x18x128xbf16> to vector<16x16x128xbf16>
    %17 = vector.shape_cast %16 : vector<16x16x128xbf16> to vector<256x128xbf16>
    %c128 = arith.constant 128 : index
    %c0_21 = arith.constant 0 : index
    %18 = vector.load %arg4[%c128, %c0_21] : memref<1152x128xbf16, #tpu.memory_space<vmem>>, vector<128x128xbf16>
    %cst_22 = arith.constant dense<0.000000e+00> : vector<256x128xf32>
    %19 = tpu.matmul %17, %18, %cst_22 {dimension_numbers = #tpu.dot_dimension_numbers<[1], [0], [0], [1], [0, 0, 1, 1], [], []>} : vector<256x128xbf16>, vector<128x128xbf16>, vector<256x128xf32> -> vector<256x128xf32>
    %20 = arith.addf %15, %19 : vector<256x128xf32>
    %21 = vector.extract_strided_slice %11 {offsets = [0, 2, 0], sizes = [16, 16, 128], strides = [1, 1, 1]} : vector<18x18x128xbf16> to vector<16x16x128xbf16>
    %22 = vector.shape_cast %21 : vector<16x16x128xbf16> to vector<256x128xbf16>
    %c256 = arith.constant 256 : index
    %c0_23 = arith.constant 0 : index
    %23 = vector.load %arg4[%c256, %c0_23] : memref<1152x128xbf16, #tpu.memory_space<vmem>>, vector<128x128xbf16>
    %cst_24 = arith.constant dense<0.000000e+00> : vector<256x128xf32>
    %24 = tpu.matmul %22, %23, %cst_24 {dimension_numbers = #tpu.dot_dimension_numbers<[1], [0], [0], [1], [0, 0, 1, 1], [], []>} : vector<256x128xbf16>, vector<128x128xbf16>, vector<256x128xf32> -> vector<256x128xf32>
    %25 = arith.addf %20, %24 : vector<256x128xf32>
    %26 = vector.extract_strided_slice %11 {offsets = [1, 0, 0], sizes = [16, 16, 128], strides = [1, 1, 1]} : vector<18x18x128xbf16> to vector<16x16x128xbf16>
    %27 = vector.shape_cast %26 : vector<16x16x128xbf16> to vector<256x128xbf16>
    %c384 = arith.constant 384 : index
    %c0_25 = arith.constant 0 : index
    %28 = vector.load %arg4[%c384, %c0_25] : memref<1152x128xbf16, #tpu.memory_space<vmem>>, vector<128x128xbf16>
    %cst_26 = arith.constant dense<0.000000e+00> : vector<256x128xf32>
    %29 = tpu.matmul %27, %28, %cst_26 {dimension_numbers = #tpu.dot_dimension_numbers<[1], [0], [0], [1], [0, 0, 1, 1], [], []>} : vector<256x128xbf16>, vector<128x128xbf16>, vector<256x128xf32> -> vector<256x128xf32>
    %30 = arith.addf %25, %29 : vector<256x128xf32>
    %31 = vector.extract_strided_slice %11 {offsets = [1, 1, 0], sizes = [16, 16, 128], strides = [1, 1, 1]} : vector<18x18x128xbf16> to vector<16x16x128xbf16>
    %32 = vector.shape_cast %31 : vector<16x16x128xbf16> to vector<256x128xbf16>
    %c512 = arith.constant 512 : index
    %c0_27 = arith.constant 0 : index
    %33 = vector.load %arg4[%c512, %c0_27] : memref<1152x128xbf16, #tpu.memory_space<vmem>>, vector<128x128xbf16>
    %cst_28 = arith.constant dense<0.000000e+00> : vector<256x128xf32>
    %34 = tpu.matmul %32, %33, %cst_28 {dimension_numbers = #tpu.dot_dimension_numbers<[1], [0], [0], [1], [0, 0, 1, 1], [], []>} : vector<256x128xbf16>, vector<128x128xbf16>, vector<256x128xf32> -> vector<256x128xf32>
    %35 = arith.addf %30, %34 : vector<256x128xf32>
    %36 = vector.extract_strided_slice %11 {offsets = [1, 2, 0], sizes = [16, 16, 128], strides = [1, 1, 1]} : vector<18x18x128xbf16> to vector<16x16x128xbf16>
    %37 = vector.shape_cast %36 : vector<16x16x128xbf16> to vector<256x128xbf16>
    %c640 = arith.constant 640 : index
    %c0_29 = arith.constant 0 : index
    %38 = vector.load %arg4[%c640, %c0_29] : memref<1152x128xbf16, #tpu.memory_space<vmem>>, vector<128x128xbf16>
    %cst_30 = arith.constant dense<0.000000e+00> : vector<256x128xf32>
    %39 = tpu.matmul %37, %38, %cst_30 {dimension_numbers = #tpu.dot_dimension_numbers<[1], [0], [0], [1], [0, 0, 1, 1], [], []>} : vector<256x128xbf16>, vector<128x128xbf16>, vector<256x128xf32> -> vector<256x128xf32>
    %40 = arith.addf %35, %39 : vector<256x128xf32>
    %41 = vector.extract_strided_slice %11 {offsets = [2, 0, 0], sizes = [16, 16, 128], strides = [1, 1, 1]} : vector<18x18x128xbf16> to vector<16x16x128xbf16>
    %42 = vector.shape_cast %41 : vector<16x16x128xbf16> to vector<256x128xbf16>
    %c768 = arith.constant 768 : index
    %c0_31 = arith.constant 0 : index
    %43 = vector.load %arg4[%c768, %c0_31] : memref<1152x128xbf16, #tpu.memory_space<vmem>>, vector<128x128xbf16>
    %cst_32 = arith.constant dense<0.000000e+00> : vector<256x128xf32>
    %44 = tpu.matmul %42, %43, %cst_32 {dimension_numbers = #tpu.dot_dimension_numbers<[1], [0], [0], [1], [0, 0, 1, 1], [], []>} : vector<256x128xbf16>, vector<128x128xbf16>, vector<256x128xf32> -> vector<256x128xf32>
    %45 = arith.addf %40, %44 : vector<256x128xf32>
    %46 = vector.extract_strided_slice %11 {offsets = [2, 1, 0], sizes = [16, 16, 128], strides = [1, 1, 1]} : vector<18x18x128xbf16> to vector<16x16x128xbf16>
    %47 = vector.shape_cast %46 : vector<16x16x128xbf16> to vector<256x128xbf16>
    %c896 = arith.constant 896 : index
    %c0_33 = arith.constant 0 : index
    %48 = vector.load %arg4[%c896, %c0_33] : memref<1152x128xbf16, #tpu.memory_space<vmem>>, vector<128x128xbf16>
    %cst_34 = arith.constant dense<0.000000e+00> : vector<256x128xf32>
    %49 = tpu.matmul %47, %48, %cst_34 {dimension_numbers = #tpu.dot_dimension_numbers<[1], [0], [0], [1], [0, 0, 1, 1], [], []>} : vector<256x128xbf16>, vector<128x128xbf16>, vector<256x128xf32> -> vector<256x128xf32>
    %50 = arith.addf %45, %49 : vector<256x128xf32>
    %51 = vector.extract_strided_slice %11 {offsets = [2, 2, 0], sizes = [16, 16, 128], strides = [1, 1, 1]} : vector<18x18x128xbf16> to vector<16x16x128xbf16>
    %52 = vector.shape_cast %51 : vector<16x16x128xbf16> to vector<256x128xbf16>
    %c1024 = arith.constant 1024 : index
    %c0_35 = arith.constant 0 : index
    %53 = vector.load %arg4[%c1024, %c0_35] : memref<1152x128xbf16, #tpu.memory_space<vmem>>, vector<128x128xbf16>
    %cst_36 = arith.constant dense<0.000000e+00> : vector<256x128xf32>
    %54 = tpu.matmul %52, %53, %cst_36 {dimension_numbers = #tpu.dot_dimension_numbers<[1], [0], [0], [1], [0, 0, 1, 1], [], []>} : vector<256x128xbf16>, vector<128x128xbf16>, vector<256x128xf32> -> vector<256x128xf32>
    %55 = arith.addf %50, %54 : vector<256x128xf32>
    %56 = vector.shape_cast %55 : vector<256x128xf32> to vector<1x16x16x128xf32>
    %57 = arith.truncf %56 : vector<1x16x16x128xf32> to vector<1x16x16x128xbf16>
    %c0_37 = arith.constant 0 : index
    %c0_38 = arith.constant 0 : index
    %c0_39 = arith.constant 0 : index
    %c0_40 = arith.constant 0 : index
    %58 = vector.load %arg5[%c0_37, %c0_38, %c0_39, %c0_40] : memref<1x16x16x128xbf16, #tpu.memory_space<vmem>>, vector<1x16x16x128xbf16>
    tpu.vector_store %arg5[%c0_37, %c0_38, %c0_39, %c0_40], %57 {strides = array<i32>} : memref<1x16x16x128xbf16, #tpu.memory_space<vmem>>, vector<1x16x16x128xbf16>,
    %cst_41 = arith.constant dense<0.000000e+00> : vector<128xf32>
    %59 = vector.multi_reduction <add>, %55, %cst_41 [0] : vector<256x128xf32> to vector<128xf32>
    %60 = vector.shape_cast %59 : vector<128xf32> to vector<1x128xf32>
    %cst_42 = arith.constant 3.906250e-03 : f32
    %61 = vector.broadcast %cst_42 : f32 to vector<1x128xf32>
    %62 = arith.mulf %60, %61 : vector<1x128xf32>
    %63 = vector.broadcast %62 : vector<1x128xf32> to vector<256x128xf32>
    %64 = arith.subf %55, %63 : vector<256x128xf32>
    %65 = arith.mulf %64, %64 : vector<256x128xf32>
    %cst_43 = arith.constant dense<0.000000e+00> : vector<128xf32>
    %66 = vector.multi_reduction <add>, %65, %cst_43 [0] : vector<256x128xf32> to vector<128xf32>
    %67 = vector.shape_cast %66 : vector<128xf32> to vector<1x128xf32>
    %68 = tpu.concatenate %60, %67 in 0 : vector<1x128xf32>, vector<1x128xf32> -> vector<2x128xf32>
    %c0_44 = arith.constant 0 : index
    %c0_45 = arith.constant 0 : index
    %c0_46 = arith.constant 0 : index
    %c0_47 = arith.constant 0 : index
    %69 = vector.load %arg6[%c0_44, %c0_45, %c0_46, %c0_47] : memref<1x1x2x128xf32, #tpu.memory_space<vmem>>, vector<1x1x2x128xf32>
    %70 = vector.shape_cast %69 : vector<1x1x2x128xf32> to vector<2x128xf32>
    %71 = vector.shape_cast %68 : vector<2x128xf32> to vector<1x1x2x128xf32>
    tpu.vector_store %arg6[%c0_44, %c0_45, %c0_46, %c0_47], %71 {strides = array<i32>} : memref<1x1x2x128xf32, #tpu.memory_space<vmem>>, vector<1x1x2x128xf32>,
    return
  }
  func.func @transform_1(%arg0: i32, %arg1: i32, %arg2: i32) -> (i32, i32) {
    %c0_i32 = arith.constant 0 : i32
    %c0_i32_0 = arith.constant 0 : i32
    return %c0_i32, %arg2 : i32, i32
  }
  func.func @transform_2(%arg0: i32, %arg1: i32, %arg2: i32) -> (i32, i32, i32, i32) {
    %c0_i32 = arith.constant 0 : i32
    %c0_i32_0 = arith.constant 0 : i32
    return %arg0, %arg1, %c0_i32, %arg2 : i32, i32, i32, i32
  }
  func.func @transform_3(%arg0: i32, %arg1: i32, %arg2: i32) -> (i32, i32, i32, i32) {
    %c0_i32 = arith.constant 0 : i32
    %c0_i32_0 = arith.constant 0 : i32
    return %arg0, %arg1, %c0_i32, %arg2 : i32, i32, i32, i32
  }
}

module attributes {stable_mosaic.version = 11 : i64} {
  func.func @kernel(%arg0: i32, %arg1: i32, %arg2: i32, %arg3: memref<2x16x16x128xbf16, #tpu.memory_space<any>>, %arg4: memref<1152x128xbf16, #tpu.memory_space<vmem>>, %arg5: memref<1x128xf32, #tpu.memory_space<vmem>>, %arg6: memref<1x128xf32, #tpu.memory_space<vmem>>, %arg7: memref<1x16x16x128xbf16, #tpu.memory_space<vmem>>, %arg8: memref<1x1x2x128xf32, #tpu.memory_space<vmem>>, %arg9: memref<18x16x128xbf16, #tpu.memory_space<vmem>>, %arg10: memref<!tpu.dma_semaphore, #tpu.memory_space<semaphore_mem>>) attributes {dimension_semantics = [#tpu.dimension_semantics<parallel>, #tpu.dimension_semantics<parallel>, #tpu.dimension_semantics<arbitrary>], iteration_bounds = array<i64: 2, 1, 1>, scalar_prefetch = 0 : i64, scratch_operands = 2 : i64, tpu.core_type = #tpu.core_type<tc>, window_params = [{}, {transform_indices = @transform_1, window_bounds = array<i64: 1152, 128>}, {pipeline_mode = #tpu.pipeline_mode<synchronous>, transform_indices = @transform_2, window_bounds = array<i64: 1, 128>}, {pipeline_mode = #tpu.pipeline_mode<synchronous>, transform_indices = @transform_3, window_bounds = array<i64: 1, 128>}, {transform_indices = @transform_4, window_bounds = array<i64: 1, 16, 16, 128>}, {transform_indices = @transform_5, window_bounds = array<i64: 1, 1, 2, 128>}]} {
    %cst = arith.constant 0.000000e+00 : bf16
    %0 = vector.broadcast %cst : bf16 to vector<1x16x128xbf16>
    %c0 = arith.constant 0 : index
    %c0_0 = arith.constant 0 : index
    %c0_1 = arith.constant 0 : index
    %1 = vector.load %arg9[%c0, %c0_0, %c0_1] : memref<18x16x128xbf16, #tpu.memory_space<vmem>>, vector<1x16x128xbf16>
    tpu.vector_store %arg9[%c0, %c0_0, %c0_1], %0 {strides = array<i32>} : memref<18x16x128xbf16, #tpu.memory_space<vmem>>, vector<1x16x128xbf16>,
    %c17 = arith.constant 17 : index
    %c0_2 = arith.constant 0 : index
    %c0_3 = arith.constant 0 : index
    %2 = vector.load %arg9[%c17, %c0_2, %c0_3] : memref<18x16x128xbf16, #tpu.memory_space<vmem>>, vector<1x16x128xbf16>
    tpu.vector_store %arg9[%c17, %c0_2, %c0_3], %0 {strides = array<i32>} : memref<18x16x128xbf16, #tpu.memory_space<vmem>>, vector<1x16x128xbf16>,
    %c0_i32 = arith.constant 0 : i32
    %c0_i32_4 = arith.constant 0 : i32
    %c0_i32_5 = arith.constant 0 : i32
    %3 = tpu.memref_slice %arg3[%arg0, %c0_i32, %c0_i32_4, %c0_i32_5] : memref<2x16x16x128xbf16, #tpu.memory_space<any>> -> memref<1x16x16x128xbf16, #tpu.memory_space<any>>
    %4 = tpu.memref_squeeze %3 : memref<1x16x16x128xbf16, #tpu.memory_space<any>> -> memref<16x16x128xbf16, #tpu.memory_space<any>>
    %c1_i32 = arith.constant 1 : i32
    %c0_i32_6 = arith.constant 0 : i32
    %c0_i32_7 = arith.constant 0 : i32
    %5 = tpu.memref_slice %arg9[%c1_i32, %c0_i32_6, %c0_i32_7] : memref<18x16x128xbf16, #tpu.memory_space<vmem>> -> memref<16x16x128xbf16, #tpu.memory_space<vmem>>
    tpu.enqueue_dma source(%4 : memref<16x16x128xbf16, #tpu.memory_space<any>>) target(%5 : memref<16x16x128xbf16, #tpu.memory_space<vmem>>) target_semaphore(%arg10 : memref<!tpu.dma_semaphore, #tpu.memory_space<semaphore_mem>>)
    %c0_i32_8 = arith.constant 0 : i32
    %c0_i32_9 = arith.constant 0 : i32
    %c0_i32_10 = arith.constant 0 : i32
    %6 = tpu.memref_slice %arg3[%arg0, %c0_i32_8, %c0_i32_9, %c0_i32_10] : memref<2x16x16x128xbf16, #tpu.memory_space<any>> -> memref<1x16x16x128xbf16, #tpu.memory_space<any>>
    %7 = tpu.memref_squeeze %6 : memref<1x16x16x128xbf16, #tpu.memory_space<any>> -> memref<16x16x128xbf16, #tpu.memory_space<any>>
    %c1_i32_11 = arith.constant 1 : i32
    %c0_i32_12 = arith.constant 0 : i32
    %c0_i32_13 = arith.constant 0 : i32
    %8 = tpu.memref_slice %arg9[%c1_i32_11, %c0_i32_12, %c0_i32_13] : memref<18x16x128xbf16, #tpu.memory_space<vmem>> -> memref<16x16x128xbf16, #tpu.memory_space<vmem>>
    tpu.wait_dma2 semaphore(%arg10 : memref<!tpu.dma_semaphore, #tpu.memory_space<semaphore_mem>>) src(%7 : memref<16x16x128xbf16, #tpu.memory_space<any>>) dst(%8 : memref<16x16x128xbf16, #tpu.memory_space<vmem>>)
    %c0_14 = arith.constant 0 : index
    %c0_15 = arith.constant 0 : index
    %c0_16 = arith.constant 0 : index
    %9 = vector.load %arg9[%c0_14, %c0_15, %c0_16] : memref<18x16x128xbf16, #tpu.memory_space<vmem>>, vector<18x16x128xbf16>
    %c0_17 = arith.constant 0 : index
    %c0_18 = arith.constant 0 : index
    %10 = vector.load %arg5[%c0_17, %c0_18] : memref<1x128xf32, #tpu.memory_space<vmem>>, vector<1x128xf32>
    %11 = vector.shape_cast %10 : vector<1x128xf32> to vector<1x1x128xf32>
    %c0_19 = arith.constant 0 : index
    %c0_20 = arith.constant 0 : index
    %12 = vector.load %arg6[%c0_19, %c0_20] : memref<1x128xf32, #tpu.memory_space<vmem>>, vector<1x128xf32>
    %13 = vector.shape_cast %12 : vector<1x128xf32> to vector<1x1x128xf32>
    %14 = arith.extf %9 : vector<18x16x128xbf16> to vector<18x16x128xf32>
    %15 = vector.broadcast %11 : vector<1x1x128xf32> to vector<18x16x128xf32>
    %16 = arith.mulf %14, %15 : vector<18x16x128xf32>
    %17 = vector.broadcast %13 : vector<1x1x128xf32> to vector<18x16x128xf32>
    %18 = arith.addf %16, %17 : vector<18x16x128xf32>
    %cst_21 = arith.constant 0.000000e+00 : f32
    %19 = vector.broadcast %cst_21 : f32 to vector<18x16x128xf32>
    %20 = arith.maximumf %18, %19 : vector<18x16x128xf32>
    %21 = tpu.iota {dimensions = array<i32: 0>} : vector<18x16x128xi32>
    %c0_i32_22 = arith.constant 0 : i32
    %22 = arith.cmpi sgt, %arg1, %c0_i32_22 : i32
    %c1_i32_23 = arith.constant 1 : i32
    %23 = vector.broadcast %c1_i32_23 : i32 to vector<18x16x128xi32>
    %24 = arith.cmpi sge, %21, %23 : vector<18x16x128xi32>
    %25 = vector.broadcast %22 : i1 to vector<18x16x128xi1>
    %26 = arith.ori %25, %24 : vector<18x16x128xi1>
    %c0_i32_24 = arith.constant 0 : i32
    %27 = arith.cmpi slt, %arg1, %c0_i32_24 : i32
    %c16_i32 = arith.constant 16 : i32
    %28 = vector.broadcast %c16_i32 : i32 to vector<18x16x128xi32>
    %29 = arith.cmpi sle, %21, %28 : vector<18x16x128xi32>
    %30 = vector.broadcast %27 : i1 to vector<18x16x128xi1>
    %31 = arith.ori %30, %29 : vector<18x16x128xi1>
    %32 = arith.andi %26, %31 : vector<18x16x128xi1>
    %cst_25 = arith.constant 0.000000e+00 : f32
    %33 = vector.broadcast %cst_25 : f32 to vector<18x16x128xf32>
    %34 = arith.select %32, %20, %33 : vector<18x16x128xi1>, vector<18x16x128xf32>
    %35 = arith.truncf %34 : vector<18x16x128xf32> to vector<18x16x128xbf16>
    %cst_26 = arith.constant 0.000000e+00 : bf16
    %36 = vector.broadcast %cst_26 : bf16 to vector<18x1x128xbf16>
    %37 = tpu.concatenate %36, %35, %36 in 1 : vector<18x1x128xbf16>, vector<18x16x128xbf16>, vector<18x1x128xbf16> -> vector<18x18x128xbf16>
    %38 = vector.extract_strided_slice %37 {offsets = [0, 0, 0], sizes = [16, 16, 128], strides = [1, 1, 1]} : vector<18x18x128xbf16> to vector<16x16x128xbf16>
    %39 = vector.shape_cast %38 : vector<16x16x128xbf16> to vector<256x128xbf16>
    %c0_27 = arith.constant 0 : index
    %c0_28 = arith.constant 0 : index
    %40 = vector.load %arg4[%c0_27, %c0_28] : memref<1152x128xbf16, #tpu.memory_space<vmem>>, vector<128x128xbf16>
    %cst_29 = arith.constant dense<0.000000e+00> : vector<256x128xf32>
    %41 = tpu.matmul %39, %40, %cst_29 {dimension_numbers = #tpu.dot_dimension_numbers<[1], [0], [0], [1], [0, 0, 1, 1], [], []>} : vector<256x128xbf16>, vector<128x128xbf16>, vector<256x128xf32> -> vector<256x128xf32>
    %42 = vector.extract_strided_slice %37 {offsets = [0, 1, 0], sizes = [16, 16, 128], strides = [1, 1, 1]} : vector<18x18x128xbf16> to vector<16x16x128xbf16>
    %43 = vector.shape_cast %42 : vector<16x16x128xbf16> to vector<256x128xbf16>
    %c128 = arith.constant 128 : index
    %c0_30 = arith.constant 0 : index
    %44 = vector.load %arg4[%c128, %c0_30] : memref<1152x128xbf16, #tpu.memory_space<vmem>>, vector<128x128xbf16>
    %cst_31 = arith.constant dense<0.000000e+00> : vector<256x128xf32>
    %45 = tpu.matmul %43, %44, %cst_31 {dimension_numbers = #tpu.dot_dimension_numbers<[1], [0], [0], [1], [0, 0, 1, 1], [], []>} : vector<256x128xbf16>, vector<128x128xbf16>, vector<256x128xf32> -> vector<256x128xf32>
    %46 = arith.addf %41, %45 : vector<256x128xf32>
    %47 = vector.extract_strided_slice %37 {offsets = [0, 2, 0], sizes = [16, 16, 128], strides = [1, 1, 1]} : vector<18x18x128xbf16> to vector<16x16x128xbf16>
    %48 = vector.shape_cast %47 : vector<16x16x128xbf16> to vector<256x128xbf16>
    %c256 = arith.constant 256 : index
    %c0_32 = arith.constant 0 : index
    %49 = vector.load %arg4[%c256, %c0_32] : memref<1152x128xbf16, #tpu.memory_space<vmem>>, vector<128x128xbf16>
    %cst_33 = arith.constant dense<0.000000e+00> : vector<256x128xf32>
    %50 = tpu.matmul %48, %49, %cst_33 {dimension_numbers = #tpu.dot_dimension_numbers<[1], [0], [0], [1], [0, 0, 1, 1], [], []>} : vector<256x128xbf16>, vector<128x128xbf16>, vector<256x128xf32> -> vector<256x128xf32>
    %51 = arith.addf %46, %50 : vector<256x128xf32>
    %52 = vector.extract_strided_slice %37 {offsets = [1, 0, 0], sizes = [16, 16, 128], strides = [1, 1, 1]} : vector<18x18x128xbf16> to vector<16x16x128xbf16>
    %53 = vector.shape_cast %52 : vector<16x16x128xbf16> to vector<256x128xbf16>
    %c384 = arith.constant 384 : index
    %c0_34 = arith.constant 0 : index
    %54 = vector.load %arg4[%c384, %c0_34] : memref<1152x128xbf16, #tpu.memory_space<vmem>>, vector<128x128xbf16>
    %cst_35 = arith.constant dense<0.000000e+00> : vector<256x128xf32>
    %55 = tpu.matmul %53, %54, %cst_35 {dimension_numbers = #tpu.dot_dimension_numbers<[1], [0], [0], [1], [0, 0, 1, 1], [], []>} : vector<256x128xbf16>, vector<128x128xbf16>, vector<256x128xf32> -> vector<256x128xf32>
    %56 = arith.addf %51, %55 : vector<256x128xf32>
    %57 = vector.extract_strided_slice %37 {offsets = [1, 1, 0], sizes = [16, 16, 128], strides = [1, 1, 1]} : vector<18x18x128xbf16> to vector<16x16x128xbf16>
    %58 = vector.shape_cast %57 : vector<16x16x128xbf16> to vector<256x128xbf16>
    %c512 = arith.constant 512 : index
    %c0_36 = arith.constant 0 : index
    %59 = vector.load %arg4[%c512, %c0_36] : memref<1152x128xbf16, #tpu.memory_space<vmem>>, vector<128x128xbf16>
    %cst_37 = arith.constant dense<0.000000e+00> : vector<256x128xf32>
    %60 = tpu.matmul %58, %59, %cst_37 {dimension_numbers = #tpu.dot_dimension_numbers<[1], [0], [0], [1], [0, 0, 1, 1], [], []>} : vector<256x128xbf16>, vector<128x128xbf16>, vector<256x128xf32> -> vector<256x128xf32>
    %61 = arith.addf %56, %60 : vector<256x128xf32>
    %62 = vector.extract_strided_slice %37 {offsets = [1, 2, 0], sizes = [16, 16, 128], strides = [1, 1, 1]} : vector<18x18x128xbf16> to vector<16x16x128xbf16>
    %63 = vector.shape_cast %62 : vector<16x16x128xbf16> to vector<256x128xbf16>
    %c640 = arith.constant 640 : index
    %c0_38 = arith.constant 0 : index
    %64 = vector.load %arg4[%c640, %c0_38] : memref<1152x128xbf16, #tpu.memory_space<vmem>>, vector<128x128xbf16>
    %cst_39 = arith.constant dense<0.000000e+00> : vector<256x128xf32>
    %65 = tpu.matmul %63, %64, %cst_39 {dimension_numbers = #tpu.dot_dimension_numbers<[1], [0], [0], [1], [0, 0, 1, 1], [], []>} : vector<256x128xbf16>, vector<128x128xbf16>, vector<256x128xf32> -> vector<256x128xf32>
    %66 = arith.addf %61, %65 : vector<256x128xf32>
    %67 = vector.extract_strided_slice %37 {offsets = [2, 0, 0], sizes = [16, 16, 128], strides = [1, 1, 1]} : vector<18x18x128xbf16> to vector<16x16x128xbf16>
    %68 = vector.shape_cast %67 : vector<16x16x128xbf16> to vector<256x128xbf16>
    %c768 = arith.constant 768 : index
    %c0_40 = arith.constant 0 : index
    %69 = vector.load %arg4[%c768, %c0_40] : memref<1152x128xbf16, #tpu.memory_space<vmem>>, vector<128x128xbf16>
    %cst_41 = arith.constant dense<0.000000e+00> : vector<256x128xf32>
    %70 = tpu.matmul %68, %69, %cst_41 {dimension_numbers = #tpu.dot_dimension_numbers<[1], [0], [0], [1], [0, 0, 1, 1], [], []>} : vector<256x128xbf16>, vector<128x128xbf16>, vector<256x128xf32> -> vector<256x128xf32>
    %71 = arith.addf %66, %70 : vector<256x128xf32>
    %72 = vector.extract_strided_slice %37 {offsets = [2, 1, 0], sizes = [16, 16, 128], strides = [1, 1, 1]} : vector<18x18x128xbf16> to vector<16x16x128xbf16>
    %73 = vector.shape_cast %72 : vector<16x16x128xbf16> to vector<256x128xbf16>
    %c896 = arith.constant 896 : index
    %c0_42 = arith.constant 0 : index
    %74 = vector.load %arg4[%c896, %c0_42] : memref<1152x128xbf16, #tpu.memory_space<vmem>>, vector<128x128xbf16>
    %cst_43 = arith.constant dense<0.000000e+00> : vector<256x128xf32>
    %75 = tpu.matmul %73, %74, %cst_43 {dimension_numbers = #tpu.dot_dimension_numbers<[1], [0], [0], [1], [0, 0, 1, 1], [], []>} : vector<256x128xbf16>, vector<128x128xbf16>, vector<256x128xf32> -> vector<256x128xf32>
    %76 = arith.addf %71, %75 : vector<256x128xf32>
    %77 = vector.extract_strided_slice %37 {offsets = [2, 2, 0], sizes = [16, 16, 128], strides = [1, 1, 1]} : vector<18x18x128xbf16> to vector<16x16x128xbf16>
    %78 = vector.shape_cast %77 : vector<16x16x128xbf16> to vector<256x128xbf16>
    %c1024 = arith.constant 1024 : index
    %c0_44 = arith.constant 0 : index
    %79 = vector.load %arg4[%c1024, %c0_44] : memref<1152x128xbf16, #tpu.memory_space<vmem>>, vector<128x128xbf16>
    %cst_45 = arith.constant dense<0.000000e+00> : vector<256x128xf32>
    %80 = tpu.matmul %78, %79, %cst_45 {dimension_numbers = #tpu.dot_dimension_numbers<[1], [0], [0], [1], [0, 0, 1, 1], [], []>} : vector<256x128xbf16>, vector<128x128xbf16>, vector<256x128xf32> -> vector<256x128xf32>
    %81 = arith.addf %76, %80 : vector<256x128xf32>
    %82 = vector.shape_cast %81 : vector<256x128xf32> to vector<1x16x16x128xf32>
    %83 = arith.truncf %82 : vector<1x16x16x128xf32> to vector<1x16x16x128xbf16>
    %c0_46 = arith.constant 0 : index
    %c0_47 = arith.constant 0 : index
    %c0_48 = arith.constant 0 : index
    %c0_49 = arith.constant 0 : index
    %84 = vector.load %arg7[%c0_46, %c0_47, %c0_48, %c0_49] : memref<1x16x16x128xbf16, #tpu.memory_space<vmem>>, vector<1x16x16x128xbf16>
    tpu.vector_store %arg7[%c0_46, %c0_47, %c0_48, %c0_49], %83 {strides = array<i32>} : memref<1x16x16x128xbf16, #tpu.memory_space<vmem>>, vector<1x16x16x128xbf16>,
    %cst_50 = arith.constant dense<0.000000e+00> : vector<128xf32>
    %85 = vector.multi_reduction <add>, %81, %cst_50 [0] : vector<256x128xf32> to vector<128xf32>
    %86 = vector.shape_cast %85 : vector<128xf32> to vector<1x128xf32>
    %cst_51 = arith.constant 3.906250e-03 : f32
    %87 = vector.broadcast %cst_51 : f32 to vector<1x128xf32>
    %88 = arith.mulf %86, %87 : vector<1x128xf32>
    %89 = vector.broadcast %88 : vector<1x128xf32> to vector<256x128xf32>
    %90 = arith.subf %81, %89 : vector<256x128xf32>
    %91 = arith.mulf %90, %90 : vector<256x128xf32>
    %cst_52 = arith.constant dense<0.000000e+00> : vector<128xf32>
    %92 = vector.multi_reduction <add>, %91, %cst_52 [0] : vector<256x128xf32> to vector<128xf32>
    %93 = vector.shape_cast %92 : vector<128xf32> to vector<1x128xf32>
    %94 = tpu.concatenate %86, %93 in 0 : vector<1x128xf32>, vector<1x128xf32> -> vector<2x128xf32>
    %c0_53 = arith.constant 0 : index
    %c0_54 = arith.constant 0 : index
    %c0_55 = arith.constant 0 : index
    %c0_56 = arith.constant 0 : index
    %95 = vector.load %arg8[%c0_53, %c0_54, %c0_55, %c0_56] : memref<1x1x2x128xf32, #tpu.memory_space<vmem>>, vector<1x1x2x128xf32>
    %96 = vector.shape_cast %95 : vector<1x1x2x128xf32> to vector<2x128xf32>
    %97 = vector.shape_cast %94 : vector<2x128xf32> to vector<1x1x2x128xf32>
    tpu.vector_store %arg8[%c0_53, %c0_54, %c0_55, %c0_56], %97 {strides = array<i32>} : memref<1x1x2x128xf32, #tpu.memory_space<vmem>>, vector<1x1x2x128xf32>,
    return
  }
  func.func @transform_1(%arg0: i32, %arg1: i32, %arg2: i32) -> (i32, i32) {
    %c0_i32 = arith.constant 0 : i32
    %c0_i32_0 = arith.constant 0 : i32
    return %c0_i32, %arg2 : i32, i32
  }
  func.func @transform_2(%arg0: i32, %arg1: i32, %arg2: i32) -> (i32, i32) {
    %c0_i32 = arith.constant 0 : i32
    %c0_i32_0 = arith.constant 0 : i32
    %c0_i32_1 = arith.constant 0 : i32
    return %c0_i32, %c0_i32_0 : i32, i32
  }
  func.func @transform_3(%arg0: i32, %arg1: i32, %arg2: i32) -> (i32, i32) {
    %c0_i32 = arith.constant 0 : i32
    %c0_i32_0 = arith.constant 0 : i32
    %c0_i32_1 = arith.constant 0 : i32
    return %c0_i32, %c0_i32_0 : i32, i32
  }
  func.func @transform_4(%arg0: i32, %arg1: i32, %arg2: i32) -> (i32, i32, i32, i32) {
    %c0_i32 = arith.constant 0 : i32
    %c0_i32_0 = arith.constant 0 : i32
    return %arg0, %arg1, %c0_i32, %arg2 : i32, i32, i32, i32
  }
  func.func @transform_5(%arg0: i32, %arg1: i32, %arg2: i32) -> (i32, i32, i32, i32) {
    %c0_i32 = arith.constant 0 : i32
    %c0_i32_0 = arith.constant 0 : i32
    return %arg0, %arg1, %c0_i32, %arg2 : i32, i32, i32, i32
  }
}

module attributes {stable_mosaic.version = 11 : i64} {
  func.func @_bn_relu_kernel(%arg0: i32, %arg1: i32, %arg2: memref<1x16x16x128xbf16, #tpu.memory_space<vmem>>, %arg3: memref<1x128xf32, #tpu.memory_space<vmem>>, %arg4: memref<1x128xf32, #tpu.memory_space<vmem>>, %arg5: memref<1x16x16x128xf32, #tpu.memory_space<vmem>>) attributes {dimension_semantics = [#tpu.dimension_semantics<parallel>, #tpu.dimension_semantics<parallel>], iteration_bounds = array<i64: 2, 1>, scalar_prefetch = 0 : i64, scratch_operands = 0 : i64, tpu.core_type = #tpu.core_type<tc>, window_params = [{transform_indices = @transform_0, window_bounds = array<i64: 1, 16, 16, 128>}, {pipeline_mode = #tpu.pipeline_mode<synchronous>, transform_indices = @transform_1, window_bounds = array<i64: 1, 128>}, {pipeline_mode = #tpu.pipeline_mode<synchronous>, transform_indices = @transform_2, window_bounds = array<i64: 1, 128>}, {transform_indices = @transform_3, window_bounds = array<i64: 1, 16, 16, 128>}]} {
    %c0 = arith.constant 0 : index
    %c0_0 = arith.constant 0 : index
    %0 = vector.load %arg3[%c0, %c0_0] : memref<1x128xf32, #tpu.memory_space<vmem>>, vector<1x128xf32>
    %1 = vector.shape_cast %0 : vector<1x128xf32> to vector<1x1x1x128xf32>
    %c0_1 = arith.constant 0 : index
    %c0_2 = arith.constant 0 : index
    %2 = vector.load %arg4[%c0_1, %c0_2] : memref<1x128xf32, #tpu.memory_space<vmem>>, vector<1x128xf32>
    %3 = vector.shape_cast %2 : vector<1x128xf32> to vector<1x1x1x128xf32>
    %c0_3 = arith.constant 0 : index
    %c0_4 = arith.constant 0 : index
    %c0_5 = arith.constant 0 : index
    %c0_6 = arith.constant 0 : index
    %4 = vector.load %arg2[%c0_3, %c0_4, %c0_5, %c0_6] : memref<1x16x16x128xbf16, #tpu.memory_space<vmem>>, vector<1x16x16x128xbf16>
    %5 = arith.extf %4 : vector<1x16x16x128xbf16> to vector<1x16x16x128xf32>
    %6 = vector.broadcast %1 : vector<1x1x1x128xf32> to vector<1x16x16x128xf32>
    %7 = arith.mulf %5, %6 : vector<1x16x16x128xf32>
    %8 = vector.broadcast %3 : vector<1x1x1x128xf32> to vector<1x16x16x128xf32>
    %9 = arith.addf %7, %8 : vector<1x16x16x128xf32>
    %cst = arith.constant 0.000000e+00 : f32
    %10 = vector.broadcast %cst : f32 to vector<1x16x16x128xf32>
    %11 = arith.maximumf %9, %10 : vector<1x16x16x128xf32>
    %c0_7 = arith.constant 0 : index
    %c0_8 = arith.constant 0 : index
    %c0_9 = arith.constant 0 : index
    %c0_10 = arith.constant 0 : index
    %12 = vector.load %arg5[%c0_7, %c0_8, %c0_9, %c0_10] : memref<1x16x16x128xf32, #tpu.memory_space<vmem>>, vector<1x16x16x128xf32>
    tpu.vector_store %arg5[%c0_7, %c0_8, %c0_9, %c0_10], %11 {strides = array<i32>} : memref<1x16x16x128xf32, #tpu.memory_space<vmem>>, vector<1x16x16x128xf32>,
    return
  }
  func.func @transform_0(%arg0: i32, %arg1: i32) -> (i32, i32, i32, i32) {
    %c0_i32 = arith.constant 0 : i32
    %c0_i32_0 = arith.constant 0 : i32
    %c0_i32_1 = arith.constant 0 : i32
    return %arg0, %arg1, %c0_i32, %c0_i32_0 : i32, i32, i32, i32
  }
  func.func @transform_1(%arg0: i32, %arg1: i32) -> (i32, i32) {
    %c0_i32 = arith.constant 0 : i32
    %c0_i32_0 = arith.constant 0 : i32
    %c0_i32_1 = arith.constant 0 : i32
    return %c0_i32, %c0_i32_0 : i32, i32
  }
  func.func @transform_2(%arg0: i32, %arg1: i32) -> (i32, i32) {
    %c0_i32 = arith.constant 0 : i32
    %c0_i32_0 = arith.constant 0 : i32
    %c0_i32_1 = arith.constant 0 : i32
    return %c0_i32, %c0_i32_0 : i32, i32
  }
  func.func @transform_3(%arg0: i32, %arg1: i32) -> (i32, i32, i32, i32) {
    %c0_i32 = arith.constant 0 : i32
    %c0_i32_0 = arith.constant 0 : i32
    %c0_i32_1 = arith.constant 0 : i32
    return %arg0, %arg1, %c0_i32, %c0_i32_0 : i32, i32, i32, i32
  }
}

</mosaic_0001>

<llo_original>
// kernel: double_conv.5
$region0: #{double_conv.5}
  #allocation0 [shape = 'u32[]', space=smem, size = 0x4, offset = 0x4, fixed_abs, tag = 'smem constant byte address 0x4 - core index']
  #allocation1 [shape = 'u32[144,128]{1,0:T(1,128)}', space=vmem, size = 0x12000, scoped, tag = 'internal scratch']
  %s0 = inlined_call_operand.vmem [shape: bf16[2,16,16,128], index: 0, kind: input, shape index: {}]
  %s1 = inlined_call_operand.vmem [shape: f32[1,128], index: 1, kind: input, shape index: {}]
  %s2 = inlined_call_operand.vmem [shape: f32[1,128], index: 2, kind: input, shape index: {}]
  %s3 = inlined_call_operand.vmem [shape: f32[2,16,16,128], index: 3, kind: output, shape index: {}]
  %s4 = sld [smem:[#allocation0]]
  $region45: #{double_conv.5} parent=0
    _
  %s6 = ssub.s32 1, %s4
  %s7 = scalar_select 0, %s6, %s4
  loop: start=0, step=1, limit=4
  $region2: #{double_conv.5} parent=0 // loop_pre_header
    _
  $region3: #{double_conv.5} parent=0 // loop_header
    %s9 = sphi 0, %s13
    %p10 = scmp.ge.s32.totalorder %s9, 4
    %s16 = sphi 0, %s28
    %s17 = sphi 0, %s24
    %s18 = sphi 0, %s16
    %s19 = sphi 0, %s17
    %s20 = sphi 0, %s18
    %s21 = sphi 0, %s19
    %s33 = sphi 0, %s35
    %s36 = sphi 0, %s33
    %s37 = sphi 0, %s36
    %s53 = sphi 0, %s37
    %s57 = sphi 0, %s57
    %s59 = sphi 0, %s57
    %s60 = sphi 0, %s59
    %s74 = sphi 0, %s60
    %s78 = sphi 0, %s78
    %s80 = sphi 0, %s78
    %s81 = sphi 0, %s80
    %s95 = sphi 0, %s81
    %s103 = sphi 0, %s105
    %s106 = sphi 0, %s103
    %s107 = sphi 0, %s106
    %s123 = sphi 0, %s107
  $region4: #{double_conv.5} parent=0 // loop_header_branch
    %12 = sbr.rel (%p10) target = $region8
  $region5: #{double_conv.5} parent=0 // loop_body
    %s14 = ssub.s32 %s9, 1
    %s15 = ssub.s32 %s9, 2
    %s22 = sadd.s32 1, %s17
    %p23 = scmp.ge.s32.totalorder %s22, 1
    %s24 = scalar_select %p23, 0, %s22
    %s25 = sadd.s32 1, %s16
    %s26 = scalar_select %p23, %s25, %s16
    %p27 = scmp.ge.s32.totalorder %s26, 2
    %s28 = scalar_select %p27, 0, %s26
    %s29 = ssub.s32 %s16, %s28
    %s30 = ssub.s32 %s17, %s24
    %s31 = sor.u32 %s29, %s30
    %p32 = scmp.eq.s32.totalorder %s31, 0
    %s34 = sadd.s32 %s33, 1
    %s35 = scalar_select %p32, %s33, %s34
    %p38 = pneg %p32
    %p39 = scmp.eq.s32.totalorder %s9, 1
    %p40 = por %p38, %p39
    %p41 = scmp.ne.s32.totalorder %s33, %s36
    %p42 = scmp.eq.s32.totalorder %s9, 0
    %p43 = por %p41, %p42
    %p44 = scmp.ne.s32.totalorder %s33, %s36
    %p45 = scmp.eq.s32.totalorder %s14, 1
    %p46 = por %p44, %p45
    %p47 = scmp.ne.s32.totalorder %s36, %s37
    %p48 = scmp.eq.s32.totalorder %s14, 0
    %p49 = por %p47, %p48
    %p50 = scmp.ne.s32.totalorder %s36, %s37
    %p51 = scmp.eq.s32.totalorder %s15, 1
    %p52 = por %p50, %p51
    %p54 = scmp.ne.s32.totalorder %s37, %s53
    %p55 = scmp.eq.s32.totalorder %s15, 0
    %p56 = por %p54, %p55
    %s58 = sadd.s32 %s57, 1
    %p61 = scmp.eq.s32.totalorder %s9, 1
    %p62 = scmp.ne.s32.totalorder %s57, %s59
    %p63 = scmp.eq.s32.totalorder %s9, 0
    %p64 = por %p62, %p63
    %p65 = scmp.ne.s32.totalorder %s57, %s59
    %p66 = scmp.eq.s32.totalorder %s14, 1
    %p67 = por %p65, %p66
    %p68 = scmp.ne.s32.totalorder %s59, %s60
    %p69 = scmp.eq.s32.totalorder %s14, 0
    %p70 = por %p68, %p69
    %p71 = scmp.ne.s32.totalorder %s59, %s60
    %p72 = scmp.eq.s32.totalorder %s15, 1
    %p73 = por %p71, %p72
    %p75 = scmp.ne.s32.totalorder %s60, %s74
    %p76 = scmp.eq.s32.totalorder %s15, 0
    %p77 = por %p75, %p76
    %s79 = sadd.s32 %s78, 1
    %p82 = scmp.eq.s32.totalorder %s9, 1
    %p83 = scmp.ne.s32.totalorder %s78, %s80
    %p84 = scmp.eq.s32.totalorder %s9, 0
    %p85 = por %p83, %p84
    %p86 = scmp.ne.s32.totalorder %s78, %s80
    %p87 = scmp.eq.s32.totalorder %s14, 1
    %p88 = por %p86, %p87
    %p89 = scmp.ne.s32.totalorder %s80, %s81
    %p90 = scmp.eq.s32.totalorder %s14, 0
    %p91 = por %p89, %p90
    %p92 = scmp.ne.s32.totalorder %s80, %s81
    %p93 = scmp.eq.s32.totalorder %s15, 1
    %p94 = por %p92, %p93
    %p96 = scmp.ne.s32.totalorder %s81, %s95
    %p97 = scmp.eq.s32.totalorder %s15, 0
    %p98 = por %p96, %p97
    %s99 = ssub.s32 %s16, %s28
    %s100 = ssub.s32 %s17, %s24
    %s101 = sor.u32 %s99, %s100
    %p102 = scmp.eq.s32.totalorder %s101, 0
    %s104 = sadd.s32 %s103, 1
    %s105 = scalar_select %p102, %s103, %s104
    %p108 = pneg %p102
    %p109 = scmp.eq.s32.totalorder %s9, 1
    %p110 = por %p108, %p109
    %p111 = scmp.ne.s32.totalorder %s103, %s106
    %p112 = scmp.eq.s32.totalorder %s9, 0
    %p113 = por %p111, %p112
    %p114 = scmp.ne.s32.totalorder %s103, %s106
    %p115 = scmp.eq.s32.totalorder %s14, 1
    %p116 = por %p114, %p115
    %p117 = scmp.ne.s32.totalorder %s106, %s107
    %p118 = scmp.eq.s32.totalorder %s14, 0
    %p119 = por %p117, %p118
    %p120 = scmp.ne.s32.totalorder %s106, %s107
    %p121 = scmp.eq.s32.totalorder %s15, 1
    %p122 = por %p120, %p121
    %p124 = scmp.ne.s32.totalorder %s107, %s123
    %p125 = scmp.eq.s32.totalorder %s15, 0
    %p126 = por %p124, %p125
    %p127 = scmp.le.s32.totalorder 1, %s9
    %p128 = scmp.lt.s32.totalorder %s9, 3
    %p129 = pnand %p127, %p128
    %p130 = pneg %p129
    // Predicated region
    $region9: #{double_conv.5} parent=5 // pred_check
      _
    $region10: #{double_conv.5} parent=5 // pred_check_branch
      %132 = sbr.rel (%p129) target = $region12
    $region11: #{double_conv.5} parent=5 // pred_region
      %s133 = ssub.s32 %s9, 1
      // Predicated region
      $region13: #{double_conv.5} parent=11 // pred_check
        %p134 = pneg %p70
      $region14: #{double_conv.5} parent=11 // pred_check_branch
        %136 = sbr.rel (%p134) target = $region16
      $region15: #{double_conv.5} parent=11 // pred_region
        _
      $region16: #{double_conv.5} parent=11 // pred_fallthru
        _
      // Predicated region
      $region17: #{double_conv.5} parent=11 // pred_check
        %p137 = pneg %p91
      $region18: #{double_conv.5} parent=11 // pred_check_branch
        %139 = sbr.rel (%p137) target = $region20
      $region19: #{double_conv.5} parent=11 // pred_region
        _
      $region20: #{double_conv.5} parent=11 // pred_fallthru
        _
    $region12: #{double_conv.5} parent=5 // pred_fallthru
      _
    %p140 = scmp.lt.s32.totalorder %s9, 2
    // Predicated region
    $region21: #{double_conv.5} parent=5 // pred_check
      %p141 = pneg %p140
    $region22: #{double_conv.5} parent=5 // pred_check_branch
      %143 = sbr.rel (%p141) target = $region24
    $region23: #{double_conv.5} parent=5 // pred_region
      // Predicated region
      $region25: #{double_conv.5} parent=23 // pred_check
        %p144 = pneg %p43
      $region26: #{double_conv.5} parent=23 // pred_check_branch
        %146 = sbr.rel (%p144) target = $region28
      $region27: #{double_conv.5} parent=23 // pred_region
        %s147 = smul.u32 16, %s17
        %p148 = scmp.lt.s32.totalorder %s16, 1
        %s149 = scalar_select %p148, %s16, 1
        %p150 = scmp.lt.s32.totalorder %s147, 15
        %s151 = scalar_select %p150, %s147, 15
        %s152 = smul.addr %s151, 2
        %s153 = smul.addr %s149, 32
        %s154 = sadd.s32 %s152, %s153
        %s155 = smul.addr %s154, 4
        %s156 = scalar_lea.vmem %s0, %s155
        %s157 = smul.u32 16, %s17
      $region28: #{double_conv.5} parent=23 // pred_fallthru
        _
    $region24: #{double_conv.5} parent=5 // pred_fallthru
      _
    %p158 = scmp.le.s32.totalorder 1, %s9
    %p159 = scmp.lt.s32.totalorder %s9, 3
    %p160 = pnand %p158, %p159
    %p161 = pneg %p160
    // Predicated region
    $region29: #{double_conv.5} parent=5 // pred_check
      _
    $region30: #{double_conv.5} parent=5 // pred_check_branch
      %163 = sbr.rel (%p160) target = $region32
    $region31: #{double_conv.5} parent=5 // pred_region
      %s164 = ssub.s32 %s9, 1
      %s165 = smul.u32 16, %s19
      %p166 = scmp.lt.s32.totalorder %s18, 1
      %s167 = scalar_select %p166, %s18, 1
      %p168 = scmp.lt.s32.totalorder %s165, 15
      %s169 = scalar_select %p168, %s165, 15
      %s170 = smul.addr %s169, 2
      %s171 = smul.addr %s167, 32
      %s172 = sadd.s32 %s170, %s171
      %s173 = smul.addr %s172, 4
      %s174 = scalar_lea.vmem %s0, %s173
      %p175 = pneg %p49
      %p176 = pneg %p46
      %p177 = pneg %p70
      %p178 = pneg %p67
      %p179 = pneg %p91
      %p180 = pneg %p88
      %p181 = pneg %p119
      %p182 = pneg %p116
      %s183 = smul.u32 16, %s19
      %p184 = scmp.lt.s32.totalorder %s18, 1
      %s185 = scalar_select %p184, %s18, 1
      %p186 = scmp.lt.s32.totalorder %s183, 15
      %s187 = scalar_select %p186, %s183, 15
      %s188 = smul.addr %s187, 2
      %s189 = smul.addr %s185, 32
      %s190 = sadd.s32 %s188, %s189
      %s191 = smul.addr %s190, 8
      %s192 = scalar_lea.vmem %s3, %s191
      %s193 = smul.u32 16, %s19
      %p194 = scmp.lt.s32.totalorder %s18, 1
      %s195 = scalar_select %p194, %s18, 1
      %p196 = scmp.lt.s32.totalorder %s193, 15
      %s197 = scalar_select %p196, %s193, 15
      %s198 = smul.addr %s197, 2
      %s199 = smul.addr %s195, 32
      %s200 = sadd.s32 %s198, %s199
      %s201 = smul.addr %s200, 4
      %s202 = scalar_lea.vmem %s0, %s201
      %s203 = smul.u32 16, %s19
      %s204 = smul.u32 16, %s19
      %p205 = scmp.lt.s32.totalorder %s18, 1
      %s206 = scalar_select %p205, %s18, 1
      %p207 = scmp.lt.s32.totalorder %s204, 15
      %s208 = scalar_select %p207, %s204, 15
      %s209 = smul.addr %s208, 2
      %s210 = smul.addr %s206, 32
      %s211 = sadd.s32 %s209, %s210
      %s212 = smul.addr %s211, 8
      %s213 = scalar_lea.vmem %s3, %s212
      %s214 = smul.u32 16, %s19
      %v215 = vld [vmem:[%s1] sm:$0x1]
      %v216 = vld [vmem:[%s2] sm:$0x1]
      %v217 = vld [vmem:[%s202] sm:$0xf]
      %v218 = vld [vmem:[%s202 + $0x4] sm:$0xf]
      %v219 = vld [vmem:[%s202 + $0x8] sm:$0xf]
      %v220 = vld [vmem:[%s202 + $0xc] sm:$0xf]
      %v221 = vld [vmem:[%s202 + $0x10] sm:$0xf]
      %v222 = vld [vmem:[%s202 + $0x14] sm:$0xf]
      %v223 = vld [vmem:[%s202 + $0x18] sm:$0xf]
      %v224 = vld [vmem:[%s202 + $0x1c] sm:$0xf]
      %v225 = vld [vmem:[%s202 + $0x20] sm:$0xf]
      %v226 = vld [vmem:[%s202 + $0x24] sm:$0xf]
      %v227 = vld [vmem:[%s202 + $0x28] sm:$0xf]
      %v228 = vld [vmem:[%s202 + $0x2c] sm:$0xf]
      %v229 = vld [vmem:[%s202 + $0x30] sm:$0xf]
      %v230 = vld [vmem:[%s202 + $0x34] sm:$0xf]
      %v231 = vld [vmem:[%s202 + $0x38] sm:$0xf]
      %v232 = vld [vmem:[%s202 + $0x3c] sm:$0xf]
      %v233 = vld [vmem:[%s202 + $0x40] sm:$0xf]
      %v234 = vld [vmem:[%s202 + $0x44] sm:$0xf]
      %v235 = vld [vmem:[%s202 + $0x48] sm:$0xf]
      %v236 = vld [vmem:[%s202 + $0x4c] sm:$0xf]
      %v237 = vld [vmem:[%s202 + $0x50] sm:$0xf]
      %v238 = vld [vmem:[%s202 + $0x54] sm:$0xf]
      %v239 = vld [vmem:[%s202 + $0x58] sm:$0xf]
      %v240 = vld [vmem:[%s202 + $0x5c] sm:$0xf]
      %v241 = vld [vmem:[%s202 + $0x60] sm:$0xf]
      %v242 = vld [vmem:[%s202 + $0x64] sm:$0xf]
      %v243 = vld [vmem:[%s202 + $0x68] sm:$0xf]
      %v244 = vld [vmem:[%s202 + $0x6c] sm:$0xf]
      %v245 = vld [vmem:[%s202 + $0x70] sm:$0xf]
      %v246 = vld [vmem:[%s202 + $0x74] sm:$0xf]
      %v247 = vld [vmem:[%s202 + $0x78] sm:$0xf]
      %v248 = vld [vmem:[%s202 + $0x7c] sm:$0xf]
      %v249 = vunpack.c.l.bf16 %v217
      %v250 = vunpack.c.l.bf16 %v218
      %v251 = vunpack.c.l.bf16 %v219
      %v252 = vunpack.c.l.bf16 %v220
      %v253 = vunpack.c.l.bf16 %v221
      %v254 = vunpack.c.l.bf16 %v222
      %v255 = vunpack.c.l.bf16 %v223
      %v256 = vunpack.c.l.bf16 %v224
      %v257 = vunpack.c.l.bf16 %v225
      %v258 = vunpack.c.l.bf16 %v226
      %v259 = vunpack.c.l.bf16 %v227
      %v260 = vunpack.c.l.bf16 %v228
      %v261 = vunpack.c.l.bf16 %v229
      %v262 = vunpack.c.l.bf16 %v230
      %v263 = vunpack.c.l.bf16 %v231
      %v264 = vunpack.c.l.bf16 %v232
      %v265 = vunpack.c.l.bf16 %v233
      %v266 = vunpack.c.l.bf16 %v234
      %v267 = vunpack.c.l.bf16 %v235
      %v268 = vunpack.c.l.bf16 %v236
      %v269 = vunpack.c.l.bf16 %v237
      %v270 = vunpack.c.l.bf16 %v238
      %v271 = vunpack.c.l.bf16 %v239
      %v272 = vunpack.c.l.bf16 %v240
      %v273 = vunpack.c.l.bf16 %v241
      %v274 = vunpack.c.l.bf16 %v242
      %v275 = vunpack.c.l.bf16 %v243
      %v276 = vunpack.c.l.bf16 %v244
      %v277 = vunpack.c.l.bf16 %v245
      %v278 = vunpack.c.l.bf16 %v246
      %v279 = vunpack.c.l.bf16 %v247
      %v280 = vunpack.c.l.bf16 %v248
      %v282 = vlaneseq
      %v283 = vshrl.u32 %v282, 7
      %v284 = vsub.s32 0, %v283
      %v285 = vrot.slane %v215, %v284
      %v287 = vmul.f32 %v249, %v285
      %v288 = vmul.f32 %v250, %v285
      %v289 = vmul.f32 %v251, %v285
      %v290 = vmul.f32 %v252, %v285
      %v291 = vmul.f32 %v253, %v285
      %v292 = vmul.f32 %v254, %v285
      %v293 = vmul.f32 %v255, %v285
      %v294 = vmul.f32 %v256, %v285
      %v295 = vmul.f32 %v257, %v285
      %v296 = vmul.f32 %v258, %v285
      %v297 = vmul.f32 %v259, %v285
      %v298 = vmul.f32 %v260, %v285
      %v299 = vmul.f32 %v261, %v285
      %v300 = vmul.f32 %v262, %v285
      %v301 = vmul.f32 %v263, %v285
      %v302 = vmul.f32 %v264, %v285
      %v303 = vmul.f32 %v265, %v285
      %v304 = vmul.f32 %v266, %v285
      %v305 = vmul.f32 %v267, %v285
      %v306 = vmul.f32 %v268, %v285
      %v307 = vmul.f32 %v269, %v285
      %v308 = vmul.f32 %v270, %v285
      %v309 = vmul.f32 %v271, %v285
      %v310 = vmul.f32 %v272, %v285
      %v311 = vmul.f32 %v273, %v285
      %v312 = vmul.f32 %v274, %v285
      %v313 = vmul.f32 %v275, %v285
      %v314 = vmul.f32 %v276, %v285
      %v315 = vmul.f32 %v277, %v285
      %v316 = vmul.f32 %v278, %v285
      %v317 = vmul.f32 %v279, %v285
      %v318 = vmul.f32 %v280, %v285
      %v320 = vlaneseq
      %v321 = vshrl.u32 %v320, 7
      %v322 = vsub.s32 0, %v321
      %v323 = vrot.slane %v216, %v322
      %v325 = vadd.f32 %v287, %v323
      %v326 = vadd.f32 %v288, %v323
      %v327 = vadd.f32 %v289, %v323
      %v328 = vadd.f32 %v290, %v323
      %v329 = vadd.f32 %v291, %v323
      %v330 = vadd.f32 %v292, %v323
      %v331 = vadd.f32 %v293, %v323
      %v332 = vadd.f32 %v294, %v323
      %v333 = vadd.f32 %v295, %v323
      %v334 = vadd.f32 %v296, %v323
      %v335 = vadd.f32 %v297, %v323
      %v336 = vadd.f32 %v298, %v323
      %v337 = vadd.f32 %v299, %v323
      %v338 = vadd.f32 %v300, %v323
      %v339 = vadd.f32 %v301, %v323
      %v340 = vadd.f32 %v302, %v323
      %v341 = vadd.f32 %v303, %v323
      %v342 = vadd.f32 %v304, %v323
      %v343 = vadd.f32 %v305, %v323
      %v344 = vadd.f32 %v306, %v323
      %v345 = vadd.f32 %v307, %v323
      %v346 = vadd.f32 %v308, %v323
      %v347 = vadd.f32 %v309, %v323
      %v348 = vadd.f32 %v310, %v323
      %v349 = vadd.f32 %v311, %v323
      %v350 = vadd.f32 %v312, %v323
      %v351 = vadd.f32 %v313, %v323
      %v352 = vadd.f32 %v314, %v323
      %v353 = vadd.f32 %v315, %v323
      %v354 = vadd.f32 %v316, %v323
      %v355 = vadd.f32 %v317, %v323
      %v356 = vadd.f32 %v318, %v323
      %v357 = vmax.f32 %v325, 0.0
      %v358 = vmax.f32 %v326, 0.0
      %v359 = vmax.f32 %v327, 0.0
      %v360 = vmax.f32 %v328, 0.0
      %v361 = vmax.f32 %v329, 0.0
      %v362 = vmax.f32 %v330, 0.0
      %v363 = vmax.f32 %v331, 0.0
      %v364 = vmax.f32 %v332, 0.0
      %v365 = vmax.f32 %v333, 0.0
      %v366 = vmax.f32 %v334, 0.0
      %v367 = vmax.f32 %v335, 0.0
      %v368 = vmax.f32 %v336, 0.0
      %v369 = vmax.f32 %v337, 0.0
      %v370 = vmax.f32 %v338, 0.0
      %v371 = vmax.f32 %v339, 0.0
      %v372 = vmax.f32 %v340, 0.0
      %v373 = vmax.f32 %v341, 0.0
      %v374 = vmax.f32 %v342, 0.0
      %v375 = vmax.f32 %v343, 0.0
      %v376 = vmax.f32 %v344, 0.0
      %v377 = vmax.f32 %v345, 0.0
      %v378 = vmax.f32 %v346, 0.0
      %v379 = vmax.f32 %v347, 0.0
      %v380 = vmax.f32 %v348, 0.0
      %v381 = vmax.f32 %v349, 0.0
      %v382 = vmax.f32 %v350, 0.0
      %v383 = vmax.f32 %v351, 0.0
      %v384 = vmax.f32 %v352, 0.0
      %v385 = vmax.f32 %v353, 0.0
      %v386 = vmax.f32 %v354, 0.0
      %v387 = vmax.f32 %v355, 0.0
      %v388 = vmax.f32 %v356, 0.0
      %389 = vst [vmem:[%s213] sm:$0xff] %v357
      %390 = vst [vmem:[%s213 + $0x8] sm:$0xff] %v358
      %391 = vst [vmem:[%s213 + $0x10] sm:$0xff] %v359
      %392 = vst [vmem:[%s213 + $0x18] sm:$0xff] %v360
      %393 = vst [vmem:[%s213 + $0x20] sm:$0xff] %v361
      %394 = vst [vmem:[%s213 + $0x28] sm:$0xff] %v362
      %395 = vst [vmem:[%s213 + $0x30] sm:$0xff] %v363
      %396 = vst [vmem:[%s213 + $0x38] sm:$0xff] %v364
      %397 = vst [vmem:[%s213 + $0x40] sm:$0xff] %v365
      %398 = vst [vmem:[%s213 + $0x48] sm:$0xff] %v366
      %399 = vst [vmem:[%s213 + $0x50] sm:$0xff] %v367
      %400 = vst [vmem:[%s213 + $0x58] sm:$0xff] %v368
      %401 = vst [vmem:[%s213 + $0x60] sm:$0xff] %v369
      %402 = vst [vmem:[%s213 + $0x68] sm:$0xff] %v370
      %403 = vst [vmem:[%s213 + $0x70] sm:$0xff] %v371
      %404 = vst [vmem:[%s213 + $0x78] sm:$0xff] %v372
      %405 = vst [vmem:[%s213 + $0x80] sm:$0xff] %v373
      %406 = vst [vmem:[%s213 + $0x88] sm:$0xff] %v374
      %407 = vst [vmem:[%s213 + $0x90] sm:$0xff] %v375
      %408 = vst [vmem:[%s213 + $0x98] sm:$0xff] %v376
      %409 = vst [vmem:[%s213 + $0xa0] sm:$0xff] %v377
      %410 = vst [vmem:[%s213 + $0xa8] sm:$0xff] %v378
      %411 = vst [vmem:[%s213 + $0xb0] sm:$0xff] %v379
      %412 = vst [vmem:[%s213 + $0xb8] sm:$0xff] %v380
      %413 = vst [vmem:[%s213 + $0xc0] sm:$0xff] %v381
      %414 = vst [vmem:[%s213 + $0xc8] sm:$0xff] %v382
      %415 = vst [vmem:[%s213 + $0xd0] sm:$0xff] %v383
      %416 = vst [vmem:[%s213 + $0xd8] sm:$0xff] %v384
      %417 = vst [vmem:[%s213 + $0xe0] sm:$0xff] %v385
      %418 = vst [vmem:[%s213 + $0xe8] sm:$0xff] %v386
      %419 = vst [vmem:[%s213 + $0xf0] sm:$0xff] %v387
      %420 = vst [vmem:[%s213 + $0xf8] sm:$0xff] %v388
      %s421 = smul.u32 16, %s19
      %p422 = scmp.lt.s32.totalorder %s18, 1
      %s423 = scalar_select %p422, %s18, 1
      %p424 = scmp.lt.s32.totalorder %s421, 15
      %s425 = scalar_select %p424, %s421, 15
      %s426 = smul.addr %s425, 2
      %s427 = smul.addr %s423, 32
      %s428 = sadd.s32 %s426, %s427
      %s429 = smul.addr %s428, 8
      %s430 = scalar_lea.vmem %s3, %s429
      // Predicated region
      $region33: #{double_conv.5} parent=31 // pred_check
        %p431 = pneg %p116
      $region34: #{double_conv.5} parent=31 // pred_check_branch
        %433 = sbr.rel (%p431) target = $region36
      $region35: #{double_conv.5} parent=31 // pred_region
        %s434 = smul.u32 16, %s19
      $region36: #{double_conv.5} parent=31 // pred_fallthru
        _
    $region32: #{double_conv.5} parent=5 // pred_fallthru
      _
    %p435 = scmp.le.s32.totalorder 2, %s9
    // Predicated region
    $region37: #{double_conv.5} parent=5 // pred_check
      %p436 = pneg %p435
    $region38: #{double_conv.5} parent=5 // pred_check_branch
      %438 = sbr.rel (%p436) target = $region40
    $region39: #{double_conv.5} parent=5 // pred_region
      %s439 = ssub.s32 %s9, 2
      // Predicated region
      $region41: #{double_conv.5} parent=39 // pred_check
        %p440 = pneg %p122
      $region42: #{double_conv.5} parent=39 // pred_check_branch
        %442 = sbr.rel (%p440) target = $region44
      $region43: #{double_conv.5} parent=39 // pred_region
        %s443 = smul.u32 16, %s21
        %p444 = scmp.lt.s32.totalorder %s20, 1
        %s445 = scalar_select %p444, %s20, 1
        %p446 = scmp.lt.s32.totalorder %s443, 15
        %s447 = scalar_select %p446, %s443, 15
        %s448 = smul.addr %s447, 2
        %s449 = smul.addr %s445, 32
        %s450 = sadd.s32 %s448, %s449
        %s451 = smul.addr %s450, 8
        %s452 = scalar_lea.vmem %s3, %s451
      $region44: #{double_conv.5} parent=39 // pred_fallthru
        _
    $region40: #{double_conv.5} parent=5 // pred_fallthru
      _
  $region6: #{double_conv.5} parent=0 // loop_footer
    %s13 = sadd.s32 1, %s9
  $region7: #{double_conv.5} parent=0 // loop_footer_branch
    %8 = sbr.rel target = $region3
  $region8: #{double_conv.5} parent=0 // loop_exit
    _

// kernel: double_conv.3
$region0: #{double_conv.3}
  #allocation0 [shape = 'u32[]', space=smem, size = 0x4, offset = 0x4, fixed_abs, tag = 'smem constant byte address 0x4 - core index']
  #allocation1 [shape = 'u32[144,128]{1,0:T(1,128)}', space=vmem, size = 0x12000, scoped, tag = 'internal scratch']
  #allocation2 [shape = 'bf16[18,16,128]{2,1,0:T(16,128)(2,1)}', space=vmem, size = 0x12000, scoped, tag = 'scratch operand']
  #allocation3 [shape = 's32[1]{0}', space=sflag, size = 0x4, scoped, tag = 'scratch operand']
  #allocation4 [shape = 's32[]', space=sflag, size = 0x4, offset = 0, fixed_abs, tag = 'sflag constant byte address 0x0 - dummy sync flag']
  %s0 = inlined_call_operand.vmem [shape: bf16[2,16,16,128], index: 0, kind: input, shape index: {}]
  %s1 = inlined_call_operand.vmem [shape: bf16[1152,128], index: 1, kind: input, shape index: {}]
  %s2 = inlined_call_operand.vmem [shape: bf16[2,16,16,128], index: 2, kind: output, shape index: {0}]
  %s3 = inlined_call_operand.vmem [shape: f32[2,1,2,128], index: 3, kind: output, shape index: {1}]
  %4 = xla_tuple %s2, %s3
  %s5 = sld [smem:[#allocation0]]
  $region79: #{double_conv.3} parent=0
    _
  %s7 = ssub.s32 1, %s5
  %s8 = scalar_select 0, %s7, %s5
  loop: start=0, step=1, limit=4
  $region2: #{double_conv.3} parent=0 // loop_pre_header
    _
  $region3: #{double_conv.3} parent=0 // loop_header
    %s10 = sphi 0, %s14
    %p11 = scmp.ge.s32.totalorder %s10, 4
    %s17 = sphi 0, %s36
    %s18 = sphi 0, %s32
    %s19 = sphi 0, %s28
    %s20 = sphi 0, %s17
    %s21 = sphi 0, %s18
    %s22 = sphi 0, %s19
    %s23 = sphi 0, %s20
    %s24 = sphi 0, %s21
    %s25 = sphi 0, %s22
    %s39 = sphi 0, %s41
    %s42 = sphi 0, %s39
    %s43 = sphi 0, %s42
    %s59 = sphi 0, %s43
    %s69 = sphi 0, %s71
    %s72 = sphi 0, %s69
    %s73 = sphi 0, %s72
    %s89 = sphi 0, %s73
    %s99 = sphi 0, %s101
    %s102 = sphi 0, %s99
    %s103 = sphi 0, %s102
    %s119 = sphi 0, %s103
  $region4: #{double_conv.3} parent=0 // loop_header_branch
    %13 = sbr.rel (%p11) target = $region8
  $region5: #{double_conv.3} parent=0 // loop_body
    %s15 = ssub.s32 %s10, 1
    %s16 = ssub.s32 %s10, 2
    %s26 = sadd.s32 1, %s19
    %p27 = scmp.ge.s32.totalorder %s26, 1
    %s28 = scalar_select %p27, 0, %s26
    %s29 = sadd.s32 1, %s18
    %s30 = scalar_select %p27, %s29, %s18
    %p31 = scmp.ge.s32.totalorder %s30, 1
    %s32 = scalar_select %p31, 0, %s30
    %s33 = sadd.s32 1, %s17
    %s34 = scalar_select %p31, %s33, %s17
    %p35 = scmp.ge.s32.totalorder %s34, 2
    %s36 = scalar_select %p35, 0, %s34
    %s37 = ssub.s32 %s19, %s28
    %p38 = scmp.eq.s32.totalorder %s37, 0
    %s40 = sadd.s32 %s39, 1
    %s41 = scalar_select %p38, %s39, %s40
    %p44 = pneg %p38
    %p45 = scmp.eq.s32.totalorder %s10, 1
    %p46 = por %p44, %p45
    %p47 = scmp.ne.s32.totalorder %s39, %s42
    %p48 = scmp.eq.s32.totalorder %s10, 0
    %p49 = por %p47, %p48
    %p50 = scmp.ne.s32.totalorder %s39, %s42
    %p51 = scmp.eq.s32.totalorder %s15, 1
    %p52 = por %p50, %p51
    %p53 = scmp.ne.s32.totalorder %s42, %s43
    %p54 = scmp.eq.s32.totalorder %s15, 0
    %p55 = por %p53, %p54
    %p56 = scmp.ne.s32.totalorder %s42, %s43
    %p57 = scmp.eq.s32.totalorder %s16, 1
    %p58 = por %p56, %p57
    %p60 = scmp.ne.s32.totalorder %s43, %s59
    %p61 = scmp.eq.s32.totalorder %s16, 0
    %p62 = por %p60, %p61
    %s63 = ssub.s32 %s17, %s36
    %s64 = ssub.s32 %s18, %s32
    %s65 = sor.u32 %s63, %s64
    %s66 = ssub.s32 %s19, %s28
    %s67 = sor.u32 %s65, %s66
    %p68 = scmp.eq.s32.totalorder %s67, 0
    %s70 = sadd.s32 %s69, 1
    %s71 = scalar_select %p68, %s69, %s70
    %p74 = pneg %p68
    %p75 = scmp.eq.s32.totalorder %s10, 1
    %p76 = por %p74, %p75
    %p77 = scmp.ne.s32.totalorder %s69, %s72
    %p78 = scmp.eq.s32.totalorder %s10, 0
    %p79 = por %p77, %p78
    %p80 = scmp.ne.s32.totalorder %s69, %s72
    %p81 = scmp.eq.s32.totalorder %s15, 1
    %p82 = por %p80, %p81
    %p83 = scmp.ne.s32.totalorder %s72, %s73
    %p84 = scmp.eq.s32.totalorder %s15, 0
    %p85 = por %p83, %p84
    %p86 = scmp.ne.s32.totalorder %s72, %s73
    %p87 = scmp.eq.s32.totalorder %s16, 1
    %p88 = por %p86, %p87
    %p90 = scmp.ne.s32.totalorder %s73, %s89
    %p91 = scmp.eq.s32.totalorder %s16, 0
    %p92 = por %p90, %p91
    %s93 = ssub.s32 %s17, %s36
    %s94 = ssub.s32 %s18, %s32
    %s95 = sor.u32 %s93, %s94
    %s96 = ssub.s32 %s19, %s28
    %s97 = sor.u32 %s95, %s96
    %p98 = scmp.eq.s32.totalorder %s97, 0
    %s100 = sadd.s32 %s99, 1
    %s101 = scalar_select %p98, %s99, %s100
    %p104 = pneg %p98
    %p105 = scmp.eq.s32.totalorder %s10, 1
    %p106 = por %p104, %p105
    %p107 = scmp.ne.s32.totalorder %s99, %s102
    %p108 = scmp.eq.s32.totalorder %s10, 0
    %p109 = por %p107, %p108
    %p110 = scmp.ne.s32.totalorder %s99, %s102
    %p111 = scmp.eq.s32.totalorder %s15, 1
    %p112 = por %p110, %p111
    %p113 = scmp.ne.s32.totalorder %s102, %s103
    %p114 = scmp.eq.s32.totalorder %s15, 0
    %p115 = por %p113, %p114
    %p116 = scmp.ne.s32.totalorder %s102, %s103
    %p117 = scmp.eq.s32.totalorder %s16, 1
    %p118 = por %p116, %p117
    %p120 = scmp.ne.s32.totalorder %s103, %s119
    %p121 = scmp.eq.s32.totalorder %s16, 0
    %p122 = por %p120, %p121
    %p123 = scmp.le.s32.totalorder 1, %s10
    %p124 = scmp.lt.s32.totalorder %s10, 3
    %p125 = pnand %p123, %p124
    %p126 = pneg %p125
    // Predicated region
    $region9: #{double_conv.3} parent=5 // pred_check
      _
    $region10: #{double_conv.3} parent=5 // pred_check_branch
      %128 = sbr.rel (%p125) target = $region12
    $region11: #{double_conv.3} parent=5 // pred_region
      %s129 = ssub.s32 %s10, 1
      // Predicated region
      $region13: #{double_conv.3} parent=11 // pred_check
        %p130 = pneg %p55
      $region14: #{double_conv.3} parent=11 // pred_check_branch
        %132 = sbr.rel (%p130) target = $region16
      $region15: #{double_conv.3} parent=11 // pred_region
        %p133 = scmp.lt.s32.totalorder %s22, 0
        %s134 = scalar_select %p133, %s22, 0
        %s135 = smul.addr %s134, 4
        %s136 = scalar_lea.vmem %s1, %s135
      $region16: #{double_conv.3} parent=11 // pred_fallthru
        _
    $region12: #{double_conv.3} parent=5 // pred_fallthru
      _
    %p137 = scmp.lt.s32.totalorder %s10, 2
    // Predicated region
    $region17: #{double_conv.3} parent=5 // pred_check
      %p138 = pneg %p137
    $region18: #{double_conv.3} parent=5 // pred_check_branch
      %140 = sbr.rel (%p138) target = $region20
    $region19: #{double_conv.3} parent=5 // pred_region
      _
    $region20: #{double_conv.3} parent=5 // pred_fallthru
      _
    %p141 = scmp.le.s32.totalorder 1, %s10
    %p142 = scmp.lt.s32.totalorder %s10, 3
    %p143 = pnand %p141, %p142
    %p144 = pneg %p143
    // Predicated region
    $region21: #{double_conv.3} parent=5 // pred_check
      _
    $region22: #{double_conv.3} parent=5 // pred_check_branch
      %146 = sbr.rel (%p143) target = $region24
    $region23: #{double_conv.3} parent=5 // pred_region
      %s147 = ssub.s32 %s10, 1
      %p148 = scmp.lt.s32.totalorder %s22, 0
      %s149 = scalar_select %p148, %s22, 0
      %s150 = smul.addr %s149, 4
      %s151 = scalar_lea.vmem %s1, %s150
      %p152 = pneg %p55
      %p153 = pneg %p52
      %p154 = pneg %p85
      %p155 = pneg %p82
      %s156 = smul.u32 16, %s21
      %p157 = scmp.lt.s32.totalorder %s20, 1
      %s158 = scalar_select %p157, %s20, 1
      %p159 = scmp.lt.s32.totalorder %s156, 15
      %s160 = scalar_select %p159, %s156, 15
      %p161 = scmp.lt.s32.totalorder %s22, 0
      %s162 = scalar_select %p161, %s22, 0
      %s163 = smul.addr %s160, 2
      %s164 = sadd.s32 %s162, %s163
      %s165 = smul.addr %s158, 32
      %s166 = sadd.s32 %s164, %s165
      %s167 = smul.addr %s166, 4
      %s168 = scalar_lea.vmem %s2, %s167
      %p169 = pneg %p115
      %p170 = pneg %p112
      %p171 = scmp.lt.s32.totalorder %s20, 1
      %s172 = scalar_select %p171, %s20, 1
      %p173 = scmp.lt.s32.totalorder %s21, 0
      %s174 = scalar_select %p173, %s21, 0
      %p175 = scmp.lt.s32.totalorder %s22, 0
      %s176 = scalar_select %p175, %s22, 0
      %s177 = sadd.s32 %s176, %s174
      %s178 = sadd.s32 %s177, %s172
      %s179 = smul.addr %s178, 2
      %s180 = scalar_lea.vmem %s3, %s179
      %p181 = scmp.lt.s32.totalorder %s22, 0
      %s182 = scalar_select %p181, %s22, 0
      %s183 = smul.addr %s182, 4
      %s184 = scalar_lea.vmem %s1, %s183
      %s185 = smul.u32 16, %s21
      %p186 = scmp.lt.s32.totalorder %s20, 1
      %s187 = scalar_select %p186, %s20, 1
      %p188 = scmp.lt.s32.totalorder %s185, 15
      %s189 = scalar_select %p188, %s185, 15
      %p190 = scmp.lt.s32.totalorder %s22, 0
      %s191 = scalar_select %p190, %s22, 0
      %s192 = smul.addr %s189, 2
      %s193 = sadd.s32 %s191, %s192
      %s194 = smul.addr %s187, 32
      %s195 = sadd.s32 %s193, %s194
      %s196 = smul.addr %s195, 4
      %s197 = scalar_lea.vmem %s2, %s196
      %s198 = smul.u32 16, %s21
      %p199 = scmp.lt.s32.totalorder %s20, 1
      %s200 = scalar_select %p199, %s20, 1
      %p201 = scmp.lt.s32.totalorder %s21, 0
      %s202 = scalar_select %p201, %s21, 0
      %p203 = scmp.lt.s32.totalorder %s22, 0
      %s204 = scalar_select %p203, %s22, 0
      %s205 = sadd.s32 %s204, %s202
      %s206 = sadd.s32 %s205, %s200
      %s207 = smul.addr %s206, 2
      %s208 = scalar_lea.vmem %s3, %s207
      %210 = vst [vmem:[#allocation2] sm:$0xff] 0
      %s211 = scalar_lea.vmem [#allocation2], 136
      %212 = vst [vmem:[%s211] sm:$0xff] 0
      %s213 = smul.u32 %s20, 32
      %s214 = smul.addr %s213, 4
      %s215 = scalar_lea.vmem %s0, %s214
      %s216 = scalar_lea.vmem [#allocation2], 8
      %p218 = scmp.lt.u32.totalorder 128, 8
      %p219 = pneg %p218
      // Predicated region
      $region25: #{double_conv.3} parent=23 // pred_check
        _
      $region26: #{double_conv.3} parent=23 // pred_check_branch
        %221 = sbr.rel (%p218) target = $region28
      $region27: #{double_conv.3} parent=23 // pred_region
        %s236 = sand.u32 128, 7
        %p237 = scmp.eq.s32.totalorder %s236, 0
        // Predicated region
        $region40: #{double_conv.3} parent=27 // pred_check
          %p238 = pneg %p237
        $region41: #{double_conv.3} parent=27 // pred_check_branch
          %240 = sbr.rel (%p238) target = $region43
        $region42: #{double_conv.3} parent=27 // pred_region
          loop: start=0, step=1, limit=1
          $region44: #{double_conv.3} parent=42 // loop_pre_header
            _
          $region45: #{double_conv.3} parent=42 // loop_header
            %s242 = sphi 0, %s246
            %p243 = scmp.ge.s32.totalorder %s242, 1
            %s247 = sphi %s215, %s215
            %s248 = sphi %s216, %s216
          $region46: #{double_conv.3} parent=42 // loop_header_branch
            %245 = sbr.rel (%p243) target = $region50
          $region47: #{double_conv.3} parent=42 // loop_body
            %v249 = vld [vmem:[%s247] sm:$0xff]
            %250 = vst [vmem:[%s248] sm:$0xff] %v249
            %v251 = vld [vmem:[%s247 + $0x8] sm:$0xff]
            %252 = vst [vmem:[%s248 + $0x8] sm:$0xff] %v251
            %v253 = vld [vmem:[%s247 + $0x10] sm:$0xff]
            %254 = vst [vmem:[%s248 + $0x10] sm:$0xff] %v253
            %v255 = vld [vmem:[%s247 + $0x18] sm:$0xff]
            %256 = vst [vmem:[%s248 + $0x18] sm:$0xff] %v255
            %v257 = vld [vmem:[%s247 + $0x20] sm:$0xff]
            %258 = vst [vmem:[%s248 + $0x20] sm:$0xff] %v257
            %v259 = vld [vmem:[%s247 + $0x28] sm:$0xff]
            %260 = vst [vmem:[%s248 + $0x28] sm:$0xff] %v259
            %v261 = vld [vmem:[%s247 + $0x30] sm:$0xff]
            %262 = vst [vmem:[%s248 + $0x30] sm:$0xff] %v261
            %v263 = vld [vmem:[%s247 + $0x38] sm:$0xff]
            %264 = vst [vmem:[%s248 + $0x38] sm:$0xff] %v263
            %v265 = vld [vmem:[%s247 + $0x40] sm:$0xff]
            %266 = vst [vmem:[%s248 + $0x40] sm:$0xff] %v265
            %v267 = vld [vmem:[%s247 + $0x48] sm:$0xff]
            %268 = vst [vmem:[%s248 + $0x48] sm:$0xff] %v267
            %v269 = vld [vmem:[%s247 + $0x50] sm:$0xff]
            %270 = vst [vmem:[%s248 + $0x50] sm:$0xff] %v269
            %v271 = vld [vmem:[%s247 + $0x58] sm:$0xff]
            %272 = vst [vmem:[%s248 + $0x58] sm:$0xff] %v271
            %v273 = vld [vmem:[%s247 + $0x60] sm:$0xff]
            %274 = vst [vmem:[%s248 + $0x60] sm:$0xff] %v273
            %v275 = vld [vmem:[%s247 + $0x68] sm:$0xff]
            %276 = vst [vmem:[%s248 + $0x68] sm:$0xff] %v275
            %v277 = vld [vmem:[%s247 + $0x70] sm:$0xff]
            %278 = vst [vmem:[%s248 + $0x70] sm:$0xff] %v277
            %v279 = vld [vmem:[%s247 + $0x78] sm:$0xff]
            %280 = vst [vmem:[%s248 + $0x78] sm:$0xff] %v279
          $region48: #{double_conv.3} parent=42 // loop_footer
            %s246 = sadd.s32 1, %s242
          $region49: #{double_conv.3} parent=42 // loop_footer_branch
            %241 = sbr.rel target = $region45
          $region50: #{double_conv.3} parent=42 // loop_exit
            _
        $region43: #{double_conv.3} parent=27 // pred_fallthru
          _
        %p281 = pneg %p237
        // Predicated region
        $region51: #{double_conv.3} parent=27 // pred_check
          _
        $region52: #{double_conv.3} parent=27 // pred_check_branch
          %283 = sbr.rel (%p237) target = $region54
        $region53: #{double_conv.3} parent=27 // pred_region
          %s284 = sand.u32 128, 7
        $region54: #{double_conv.3} parent=27 // pred_fallthru
          _
      $region28: #{double_conv.3} parent=23 // pred_fallthru
        _
      // Predicated region
      $region29: #{double_conv.3} parent=23 // pred_check
        %p222 = pneg %p218
      $region30: #{double_conv.3} parent=23 // pred_check_branch
        %224 = sbr.rel (%p222) target = $region32
      $region31: #{double_conv.3} parent=23 // pred_region
        %s225 = sshllo.u32 0, 128
        loop: start=0, step=1, limit=1
        $region33: #{double_conv.3} parent=31 // loop_pre_header
          _
        $region34: #{double_conv.3} parent=31 // loop_header
          %s227 = sphi 0, %s231
          %p228 = scmp.ge.s32.totalorder %s227, 1
          %s232 = sphi %s215, %s215
          %s233 = sphi %s216, %s216
        $region35: #{double_conv.3} parent=31 // loop_header_branch
          %230 = sbr.rel (%p228) target = $region39
        $region36: #{double_conv.3} parent=31 // loop_body
          %v234 = vld [vmem:[%s232] sm:%s225]
          %235 = vst [vmem:[%s233] sm:%s225] %v234
        $region37: #{double_conv.3} parent=31 // loop_footer
          %s231 = sadd.s32 1, %s227
        $region38: #{double_conv.3} parent=31 // loop_footer_branch
          %226 = sbr.rel target = $region34
        $region39: #{double_conv.3} parent=31 // loop_exit
          _
      $region32: #{double_conv.3} parent=23 // pred_fallthru
        _
      // Predicated region
      $region55: #{double_conv.3} parent=23 // pred_check
        _
      $region56: #{double_conv.3} parent=23 // pred_check_branch
        %287 = sbr.rel (0) target = $region58
      $region57: #{double_conv.3} parent=23 // pred_region
        %288 = vsyncadd [#allocation3], 2048
      $region58: #{double_conv.3} parent=23 // pred_fallthru
        _
      %s289 = smul.u32 4, 16
      %s290 = smul.u32 %s289, 2
      %s291 = smul.u32 %s290, 1
      %s292 = sshll.u32 %s291, 4
      %293 = dma.done [#allocation3], %s292
      %v294 = vld [vmem:[#allocation2] sm:$0xff]
      %v295 = vld [vmem:[#allocation2 + $0x8] sm:$0xff]
      %v296 = vld [vmem:[#allocation2 + $0x10] sm:$0xff]
      %v297 = vld [vmem:[#allocation2 + $0x18] sm:$0xff]
      %v298 = vld [vmem:[#allocation2 + $0x20] sm:$0xff]
      %v299 = vld [vmem:[#allocation2 + $0x28] sm:$0xff]
      %v300 = vld [vmem:[#allocation2 + $0x30] sm:$0xff]
      %v301 = vld [vmem:[#allocation2 + $0x38] sm:$0xff]
      %v302 = vld [vmem:[#allocation2 + $0x40] sm:$0xff]
      %v303 = vld [vmem:[#allocation2 + $0x48] sm:$0xff]
      %v304 = vld [vmem:[#allocation2 + $0x50] sm:$0xff]
      %v305 = vld [vmem:[#allocation2 + $0x58] sm:$0xff]
      %v306 = vld [vmem:[#allocation2 + $0x60] sm:$0xff]
      %v307 = vld [vmem:[#allocation2 + $0x68] sm:$0xff]
      %v308 = vld [vmem:[#allocation2 + $0x70] sm:$0xff]
      %v309 = vld [vmem:[#allocation2 + $0x78] sm:$0xff]
      %v310 = vld [vmem:[#allocation2 + $0x80] sm:$0xff]
      %v311 = vld [vmem:[#allocation2 + $0x88] sm:$0xff]
      %v313 = vshrl.u32 %v294, 16
      %v315 = vrot.slane %v313, 7
      %v316 = vshll.u32 %v294, 16
      %v318 = vor.u32 %v315, %v316
      %v320 = vshrl.u32 %v295, 16
      %v322 = vrot.slane %v320, 7
      %v323 = vshll.u32 %v295, 16
      %v325 = vor.u32 %v322, %v323
      %v327 = vshrl.u32 %v296, 16
      %v329 = vrot.slane %v327, 7
      %v330 = vshll.u32 %v296, 16
      %v332 = vor.u32 %v329, %v330
      %v334 = vshrl.u32 %v297, 16
      %v336 = vrot.slane %v334, 7
      %v337 = vshll.u32 %v297, 16
      %v339 = vor.u32 %v336, %v337
      %v341 = vshrl.u32 %v298, 16
      %v343 = vrot.slane %v341, 7
      %v344 = vshll.u32 %v298, 16
      %v346 = vor.u32 %v343, %v344
      %v348 = vshrl.u32 %v299, 16
      %v350 = vrot.slane %v348, 7
      %v351 = vshll.u32 %v299, 16
      %v353 = vor.u32 %v350, %v351
      %v355 = vshrl.u32 %v300, 16
      %v357 = vrot.slane %v355, 7
      %v358 = vshll.u32 %v300, 16
      %v360 = vor.u32 %v357, %v358
      %v362 = vshrl.u32 %v301, 16
      %v364 = vrot.slane %v362, 7
      %v365 = vshll.u32 %v301, 16
      %v367 = vor.u32 %v364, %v365
      %v369 = vshrl.u32 %v302, 16
      %v371 = vrot.slane %v369, 7
      %v372 = vshll.u32 %v302, 16
      %v374 = vor.u32 %v371, %v372
      %v376 = vshrl.u32 %v303, 16
      %v378 = vrot.slane %v376, 7
      %v379 = vshll.u32 %v303, 16
      %v381 = vor.u32 %v378, %v379
      %v383 = vshrl.u32 %v304, 16
      %v385 = vrot.slane %v383, 7
      %v386 = vshll.u32 %v304, 16
      %v388 = vor.u32 %v385, %v386
      %v390 = vshrl.u32 %v305, 16
      %v392 = vrot.slane %v390, 7
      %v393 = vshll.u32 %v305, 16
      %v395 = vor.u32 %v392, %v393
      %v397 = vshrl.u32 %v306, 16
      %v399 = vrot.slane %v397, 7
      %v400 = vshll.u32 %v306, 16
      %v402 = vor.u32 %v399, %v400
      %v404 = vshrl.u32 %v307, 16
      %v406 = vrot.slane %v404, 7
      %v407 = vshll.u32 %v307, 16
      %v409 = vor.u32 %v406, %v407
      %v411 = vshrl.u32 %v308, 16
      %v413 = vrot.slane %v411, 7
      %v414 = vshll.u32 %v308, 16
      %v416 = vor.u32 %v413, %v414
      %v418 = vshrl.u32 %v309, 16
      %v420 = vrot.slane %v418, 7
      %v421 = vshll.u32 %v309, 16
      %v423 = vor.u32 %v420, %v421
      %v425 = vshrl.u32 %v310, 16
      %v427 = vrot.slane %v425, 7
      %v428 = vshll.u32 %v310, 16
      %v430 = vor.u32 %v427, %v428
      %v432 = vshrl.u32 %v311, 16
      %v434 = vrot.slane %v432, 7
      %v435 = vshll.u32 %v311, 16
      %v437 = vor.u32 %v434, %v435
      %vm474 = vcmask 1040384
      %vm475 = vsmask.f32 256
      %vm476 = vmand %vm474, %vm475
      %v477 = vsel %vm476, 0, %v318
      %v478 = vsel %vm476, 0, %v325
      %v479 = vsel %vm476, 0, %v332
      %v480 = vsel %vm476, 0, %v339
      %v481 = vsel %vm476, 0, %v346
      %v482 = vsel %vm476, 0, %v353
      %v483 = vsel %vm476, 0, %v360
      %v484 = vsel %vm476, 0, %v367
      %v485 = vsel %vm476, 0, %v374
      %v486 = vsel %vm476, 0, %v381
      %v487 = vsel %vm476, 0, %v388
      %v488 = vsel %vm476, 0, %v395
      %v489 = vsel %vm476, 0, %v402
      %v490 = vsel %vm476, 0, %v409
      %v491 = vsel %vm476, 0, %v416
      %v492 = vsel %vm476, 0, %v423
      %v493 = vsel %vm476, 0, %v430
      %v494 = vsel %vm476, 0, %v437
      %v495 = vsel %vm476, %v315, 0
      %v496 = vsel %vm476, %v322, 0
      %v497 = vsel %vm476, %v329, 0
      %v498 = vsel %vm476, %v336, 0
      %v499 = vsel %vm476, %v343, 0
      %v500 = vsel %vm476, %v350, 0
      %v501 = vsel %vm476, %v357, 0
      %v502 = vsel %vm476, %v364, 0
      %v503 = vsel %vm476, %v371, 0
      %v504 = vsel %vm476, %v378, 0
      %v505 = vsel %vm476, %v385, 0
      %v506 = vsel %vm476, %v392, 0
      %v507 = vsel %vm476, %v399, 0
      %v508 = vsel %vm476, %v406, 0
      %v509 = vsel %vm476, %v413, 0
      %v510 = vsel %vm476, %v420, 0
      %v511 = vsel %vm476, %v427, 0
      %v512 = vsel %vm476, %v434, 0
      %v513 = vld [vmem:[%s184] sm:$0xf]
      %v514 = vld [vmem:[%s184 + $0x4] sm:$0xf]
      %v515 = vld [vmem:[%s184 + $0x8] sm:$0xf]
      %v516 = vld [vmem:[%s184 + $0xc] sm:$0xf]
      %v517 = vld [vmem:[%s184 + $0x10] sm:$0xf]
      %v518 = vld [vmem:[%s184 + $0x14] sm:$0xf]
      %v519 = vld [vmem:[%s184 + $0x18] sm:$0xf]
      %v520 = vld [vmem:[%s184 + $0x1c] sm:$0xf]
      %v521 = vld [vmem:[%s184 + $0x20] sm:$0xf]
      %v522 = vld [vmem:[%s184 + $0x24] sm:$0xf]
      %v523 = vld [vmem:[%s184 + $0x28] sm:$0xf]
      %v524 = vld [vmem:[%s184 + $0x2c] sm:$0xf]
      %v525 = vld [vmem:[%s184 + $0x30] sm:$0xf]
      %v526 = vld [vmem:[%s184 + $0x34] sm:$0xf]
      %v527 = vld [vmem:[%s184 + $0x38] sm:$0xf]
      %v528 = vld [vmem:[%s184 + $0x3c] sm:$0xf]
      %vm529 = vsmask.f32 7424
      %v531 = vshrl.u32 %v477, 16
      %v533 = vshll.u32 %v477, 16
      %v535 = vrot.slane %v533, 1
      %v536 = vor.u32 %v531, %v535
      %v538 = vshll.u32 %v495, 16
      %v540 = vrot.slane %v538, 1
      %v541 = vsel %vm529, %v536, %v540
      %v543 = vshrl.u32 %v478, 16
      %v545 = vshll.u32 %v478, 16
      %v547 = vrot.slane %v545, 1
      %v548 = vor.u32 %v543, %v547
      %v550 = vshll.u32 %v496, 16
      %v552 = vrot.slane %v550, 1
      %v553 = vsel %vm529, %v548, %v552
      %v555 = vshrl.u32 %v479, 16
      %v557 = vshll.u32 %v479, 16
      %v559 = vrot.slane %v557, 1
      %v560 = vor.u32 %v555, %v559
      %v562 = vshll.u32 %v497, 16
      %v564 = vrot.slane %v562, 1
      %v565 = vsel %vm529, %v560, %v564
      %v567 = vshrl.u32 %v480, 16
      %v569 = vshll.u32 %v480, 16
      %v571 = vrot.slane %v569, 1
      %v572 = vor.u32 %v567, %v571
      %v574 = vshll.u32 %v498, 16
      %v576 = vrot.slane %v574, 1
      %v577 = vsel %vm529, %v572, %v576
      %v579 = vshrl.u32 %v481, 16
      %v581 = vshll.u32 %v481, 16
      %v583 = vrot.slane %v581, 1
      %v584 = vor.u32 %v579, %v583
      %v586 = vshll.u32 %v499, 16
      %v588 = vrot.slane %v586, 1
      %v589 = vsel %vm529, %v584, %v588
      %v591 = vshrl.u32 %v482, 16
      %v593 = vshll.u32 %v482, 16
      %v595 = vrot.slane %v593, 1
      %v596 = vor.u32 %v591, %v595
      %v598 = vshll.u32 %v500, 16
      %v600 = vrot.slane %v598, 1
      %v601 = vsel %vm529, %v596, %v600
      %v603 = vshrl.u32 %v483, 16
      %v605 = vshll.u32 %v483, 16
      %v607 = vrot.slane %v605, 1
      %v608 = vor.u32 %v603, %v607
      %v610 = vshll.u32 %v501, 16
      %v612 = vrot.slane %v610, 1
      %v613 = vsel %vm529, %v608, %v612
      %v615 = vshrl.u32 %v484, 16
      %v617 = vshll.u32 %v484, 16
      %v619 = vrot.slane %v617, 1
      %v620 = vor.u32 %v615, %v619
      %v622 = vshll.u32 %v502, 16
      %v624 = vrot.slane %v622, 1
      %v625 = vsel %vm529, %v620, %v624
      %v627 = vshrl.u32 %v485, 16
      %v629 = vshll.u32 %v485, 16
      %v631 = vrot.slane %v629, 1
      %v632 = vor.u32 %v627, %v631
      %v634 = vshll.u32 %v503, 16
      %v636 = vrot.slane %v634, 1
      %v637 = vsel %vm529, %v632, %v636
      %v639 = vshrl.u32 %v486, 16
      %v641 = vshll.u32 %v486, 16
      %v643 = vrot.slane %v641, 1
      %v644 = vor.u32 %v639, %v643
      %v646 = vshll.u32 %v504, 16
      %v648 = vrot.slane %v646, 1
      %v649 = vsel %vm529, %v644, %v648
      %v651 = vshrl.u32 %v487, 16
      %v653 = vshll.u32 %v487, 16
      %v655 = vrot.slane %v653, 1
      %v656 = vor.u32 %v651, %v655
      %v658 = vshll.u32 %v505, 16
      %v660 = vrot.slane %v658, 1
      %v661 = vsel %vm529, %v656, %v660
      %v663 = vshrl.u32 %v488, 16
      %v665 = vshll.u32 %v488, 16
      %v667 = vrot.slane %v665, 1
      %v668 = vor.u32 %v663, %v667
      %v670 = vshll.u32 %v506, 16
      %v672 = vrot.slane %v670, 1
      %v673 = vsel %vm529, %v668, %v672
      %v675 = vshrl.u32 %v489, 16
      %v677 = vshll.u32 %v489, 16
      %v679 = vrot.slane %v677, 1
      %v680 = vor.u32 %v675, %v679
      %v682 = vshll.u32 %v507, 16
      %v684 = vrot.slane %v682, 1
      %v685 = vsel %vm529, %v680, %v684
      %v687 = vshrl.u32 %v490, 16
      %v689 = vshll.u32 %v490, 16
      %v691 = vrot.slane %v689, 1
      %v692 = vor.u32 %v687, %v691
      %v694 = vshll.u32 %v508, 16
      %v696 = vrot.slane %v694, 1
      %v697 = vsel %vm529, %v692, %v696
      %v699 = vshrl.u32 %v491, 16
      %v701 = vshll.u32 %v491, 16
      %v703 = vrot.slane %v701, 1
      %v704 = vor.u32 %v699, %v703
      %v706 = vshll.u32 %v509, 16
      %v708 = vrot.slane %v706, 1
      %v709 = vsel %vm529, %v704, %v708
      %v711 = vshrl.u32 %v492, 16
      %v713 = vshll.u32 %v492, 16
      %v715 = vrot.slane %v713, 1
      %v716 = vor.u32 %v711, %v715
      %v718 = vshll.u32 %v510, 16
      %v720 = vrot.slane %v718, 1
      %v721 = vsel %vm529, %v716, %v720
      %v738 = vld [vmem:[%s184 + $0x40] sm:$0xf]
      %v739 = vld [vmem:[%s184 + $0x44] sm:$0xf]
      %v740 = vld [vmem:[%s184 + $0x48] sm:$0xf]
      %v741 = vld [vmem:[%s184 + $0x4c] sm:$0xf]
      %v742 = vld [vmem:[%s184 + $0x50] sm:$0xf]
      %v743 = vld [vmem:[%s184 + $0x54] sm:$0xf]
      %v744 = vld [vmem:[%s184 + $0x58] sm:$0xf]
      %v745 = vld [vmem:[%s184 + $0x5c] sm:$0xf]
      %v746 = vld [vmem:[%s184 + $0x60] sm:$0xf]
      %v747 = vld [vmem:[%s184 + $0x64] sm:$0xf]
      %v748 = vld [vmem:[%s184 + $0x68] sm:$0xf]
      %v749 = vld [vmem:[%s184 + $0x6c] sm:$0xf]
      %v750 = vld [vmem:[%s184 + $0x70] sm:$0xf]
      %v751 = vld [vmem:[%s184 + $0x74] sm:$0xf]
      %v752 = vld [vmem:[%s184 + $0x78] sm:$0xf]
      %v753 = vld [vmem:[%s184 + $0x7c] sm:$0xf]
      %v770 = vunpack.c.l.b16 %v738
      %v771 = vunpack.c.l.b16 %v739
      %v772 = vunpack.c.l.b16 %v740
      %v773 = vunpack.c.l.b16 %v741
      %v774 = vunpack.c.l.b16 %v742
      %v775 = vunpack.c.l.b16 %v743
      %v776 = vunpack.c.l.b16 %v744
      %v777 = vunpack.c.l.b16 %v745
      %v778 = vunpack.c.l.b16 %v746
      %v779 = vunpack.c.l.b16 %v747
      %v780 = vunpack.c.l.b16 %v748
      %v781 = vunpack.c.l.b16 %v749
      %v782 = vunpack.c.l.b16 %v750
      %v783 = vunpack.c.l.b16 %v751
      %v784 = vunpack.c.l.b16 %v752
      %v785 = vunpack.c.l.b16 %v753
      %v786 = vpack.c.b16 %v771, %v770
      %v787 = vpack.c.b16 %v773, %v772
      %v788 = vpack.c.b16 %v775, %v774
      %v789 = vpack.c.b16 %v777, %v776
      %v790 = vpack.c.b16 %v779, %v778
      %v791 = vpack.c.b16 %v781, %v780
      %v792 = vpack.c.b16 %v783, %v782
      %v793 = vpack.c.b16 %v785, %v784
      %802 = vmatprep.subr.bf16.mxu0 0
      %803 = vmatpush1.bf16.msra.mxu0 %v786
      %804 = vmatprep.subr.bf16.mxu0 0
      %805 = vmatpush1.bf16.msra.mxu0 %v787
      %806 = vmatprep.subr.bf16.mxu0 0
      %807 = vmatpush1.bf16.msra.mxu0 %v788
      %808 = vmatprep.subr.bf16.mxu0 0
      %809 = vmatpush1.bf16.msra.mxu0 %v789
      %810 = vmatprep.subr.bf16.mxu0 0
      %811 = vmatpush1.bf16.msra.mxu0 %v790
      %812 = vmatprep.subr.bf16.mxu0 0
      %813 = vmatpush1.bf16.msra.mxu0 %v791
      %814 = vmatprep.subr.bf16.mxu0 0
      %815 = vmatpush1.bf16.msra.mxu0 %v792
      %816 = vmatprep.subr.bf16.mxu0 0
      %817 = vmatpush1.bf16.msra.mxu0 %v793
      %818 = vmatprep.subr.bf16.mxu0 0
      %819 = vmatpush1.bf16.msra.mxu0 0
      %820 = vmatprep.subr.bf16.mxu0 0
      %821 = vmatpush1.bf16.msra.mxu0 0
      %822 = vmatprep.subr.bf16.mxu0 0
      %823 = vmatpush1.bf16.msra.mxu0 0
      %824 = vmatprep.subr.bf16.mxu0 0
      %825 = vmatpush1.bf16.msra.mxu0 0
      %826 = vmatprep.subr.bf16.mxu0 0
      %827 = vmatpush1.bf16.msra.mxu0 0
      %828 = vmatprep.subr.bf16.mxu0 0
      %829 = vmatpush1.bf16.msra.mxu0 0
      %830 = vmatprep.subr.bf16.mxu0 0
      %831 = vmatpush1.bf16.msra.mxu0 0
      %832 = vmatprep.subr.bf16.mxu0 0
      %833 = vmatpush1.bf16.msra.mxu0 0
      %834 = vmatprep.mubr.bf16.mxu0 0
      %835 = vmatmul.mubr.bf16.gmra.mrb[0].mxu0 %v541
      %v836 = vpop.f32.mrb[0].mxu0
      %v837 = vadd.f32 0.0, %v836
      %v838 = vpop.f32.mrb[0].mxu0
      %v839 = vpop.f32.mrb[0].mxu0
      %v840 = vadd.f32 0.0, %v839
      %v841 = vpop.f32.mrb[0].mxu0
      %842 = vmatprep.mubr.bf16.mxu0 0
      %843 = vmatmul.mubr.bf16.gmra.mrb[0].mxu0 %v553
      %v844 = vpop.f32.mrb[0].mxu0
      %v845 = vadd.f32 0.0, %v844
      %v846 = vpop.f32.mrb[0].mxu0
      %v847 = vpop.f32.mrb[0].mxu0
      %v848 = vadd.f32 0.0, %v847
      %v849 = vpop.f32.mrb[0].mxu0
      %850 = vmatprep.mubr.bf16.mxu0 0
      %851 = vmatmul.mubr.bf16.gmra.mrb[0].mxu0 %v565
      %v852 = vpop.f32.mrb[0].mxu0
      %v853 = vadd.f32 0.0, %v852
      %v854 = vpop.f32.mrb[0].mxu0
      %v855 = vpop.f32.mrb[0].mxu0
      %v856 = vadd.f32 0.0, %v855
      %v857 = vpop.f32.mrb[0].mxu0
      %858 = vmatprep.mubr.bf16.mxu0 0
      %859 = vmatmul.mubr.bf16.gmra.mrb[0].mxu0 %v577
      %v860 = vpop.f32.mrb[0].mxu0
      %v861 = vadd.f32 0.0, %v860
      %v862 = vpop.f32.mrb[0].mxu0
      %v863 = vpop.f32.mrb[0].mxu0
      %v864 = vadd.f32 0.0, %v863
      %v865 = vpop.f32.mrb[0].mxu0
      %866 = vmatprep.mubr.bf16.mxu0 0
      %867 = vmatmul.mubr.bf16.gmra.mrb[0].mxu0 %v589
      %v868 = vpop.f32.mrb[0].mxu0
      %v869 = vadd.f32 0.0, %v868
      %v870 = vpop.f32.mrb[0].mxu0
      %v871 = vpop.f32.mrb[0].mxu0
      %v872 = vadd.f32 0.0, %v871
      %v873 = vpop.f32.mrb[0].mxu0
      %874 = vmatprep.mubr.bf16.mxu0 0
      %875 = vmatmul.mubr.bf16.gmra.mrb[0].mxu0 %v601
      %v876 = vpop.f32.mrb[0].mxu0
      %v877 = vadd.f32 0.0, %v876
      %v878 = vpop.f32.mrb[0].mxu0
      %v879 = vpop.f32.mrb[0].mxu0
      %v880 = vadd.f32 0.0, %v879
      %v881 = vpop.f32.mrb[0].mxu0
      %882 = vmatprep.mubr.bf16.mxu0 0
      %883 = vmatmul.mubr.bf16.gmra.mrb[0].mxu0 %v613
      %v884 = vpop.f32.mrb[0].mxu0
      %v885 = vadd.f32 0.0, %v884
      %v886 = vpop.f32.mrb[0].mxu0
      %v887 = vpop.f32.mrb[0].mxu0
      %v888 = vadd.f32 0.0, %v887
      %v889 = vpop.f32.mrb[0].mxu0
      %890 = vmatprep.mubr.bf16.mxu0 0
      %891 = vmatmul.mubr.bf16.gmra.mrb[0].mxu0 %v625
      %v892 = vpop.f32.mrb[0].mxu0
      %v893 = vadd.f32 0.0, %v892
      %v894 = vpop.f32.mrb[0].mxu0
      %v895 = vpop.f32.mrb[0].mxu0
      %v896 = vadd.f32 0.0, %v895
      %v897 = vpop.f32.mrb[0].mxu0
      %898 = vmatprep.mubr.bf16.mxu0 0
      %899 = vmatmul.mubr.bf16.gmra.mrb[0].mxu0 %v637
      %v900 = vpop.f32.mrb[0].mxu0
      %v901 = vadd.f32 0.0, %v900
      %v902 = vpop.f32.mrb[0].mxu0
      %v903 = vpop.f32.mrb[0].mxu0
      %v904 = vadd.f32 0.0, %v903
      %v905 = vpop.f32.mrb[0].mxu0
      %906 = vmatprep.mubr.bf16.mxu0 0
      %907 = vmatmul.mubr.bf16.gmra.mrb[0].mxu0 %v649
      %v908 = vpop.f32.mrb[0].mxu0
      %v909 = vadd.f32 0.0, %v908
      %v910 = vpop.f32.mrb[0].mxu0
      %v911 = vpop.f32.mrb[0].mxu0
      %v912 = vadd.f32 0.0, %v911
      %v913 = vpop.f32.mrb[0].mxu0
      %914 = vmatprep.mubr.bf16.mxu0 0
      %915 = vmatmul.mubr.bf16.gmra.mrb[0].mxu0 %v661
      %v916 = vpop.f32.mrb[0].mxu0
      %v917 = vadd.f32 0.0, %v916
      %v918 = vpop.f32.mrb[0].mxu0
      %v919 = vpop.f32.mrb[0].mxu0
      %v920 = vadd.f32 0.0, %v919
      %v921 = vpop.f32.mrb[0].mxu0
      %922 = vmatprep.mubr.bf16.mxu0 0
      %923 = vmatmul.mubr.bf16.gmra.mrb[0].mxu0 %v673
      %v924 = vpop.f32.mrb[0].mxu0
      %v925 = vadd.f32 0.0, %v924
      %v926 = vpop.f32.mrb[0].mxu0
      %v927 = vpop.f32.mrb[0].mxu0
      %v928 = vadd.f32 0.0, %v927
      %v929 = vpop.f32.mrb[0].mxu0
      %930 = vmatprep.mubr.bf16.mxu0 0
      %931 = vmatmul.mubr.bf16.gmra.mrb[0].mxu0 %v685
      %v932 = vpop.f32.mrb[0].mxu0
      %v933 = vadd.f32 0.0, %v932
      %v934 = vpop.f32.mrb[0].mxu0
      %v935 = vpop.f32.mrb[0].mxu0
      %v936 = vadd.f32 0.0, %v935
      %v937 = vpop.f32.mrb[0].mxu0
      %938 = vmatprep.mubr.bf16.mxu0 0
      %939 = vmatmul.mubr.bf16.gmra.mrb[0].mxu0 %v697
      %v940 = vpop.f32.mrb[0].mxu0
      %v941 = vadd.f32 0.0, %v940
      %v942 = vpop.f32.mrb[0].mxu0
      %v943 = vpop.f32.mrb[0].mxu0
      %v944 = vadd.f32 0.0, %v943
      %v945 = vpop.f32.mrb[0].mxu0
      %946 = vmatprep.mubr.bf16.mxu0 0
      %947 = vmatmul.mubr.bf16.gmra.mrb[0].mxu0 %v709
      %v948 = vpop.f32.mrb[0].mxu0
      %v949 = vadd.f32 0.0, %v948
      %v950 = vpop.f32.mrb[0].mxu0
      %v951 = vpop.f32.mrb[0].mxu0
      %v952 = vadd.f32 0.0, %v951
      %v953 = vpop.f32.mrb[0].mxu0
      %954 = vmatprep.mubr.bf16.mxu0 0
      %955 = vmatmul.mubr.bf16.gmra.mrb[0].mxu0 %v721
      %v956 = vpop.f32.mrb[0].mxu0
      %v957 = vadd.f32 0.0, %v956
      %v958 = vpop.f32.mrb[0].mxu0
      %v959 = vpop.f32.mrb[0].mxu0
      %v960 = vadd.f32 0.0, %v959
      %v961 = vpop.f32.mrb[0].mxu0
      %962 = vdwg.mxu0
      %v979 = vunpack.c.l.b16 %v513
      %v980 = vunpack.c.l.b16 %v514
      %v981 = vunpack.c.l.b16 %v515
      %v982 = vunpack.c.l.b16 %v516
      %v983 = vunpack.c.l.b16 %v517
      %v984 = vunpack.c.l.b16 %v518
      %v985 = vunpack.c.l.b16 %v519
      %v986 = vunpack.c.l.b16 %v520
      %v987 = vunpack.c.l.b16 %v521
      %v988 = vunpack.c.l.b16 %v522
      %v989 = vunpack.c.l.b16 %v523
      %v990 = vunpack.c.l.b16 %v524
      %v991 = vunpack.c.l.b16 %v525
      %v992 = vunpack.c.l.b16 %v526
      %v993 = vunpack.c.l.b16 %v527
      %v994 = vunpack.c.l.b16 %v528
      %v995 = vpack.c.b16 %v980, %v979
      %v996 = vpack.c.b16 %v982, %v981
      %v997 = vpack.c.b16 %v984, %v983
      %v998 = vpack.c.b16 %v986, %v985
      %v999 = vpack.c.b16 %v988, %v987
      %v1000 = vpack.c.b16 %v990, %v989
      %v1001 = vpack.c.b16 %v992, %v991
      %v1002 = vpack.c.b16 %v994, %v993
      %1011 = vmatprep.subr.bf16.mxu0 0
      %1012 = vmatpush1.bf16.msra.mxu0 %v995
      %1013 = vmatprep.subr.bf16.mxu0 0
      %1014 = vmatpush1.bf16.msra.mxu0 %v996
      %1015 = vmatprep.subr.bf16.mxu0 0
      %1016 = vmatpush1.bf16.msra.mxu0 %v997
      %1017 = vmatprep.subr.bf16.mxu0 0
      %1018 = vmatpush1.bf16.msra.mxu0 %v998
      %1019 = vmatprep.subr.bf16.mxu0 0
      %1020 = vmatpush1.bf16.msra.mxu0 %v999
      %1021 = vmatprep.subr.bf16.mxu0 0
      %1022 = vmatpush1.bf16.msra.mxu0 %v1000
      %1023 = vmatprep.subr.bf16.mxu0 0
      %1024 = vmatpush1.bf16.msra.mxu0 %v1001
      %1025 = vmatprep.subr.bf16.mxu0 0
      %1026 = vmatpush1.bf16.msra.mxu0 %v1002
      %1027 = vmatprep.subr.bf16.mxu0 0
      %1028 = vmatpush1.bf16.msra.mxu0 0
      %1029 = vmatprep.subr.bf16.mxu0 0
      %1030 = vmatpush1.bf16.msra.mxu0 0
      %1031 = vmatprep.subr.bf16.mxu0 0
      %1032 = vmatpush1.bf16.msra.mxu0 0
      %1033 = vmatprep.subr.bf16.mxu0 0
      %1034 = vmatpush1.bf16.msra.mxu0 0
      %1035 = vmatprep.subr.bf16.mxu0 0
      %1036 = vmatpush1.bf16.msra.mxu0 0
      %1037 = vmatprep.subr.bf16.mxu0 0
      %1038 = vmatpush1.bf16.msra.mxu0 0
      %1039 = vmatprep.subr.bf16.mxu0 0
      %1040 = vmatpush1.bf16.msra.mxu0 0
      %1041 = vmatprep.subr.bf16.mxu0 0
      %1042 = vmatpush1.bf16.msra.mxu0 0
      %1043 = vmatprep.mubr.bf16.mxu0 0
      %1044 = vmatmul.mubr.bf16.gmra.mrb[0].mxu0 %v477
      %v1045 = vpop.f32.mrb[0].mxu0
      %v1046 = vadd.f32 %v837, %v1045
      %v1047 = vpop.f32.mrb[0].mxu0
      %v1048 = vpop.f32.mrb[0].mxu0
      %v1049 = vadd.f32 %v840, %v1048
      %v1050 = vpop.f32.mrb[0].mxu0
      %1051 = vmatprep.mubr.bf16.mxu0 0
      %1052 = vmatmul.mubr.bf16.gmra.mrb[0].mxu0 %v478
      %v1053 = vpop.f32.mrb[0].mxu0
      %v1054 = vadd.f32 %v845, %v1053
      %v1055 = vpop.f32.mrb[0].mxu0
      %v1056 = vpop.f32.mrb[0].mxu0
      %v1057 = vadd.f32 %v848, %v1056
      %v1058 = vpop.f32.mrb[0].mxu0
      %1059 = vmatprep.mubr.bf16.mxu0 0
      %1060 = vmatmul.mubr.bf16.gmra.mrb[0].mxu0 %v479
      %v1061 = vpop.f32.mrb[0].mxu0
      %v1062 = vadd.f32 %v853, %v1061
      %v1063 = vpop.f32.mrb[0].mxu0
      %v1064 = vpop.f32.mrb[0].mxu0
      %v1065 = vadd.f32 %v856, %v1064
      %v1066 = vpop.f32.mrb[0].mxu0
      %1067 = vmatprep.mubr.bf16.mxu0 0
      %1068 = vmatmul.mubr.bf16.gmra.mrb[0].mxu0 %v480
      %v1069 = vpop.f32.mrb[0].mxu0
      %v1070 = vadd.f32 %v861, %v1069
      %v1071 = vpop.f32.mrb[0].mxu0
      %v1072 = vpop.f32.mrb[0].mxu0
      %v1073 = vadd.f32 %v864, %v1072
      %v1074 = vpop.f32.mrb[0].mxu0
      %1075 = vmatprep.mubr.bf16.mxu0 0
      %1076 = vmatmul.mubr.bf16.gmra.mrb[0].mxu0 %v481
      %v1077 = vpop.f32.mrb[0].mxu0
      %v1078 = vadd.f32 %v869, %v1077
      %v1079 = vpop.f32.mrb[0].mxu0
      %v1080 = vpop.f32.mrb[0].mxu0
      %v1081 = vadd.f32 %v872, %v1080
      %v1082 = vpop.f32.mrb[0].mxu0
      %1083 = vmatprep.mubr.bf16.mxu0 0
      %1084 = vmatmul.mubr.bf16.gmra.mrb[0].mxu0 %v482
      %v1085 = vpop.f32.mrb[0].mxu0
      %v1086 = vadd.f32 %v877, %v1085
      %v1087 = vpop.f32.mrb[0].mxu0
      %v1088 = vpop.f32.mrb[0].mxu0
      %v1089 = vadd.f32 %v880, %v1088
      %v1090 = vpop.f32.mrb[0].mxu0
      %1091 = vmatprep.mubr.bf16.mxu0 0
      %1092 = vmatmul.mubr.bf16.gmra.mrb[0].mxu0 %v483
      %v1093 = vpop.f32.mrb[0].mxu0
      %v1094 = vadd.f32 %v885, %v1093
      %v1095 = vpop.f32.mrb[0].mxu0
      %v1096 = vpop.f32.mrb[0].mxu0
      %v1097 = vadd.f32 %v888, %v1096
      %v1098 = vpop.f32.mrb[0].mxu0
      %1099 = vmatprep.mubr.bf16.mxu0 0
      %1100 = vmatmul.mubr.bf16.gmra.mrb[0].mxu0 %v484
      %v1101 = vpop.f32.mrb[0].mxu0
      %v1102 = vadd.f32 %v893, %v1101
      %v1103 = vpop.f32.mrb[0].mxu0
      %v1104 = vpop.f32.mrb[0].mxu0
      %v1105 = vadd.f32 %v896, %v1104
      %v1106 = vpop.f32.mrb[0].mxu0
      %1107 = vmatprep.mubr.bf16.mxu0 0
      %1108 = vmatmul.mubr.bf16.gmra.mrb[0].mxu0 %v485
      %v1109 = vpop.f32.mrb[0].mxu0
      %v1110 = vadd.f32 %v901, %v1109
      %v1111 = vpop.f32.mrb[0].mxu0
      %v1112 = vpop.f32.mrb[0].mxu0
      %v1113 = vadd.f32 %v904, %v1112
      %v1114 = vpop.f32.mrb[0].mxu0
      %1115 = vmatprep.mubr.bf16.mxu0 0
      %1116 = vmatmul.mubr.bf16.gmra.mrb[0].mxu0 %v486
      %v1117 = vpop.f32.mrb[0].mxu0
      %v1118 = vadd.f32 %v909, %v1117
      %v1119 = vpop.f32.mrb[0].mxu0
      %v1120 = vpop.f32.mrb[0].mxu0
      %v1121 = vadd.f32 %v912, %v1120
      %v1122 = vpop.f32.mrb[0].mxu0
      %1123 = vmatprep.mubr.bf16.mxu0 0
      %1124 = vmatmul.mubr.bf16.gmra.mrb[0].mxu0 %v487
      %v1125 = vpop.f32.mrb[0].mxu0
      %v1126 = vadd.f32 %v917, %v1125
      %v1127 = vpop.f32.mrb[0].mxu0
      %v1128 = vpop.f32.mrb[0].mxu0
      %v1129 = vadd.f32 %v920, %v1128
      %v1130 = vpop.f32.mrb[0].mxu0
      %1131 = vmatprep.mubr.bf16.mxu0 0
      %1132 = vmatmul.mubr.bf16.gmra.mrb[0].mxu0 %v488
      %v1133 = vpop.f32.mrb[0].mxu0
      %v1134 = vadd.f32 %v925, %v1133
      %v1135 = vpop.f32.mrb[0].mxu0
      %v1136 = vpop.f32.mrb[0].mxu0
      %v1137 = vadd.f32 %v928, %v1136
      %v1138 = vpop.f32.mrb[0].mxu0
      %1139 = vmatprep.mubr.bf16.mxu0 0
      %1140 = vmatmul.mubr.bf16.gmra.mrb[0].mxu0 %v489
      %v1141 = vpop.f32.mrb[0].mxu0
      %v1142 = vadd.f32 %v933, %v1141
      %v1143 = vpop.f32.mrb[0].mxu0
      %v1144 = vpop.f32.mrb[0].mxu0
      %v1145 = vadd.f32 %v936, %v1144
      %v1146 = vpop.f32.mrb[0].mxu0
      %1147 = vmatprep.mubr.bf16.mxu0 0
      %1148 = vmatmul.mubr.bf16.gmra.mrb[0].mxu0 %v490
      %v1149 = vpop.f32.mrb[0].mxu0
      %v1150 = vadd.f32 %v941, %v1149
      %v1151 = vpop.f32.mrb[0].mxu0
      %v1152 = vpop.f32.mrb[0].mxu0
      %v1153 = vadd.f32 %v944, %v1152
      %v1154 = vpop.f32.mrb[0].mxu0
      %1155 = vmatprep.mubr.bf16.mxu0 0
      %1156 = vmatmul.mubr.bf16.gmra.mrb[0].mxu0 %v491
      %v1157 = vpop.f32.mrb[0].mxu0
      %v1158 = vadd.f32 %v949, %v1157
      %v1159 = vpop.f32.mrb[0].mxu0
      %v1160 = vpop.f32.mrb[0].mxu0
      %v1161 = vadd.f32 %v952, %v1160
      %v1162 = vpop.f32.mrb[0].mxu0
      %1163 = vmatprep.mubr.bf16.mxu0 0
      %1164 = vmatmul.mubr.bf16.gmra.mrb[0].mxu0 %v492
      %v1165 = vpop.f32.mrb[0].mxu0
      %v1166 = vadd.f32 %v957, %v1165
      %v1167 = vpop.f32.mrb[0].mxu0
      %v1168 = vpop.f32.mrb[0].mxu0
      %v1169 = vadd.f32 %v960, %v1168
      %v1170 = vpop.f32.mrb[0].mxu0
      %1171 = vdwg.mxu0
      %vm1204 = vcmask 1046528
      %v1205 = vrot.slane %v477, 1
      %v1206 = vrot.slane %v495, 1
      %v1207 = vsel %vm1204, %v1205, %v1206
      %v1208 = vrot.slane %v478, 1
      %v1209 = vrot.slane %v496, 1
      %v1210 = vsel %vm1204, %v1208, %v1209
      %v1211 = vrot.slane %v479, 1
      %v1212 = vrot.slane %v497, 1
      %v1213 = vsel %vm1204, %v1211, %v1212
      %v1214 = vrot.slane %v480, 1
      %v1215 = vrot.slane %v498, 1
      %v1216 = vsel %vm1204, %v1214, %v1215
      %v1217 = vrot.slane %v481, 1
      %v1218 = vrot.slane %v499, 1
      %v1219 = vsel %vm1204, %v1217, %v1218
      %v1220 = vrot.slane %v482, 1
      %v1221 = vrot.slane %v500, 1
      %v1222 = vsel %vm1204, %v1220, %v1221
      %v1223 = vrot.slane %v483, 1
      %v1224 = vrot.slane %v501, 1
      %v1225 = vsel %vm1204, %v1223, %v1224
      %v1226 = vrot.slane %v484, 1
      %v1227 = vrot.slane %v502, 1
      %v1228 = vsel %vm1204, %v1226, %v1227
      %v1229 = vrot.slane %v485, 1
      %v1230 = vrot.slane %v503, 1
      %v1231 = vsel %vm1204, %v1229, %v1230
      %v1232 = vrot.slane %v486, 1
      %v1233 = vrot.slane %v504, 1
      %v1234 = vsel %vm1204, %v1232, %v1233
      %v1235 = vrot.slane %v487, 1
      %v1236 = vrot.slane %v505, 1
      %v1237 = vsel %vm1204, %v1235, %v1236
      %v1238 = vrot.slane %v488, 1
      %v1239 = vrot.slane %v506, 1
      %v1240 = vsel %vm1204, %v1238, %v1239
      %v1241 = vrot.slane %v489, 1
      %v1242 = vrot.slane %v507, 1
      %v1243 = vsel %vm1204, %v1241, %v1242
      %v1244 = vrot.slane %v490, 1
      %v1245 = vrot.slane %v508, 1
      %v1246 = vsel %vm1204, %v1244, %v1245
      %v1247 = vrot.slane %v491, 1
      %v1248 = vrot.slane %v509, 1
      %v1249 = vsel %vm1204, %v1247, %v1248
      %v1250 = vrot.slane %v492, 1
      %v1251 = vrot.slane %v510, 1
      %v1252 = vsel %vm1204, %v1250, %v1251
      %v1269 = vld [vmem:[%s184 + $0x80] sm:$0xf]
      %v1270 = vld [vmem:[%s184 + $0x84] sm:$0xf]
      %v1271 = vld [vmem:[%s184 + $0x88] sm:$0xf]
      %v1272 = vld [vmem:[%s184 + $0x8c] sm:$0xf]
      %v1273 = vld [vmem:[%s184 + $0x90] sm:$0xf]
      %v1274 = vld [vmem:[%s184 + $0x94] sm:$0xf]
      %v1275 = vld [vmem:[%s184 + $0x98] sm:$0xf]
      %v1276 = vld [vmem:[%s184 + $0x9c] sm:$0xf]
      %v1277 = vld [vmem:[%s184 + $0xa0] sm:$0xf]
      %v1278 = vld [vmem:[%s184 + $0xa4] sm:$0xf]
      %v1279 = vld [vmem:[%s184 + $0xa8] sm:$0xf]
      %v1280 = vld [vmem:[%s184 + $0xac] sm:$0xf]
      %v1281 = vld [vmem:[%s184 + $0xb0] sm:$0xf]
      %v1282 = vld [vmem:[%s184 + $0xb4] sm:$0xf]
      %v1283 = vld [vmem:[%s184 + $0xb8] sm:$0xf]
      %v1284 = vld [vmem:[%s184 + $0xbc] sm:$0xf]
      %v1301 = vunpack.c.l.b16 %v1269
      %v1302 = vunpack.c.l.b16 %v1270
      %v1303 = vunpack.c.l.b16 %v1271
      %v1304 = vunpack.c.l.b16 %v1272
      %v1305 = vunpack.c.l.b16 %v1273
      %v1306 = vunpack.c.l.b16 %v1274
      %v1307 = vunpack.c.l.b16 %v1275
      %v1308 = vunpack.c.l.b16 %v1276
      %v1309 = vunpack.c.l.b16 %v1277
      %v1310 = vunpack.c.l.b16 %v1278
      %v1311 = vunpack.c.l.b16 %v1279
      %v1312 = vunpack.c.l.b16 %v1280
      %v1313 = vunpack.c.l.b16 %v1281
      %v1314 = vunpack.c.l.b16 %v1282
      %v1315 = vunpack.c.l.b16 %v1283
      %v1316 = vunpack.c.l.b16 %v1284
      %v1317 = vpack.c.b16 %v1302, %v1301
      %v1318 = vpack.c.b16 %v1304, %v1303
      %v1319 = vpack.c.b16 %v1306, %v1305
      %v1320 = vpack.c.b16 %v1308, %v1307
      %v1321 = vpack.c.b16 %v1310, %v1309
      %v1322 = vpack.c.b16 %v1312, %v1311
      %v1323 = vpack.c.b16 %v1314, %v1313
      %v1324 = vpack.c.b16 %v1316, %v1315
      %1333 = vmatprep.subr.bf16.mxu0 0
      %1334 = vmatpush1.bf16.msra.mxu0 %v1317
      %1335 = vmatprep.subr.bf16.mxu0 0
      %1336 = vmatpush1.bf16.msra.mxu0 %v1318
      %1337 = vmatprep.subr.bf16.mxu0 0
      %1338 = vmatpush1.bf16.msra.mxu0 %v1319
      %1339 = vmatprep.subr.bf16.mxu0 0
      %1340 = vmatpush1.bf16.msra.mxu0 %v1320
      %1341 = vmatprep.subr.bf16.mxu0 0
      %1342 = vmatpush1.bf16.msra.mxu0 %v1321
      %1343 = vmatprep.subr.bf16.mxu0 0
      %1344 = vmatpush1.bf16.msra.mxu0 %v1322
      %1345 = vmatprep.subr.bf16.mxu0 0
      %1346 = vmatpush1.bf16.msra.mxu0 %v1323
      %1347 = vmatprep.subr.bf16.mxu0 0
      %1348 = vmatpush1.bf16.msra.mxu0 %v1324
      %1349 = vmatprep.subr.bf16.mxu0 0
      %1350 = vmatpush1.bf16.msra.mxu0 0
      %1351 = vmatprep.subr.bf16.mxu0 0
      %1352 = vmatpush1.bf16.msra.mxu0 0
      %1353 = vmatprep.subr.bf16.mxu0 0
      %1354 = vmatpush1.bf16.msra.mxu0 0
      %1355 = vmatprep.subr.bf16.mxu0 0
      %1356 = vmatpush1.bf16.msra.mxu0 0
      %1357 = vmatprep.subr.bf16.mxu0 0
      %1358 = vmatpush1.bf16.msra.mxu0 0
      %1359 = vmatprep.subr.bf16.mxu0 0
      %1360 = vmatpush1.bf16.msra.mxu0 0
      %1361 = vmatprep.subr.bf16.mxu0 0
      %1362 = vmatpush1.bf16.msra.mxu0 0
      %1363 = vmatprep.subr.bf16.mxu0 0
      %1364 = vmatpush1.bf16.msra.mxu0 0
      %1365 = vmatprep.mubr.bf16.mxu0 0
      %1366 = vmatmul.mubr.bf16.gmra.mrb[0].mxu0 %v1207
      %v1367 = vpop.f32.mrb[0].mxu0
      %v1368 = vadd.f32 0.0, %v1367
      %v1369 = vpop.f32.mrb[0].mxu0
      %v1370 = vpop.f32.mrb[0].mxu0
      %v1371 = vadd.f32 0.0, %v1370
      %v1372 = vpop.f32.mrb[0].mxu0
      %1373 = vmatprep.mubr.bf16.mxu0 0
      %1374 = vmatmul.mubr.bf16.gmra.mrb[0].mxu0 %v1210
      %v1375 = vpop.f32.mrb[0].mxu0
      %v1376 = vadd.f32 0.0, %v1375
      %v1377 = vpop.f32.mrb[0].mxu0
      %v1378 = vpop.f32.mrb[0].mxu0
      %v1379 = vadd.f32 0.0, %v1378
      %v1380 = vpop.f32.mrb[0].mxu0
      %1381 = vmatprep.mubr.bf16.mxu0 0
      %1382 = vmatmul.mubr.bf16.gmra.mrb[0].mxu0 %v1213
      %v1383 = vpop.f32.mrb[0].mxu0
      %v1384 = vadd.f32 0.0, %v1383
      %v1385 = vpop.f32.mrb[0].mxu0
      %v1386 = vpop.f32.mrb[0].mxu0
      %v1387 = vadd.f32 0.0, %v1386
      %v1388 = vpop.f32.mrb[0].mxu0
      %1389 = vmatprep.mubr.bf16.mxu0 0
      %1390 = vmatmul.mubr.bf16.gmra.mrb[0].mxu0 %v1216
      %v1391 = vpop.f32.mrb[0].mxu0
      %v1392 = vadd.f32 0.0, %v1391
      %v1393 = vpop.f32.mrb[0].mxu0
      %v1394 = vpop.f32.mrb[0].mxu0
      %v1395 = vadd.f32 0.0, %v1394
      %v1396 = vpop.f32.mrb[0].mxu0
      %1397 = vmatprep.mubr.bf16.mxu0 0
      %1398 = vmatmul.mubr.bf16.gmra.mrb[0].mxu0 %v1219
      %v1399 = vpop.f32.mrb[0].mxu0
      %v1400 = vadd.f32 0.0, %v1399
      %v1401 = vpop.f32.mrb[0].mxu0
      %v1402 = vpop.f32.mrb[0].mxu0
      %v1403 = vadd.f32 0.0, %v1402
      %v1404 = vpop.f32.mrb[0].mxu0
      %1405 = vmatprep.mubr.bf16.mxu0 0
      %1406 = vmatmul.mubr.bf16.gmra.mrb[0].mxu0 %v1222
      %v1407 = vpop.f32.mrb[0].mxu0
      %v1408 = vadd.f32 0.0, %v1407
      %v1409 = vpop.f32.mrb[0].mxu0
      %v1410 = vpop.f32.mrb[0].mxu0
      %v1411 = vadd.f32 0.0, %v1410
      %v1412 = vpop.f32.mrb[0].mxu0
      %1413 = vmatprep.mubr.bf16.mxu0 0
      %1414 = vmatmul.mubr.bf16.gmra.mrb[0].mxu0 %v1225
      %v1415 = vpop.f32.mrb[0].mxu0
      %v1416 = vadd.f32 0.0, %v1415
      %v1417 = vpop.f32.mrb[0].mxu0
      %v1418 = vpop.f32.mrb[0].mxu0
      %v1419 = vadd.f32 0.0, %v1418
      %v1420 = vpop.f32.mrb[0].mxu0
      %1421 = vmatprep.mubr.bf16.mxu0 0
      %1422 = vmatmul.mubr.bf16.gmra.mrb[0].mxu0 %v1228
      %v1423 = vpop.f32.mrb[0].mxu0
      %v1424 = vadd.f32 0.0, %v1423
      %v1425 = vpop.f32.mrb[0].mxu0
      %v1426 = vpop.f32.mrb[0].mxu0
      %v1427 = vadd.f32 0.0, %v1426
      %v1428 = vpop.f32.mrb[0].mxu0
      %1429 = vmatprep.mubr.bf16.mxu0 0
      %1430 = vmatmul.mubr.bf16.gmra.mrb[0].mxu0 %v1231
      %v1431 = vpop.f32.mrb[0].mxu0
      %v1432 = vadd.f32 0.0, %v1431
      %v1433 = vpop.f32.mrb[0].mxu0
      %v1434 = vpop.f32.mrb[0].mxu0
      %v1435 = vadd.f32 0.0, %v1434
      %v1436 = vpop.f32.mrb[0].mxu0
      %1437 = vmatprep.mubr.bf16.mxu0 0
      %1438 = vmatmul.mubr.bf16.gmra.mrb[0].mxu0 %v1234
      %v1439 = vpop.f32.mrb[0].mxu0
      %v1440 = vadd.f32 0.0, %v1439
      %v1441 = vpop.f32.mrb[0].mxu0
      %v1442 = vpop.f32.mrb[0].mxu0
      %v1443 = vadd.f32 0.0, %v1442
      %v1444 = vpop.f32.mrb[0].mxu0
      %1445 = vmatprep.mubr.bf16.mxu0 0
      %1446 = vmatmul.mubr.bf16.gmra.mrb[0].mxu0 %v1237
      %v1447 = vpop.f32.mrb[0].mxu0
      %v1448 = vadd.f32 0.0, %v1447
      %v1449 = vpop.f32.mrb[0].mxu0
      %v1450 = vpop.f32.mrb[0].mxu0
      %v1451 = vadd.f32 0.0, %v1450
      %v1452 = vpop.f32.mrb[0].mxu0
      %1453 = vmatprep.mubr.bf16.mxu0 0
      %1454 = vmatmul.mubr.bf16.gmra.mrb[0].mxu0 %v1240
      %v1455 = vpop.f32.mrb[0].mxu0
      %v1456 = vadd.f32 0.0, %v1455
      %v1457 = vpop.f32.mrb[0].mxu0
      %v1458 = vpop.f32.mrb[0].mxu0
      %v1459 = vadd.f32 0.0, %v1458
      %v1460 = vpop.f32.mrb[0].mxu0
      %1461 = vmatprep.mubr.bf16.mxu0 0
      %1462 = vmatmul.mubr.bf16.gmra.mrb[0].mxu0 %v1243
      %v1463 = vpop.f32.mrb[0].mxu0
      %v1464 = vadd.f32 0.0, %v1463
      %v1465 = vpop.f32.mrb[0].mxu0
      %v1466 = vpop.f32.mrb[0].mxu0
      %v1467 = vadd.f32 0.0, %v1466
      %v1468 = vpop.f32.mrb[0].mxu0
      %1469 = vmatprep.mubr.bf16.mxu0 0
      %1470 = vmatmul.mubr.bf16.gmra.mrb[0].mxu0 %v1246
      %v1471 = vpop.f32.mrb[0].mxu0
      %v1472 = vadd.f32 0.0, %v1471
      %v1473 = vpop.f32.mrb[0].mxu0
      %v1474 = vpop.f32.mrb[0].mxu0
      %v1475 = vadd.f32 0.0, %v1474
      %v1476 = vpop.f32.mrb[0].mxu0
      %1477 = vmatprep.mubr.bf16.mxu0 0
      %1478 = vmatmul.mubr.bf16.gmra.mrb[0].mxu0 %v1249
      %v1479 = vpop.f32.mrb[0].mxu0
      %v1480 = vadd.f32 0.0, %v1479
      %v1481 = vpop.f32.mrb[0].mxu0
      %v1482 = vpop.f32.mrb[0].mxu0
      %v1483 = vadd.f32 0.0, %v1482
      %v1484 = vpop.f32.mrb[0].mxu0
      %1485 = vmatprep.mubr.bf16.mxu0 0
      %1486 = vmatmul.mubr.bf16.gmra.mrb[0].mxu0 %v1252
      %v1487 = vpop.f32.mrb[0].mxu0
      %v1488 = vadd.f32 0.0, %v1487
      %v1489 = vpop.f32.mrb[0].mxu0
      %v1490 = vpop.f32.mrb[0].mxu0
      %v1491 = vadd.f32 0.0, %v1490
      %v1492 = vpop.f32.mrb[0].mxu0
      %1493 = vdwg.mxu0
      %v1494 = vadd.f32 %v1046, %v1368
      %v1495 = vadd.f32 %v1049, %v1371
      %v1496 = vadd.f32 %v1054, %v1376
      %v1497 = vadd.f32 %v1057, %v1379
      %v1498 = vadd.f32 %v1062, %v1384
      %v1499 = vadd.f32 %v1065, %v1387
      %v1500 = vadd.f32 %v1070, %v1392
      %v1501 = vadd.f32 %v1073, %v1395
      %v1502 = vadd.f32 %v1078, %v1400
      %v1503 = vadd.f32 %v1081, %v1403
      %v1504 = vadd.f32 %v1086, %v1408
      %v1505 = vadd.f32 %v1089, %v1411
      %v1506 = vadd.f32 %v1094, %v1416
      %v1507 = vadd.f32 %v1097, %v1419
      %v1508 = vadd.f32 %v1102, %v1424
      %v1509 = vadd.f32 %v1105, %v1427
      %v1510 = vadd.f32 %v1110, %v1432
      %v1511 = vadd.f32 %v1113, %v1435
      %v1512 = vadd.f32 %v1118, %v1440
      %v1513 = vadd.f32 %v1121, %v1443
      %v1514 = vadd.f32 %v1126, %v1448
      %v1515 = vadd.f32 %v1129, %v1451
      %v1516 = vadd.f32 %v1134, %v1456
      %v1517 = vadd.f32 %v1137, %v1459
      %v1518 = vadd.f32 %v1142, %v1464
      %v1519 = vadd.f32 %v1145, %v1467
      %v1520 = vadd.f32 %v1150, %v1472
      %v1521 = vadd.f32 %v1153, %v1475
      %v1522 = vadd.f32 %v1158, %v1480
      %v1523 = vadd.f32 %v1161, %v1483
      %v1524 = vadd.f32 %v1166, %v1488
      %v1525 = vadd.f32 %v1169, %v1491
      %v1526 = vld [vmem:[%s184 + $0xc0] sm:$0xf]
      %v1527 = vld [vmem:[%s184 + $0xc4] sm:$0xf]
      %v1528 = vld [vmem:[%s184 + $0xc8] sm:$0xf]
      %v1529 = vld [vmem:[%s184 + $0xcc] sm:$0xf]
      %v1530 = vld [vmem:[%s184 + $0xd0] sm:$0xf]
      %v1531 = vld [vmem:[%s184 + $0xd4] sm:$0xf]
      %v1532 = vld [vmem:[%s184 + $0xd8] sm:$0xf]
      %v1533 = vld [vmem:[%s184 + $0xdc] sm:$0xf]
      %v1534 = vld [vmem:[%s184 + $0xe0] sm:$0xf]
      %v1535 = vld [vmem:[%s184 + $0xe4] sm:$0xf]
      %v1536 = vld [vmem:[%s184 + $0xe8] sm:$0xf]
      %v1537 = vld [vmem:[%s184 + $0xec] sm:$0xf]
      %v1538 = vld [vmem:[%s184 + $0xf0] sm:$0xf]
      %v1539 = vld [vmem:[%s184 + $0xf4] sm:$0xf]
      %v1540 = vld [vmem:[%s184 + $0xf8] sm:$0xf]
      %v1541 = vld [vmem:[%s184 + $0xfc] sm:$0xf]
      %v1558 = vunpack.c.l.b16 %v1526
      %v1559 = vunpack.c.l.b16 %v1527
      %v1560 = vunpack.c.l.b16 %v1528
      %v1561 = vunpack.c.l.b16 %v1529
      %v1562 = vunpack.c.l.b16 %v1530
      %v1563 = vunpack.c.l.b16 %v1531
      %v1564 = vunpack.c.l.b16 %v1532
      %v1565 = vunpack.c.l.b16 %v1533
      %v1566 = vunpack.c.l.b16 %v1534
      %v1567 = vunpack.c.l.b16 %v1535
      %v1568 = vunpack.c.l.b16 %v1536
      %v1569 = vunpack.c.l.b16 %v1537
      %v1570 = vunpack.c.l.b16 %v1538
      %v1571 = vunpack.c.l.b16 %v1539
      %v1572 = vunpack.c.l.b16 %v1540
      %v1573 = vunpack.c.l.b16 %v1541
      %v1574 = vpack.c.b16 %v1559, %v1558
      %v1575 = vpack.c.b16 %v1561, %v1560
      %v1576 = vpack.c.b16 %v1563, %v1562
      %v1577 = vpack.c.b16 %v1565, %v1564
      %v1578 = vpack.c.b16 %v1567, %v1566
      %v1579 = vpack.c.b16 %v1569, %v1568
      %v1580 = vpack.c.b16 %v1571, %v1570
      %v1581 = vpack.c.b16 %v1573, %v1572
      %1590 = vmatprep.subr.bf16.mxu0 0
      %1591 = vmatpush1.bf16.msra.mxu0 %v1574
      %1592 = vmatprep.subr.bf16.mxu0 0
      %1593 = vmatpush1.bf16.msra.mxu0 %v1575
      %1594 = vmatprep.subr.bf16.mxu0 0
      %1595 = vmatpush1.bf16.msra.mxu0 %v1576
      %1596 = vmatprep.subr.bf16.mxu0 0
      %1597 = vmatpush1.bf16.msra.mxu0 %v1577
      %1598 = vmatprep.subr.bf16.mxu0 0
      %1599 = vmatpush1.bf16.msra.mxu0 %v1578
      %1600 = vmatprep.subr.bf16.mxu0 0
      %1601 = vmatpush1.bf16.msra.mxu0 %v1579
      %1602 = vmatprep.subr.bf16.mxu0 0
      %1603 = vmatpush1.bf16.msra.mxu0 %v1580
      %1604 = vmatprep.subr.bf16.mxu0 0
      %1605 = vmatpush1.bf16.msra.mxu0 %v1581
      %1606 = vmatprep.subr.bf16.mxu0 0
      %1607 = vmatpush1.bf16.msra.mxu0 0
      %1608 = vmatprep.subr.bf16.mxu0 0
      %1609 = vmatpush1.bf16.msra.mxu0 0
      %1610 = vmatprep.subr.bf16.mxu0 0
      %1611 = vmatpush1.bf16.msra.mxu0 0
      %1612 = vmatprep.subr.bf16.mxu0 0
      %1613 = vmatpush1.bf16.msra.mxu0 0
      %1614 = vmatprep.subr.bf16.mxu0 0
      %1615 = vmatpush1.bf16.msra.mxu0 0
      %1616 = vmatprep.subr.bf16.mxu0 0
      %1617 = vmatpush1.bf16.msra.mxu0 0
      %1618 = vmatprep.subr.bf16.mxu0 0
      %1619 = vmatpush1.bf16.msra.mxu0 0
      %1620 = vmatprep.subr.bf16.mxu0 0
      %1621 = vmatpush1.bf16.msra.mxu0 0
      %1622 = vmatprep.mubr.bf16.mxu0 0
      %1623 = vmatmul.mubr.bf16.gmra.mrb[0].mxu0 %v478
      %v1624 = vpop.f32.mrb[0].mxu0
      %v1625 = vadd.f32 0.0, %v1624
      %v1626 = vpop.f32.mrb[0].mxu0
      %v1627 = vpop.f32.mrb[0].mxu0
      %v1628 = vadd.f32 0.0, %v1627
      %v1629 = vpop.f32.mrb[0].mxu0
      %1630 = vmatprep.mubr.bf16.mxu0 0
      %1631 = vmatmul.mubr.bf16.gmra.mrb[0].mxu0 %v479
      %v1632 = vpop.f32.mrb[0].mxu0
      %v1633 = vadd.f32 0.0, %v1632
      %v1634 = vpop.f32.mrb[0].mxu0
      %v1635 = vpop.f32.mrb[0].mxu0
      %v1636 = vadd.f32 0.0, %v1635
      %v1637 = vpop.f32.mrb[0].mxu0
      %1638 = vmatprep.mubr.bf16.mxu0 0
      %1639 = vmatmul.mubr.bf16.gmra.mrb[0].mxu0 %v480
      %v1640 = vpop.f32.mrb[0].mxu0
      %v1641 = vadd.f32 0.0, %v1640
      %v1642 = vpop.f32.mrb[0].mxu0
      %v1643 = vpop.f32.mrb[0].mxu0
      %v1644 = vadd.f32 0.0, %v1643
      %v1645 = vpop.f32.mrb[0].mxu0
      %1646 = vmatprep.mubr.bf16.mxu0 0
      %1647 = vmatmul.mubr.bf16.gmra.mrb[0].mxu0 %v481
      %v1648 = vpop.f32.mrb[0].mxu0
      %v1649 = vadd.f32 0.0, %v1648
      %v1650 = vpop.f32.mrb[0].mxu0
      %v1651 = vpop.f32.mrb[0].mxu0
      %v1652 = vadd.f32 0.0, %v1651
      %v1653 = vpop.f32.mrb[0].mxu0
      %1654 = vmatprep.mubr.bf16.mxu0 0
      %1655 = vmatmul.mubr.bf16.gmra.mrb[0].mxu0 %v482
      %v1656 = vpop.f32.mrb[0].mxu0
      %v1657 = vadd.f32 0.0, %v1656
      %v1658 = vpop.f32.mrb[0].mxu0
      %v1659 = vpop.f32.mrb[0].mxu0
      %v1660 = vadd.f32 0.0, %v1659
      %v1661 = vpop.f32.mrb[0].mxu0
      %1662 = vmatprep.mubr.bf16.mxu0 0
      %1663 = vmatmul.mubr.bf16.gmra.mrb[0].mxu0 %v483
      %v1664 = vpop.f32.mrb[0].mxu0
      %v1665 = vadd.f32 0.0, %v1664
      %v1666 = vpop.f32.mrb[0].mxu0
      %v1667 = vpop.f32.mrb[0].mxu0
      %v1668 = vadd.f32 0.0, %v1667
      %v1669 = vpop.f32.mrb[0].mxu0
      %1670 = vmatprep.mubr.bf16.mxu0 0
      %1671 = vmatmul.mubr.bf16.gmra.mrb[0].mxu0 %v484
      %v1672 = vpop.f32.mrb[0].mxu0
      %v1673 = vadd.f32 0.0, %v1672
      %v1674 = vpop.f32.mrb[0].mxu0
      %v1675 = vpop.f32.mrb[0].mxu0
      %v1676 = vadd.f32 0.0, %v1675
      %v1677 = vpop.f32.mrb[0].mxu0
      %1678 = vmatprep.mubr.bf16.mxu0 0
      %1679 = vmatmul.mubr.bf16.gmra.mrb[0].mxu0 %v485
      %v1680 = vpop.f32.mrb[0].mxu0
      %v1681 = vadd.f32 0.0, %v1680
      %v1682 = vpop.f32.mrb[0].mxu0
      %v1683 = vpop.f32.mrb[0].mxu0
      %v1684 = vadd.f32 0.0, %v1683
      %v1685 = vpop.f32.mrb[0].mxu0
      %1686 = vmatprep.mubr.bf16.mxu0 0
      %1687 = vmatmul.mubr.bf16.gmra.mrb[0].mxu0 %v486
      %v1688 = vpop.f32.mrb[0].mxu0
      %v1689 = vadd.f32 0.0, %v1688
      %v1690 = vpop.f32.mrb[0].mxu0
      %v1691 = vpop.f32.mrb[0].mxu0
      %v1692 = vadd.f32 0.0, %v1691
      %v1693 = vpop.f32.mrb[0].mxu0
      %1694 = vmatprep.mubr.bf16.mxu0 0
      %1695 = vmatmul.mubr.bf16.gmra.mrb[0].mxu0 %v487
      %v1696 = vpop.f32.mrb[0].mxu0
      %v1697 = vadd.f32 0.0, %v1696
      %v1698 = vpop.f32.mrb[0].mxu0
      %v1699 = vpop.f32.mrb[0].mxu0
      %v1700 = vadd.f32 0.0, %v1699
      %v1701 = vpop.f32.mrb[0].mxu0
      %1702 = vmatprep.mubr.bf16.mxu0 0
      %1703 = vmatmul.mubr.bf16.gmra.mrb[0].mxu0 %v488
      %v1704 = vpop.f32.mrb[0].mxu0
      %v1705 = vadd.f32 0.0, %v1704
      %v1706 = vpop.f32.mrb[0].mxu0
      %v1707 = vpop.f32.mrb[0].mxu0
      %v1708 = vadd.f32 0.0, %v1707
      %v1709 = vpop.f32.mrb[0].mxu0
      %1710 = vmatprep.mubr.bf16.mxu0 0
      %1711 = vmatmul.mubr.bf16.gmra.mrb[0].mxu0 %v489
      %v1712 = vpop.f32.mrb[0].mxu0
      %v1713 = vadd.f32 0.0, %v1712
      %v1714 = vpop.f32.mrb[0].mxu0
      %v1715 = vpop.f32.mrb[0].mxu0
      %v1716 = vadd.f32 0.0, %v1715
      %v1717 = vpop.f32.mrb[0].mxu0
      %1718 = vmatprep.mubr.bf16.mxu0 0
      %1719 = vmatmul.mubr.bf16.gmra.mrb[0].mxu0 %v490
      %v1720 = vpop.f32.mrb[0].mxu0
      %v1721 = vadd.f32 0.0, %v1720
      %v1722 = vpop.f32.mrb[0].mxu0
      %v1723 = vpop.f32.mrb[0].mxu0
      %v1724 = vadd.f32 0.0, %v1723
      %v1725 = vpop.f32.mrb[0].mxu0
      %1726 = vmatprep.mubr.bf16.mxu0 0
      %1727 = vmatmul.mubr.bf16.gmra.mrb[0].mxu0 %v491
      %v1728 = vpop.f32.mrb[0].mxu0
      %v1729 = vadd.f32 0.0, %v1728
      %v1730 = vpop.f32.mrb[0].mxu0
      %v1731 = vpop.f32.mrb[0].mxu0
      %v1732 = vadd.f32 0.0, %v1731
      %v1733 = vpop.f32.mrb[0].mxu0
      %1734 = vmatprep.mubr.bf16.mxu0 0
      %1735 = vmatmul.mubr.bf16.gmra.mrb[0].mxu0 %v492
      %v1736 = vpop.f32.mrb[0].mxu0
      %v1737 = vadd.f32 0.0, %v1736
      %v1738 = vpop.f32.mrb[0].mxu0
      %v1739 = vpop.f32.mrb[0].mxu0
      %v1740 = vadd.f32 0.0, %v1739
      %v1741 = vpop.f32.mrb[0].mxu0
      %1742 = vmatprep.mubr.bf16.mxu0 0
      %1743 = vmatmul.mubr.bf16.gmra.mrb[0].mxu0 %v493
      %v1744 = vpop.f32.mrb[0].mxu0
      %v1745 = vadd.f32 0.0, %v1744
      %v1746 = vpop.f32.mrb[0].mxu0
      %v1747 = vpop.f32.mrb[0].mxu0
      %v1748 = vadd.f32 0.0, %v1747
      %v1749 = vpop.f32.mrb[0].mxu0
      %1750 = vdwg.mxu0
      %v1751 = vadd.f32 %v1494, %v1625
      %v1752 = vadd.f32 %v1495, %v1628
      %v1753 = vadd.f32 %v1496, %v1633
      %v1754 = vadd.f32 %v1497, %v1636
      %v1755 = vadd.f32 %v1498, %v1641
      %v1756 = vadd.f32 %v1499, %v1644
      %v1757 = vadd.f32 %v1500, %v1649
      %v1758 = vadd.f32 %v1501, %v1652
      %v1759 = vadd.f32 %v1502, %v1657
      %v1760 = vadd.f32 %v1503, %v1660
      %v1761 = vadd.f32 %v1504, %v1665
      %v1762 = vadd.f32 %v1505, %v1668
      %v1763 = vadd.f32 %v1506, %v1673
      %v1764 = vadd.f32 %v1507, %v1676
      %v1765 = vadd.f32 %v1508, %v1681
      %v1766 = vadd.f32 %v1509, %v1684
      %v1767 = vadd.f32 %v1510, %v1689
      %v1768 = vadd.f32 %v1511, %v1692
      %v1769 = vadd.f32 %v1512, %v1697
      %v1770 = vadd.f32 %v1513, %v1700
      %v1771 = vadd.f32 %v1514, %v1705
      %v1772 = vadd.f32 %v1515, %v1708
      %v1773 = vadd.f32 %v1516, %v1713
      %v1774 = vadd.f32 %v1517, %v1716
      %v1775 = vadd.f32 %v1518, %v1721
      %v1776 = vadd.f32 %v1519, %v1724
      %v1777 = vadd.f32 %v1520, %v1729
      %v1778 = vadd.f32 %v1521, %v1732
      %v1779 = vadd.f32 %v1522, %v1737
      %v1780 = vadd.f32 %v1523, %v1740
      %v1781 = vadd.f32 %v1524, %v1745
      %v1782 = vadd.f32 %v1525, %v1748
      %v1784 = vshrl.u32 %v493, 16
      %v1786 = vshll.u32 %v493, 16
      %v1788 = vrot.slane %v1786, 1
      %v1789 = vor.u32 %v1784, %v1788
      %v1791 = vshll.u32 %v511, 16
      %v1793 = vrot.slane %v1791, 1
      %v1794 = vsel %vm529, %v1789, %v1793
      %v1796 = vld [vmem:[%s184 + $0x100] sm:$0xf]
      %v1797 = vld [vmem:[%s184 + $0x104] sm:$0xf]
      %v1798 = vld [vmem:[%s184 + $0x108] sm:$0xf]
      %v1799 = vld [vmem:[%s184 + $0x10c] sm:$0xf]
      %v1800 = vld [vmem:[%s184 + $0x110] sm:$0xf]
      %v1801 = vld [vmem:[%s184 + $0x114] sm:$0xf]
      %v1802 = vld [vmem:[%s184 + $0x118] sm:$0xf]
      %v1803 = vld [vmem:[%s184 + $0x11c] sm:$0xf]
      %v1804 = vld [vmem:[%s184 + $0x120] sm:$0xf]
      %v1805 = vld [vmem:[%s184 + $0x124] sm:$0xf]
      %v1806 = vld [vmem:[%s184 + $0x128] sm:$0xf]
      %v1807 = vld [vmem:[%s184 + $0x12c] sm:$0xf]
      %v1808 = vld [vmem:[%s184 + $0x130] sm:$0xf]
      %v1809 = vld [vmem:[%s184 + $0x134] sm:$0xf]
      %v1810 = vld [vmem:[%s184 + $0x138] sm:$0xf]
      %v1811 = vld [vmem:[%s184 + $0x13c] sm:$0xf]
      %v1828 = vunpack.c.l.b16 %v1796
      %v1829 = vunpack.c.l.b16 %v1797
      %v1830 = vunpack.c.l.b16 %v1798
      %v1831 = vunpack.c.l.b16 %v1799
      %v1832 = vunpack.c.l.b16 %v1800
      %v1833 = vunpack.c.l.b16 %v1801
      %v1834 = vunpack.c.l.b16 %v1802
      %v1835 = vunpack.c.l.b16 %v1803
      %v1836 = vunpack.c.l.b16 %v1804
      %v1837 = vunpack.c.l.b16 %v1805
      %v1838 = vunpack.c.l.b16 %v1806
      %v1839 = vunpack.c.l.b16 %v1807
      %v1840 = vunpack.c.l.b16 %v1808
      %v1841 = vunpack.c.l.b16 %v1809
      %v1842 = vunpack.c.l.b16 %v1810
      %v1843 = vunpack.c.l.b16 %v1811
      %v1844 = vpack.c.b16 %v1829, %v1828
      %v1845 = vpack.c.b16 %v1831, %v1830
      %v1846 = vpack.c.b16 %v1833, %v1832
      %v1847 = vpack.c.b16 %v1835, %v1834
      %v1848 = vpack.c.b16 %v1837, %v1836
      %v1849 = vpack.c.b16 %v1839, %v1838
      %v1850 = vpack.c.b16 %v1841, %v1840
      %v1851 = vpack.c.b16 %v1843, %v1842
      %1860 = vmatprep.subr.bf16.mxu0 0
      %1861 = vmatpush1.bf16.msra.mxu0 %v1844
      %1862 = vmatprep.subr.bf16.mxu0 0
      %1863 = vmatpush1.bf16.msra.mxu0 %v1845
      %1864 = vmatprep.subr.bf16.mxu0 0
      %1865 = vmatpush1.bf16.msra.mxu0 %v1846
      %1866 = vmatprep.subr.bf16.mxu0 0
      %1867 = vmatpush1.bf16.msra.mxu0 %v1847
      %1868 = vmatprep.subr.bf16.mxu0 0
      %1869 = vmatpush1.bf16.msra.mxu0 %v1848
      %1870 = vmatprep.subr.bf16.mxu0 0
      %1871 = vmatpush1.bf16.msra.mxu0 %v1849
      %1872 = vmatprep.subr.bf16.mxu0 0
      %1873 = vmatpush1.bf16.msra.mxu0 %v1850
      %1874 = vmatprep.subr.bf16.mxu0 0
      %1875 = vmatpush1.bf16.msra.mxu0 %v1851
      %1876 = vmatprep.subr.bf16.mxu0 0
      %1877 = vmatpush1.bf16.msra.mxu0 0
      %1878 = vmatprep.subr.bf16.mxu0 0
      %1879 = vmatpush1.bf16.msra.mxu0 0
      %1880 = vmatprep.subr.bf16.mxu0 0
      %1881 = vmatpush1.bf16.msra.mxu0 0
      %1882 = vmatprep.subr.bf16.mxu0 0
      %1883 = vmatpush1.bf16.msra.mxu0 0
      %1884 = vmatprep.subr.bf16.mxu0 0
      %1885 = vmatpush1.bf16.msra.mxu0 0
      %1886 = vmatprep.subr.bf16.mxu0 0
      %1887 = vmatpush1.bf16.msra.mxu0 0
      %1888 = vmatprep.subr.bf16.mxu0 0
      %1889 = vmatpush1.bf16.msra.mxu0 0
      %1890 = vmatprep.subr.bf16.mxu0 0
      %1891 = vmatpush1.bf16.msra.mxu0 0
      %1892 = vmatprep.mubr.bf16.mxu0 0
      %1893 = vmatmul.mubr.bf16.gmra.mrb[0].mxu0 %v553
      %v1894 = vpop.f32.mrb[0].mxu0
      %v1895 = vadd.f32 0.0, %v1894
      %v1896 = vpop.f32.mrb[0].mxu0
      %v1897 = vpop.f32.mrb[0].mxu0
      %v1898 = vadd.f32 0.0, %v1897
      %v1899 = vpop.f32.mrb[0].mxu0
      %1900 = vmatprep.mubr.bf16.mxu0 0
      %1901 = vmatmul.mubr.bf16.gmra.mrb[0].mxu0 %v565
      %v1902 = vpop.f32.mrb[0].mxu0
      %v1903 = vadd.f32 0.0, %v1902
      %v1904 = vpop.f32.mrb[0].mxu0
      %v1905 = vpop.f32.mrb[0].mxu0
      %v1906 = vadd.f32 0.0, %v1905
      %v1907 = vpop.f32.mrb[0].mxu0
      %1908 = vmatprep.mubr.bf16.mxu0 0
      %1909 = vmatmul.mubr.bf16.gmra.mrb[0].mxu0 %v577
      %v1910 = vpop.f32.mrb[0].mxu0
      %v1911 = vadd.f32 0.0, %v1910
      %v1912 = vpop.f32.mrb[0].mxu0
      %v1913 = vpop.f32.mrb[0].mxu0
      %v1914 = vadd.f32 0.0, %v1913
      %v1915 = vpop.f32.mrb[0].mxu0
      %1916 = vmatprep.mubr.bf16.mxu0 0
      %1917 = vmatmul.mubr.bf16.gmra.mrb[0].mxu0 %v589
      %v1918 = vpop.f32.mrb[0].mxu0
      %v1919 = vadd.f32 0.0, %v1918
      %v1920 = vpop.f32.mrb[0].mxu0
      %v1921 = vpop.f32.mrb[0].mxu0
      %v1922 = vadd.f32 0.0, %v1921
      %v1923 = vpop.f32.mrb[0].mxu0
      %1924 = vmatprep.mubr.bf16.mxu0 0
      %1925 = vmatmul.mubr.bf16.gmra.mrb[0].mxu0 %v601
      %v1926 = vpop.f32.mrb[0].mxu0
      %v1927 = vadd.f32 0.0, %v1926
      %v1928 = vpop.f32.mrb[0].mxu0
      %v1929 = vpop.f32.mrb[0].mxu0
      %v1930 = vadd.f32 0.0, %v1929
      %v1931 = vpop.f32.mrb[0].mxu0
      %1932 = vmatprep.mubr.bf16.mxu0 0
      %1933 = vmatmul.mubr.bf16.gmra.mrb[0].mxu0 %v613
      %v1934 = vpop.f32.mrb[0].mxu0
      %v1935 = vadd.f32 0.0, %v1934
      %v1936 = vpop.f32.mrb[0].mxu0
      %v1937 = vpop.f32.mrb[0].mxu0
      %v1938 = vadd.f32 0.0, %v1937
      %v1939 = vpop.f32.mrb[0].mxu0
      %1940 = vmatprep.mubr.bf16.mxu0 0
      %1941 = vmatmul.mubr.bf16.gmra.mrb[0].mxu0 %v625
      %v1942 = vpop.f32.mrb[0].mxu0
      %v1943 = vadd.f32 0.0, %v1942
      %v1944 = vpop.f32.mrb[0].mxu0
      %v1945 = vpop.f32.mrb[0].mxu0
      %v1946 = vadd.f32 0.0, %v1945
      %v1947 = vpop.f32.mrb[0].mxu0
      %1948 = vmatprep.mubr.bf16.mxu0 0
      %1949 = vmatmul.mubr.bf16.gmra.mrb[0].mxu0 %v637
      %v1950 = vpop.f32.mrb[0].mxu0
      %v1951 = vadd.f32 0.0, %v1950
      %v1952 = vpop.f32.mrb[0].mxu0
      %v1953 = vpop.f32.mrb[0].mxu0
      %v1954 = vadd.f32 0.0, %v1953
      %v1955 = vpop.f32.mrb[0].mxu0
      %1956 = vmatprep.mubr.bf16.mxu0 0
      %1957 = vmatmul.mubr.bf16.gmra.mrb[0].mxu0 %v649
      %v1958 = vpop.f32.mrb[0].mxu0
      %v1959 = vadd.f32 0.0, %v1958
      %v1960 = vpop.f32.mrb[0].mxu0
      %v1961 = vpop.f32.mrb[0].mxu0
      %v1962 = vadd.f32 0.0, %v1961
      %v1963 = vpop.f32.mrb[0].mxu0
      %1964 = vmatprep.mubr.bf16.mxu0 0
      %1965 = vmatmul.mubr.bf16.gmra.mrb[0].mxu0 %v661
      %v1966 = vpop.f32.mrb[0].mxu0
      %v1967 = vadd.f32 0.0, %v1966
      %v1968 = vpop.f32.mrb[0].mxu0
      %v1969 = vpop.f32.mrb[0].mxu0
      %v1970 = vadd.f32 0.0, %v1969
      %v1971 = vpop.f32.mrb[0].mxu0
      %1972 = vmatprep.mubr.bf16.mxu0 0
      %1973 = vmatmul.mubr.bf16.gmra.mrb[0].mxu0 %v673
      %v1974 = vpop.f32.mrb[0].mxu0
      %v1975 = vadd.f32 0.0, %v1974
      %v1976 = vpop.f32.mrb[0].mxu0
      %v1977 = vpop.f32.mrb[0].mxu0
      %v1978 = vadd.f32 0.0, %v1977
      %v1979 = vpop.f32.mrb[0].mxu0
      %1980 = vmatprep.mubr.bf16.mxu0 0
      %1981 = vmatmul.mubr.bf16.gmra.mrb[0].mxu0 %v685
      %v1982 = vpop.f32.mrb[0].mxu0
      %v1983 = vadd.f32 0.0, %v1982
      %v1984 = vpop.f32.mrb[0].mxu0
      %v1985 = vpop.f32.mrb[0].mxu0
      %v1986 = vadd.f32 0.0, %v1985
      %v1987 = vpop.f32.mrb[0].mxu0
      %1988 = vmatprep.mubr.bf16.mxu0 0
      %1989 = vmatmul.mubr.bf16.gmra.mrb[0].mxu0 %v697
      %v1990 = vpop.f32.mrb[0].mxu0
      %v1991 = vadd.f32 0.0, %v1990
      %v1992 = vpop.f32.mrb[0].mxu0
      %v1993 = vpop.f32.mrb[0].mxu0
      %v1994 = vadd.f32 0.0, %v1993
      %v1995 = vpop.f32.mrb[0].mxu0
      %1996 = vmatprep.mubr.bf16.mxu0 0
      %1997 = vmatmul.mubr.bf16.gmra.mrb[0].mxu0 %v709
      %v1998 = vpop.f32.mrb[0].mxu0
      %v1999 = vadd.f32 0.0, %v1998
      %v2000 = vpop.f32.mrb[0].mxu0
      %v2001 = vpop.f32.mrb[0].mxu0
      %v2002 = vadd.f32 0.0, %v2001
      %v2003 = vpop.f32.mrb[0].mxu0
      %2004 = vmatprep.mubr.bf16.mxu0 0
      %2005 = vmatmul.mubr.bf16.gmra.mrb[0].mxu0 %v721
      %v2006 = vpop.f32.mrb[0].mxu0
      %v2007 = vadd.f32 0.0, %v2006
      %v2008 = vpop.f32.mrb[0].mxu0
      %v2009 = vpop.f32.mrb[0].mxu0
      %v2010 = vadd.f32 0.0, %v2009
      %v2011 = vpop.f32.mrb[0].mxu0
      %2012 = vmatprep.mubr.bf16.mxu0 0
      %2013 = vmatmul.mubr.bf16.gmra.mrb[0].mxu0 %v1794
      %v2014 = vpop.f32.mrb[0].mxu0
      %v2015 = vadd.f32 0.0, %v2014
      %v2016 = vpop.f32.mrb[0].mxu0
      %v2017 = vpop.f32.mrb[0].mxu0
      %v2018 = vadd.f32 0.0, %v2017
      %v2019 = vpop.f32.mrb[0].mxu0
      %2020 = vdwg.mxu0
      %v2021 = vadd.f32 %v1751, %v1895
      %v2022 = vadd.f32 %v1752, %v1898
      %v2023 = vadd.f32 %v1753, %v1903
      %v2024 = vadd.f32 %v1754, %v1906
      %v2025 = vadd.f32 %v1755, %v1911
      %v2026 = vadd.f32 %v1756, %v1914
      %v2027 = vadd.f32 %v1757, %v1919
      %v2028 = vadd.f32 %v1758, %v1922
      %v2029 = vadd.f32 %v1759, %v1927
      %v2030 = vadd.f32 %v1760, %v1930
      %v2031 = vadd.f32 %v1761, %v1935
      %v2032 = vadd.f32 %v1762, %v1938
      %v2033 = vadd.f32 %v1763, %v1943
      %v2034 = vadd.f32 %v1764, %v1946
      %v2035 = vadd.f32 %v1765, %v1951
      %v2036 = vadd.f32 %v1766, %v1954
      %v2037 = vadd.f32 %v1767, %v1959
      %v2038 = vadd.f32 %v1768, %v1962
      %v2039 = vadd.f32 %v1769, %v1967
      %v2040 = vadd.f32 %v1770, %v1970
      %v2041 = vadd.f32 %v1771, %v1975
      %v2042 = vadd.f32 %v1772, %v1978
      %v2043 = vadd.f32 %v1773, %v1983
      %v2044 = vadd.f32 %v1774, %v1986
      %v2045 = vadd.f32 %v1775, %v1991
      %v2046 = vadd.f32 %v1776, %v1994
      %v2047 = vadd.f32 %v1777, %v1999
      %v2048 = vadd.f32 %v1778, %v2002
      %v2049 = vadd.f32 %v1779, %v2007
      %v2050 = vadd.f32 %v1780, %v2010
      %v2051 = vadd.f32 %v1781, %v2015
      %v2052 = vadd.f32 %v1782, %v2018
      %v2055 = vrot.slane %v493, 1
      %v2056 = vrot.slane %v511, 1
      %v2057 = vsel %vm1204, %v2055, %v2056
      %v2059 = vld [vmem:[%s184 + $0x140] sm:$0xf]
      %v2060 = vld [vmem:[%s184 + $0x144] sm:$0xf]
      %v2061 = vld [vmem:[%s184 + $0x148] sm:$0xf]
      %v2062 = vld [vmem:[%s184 + $0x14c] sm:$0xf]
      %v2063 = vld [vmem:[%s184 + $0x150] sm:$0xf]
      %v2064 = vld [vmem:[%s184 + $0x154] sm:$0xf]
      %v2065 = vld [vmem:[%s184 + $0x158] sm:$0xf]
      %v2066 = vld [vmem:[%s184 + $0x15c] sm:$0xf]
      %v2067 = vld [vmem:[%s184 + $0x160] sm:$0xf]
      %v2068 = vld [vmem:[%s184 + $0x164] sm:$0xf]
      %v2069 = vld [vmem:[%s184 + $0x168] sm:$0xf]
      %v2070 = vld [vmem:[%s184 + $0x16c] sm:$0xf]
      %v2071 = vld [vmem:[%s184 + $0x170] sm:$0xf]
      %v2072 = vld [vmem:[%s184 + $0x174] sm:$0xf]
      %v2073 = vld [vmem:[%s184 + $0x178] sm:$0xf]
      %v2074 = vld [vmem:[%s184 + $0x17c] sm:$0xf]
      %v2091 = vunpack.c.l.b16 %v2059
      %v2092 = vunpack.c.l.b16 %v2060
      %v2093 = vunpack.c.l.b16 %v2061
      %v2094 = vunpack.c.l.b16 %v2062
      %v2095 = vunpack.c.l.b16 %v2063
      %v2096 = vunpack.c.l.b16 %v2064
      %v2097 = vunpack.c.l.b16 %v2065
      %v2098 = vunpack.c.l.b16 %v2066
      %v2099 = vunpack.c.l.b16 %v2067
      %v2100 = vunpack.c.l.b16 %v2068
      %v2101 = vunpack.c.l.b16 %v2069
      %v2102 = vunpack.c.l.b16 %v2070
      %v2103 = vunpack.c.l.b16 %v2071
      %v2104 = vunpack.c.l.b16 %v2072
      %v2105 = vunpack.c.l.b16 %v2073
      %v2106 = vunpack.c.l.b16 %v2074
      %v2107 = vpack.c.b16 %v2092, %v2091
      %v2108 = vpack.c.b16 %v2094, %v2093
      %v2109 = vpack.c.b16 %v2096, %v2095
      %v2110 = vpack.c.b16 %v2098, %v2097
      %v2111 = vpack.c.b16 %v2100, %v2099
      %v2112 = vpack.c.b16 %v2102, %v2101
      %v2113 = vpack.c.b16 %v2104, %v2103
      %v2114 = vpack.c.b16 %v2106, %v2105
      %2123 = vmatprep.subr.bf16.mxu0 0
      %2124 = vmatpush1.bf16.msra.mxu0 %v2107
      %2125 = vmatprep.subr.bf16.mxu0 0
      %2126 = vmatpush1.bf16.msra.mxu0 %v2108
      %2127 = vmatprep.subr.bf16.mxu0 0
      %2128 = vmatpush1.bf16.msra.mxu0 %v2109
      %2129 = vmatprep.subr.bf16.mxu0 0
      %2130 = vmatpush1.bf16.msra.mxu0 %v2110
      %2131 = vmatprep.subr.bf16.mxu0 0
      %2132 = vmatpush1.bf16.msra.mxu0 %v2111
      %2133 = vmatprep.subr.bf16.mxu0 0
      %2134 = vmatpush1.bf16.msra.mxu0 %v2112
      %2135 = vmatprep.subr.bf16.mxu0 0
      %2136 = vmatpush1.bf16.msra.mxu0 %v2113
      %2137 = vmatprep.subr.bf16.mxu0 0
      %2138 = vmatpush1.bf16.msra.mxu0 %v2114
      %2139 = vmatprep.subr.bf16.mxu0 0
      %2140 = vmatpush1.bf16.msra.mxu0 0
      %2141 = vmatprep.subr.bf16.mxu0 0
      %2142 = vmatpush1.bf16.msra.mxu0 0
      %2143 = vmatprep.subr.bf16.mxu0 0
      %2144 = vmatpush1.bf16.msra.mxu0 0
      %2145 = vmatprep.subr.bf16.mxu0 0
      %2146 = vmatpush1.bf16.msra.mxu0 0
      %2147 = vmatprep.subr.bf16.mxu0 0
      %2148 = vmatpush1.bf16.msra.mxu0 0
      %2149 = vmatprep.subr.bf16.mxu0 0
      %2150 = vmatpush1.bf16.msra.mxu0 0
      %2151 = vmatprep.subr.bf16.mxu0 0
      %2152 = vmatpush1.bf16.msra.mxu0 0
      %2153 = vmatprep.subr.bf16.mxu0 0
      %2154 = vmatpush1.bf16.msra.mxu0 0
      %2155 = vmatprep.mubr.bf16.mxu0 0
      %2156 = vmatmul.mubr.bf16.gmra.mrb[0].mxu0 %v1210
      %v2157 = vpop.f32.mrb[0].mxu0
      %v2158 = vadd.f32 0.0, %v2157
      %v2159 = vpop.f32.mrb[0].mxu0
      %v2160 = vpop.f32.mrb[0].mxu0
      %v2161 = vadd.f32 0.0, %v2160
      %v2162 = vpop.f32.mrb[0].mxu0
      %2163 = vmatprep.mubr.bf16.mxu0 0
      %2164 = vmatmul.mubr.bf16.gmra.mrb[0].mxu0 %v1213
      %v2165 = vpop.f32.mrb[0].mxu0
      %v2166 = vadd.f32 0.0, %v2165
      %v2167 = vpop.f32.mrb[0].mxu0
      %v2168 = vpop.f32.mrb[0].mxu0
      %v2169 = vadd.f32 0.0, %v2168
      %v2170 = vpop.f32.mrb[0].mxu0
      %2171 = vmatprep.mubr.bf16.mxu0 0
      %2172 = vmatmul.mubr.bf16.gmra.mrb[0].mxu0 %v1216
      %v2173 = vpop.f32.mrb[0].mxu0
      %v2174 = vadd.f32 0.0, %v2173
      %v2175 = vpop.f32.mrb[0].mxu0
      %v2176 = vpop.f32.mrb[0].mxu0
      %v2177 = vadd.f32 0.0, %v2176
      %v2178 = vpop.f32.mrb[0].mxu0
      %2179 = vmatprep.mubr.bf16.mxu0 0
      %2180 = vmatmul.mubr.bf16.gmra.mrb[0].mxu0 %v1219
      %v2181 = vpop.f32.mrb[0].mxu0
      %v2182 = vadd.f32 0.0, %v2181
      %v2183 = vpop.f32.mrb[0].mxu0
      %v2184 = vpop.f32.mrb[0].mxu0
      %v2185 = vadd.f32 0.0, %v2184
      %v2186 = vpop.f32.mrb[0].mxu0
      %2187 = vmatprep.mubr.bf16.mxu0 0
      %2188 = vmatmul.mubr.bf16.gmra.mrb[0].mxu0 %v1222
      %v2189 = vpop.f32.mrb[0].mxu0
      %v2190 = vadd.f32 0.0, %v2189
      %v2191 = vpop.f32.mrb[0].mxu0
      %v2192 = vpop.f32.mrb[0].mxu0
      %v2193 = vadd.f32 0.0, %v2192
      %v2194 = vpop.f32.mrb[0].mxu0
      %2195 = vmatprep.mubr.bf16.mxu0 0
      %2196 = vmatmul.mubr.bf16.gmra.mrb[0].mxu0 %v1225
      %v2197 = vpop.f32.mrb[0].mxu0
      %v2198 = vadd.f32 0.0, %v2197
      %v2199 = vpop.f32.mrb[0].mxu0
      %v2200 = vpop.f32.mrb[0].mxu0
      %v2201 = vadd.f32 0.0, %v2200
      %v2202 = vpop.f32.mrb[0].mxu0
      %2203 = vmatprep.mubr.bf16.mxu0 0
      %2204 = vmatmul.mubr.bf16.gmra.mrb[0].mxu0 %v1228
      %v2205 = vpop.f32.mrb[0].mxu0
      %v2206 = vadd.f32 0.0, %v2205
      %v2207 = vpop.f32.mrb[0].mxu0
      %v2208 = vpop.f32.mrb[0].mxu0
      %v2209 = vadd.f32 0.0, %v2208
      %v2210 = vpop.f32.mrb[0].mxu0
      %2211 = vmatprep.mubr.bf16.mxu0 0
      %2212 = vmatmul.mubr.bf16.gmra.mrb[0].mxu0 %v1231
      %v2213 = vpop.f32.mrb[0].mxu0
      %v2214 = vadd.f32 0.0, %v2213
      %v2215 = vpop.f32.mrb[0].mxu0
      %v2216 = vpop.f32.mrb[0].mxu0
      %v2217 = vadd.f32 0.0, %v2216
      %v2218 = vpop.f32.mrb[0].mxu0
      %2219 = vmatprep.mubr.bf16.mxu0 0
      %2220 = vmatmul.mubr.bf16.gmra.mrb[0].mxu0 %v1234
      %v2221 = vpop.f32.mrb[0].mxu0
      %v2222 = vadd.f32 0.0, %v2221
      %v2223 = vpop.f32.mrb[0].mxu0
      %v2224 = vpop.f32.mrb[0].mxu0
      %v2225 = vadd.f32 0.0, %v2224
      %v2226 = vpop.f32.mrb[0].mxu0
      %2227 = vmatprep.mubr.bf16.mxu0 0
      %2228 = vmatmul.mubr.bf16.gmra.mrb[0].mxu0 %v1237
      %v2229 = vpop.f32.mrb[0].mxu0
      %v2230 = vadd.f32 0.0, %v2229
      %v2231 = vpop.f32.mrb[0].mxu0
      %v2232 = vpop.f32.mrb[0].mxu0
      %v2233 = vadd.f32 0.0, %v2232
      %v2234 = vpop.f32.mrb[0].mxu0
      %2235 = vmatprep.mubr.bf16.mxu0 0
      %2236 = vmatmul.mubr.bf16.gmra.mrb[0].mxu0 %v1240
      %v2237 = vpop.f32.mrb[0].mxu0
      %v2238 = vadd.f32 0.0, %v2237
      %v2239 = vpop.f32.mrb[0].mxu0
      %v2240 = vpop.f32.mrb[0].mxu0
      %v2241 = vadd.f32 0.0, %v2240
      %v2242 = vpop.f32.mrb[0].mxu0
      %2243 = vmatprep.mubr.bf16.mxu0 0
      %2244 = vmatmul.mubr.bf16.gmra.mrb[0].mxu0 %v1243
      %v2245 = vpop.f32.mrb[0].mxu0
      %v2246 = vadd.f32 0.0, %v2245
      %v2247 = vpop.f32.mrb[0].mxu0
      %v2248 = vpop.f32.mrb[0].mxu0
      %v2249 = vadd.f32 0.0, %v2248
      %v2250 = vpop.f32.mrb[0].mxu0
      %2251 = vmatprep.mubr.bf16.mxu0 0
      %2252 = vmatmul.mubr.bf16.gmra.mrb[0].mxu0 %v1246
      %v2253 = vpop.f32.mrb[0].mxu0
      %v2254 = vadd.f32 0.0, %v2253
      %v2255 = vpop.f32.mrb[0].mxu0
      %v2256 = vpop.f32.mrb[0].mxu0
      %v2257 = vadd.f32 0.0, %v2256
      %v2258 = vpop.f32.mrb[0].mxu0
      %2259 = vmatprep.mubr.bf16.mxu0 0
      %2260 = vmatmul.mubr.bf16.gmra.mrb[0].mxu0 %v1249
      %v2261 = vpop.f32.mrb[0].mxu0
      %v2262 = vadd.f32 0.0, %v2261
      %v2263 = vpop.f32.mrb[0].mxu0
      %v2264 = vpop.f32.mrb[0].mxu0
      %v2265 = vadd.f32 0.0, %v2264
      %v2266 = vpop.f32.mrb[0].mxu0
      %2267 = vmatprep.mubr.bf16.mxu0 0
      %2268 = vmatmul.mubr.bf16.gmra.mrb[0].mxu0 %v1252
      %v2269 = vpop.f32.mrb[0].mxu0
      %v2270 = vadd.f32 0.0, %v2269
      %v2271 = vpop.f32.mrb[0].mxu0
      %v2272 = vpop.f32.mrb[0].mxu0
      %v2273 = vadd.f32 0.0, %v2272
      %v2274 = vpop.f32.mrb[0].mxu0
      %2275 = vmatprep.mubr.bf16.mxu0 0
      %2276 = vmatmul.mubr.bf16.gmra.mrb[0].mxu0 %v2057
      %v2277 = vpop.f32.mrb[0].mxu0
      %v2278 = vadd.f32 0.0, %v2277
      %v2279 = vpop.f32.mrb[0].mxu0
      %v2280 = vpop.f32.mrb[0].mxu0
      %v2281 = vadd.f32 0.0, %v2280
      %v2282 = vpop.f32.mrb[0].mxu0
      %2283 = vdwg.mxu0
      %v2284 = vadd.f32 %v2021, %v2158
      %v2285 = vadd.f32 %v2022, %v2161
      %v2286 = vadd.f32 %v2023, %v2166
      %v2287 = vadd.f32 %v2024, %v2169
      %v2288 = vadd.f32 %v2025, %v2174
      %v2289 = vadd.f32 %v2026, %v2177
      %v2290 = vadd.f32 %v2027, %v2182
      %v2291 = vadd.f32 %v2028, %v2185
      %v2292 = vadd.f32 %v2029, %v2190
      %v2293 = vadd.f32 %v2030, %v2193
      %v2294 = vadd.f32 %v2031, %v2198
      %v2295 = vadd.f32 %v2032, %v2201
      %v2296 = vadd.f32 %v2033, %v2206
      %v2297 = vadd.f32 %v2034, %v2209
      %v2298 = vadd.f32 %v2035, %v2214
      %v2299 = vadd.f32 %v2036, %v2217
      %v2300 = vadd.f32 %v2037, %v2222
      %v2301 = vadd.f32 %v2038, %v2225
      %v2302 = vadd.f32 %v2039, %v2230
      %v2303 = vadd.f32 %v2040, %v2233
      %v2304 = vadd.f32 %v2041, %v2238
      %v2305 = vadd.f32 %v2042, %v2241
      %v2306 = vadd.f32 %v2043, %v2246
      %v2307 = vadd.f32 %v2044, %v2249
      %v2308 = vadd.f32 %v2045, %v2254
      %v2309 = vadd.f32 %v2046, %v2257
      %v2310 = vadd.f32 %v2047, %v2262
      %v2311 = vadd.f32 %v2048, %v2265
      %v2312 = vadd.f32 %v2049, %v2270
      %v2313 = vadd.f32 %v2050, %v2273
      %v2314 = vadd.f32 %v2051, %v2278
      %v2315 = vadd.f32 %v2052, %v2281
      %v2316 = vld [vmem:[%s184 + $0x180] sm:$0xf]
      %v2317 = vld [vmem:[%s184 + $0x184] sm:$0xf]
      %v2318 = vld [vmem:[%s184 + $0x188] sm:$0xf]
      %v2319 = vld [vmem:[%s184 + $0x18c] sm:$0xf]
      %v2320 = vld [vmem:[%s184 + $0x190] sm:$0xf]
      %v2321 = vld [vmem:[%s184 + $0x194] sm:$0xf]
      %v2322 = vld [vmem:[%s184 + $0x198] sm:$0xf]
      %v2323 = vld [vmem:[%s184 + $0x19c] sm:$0xf]
      %v2324 = vld [vmem:[%s184 + $0x1a0] sm:$0xf]
      %v2325 = vld [vmem:[%s184 + $0x1a4] sm:$0xf]
      %v2326 = vld [vmem:[%s184 + $0x1a8] sm:$0xf]
      %v2327 = vld [vmem:[%s184 + $0x1ac] sm:$0xf]
      %v2328 = vld [vmem:[%s184 + $0x1b0] sm:$0xf]
      %v2329 = vld [vmem:[%s184 + $0x1b4] sm:$0xf]
      %v2330 = vld [vmem:[%s184 + $0x1b8] sm:$0xf]
      %v2331 = vld [vmem:[%s184 + $0x1bc] sm:$0xf]
      %v2348 = vunpack.c.l.b16 %v2316
      %v2349 = vunpack.c.l.b16 %v2317
      %v2350 = vunpack.c.l.b16 %v2318
      %v2351 = vunpack.c.l.b16 %v2319
      %v2352 = vunpack.c.l.b16 %v2320
      %v2353 = vunpack.c.l.b16 %v2321
      %v2354 = vunpack.c.l.b16 %v2322
      %v2355 = vunpack.c.l.b16 %v2323
      %v2356 = vunpack.c.l.b16 %v2324
      %v2357 = vunpack.c.l.b16 %v2325
      %v2358 = vunpack.c.l.b16 %v2326
      %v2359 = vunpack.c.l.b16 %v2327
      %v2360 = vunpack.c.l.b16 %v2328
      %v2361 = vunpack.c.l.b16 %v2329
      %v2362 = vunpack.c.l.b16 %v2330
      %v2363 = vunpack.c.l.b16 %v2331
      %v2364 = vpack.c.b16 %v2349, %v2348
      %v2365 = vpack.c.b16 %v2351, %v2350
      %v2366 = vpack.c.b16 %v2353, %v2352
      %v2367 = vpack.c.b16 %v2355, %v2354
      %v2368 = vpack.c.b16 %v2357, %v2356
      %v2369 = vpack.c.b16 %v2359, %v2358
      %v2370 = vpack.c.b16 %v2361, %v2360
      %v2371 = vpack.c.b16 %v2363, %v2362
      %2380 = vmatprep.subr.bf16.mxu0 0
      %2381 = vmatpush1.bf16.msra.mxu0 %v2364
      %2382 = vmatprep.subr.bf16.mxu0 0
      %2383 = vmatpush1.bf16.msra.mxu0 %v2365
      %2384 = vmatprep.subr.bf16.mxu0 0
      %2385 = vmatpush1.bf16.msra.mxu0 %v2366
      %2386 = vmatprep.subr.bf16.mxu0 0
      %2387 = vmatpush1.bf16.msra.mxu0 %v2367
      %2388 = vmatprep.subr.bf16.mxu0 0
      %2389 = vmatpush1.bf16.msra.mxu0 %v2368
      %2390 = vmatprep.subr.bf16.mxu0 0
      %2391 = vmatpush1.bf16.msra.mxu0 %v2369
      %2392 = vmatprep.subr.bf16.mxu0 0
      %2393 = vmatpush1.bf16.msra.mxu0 %v2370
      %2394 = vmatprep.subr.bf16.mxu0 0
      %2395 = vmatpush1.bf16.msra.mxu0 %v2371
      %2396 = vmatprep.subr.bf16.mxu0 0
      %2397 = vmatpush1.bf16.msra.mxu0 0
      %2398 = vmatprep.subr.bf16.mxu0 0
      %2399 = vmatpush1.bf16.msra.mxu0 0
      %2400 = vmatprep.subr.bf16.mxu0 0
      %2401 = vmatpush1.bf16.msra.mxu0 0
      %2402 = vmatprep.subr.bf16.mxu0 0
      %2403 = vmatpush1.bf16.msra.mxu0 0
      %2404 = vmatprep.subr.bf16.mxu0 0
      %2405 = vmatpush1.bf16.msra.mxu0 0
      %2406 = vmatprep.subr.bf16.mxu0 0
      %2407 = vmatpush1.bf16.msra.mxu0 0
      %2408 = vmatprep.subr.bf16.mxu0 0
      %2409 = vmatpush1.bf16.msra.mxu0 0
      %2410 = vmatprep.subr.bf16.mxu0 0
      %2411 = vmatpush1.bf16.msra.mxu0 0
      %2412 = vmatprep.mubr.bf16.mxu0 0
      %2413 = vmatmul.mubr.bf16.gmra.mrb[0].mxu0 %v479
      %v2414 = vpop.f32.mrb[0].mxu0
      %v2415 = vadd.f32 0.0, %v2414
      %v2416 = vpop.f32.mrb[0].mxu0
      %v2417 = vpop.f32.mrb[0].mxu0
      %v2418 = vadd.f32 0.0, %v2417
      %v2419 = vpop.f32.mrb[0].mxu0
      %2420 = vmatprep.mubr.bf16.mxu0 0
      %2421 = vmatmul.mubr.bf16.gmra.mrb[0].mxu0 %v480
      %v2422 = vpop.f32.mrb[0].mxu0
      %v2423 = vadd.f32 0.0, %v2422
      %v2424 = vpop.f32.mrb[0].mxu0
      %v2425 = vpop.f32.mrb[0].mxu0
      %v2426 = vadd.f32 0.0, %v2425
      %v2427 = vpop.f32.mrb[0].mxu0
      %2428 = vmatprep.mubr.bf16.mxu0 0
      %2429 = vmatmul.mubr.bf16.gmra.mrb[0].mxu0 %v481
      %v2430 = vpop.f32.mrb[0].mxu0
      %v2431 = vadd.f32 0.0, %v2430
      %v2432 = vpop.f32.mrb[0].mxu0
      %v2433 = vpop.f32.mrb[0].mxu0
      %v2434 = vadd.f32 0.0, %v2433
      %v2435 = vpop.f32.mrb[0].mxu0
      %2436 = vmatprep.mubr.bf16.mxu0 0
      %2437 = vmatmul.mubr.bf16.gmra.mrb[0].mxu0 %v482
      %v2438 = vpop.f32.mrb[0].mxu0
      %v2439 = vadd.f32 0.0, %v2438
      %v2440 = vpop.f32.mrb[0].mxu0
      %v2441 = vpop.f32.mrb[0].mxu0
      %v2442 = vadd.f32 0.0, %v2441
      %v2443 = vpop.f32.mrb[0].mxu0
      %2444 = vmatprep.mubr.bf16.mxu0 0
      %2445 = vmatmul.mubr.bf16.gmra.mrb[0].mxu0 %v483
      %v2446 = vpop.f32.mrb[0].mxu0
      %v2447 = vadd.f32 0.0, %v2446
      %v2448 = vpop.f32.mrb[0].mxu0
      %v2449 = vpop.f32.mrb[0].mxu0
      %v2450 = vadd.f32 0.0, %v2449
      %v2451 = vpop.f32.mrb[0].mxu0
      %2452 = vmatprep.mubr.bf16.mxu0 0
      %2453 = vmatmul.mubr.bf16.gmra.mrb[0].mxu0 %v484
      %v2454 = vpop.f32.mrb[0].mxu0
      %v2455 = vadd.f32 0.0, %v2454
      %v2456 = vpop.f32.mrb[0].mxu0
      %v2457 = vpop.f32.mrb[0].mxu0
      %v2458 = vadd.f32 0.0, %v2457
      %v2459 = vpop.f32.mrb[0].mxu0
      %2460 = vmatprep.mubr.bf16.mxu0 0
      %2461 = vmatmul.mubr.bf16.gmra.mrb[0].mxu0 %v485
      %v2462 = vpop.f32.mrb[0].mxu0
      %v2463 = vadd.f32 0.0, %v2462
      %v2464 = vpop.f32.mrb[0].mxu0
      %v2465 = vpop.f32.mrb[0].mxu0
      %v2466 = vadd.f32 0.0, %v2465
      %v2467 = vpop.f32.mrb[0].mxu0
      %2468 = vmatprep.mubr.bf16.mxu0 0
      %2469 = vmatmul.mubr.bf16.gmra.mrb[0].mxu0 %v486
      %v2470 = vpop.f32.mrb[0].mxu0
      %v2471 = vadd.f32 0.0, %v2470
      %v2472 = vpop.f32.mrb[0].mxu0
      %v2473 = vpop.f32.mrb[0].mxu0
      %v2474 = vadd.f32 0.0, %v2473
      %v2475 = vpop.f32.mrb[0].mxu0
      %2476 = vmatprep.mubr.bf16.mxu0 0
      %2477 = vmatmul.mubr.bf16.gmra.mrb[0].mxu0 %v487
      %v2478 = vpop.f32.mrb[0].mxu0
      %v2479 = vadd.f32 0.0, %v2478
      %v2480 = vpop.f32.mrb[0].mxu0
      %v2481 = vpop.f32.mrb[0].mxu0
      %v2482 = vadd.f32 0.0, %v2481
      %v2483 = vpop.f32.mrb[0].mxu0
      %2484 = vmatprep.mubr.bf16.mxu0 0
      %2485 = vmatmul.mubr.bf16.gmra.mrb[0].mxu0 %v488
      %v2486 = vpop.f32.mrb[0].mxu0
      %v2487 = vadd.f32 0.0, %v2486
      %v2488 = vpop.f32.mrb[0].mxu0
      %v2489 = vpop.f32.mrb[0].mxu0
      %v2490 = vadd.f32 0.0, %v2489
      %v2491 = vpop.f32.mrb[0].mxu0
      %2492 = vmatprep.mubr.bf16.mxu0 0
      %2493 = vmatmul.mubr.bf16.gmra.mrb[0].mxu0 %v489
      %v2494 = vpop.f32.mrb[0].mxu0
      %v2495 = vadd.f32 0.0, %v2494
      %v2496 = vpop.f32.mrb[0].mxu0
      %v2497 = vpop.f32.mrb[0].mxu0
      %v2498 = vadd.f32 0.0, %v2497
      %v2499 = vpop.f32.mrb[0].mxu0
      %2500 = vmatprep.mubr.bf16.mxu0 0
      %2501 = vmatmul.mubr.bf16.gmra.mrb[0].mxu0 %v490
      %v2502 = vpop.f32.mrb[0].mxu0
      %v2503 = vadd.f32 0.0, %v2502
      %v2504 = vpop.f32.mrb[0].mxu0
      %v2505 = vpop.f32.mrb[0].mxu0
      %v2506 = vadd.f32 0.0, %v2505
      %v2507 = vpop.f32.mrb[0].mxu0
      %2508 = vmatprep.mubr.bf16.mxu0 0
      %2509 = vmatmul.mubr.bf16.gmra.mrb[0].mxu0 %v491
      %v2510 = vpop.f32.mrb[0].mxu0
      %v2511 = vadd.f32 0.0, %v2510
      %v2512 = vpop.f32.mrb[0].mxu0
      %v2513 = vpop.f32.mrb[0].mxu0
      %v2514 = vadd.f32 0.0, %v2513
      %v2515 = vpop.f32.mrb[0].mxu0
      %2516 = vmatprep.mubr.bf16.mxu0 0
      %2517 = vmatmul.mubr.bf16.gmra.mrb[0].mxu0 %v492
      %v2518 = vpop.f32.mrb[0].mxu0
      %v2519 = vadd.f32 0.0, %v2518
      %v2520 = vpop.f32.mrb[0].mxu0
      %v2521 = vpop.f32.mrb[0].mxu0
      %v2522 = vadd.f32 0.0, %v2521
      %v2523 = vpop.f32.mrb[0].mxu0
      %2524 = vmatprep.mubr.bf16.mxu0 0
      %2525 = vmatmul.mubr.bf16.gmra.mrb[0].mxu0 %v493
      %v2526 = vpop.f32.mrb[0].mxu0
      %v2527 = vadd.f32 0.0, %v2526
      %v2528 = vpop.f32.mrb[0].mxu0
      %v2529 = vpop.f32.mrb[0].mxu0
      %v2530 = vadd.f32 0.0, %v2529
      %v2531 = vpop.f32.mrb[0].mxu0
      %2532 = vmatprep.mubr.bf16.mxu0 0
      %2533 = vmatmul.mubr.bf16.gmra.mrb[0].mxu0 %v494
      %v2534 = vpop.f32.mrb[0].mxu0
      %v2535 = vadd.f32 0.0, %v2534
      %v2536 = vpop.f32.mrb[0].mxu0
      %v2537 = vpop.f32.mrb[0].mxu0
      %v2538 = vadd.f32 0.0, %v2537
      %v2539 = vpop.f32.mrb[0].mxu0
      %2540 = vdwg.mxu0
      %v2541 = vadd.f32 %v2284, %v2415
      %v2542 = vadd.f32 %v2285, %v2418
      %v2543 = vadd.f32 %v2286, %v2423
      %v2544 = vadd.f32 %v2287, %v2426
      %v2545 = vadd.f32 %v2288, %v2431
      %v2546 = vadd.f32 %v2289, %v2434
      %v2547 = vadd.f32 %v2290, %v2439
      %v2548 = vadd.f32 %v2291, %v2442
      %v2549 = vadd.f32 %v2292, %v2447
      %v2550 = vadd.f32 %v2293, %v2450
      %v2551 = vadd.f32 %v2294, %v2455
      %v2552 = vadd.f32 %v2295, %v2458
      %v2553 = vadd.f32 %v2296, %v2463
      %v2554 = vadd.f32 %v2297, %v2466
      %v2555 = vadd.f32 %v2298, %v2471
      %v2556 = vadd.f32 %v2299, %v2474
      %v2557 = vadd.f32 %v2300, %v2479
      %v2558 = vadd.f32 %v2301, %v2482
      %v2559 = vadd.f32 %v2302, %v2487
      %v2560 = vadd.f32 %v2303, %v2490
      %v2561 = vadd.f32 %v2304, %v2495
      %v2562 = vadd.f32 %v2305, %v2498
      %v2563 = vadd.f32 %v2306, %v2503
      %v2564 = vadd.f32 %v2307, %v2506
      %v2565 = vadd.f32 %v2308, %v2511
      %v2566 = vadd.f32 %v2309, %v2514
      %v2567 = vadd.f32 %v2310, %v2519
      %v2568 = vadd.f32 %v2311, %v2522
      %v2569 = vadd.f32 %v2312, %v2527
      %v2570 = vadd.f32 %v2313, %v2530
      %v2571 = vadd.f32 %v2314, %v2535
      %v2572 = vadd.f32 %v2315, %v2538
      %v2574 = vshrl.u32 %v494, 16
      %v2576 = vshll.u32 %v494, 16
      %v2578 = vrot.slane %v2576, 1
      %v2579 = vor.u32 %v2574, %v2578
      %v2581 = vshll.u32 %v512, 16
      %v2583 = vrot.slane %v2581, 1
      %v2584 = vsel %vm529, %v2579, %v2583
      %v2586 = vld [vmem:[%s184 + $0x1c0] sm:$0xf]
      %v2587 = vld [vmem:[%s184 + $0x1c4] sm:$0xf]
      %v2588 = vld [vmem:[%s184 + $0x1c8] sm:$0xf]
      %v2589 = vld [vmem:[%s184 + $0x1cc] sm:$0xf]
      %v2590 = vld [vmem:[%s184 + $0x1d0] sm:$0xf]
      %v2591 = vld [vmem:[%s184 + $0x1d4] sm:$0xf]
      %v2592 = vld [vmem:[%s184 + $0x1d8] sm:$0xf]
      %v2593 = vld [vmem:[%s184 + $0x1dc] sm:$0xf]
      %v2594 = vld [vmem:[%s184 + $0x1e0] sm:$0xf]
      %v2595 = vld [vmem:[%s184 + $0x1e4] sm:$0xf]
      %v2596 = vld [vmem:[%s184 + $0x1e8] sm:$0xf]
      %v2597 = vld [vmem:[%s184 + $0x1ec] sm:$0xf]
      %v2598 = vld [vmem:[%s184 + $0x1f0] sm:$0xf]
      %v2599 = vld [vmem:[%s184 + $0x1f4] sm:$0xf]
      %v2600 = vld [vmem:[%s184 + $0x1f8] sm:$0xf]
      %v2601 = vld [vmem:[%s184 + $0x1fc] sm:$0xf]
      %v2618 = vunpack.c.l.b16 %v2586
      %v2619 = vunpack.c.l.b16 %v2587
      %v2620 = vunpack.c.l.b16 %v2588
      %v2621 = vunpack.c.l.b16 %v2589
      %v2622 = vunpack.c.l.b16 %v2590
      %v2623 = vunpack.c.l.b16 %v2591
      %v2624 = vunpack.c.l.b16 %v2592
      %v2625 = vunpack.c.l.b16 %v2593
      %v2626 = vunpack.c.l.b16 %v2594
      %v2627 = vunpack.c.l.b16 %v2595
      %v2628 = vunpack.c.l.b16 %v2596
      %v2629 = vunpack.c.l.b16 %v2597
      %v2630 = vunpack.c.l.b16 %v2598
      %v2631 = vunpack.c.l.b16 %v2599
      %v2632 = vunpack.c.l.b16 %v2600
      %v2633 = vunpack.c.l.b16 %v2601
      %v2634 = vpack.c.b16 %v2619, %v2618
      %v2635 = vpack.c.b16 %v2621, %v2620
      %v2636 = vpack.c.b16 %v2623, %v2622
      %v2637 = vpack.c.b16 %v2625, %v2624
      %v2638 = vpack.c.b16 %v2627, %v2626
      %v2639 = vpack.c.b16 %v2629, %v2628
      %v2640 = vpack.c.b16 %v2631, %v2630
      %v2641 = vpack.c.b16 %v2633, %v2632
      %2650 = vmatprep.subr.bf16.mxu0 0
      %2651 = vmatpush1.bf16.msra.mxu0 %v2634
      %2652 = vmatprep.subr.bf16.mxu0 0
      %2653 = vmatpush1.bf16.msra.mxu0 %v2635
      %2654 = vmatprep.subr.bf16.mxu0 0
      %2655 = vmatpush1.bf16.msra.mxu0 %v2636
      %2656 = vmatprep.subr.bf16.mxu0 0
      %2657 = vmatpush1.bf16.msra.mxu0 %v2637
      %2658 = vmatprep.subr.bf16.mxu0 0
      %2659 = vmatpush1.bf16.msra.mxu0 %v2638
      %2660 = vmatprep.subr.bf16.mxu0 0
      %2661 = vmatpush1.bf16.msra.mxu0 %v2639
      %2662 = vmatprep.subr.bf16.mxu0 0
      %2663 = vmatpush1.bf16.msra.mxu0 %v2640
      %2664 = vmatprep.subr.bf16.mxu0 0
      %2665 = vmatpush1.bf16.msra.mxu0 %v2641
      %2666 = vmatprep.subr.bf16.mxu0 0
      %2667 = vmatpush1.bf16.msra.mxu0 0
      %2668 = vmatprep.subr.bf16.mxu0 0
      %2669 = vmatpush1.bf16.msra.mxu0 0
      %2670 = vmatprep.subr.bf16.mxu0 0
      %2671 = vmatpush1.bf16.msra.mxu0 0
      %2672 = vmatprep.subr.bf16.mxu0 0
      %2673 = vmatpush1.bf16.msra.mxu0 0
      %2674 = vmatprep.subr.bf16.mxu0 0
      %2675 = vmatpush1.bf16.msra.mxu0 0
      %2676 = vmatprep.subr.bf16.mxu0 0
      %2677 = vmatpush1.bf16.msra.mxu0 0
      %2678 = vmatprep.subr.bf16.mxu0 0
      %2679 = vmatpush1.bf16.msra.mxu0 0
      %2680 = vmatprep.subr.bf16.mxu0 0
      %2681 = vmatpush1.bf16.msra.mxu0 0
      %2682 = vmatprep.mubr.bf16.mxu0 0
      %2683 = vmatmul.mubr.bf16.gmra.mrb[0].mxu0 %v565
      %v2684 = vpop.f32.mrb[0].mxu0
      %v2685 = vadd.f32 0.0, %v2684
      %v2686 = vpop.f32.mrb[0].mxu0
      %v2687 = vpop.f32.mrb[0].mxu0
      %v2688 = vadd.f32 0.0, %v2687
      %v2689 = vpop.f32.mrb[0].mxu0
      %2690 = vmatprep.mubr.bf16.mxu0 0
      %2691 = vmatmul.mubr.bf16.gmra.mrb[0].mxu0 %v577
      %v2692 = vpop.f32.mrb[0].mxu0
      %v2693 = vadd.f32 0.0, %v2692
      %v2694 = vpop.f32.mrb[0].mxu0
      %v2695 = vpop.f32.mrb[0].mxu0
      %v2696 = vadd.f32 0.0, %v2695
      %v2697 = vpop.f32.mrb[0].mxu0
      %2698 = vmatprep.mubr.bf16.mxu0 0
      %2699 = vmatmul.mubr.bf16.gmra.mrb[0].mxu0 %v589
      %v2700 = vpop.f32.mrb[0].mxu0
      %v2701 = vadd.f32 0.0, %v2700
      %v2702 = vpop.f32.mrb[0].mxu0
      %v2703 = vpop.f32.mrb[0].mxu0
      %v2704 = vadd.f32 0.0, %v2703
      %v2705 = vpop.f32.mrb[0].mxu0
      %2706 = vmatprep.mubr.bf16.mxu0 0
      %2707 = vmatmul.mubr.bf16.gmra.mrb[0].mxu0 %v601
      %v2708 = vpop.f32.mrb[0].mxu0
      %v2709 = vadd.f32 0.0, %v2708
      %v2710 = vpop.f32.mrb[0].mxu0
      %v2711 = vpop.f32.mrb[0].mxu0
      %v2712 = vadd.f32 0.0, %v2711
      %v2713 = vpop.f32.mrb[0].mxu0
      %2714 = vmatprep.mubr.bf16.mxu0 0
      %2715 = vmatmul.mubr.bf16.gmra.mrb[0].mxu0 %v613
      %v2716 = vpop.f32.mrb[0].mxu0
      %v2717 = vadd.f32 0.0, %v2716
      %v2718 = vpop.f32.mrb[0].mxu0
      %v2719 = vpop.f32.mrb[0].mxu0
      %v2720 = vadd.f32 0.0, %v2719
      %v2721 = vpop.f32.mrb[0].mxu0
      %2722 = vmatprep.mubr.bf16.mxu0 0
      %2723 = vmatmul.mubr.bf16.gmra.mrb[0].mxu0 %v625
      %v2724 = vpop.f32.mrb[0].mxu0
      %v2725 = vadd.f32 0.0, %v2724
      %v2726 = vpop.f32.mrb[0].mxu0
      %v2727 = vpop.f32.mrb[0].mxu0
      %v2728 = vadd.f32 0.0, %v2727
      %v2729 = vpop.f32.mrb[0].mxu0
      %2730 = vmatprep.mubr.bf16.mxu0 0
      %2731 = vmatmul.mubr.bf16.gmra.mrb[0].mxu0 %v637
      %v2732 = vpop.f32.mrb[0].mxu0
      %v2733 = vadd.f32 0.0, %v2732
      %v2734 = vpop.f32.mrb[0].mxu0
      %v2735 = vpop.f32.mrb[0].mxu0
      %v2736 = vadd.f32 0.0, %v2735
      %v2737 = vpop.f32.mrb[0].mxu0
      %2738 = vmatprep.mubr.bf16.mxu0 0
      %2739 = vmatmul.mubr.bf16.gmra.mrb[0].mxu0 %v649
      %v2740 = vpop.f32.mrb[0].mxu0
      %v2741 = vadd.f32 0.0, %v2740
      %v2742 = vpop.f32.mrb[0].mxu0
      %v2743 = vpop.f32.mrb[0].mxu0
      %v2744 = vadd.f32 0.0, %v2743
      %v2745 = vpop.f32.mrb[0].mxu0
      %2746 = vmatprep.mubr.bf16.mxu0 0
      %2747 = vmatmul.mubr.bf16.gmra.mrb[0].mxu0 %v661
      %v2748 = vpop.f32.mrb[0].mxu0
      %v2749 = vadd.f32 0.0, %v2748
      %v2750 = vpop.f32.mrb[0].mxu0
      %v2751 = vpop.f32.mrb[0].mxu0
      %v2752 = vadd.f32 0.0, %v2751
      %v2753 = vpop.f32.mrb[0].mxu0
      %2754 = vmatprep.mubr.bf16.mxu0 0
      %2755 = vmatmul.mubr.bf16.gmra.mrb[0].mxu0 %v673
      %v2756 = vpop.f32.mrb[0].mxu0
      %v2757 = vadd.f32 0.0, %v2756
      %v2758 = vpop.f32.mrb[0].mxu0
      %v2759 = vpop.f32.mrb[0].mxu0
      %v2760 = vadd.f32 0.0, %v2759
      %v2761 = vpop.f32.mrb[0].mxu0
      %2762 = vmatprep.mubr.bf16.mxu0 0
      %2763 = vmatmul.mubr.bf16.gmra.mrb[0].mxu0 %v685
      %v2764 = vpop.f32.mrb[0].mxu0
      %v2765 = vadd.f32 0.0, %v2764
      %v2766 = vpop.f32.mrb[0].mxu0
      %v2767 = vpop.f32.mrb[0].mxu0
      %v2768 = vadd.f32 0.0, %v2767
      %v2769 = vpop.f32.mrb[0].mxu0
      %2770 = vmatprep.mubr.bf16.mxu0 0
      %2771 = vmatmul.mubr.bf16.gmra.mrb[0].mxu0 %v697
      %v2772 = vpop.f32.mrb[0].mxu0
      %v2773 = vadd.f32 0.0, %v2772
      %v2774 = vpop.f32.mrb[0].mxu0
      %v2775 = vpop.f32.mrb[0].mxu0
      %v2776 = vadd.f32 0.0, %v2775
      %v2777 = vpop.f32.mrb[0].mxu0
      %2778 = vmatprep.mubr.bf16.mxu0 0
      %2779 = vmatmul.mubr.bf16.gmra.mrb[0].mxu0 %v709
      %v2780 = vpop.f32.mrb[0].mxu0
      %v2781 = vadd.f32 0.0, %v2780
      %v2782 = vpop.f32.mrb[0].mxu0
      %v2783 = vpop.f32.mrb[0].mxu0
      %v2784 = vadd.f32 0.0, %v2783
      %v2785 = vpop.f32.mrb[0].mxu0
      %2786 = vmatprep.mubr.bf16.mxu0 0
      %2787 = vmatmul.mubr.bf16.gmra.mrb[0].mxu0 %v721
      %v2788 = vpop.f32.mrb[0].mxu0
      %v2789 = vadd.f32 0.0, %v2788
      %v2790 = vpop.f32.mrb[0].mxu0
      %v2791 = vpop.f32.mrb[0].mxu0
      %v2792 = vadd.f32 0.0, %v2791
      %v2793 = vpop.f32.mrb[0].mxu0
      %2794 = vmatprep.mubr.bf16.mxu0 0
      %2795 = vmatmul.mubr.bf16.gmra.mrb[0].mxu0 %v1794
      %v2796 = vpop.f32.mrb[0].mxu0
      %v2797 = vadd.f32 0.0, %v2796
      %v2798 = vpop.f32.mrb[0].mxu0
      %v2799 = vpop.f32.mrb[0].mxu0
      %v2800 = vadd.f32 0.0, %v2799
      %v2801 = vpop.f32.mrb[0].mxu0
      %2802 = vmatprep.mubr.bf16.mxu0 0
      %2803 = vmatmul.mubr.bf16.gmra.mrb[0].mxu0 %v2584
      %v2804 = vpop.f32.mrb[0].mxu0
      %v2805 = vadd.f32 0.0, %v2804
      %v2806 = vpop.f32.mrb[0].mxu0
      %v2807 = vpop.f32.mrb[0].mxu0
      %v2808 = vadd.f32 0.0, %v2807
      %v2809 = vpop.f32.mrb[0].mxu0
      %2810 = vdwg.mxu0
      %v2811 = vadd.f32 %v2541, %v2685
      %v2812 = vadd.f32 %v2542, %v2688
      %v2813 = vadd.f32 %v2543, %v2693
      %v2814 = vadd.f32 %v2544, %v2696
      %v2815 = vadd.f32 %v2545, %v2701
      %v2816 = vadd.f32 %v2546, %v2704
      %v2817 = vadd.f32 %v2547, %v2709
      %v2818 = vadd.f32 %v2548, %v2712
      %v2819 = vadd.f32 %v2549, %v2717
      %v2820 = vadd.f32 %v2550, %v2720
      %v2821 = vadd.f32 %v2551, %v2725
      %v2822 = vadd.f32 %v2552, %v2728
      %v2823 = vadd.f32 %v2553, %v2733
      %v2824 = vadd.f32 %v2554, %v2736
      %v2825 = vadd.f32 %v2555, %v2741
      %v2826 = vadd.f32 %v2556, %v2744
      %v2827 = vadd.f32 %v2557, %v2749
      %v2828 = vadd.f32 %v2558, %v2752
      %v2829 = vadd.f32 %v2559, %v2757
      %v2830 = vadd.f32 %v2560, %v2760
      %v2831 = vadd.f32 %v2561, %v2765
      %v2832 = vadd.f32 %v2562, %v2768
      %v2833 = vadd.f32 %v2563, %v2773
      %v2834 = vadd.f32 %v2564, %v2776
      %v2835 = vadd.f32 %v2565, %v2781
      %v2836 = vadd.f32 %v2566, %v2784
      %v2837 = vadd.f32 %v2567, %v2789
      %v2838 = vadd.f32 %v2568, %v2792
      %v2839 = vadd.f32 %v2569, %v2797
      %v2840 = vadd.f32 %v2570, %v2800
      %v2841 = vadd.f32 %v2571, %v2805
      %v2842 = vadd.f32 %v2572, %v2808
      %v2845 = vrot.slane %v494, 1
      %v2846 = vrot.slane %v512, 1
      %v2847 = vsel %vm1204, %v2845, %v2846
      %v2849 = vld [vmem:[%s184 + $0x200] sm:$0xf]
      %v2850 = vld [vmem:[%s184 + $0x204] sm:$0xf]
      %v2851 = vld [vmem:[%s184 + $0x208] sm:$0xf]
      %v2852 = vld [vmem:[%s184 + $0x20c] sm:$0xf]
      %v2853 = vld [vmem:[%s184 + $0x210] sm:$0xf]
      %v2854 = vld [vmem:[%s184 + $0x214] sm:$0xf]
      %v2855 = vld [vmem:[%s184 + $0x218] sm:$0xf]
      %v2856 = vld [vmem:[%s184 + $0x21c] sm:$0xf]
      %v2857 = vld [vmem:[%s184 + $0x220] sm:$0xf]
      %v2858 = vld [vmem:[%s184 + $0x224] sm:$0xf]
      %v2859 = vld [vmem:[%s184 + $0x228] sm:$0xf]
      %v2860 = vld [vmem:[%s184 + $0x22c] sm:$0xf]
      %v2861 = vld [vmem:[%s184 + $0x230] sm:$0xf]
      %v2862 = vld [vmem:[%s184 + $0x234] sm:$0xf]
      %v2863 = vld [vmem:[%s184 + $0x238] sm:$0xf]
      %v2864 = vld [vmem:[%s184 + $0x23c] sm:$0xf]
      %v2881 = vunpack.c.l.b16 %v2849
      %v2882 = vunpack.c.l.b16 %v2850
      %v2883 = vunpack.c.l.b16 %v2851
      %v2884 = vunpack.c.l.b16 %v2852
      %v2885 = vunpack.c.l.b16 %v2853
      %v2886 = vunpack.c.l.b16 %v2854
      %v2887 = vunpack.c.l.b16 %v2855
      %v2888 = vunpack.c.l.b16 %v2856
      %v2889 = vunpack.c.l.b16 %v2857
      %v2890 = vunpack.c.l.b16 %v2858
      %v2891 = vunpack.c.l.b16 %v2859
      %v2892 = vunpack.c.l.b16 %v2860
      %v2893 = vunpack.c.l.b16 %v2861
      %v2894 = vunpack.c.l.b16 %v2862
      %v2895 = vunpack.c.l.b16 %v2863
      %v2896 = vunpack.c.l.b16 %v2864
      %v2897 = vpack.c.b16 %v2882, %v2881
      %v2898 = vpack.c.b16 %v2884, %v2883
      %v2899 = vpack.c.b16 %v2886, %v2885
      %v2900 = vpack.c.b16 %v2888, %v2887
      %v2901 = vpack.c.b16 %v2890, %v2889
      %v2902 = vpack.c.b16 %v2892, %v2891
      %v2903 = vpack.c.b16 %v2894, %v2893
      %v2904 = vpack.c.b16 %v2896, %v2895
      %2913 = vmatprep.subr.bf16.mxu0 0
      %2914 = vmatpush1.bf16.msra.mxu0 %v2897
      %2915 = vmatprep.subr.bf16.mxu0 0
      %2916 = vmatpush1.bf16.msra.mxu0 %v2898
      %2917 = vmatprep.subr.bf16.mxu0 0
      %2918 = vmatpush1.bf16.msra.mxu0 %v2899
      %2919 = vmatprep.subr.bf16.mxu0 0
      %2920 = vmatpush1.bf16.msra.mxu0 %v2900
      %2921 = vmatprep.subr.bf16.mxu0 0
      %2922 = vmatpush1.bf16.msra.mxu0 %v2901
      %2923 = vmatprep.subr.bf16.mxu0 0
      %2924 = vmatpush1.bf16.msra.mxu0 %v2902
      %2925 = vmatprep.subr.bf16.mxu0 0
      %2926 = vmatpush1.bf16.msra.mxu0 %v2903
      %2927 = vmatprep.subr.bf16.mxu0 0
      %2928 = vmatpush1.bf16.msra.mxu0 %v2904
      %2929 = vmatprep.subr.bf16.mxu0 0
      %2930 = vmatpush1.bf16.msra.mxu0 0
      %2931 = vmatprep.subr.bf16.mxu0 0
      %2932 = vmatpush1.bf16.msra.mxu0 0
      %2933 = vmatprep.subr.bf16.mxu0 0
      %2934 = vmatpush1.bf16.msra.mxu0 0
      %2935 = vmatprep.subr.bf16.mxu0 0
      %2936 = vmatpush1.bf16.msra.mxu0 0
      %2937 = vmatprep.subr.bf16.mxu0 0
      %2938 = vmatpush1.bf16.msra.mxu0 0
      %2939 = vmatprep.subr.bf16.mxu0 0
      %2940 = vmatpush1.bf16.msra.mxu0 0
      %2941 = vmatprep.subr.bf16.mxu0 0
      %2942 = vmatpush1.bf16.msra.mxu0 0
      %2943 = vmatprep.subr.bf16.mxu0 0
      %2944 = vmatpush1.bf16.msra.mxu0 0
      %2945 = vmatprep.mubr.bf16.mxu0 0
      %2946 = vmatmul.mubr.bf16.gmra.mrb[0].mxu0 %v1213
      %v2947 = vpop.f32.mrb[0].mxu0
      %v2948 = vadd.f32 0.0, %v2947
      %v2949 = vpop.f32.mrb[0].mxu0
      %v2950 = vpop.f32.mrb[0].mxu0
      %v2951 = vadd.f32 0.0, %v2950
      %v2952 = vpop.f32.mrb[0].mxu0
      %2953 = vmatprep.mubr.bf16.mxu0 0
      %2954 = vmatmul.mubr.bf16.gmra.mrb[0].mxu0 %v1216
      %v2955 = vpop.f32.mrb[0].mxu0
      %v2956 = vadd.f32 0.0, %v2955
      %v2957 = vpop.f32.mrb[0].mxu0
      %v2958 = vpop.f32.mrb[0].mxu0
      %v2959 = vadd.f32 0.0, %v2958
      %v2960 = vpop.f32.mrb[0].mxu0
      %2961 = vmatprep.mubr.bf16.mxu0 0
      %2962 = vmatmul.mubr.bf16.gmra.mrb[0].mxu0 %v1219
      %v2963 = vpop.f32.mrb[0].mxu0
      %v2964 = vadd.f32 0.0, %v2963
      %v2965 = vpop.f32.mrb[0].mxu0
      %v2966 = vpop.f32.mrb[0].mxu0
      %v2967 = vadd.f32 0.0, %v2966
      %v2968 = vpop.f32.mrb[0].mxu0
      %2969 = vmatprep.mubr.bf16.mxu0 0
      %2970 = vmatmul.mubr.bf16.gmra.mrb[0].mxu0 %v1222
      %v2971 = vpop.f32.mrb[0].mxu0
      %v2972 = vadd.f32 0.0, %v2971
      %v2973 = vpop.f32.mrb[0].mxu0
      %v2974 = vpop.f32.mrb[0].mxu0
      %v2975 = vadd.f32 0.0, %v2974
      %v2976 = vpop.f32.mrb[0].mxu0
      %2977 = vmatprep.mubr.bf16.mxu0 0
      %2978 = vmatmul.mubr.bf16.gmra.mrb[0].mxu0 %v1225
      %v2979 = vpop.f32.mrb[0].mxu0
      %v2980 = vadd.f32 0.0, %v2979
      %v2981 = vpop.f32.mrb[0].mxu0
      %v2982 = vpop.f32.mrb[0].mxu0
      %v2983 = vadd.f32 0.0, %v2982
      %v2984 = vpop.f32.mrb[0].mxu0
      %2985 = vmatprep.mubr.bf16.mxu0 0
      %2986 = vmatmul.mubr.bf16.gmra.mrb[0].mxu0 %v1228
      %v2987 = vpop.f32.mrb[0].mxu0
      %v2988 = vadd.f32 0.0, %v2987
      %v2989 = vpop.f32.mrb[0].mxu0
      %v2990 = vpop.f32.mrb[0].mxu0
      %v2991 = vadd.f32 0.0, %v2990
      %v2992 = vpop.f32.mrb[0].mxu0
      %2993 = vmatprep.mubr.bf16.mxu0 0
      %2994 = vmatmul.mubr.bf16.gmra.mrb[0].mxu0 %v1231
      %v2995 = vpop.f32.mrb[0].mxu0
      %v2996 = vadd.f32 0.0, %v2995
      %v2997 = vpop.f32.mrb[0].mxu0
      %v2998 = vpop.f32.mrb[0].mxu0
      %v2999 = vadd.f32 0.0, %v2998
      %v3000 = vpop.f32.mrb[0].mxu0
      %3001 = vmatprep.mubr.bf16.mxu0 0
      %3002 = vmatmul.mubr.bf16.gmra.mrb[0].mxu0 %v1234
      %v3003 = vpop.f32.mrb[0].mxu0
      %v3004 = vadd.f32 0.0, %v3003
      %v3005 = vpop.f32.mrb[0].mxu0
      %v3006 = vpop.f32.mrb[0].mxu0
      %v3007 = vadd.f32 0.0, %v3006
      %v3008 = vpop.f32.mrb[0].mxu0
      %3009 = vmatprep.mubr.bf16.mxu0 0
      %3010 = vmatmul.mubr.bf16.gmra.mrb[0].mxu0 %v1237
      %v3011 = vpop.f32.mrb[0].mxu0
      %v3012 = vadd.f32 0.0, %v3011
      %v3013 = vpop.f32.mrb[0].mxu0
      %v3014 = vpop.f32.mrb[0].mxu0
      %v3015 = vadd.f32 0.0, %v3014
      %v3016 = vpop.f32.mrb[0].mxu0
      %3017 = vmatprep.mubr.bf16.mxu0 0
      %3018 = vmatmul.mubr.bf16.gmra.mrb[0].mxu0 %v1240
      %v3019 = vpop.f32.mrb[0].mxu0
      %v3020 = vadd.f32 0.0, %v3019
      %v3021 = vpop.f32.mrb[0].mxu0
      %v3022 = vpop.f32.mrb[0].mxu0
      %v3023 = vadd.f32 0.0, %v3022
      %v3024 = vpop.f32.mrb[0].mxu0
      %3025 = vmatprep.mubr.bf16.mxu0 0
      %3026 = vmatmul.mubr.bf16.gmra.mrb[0].mxu0 %v1243
      %v3027 = vpop.f32.mrb[0].mxu0
      %v3028 = vadd.f32 0.0, %v3027
      %v3029 = vpop.f32.mrb[0].mxu0
      %v3030 = vpop.f32.mrb[0].mxu0
      %v3031 = vadd.f32 0.0, %v3030
      %v3032 = vpop.f32.mrb[0].mxu0
      %3033 = vmatprep.mubr.bf16.mxu0 0
      %3034 = vmatmul.mubr.bf16.gmra.mrb[0].mxu0 %v1246
      %v3035 = vpop.f32.mrb[0].mxu0
      %v3036 = vadd.f32 0.0, %v3035
      %v3037 = vpop.f32.mrb[0].mxu0
      %v3038 = vpop.f32.mrb[0].mxu0
      %v3039 = vadd.f32 0.0, %v3038
      %v3040 = vpop.f32.mrb[0].mxu0
      %3041 = vmatprep.mubr.bf16.mxu0 0
      %3042 = vmatmul.mubr.bf16.gmra.mrb[0].mxu0 %v1249
      %v3043 = vpop.f32.mrb[0].mxu0
      %v3044 = vadd.f32 0.0, %v3043
      %v3045 = vpop.f32.mrb[0].mxu0
      %v3046 = vpop.f32.mrb[0].mxu0
      %v3047 = vadd.f32 0.0, %v3046
      %v3048 = vpop.f32.mrb[0].mxu0
      %3049 = vmatprep.mubr.bf16.mxu0 0
      %3050 = vmatmul.mubr.bf16.gmra.mrb[0].mxu0 %v1252
      %v3051 = vpop.f32.mrb[0].mxu0
      %v3052 = vadd.f32 0.0, %v3051
      %v3053 = vpop.f32.mrb[0].mxu0
      %v3054 = vpop.f32.mrb[0].mxu0
      %v3055 = vadd.f32 0.0, %v3054
      %v3056 = vpop.f32.mrb[0].mxu0
      %3057 = vmatprep.mubr.bf16.mxu0 0
      %3058 = vmatmul.mubr.bf16.gmra.mrb[0].mxu0 %v2057
      %v3059 = vpop.f32.mrb[0].mxu0
      %v3060 = vadd.f32 0.0, %v3059
      %v3061 = vpop.f32.mrb[0].mxu0
      %v3062 = vpop.f32.mrb[0].mxu0
      %v3063 = vadd.f32 0.0, %v3062
      %v3064 = vpop.f32.mrb[0].mxu0
      %3065 = vmatprep.mubr.bf16.mxu0 0
      %3066 = vmatmul.mubr.bf16.gmra.mrb[0].mxu0 %v2847
      %v3067 = vpop.f32.mrb[0].mxu0
      %v3068 = vadd.f32 0.0, %v3067
      %v3069 = vpop.f32.mrb[0].mxu0
      %v3070 = vpop.f32.mrb[0].mxu0
      %v3071 = vadd.f32 0.0, %v3070
      %v3072 = vpop.f32.mrb[0].mxu0
      %3073 = vdwg.mxu0
      %v3074 = vadd.f32 %v2811, %v2948
      %v3075 = vadd.f32 %v2812, %v2951
      %v3076 = vadd.f32 %v2813, %v2956
      %v3077 = vadd.f32 %v2814, %v2959
      %v3078 = vadd.f32 %v2815, %v2964
      %v3079 = vadd.f32 %v2816, %v2967
      %v3080 = vadd.f32 %v2817, %v2972
      %v3081 = vadd.f32 %v2818, %v2975
      %v3082 = vadd.f32 %v2819, %v2980
      %v3083 = vadd.f32 %v2820, %v2983
      %v3084 = vadd.f32 %v2821, %v2988
      %v3085 = vadd.f32 %v2822, %v2991
      %v3086 = vadd.f32 %v2823, %v2996
      %v3087 = vadd.f32 %v2824, %v2999
      %v3088 = vadd.f32 %v2825, %v3004
      %v3089 = vadd.f32 %v2826, %v3007
      %v3090 = vadd.f32 %v2827, %v3012
      %v3091 = vadd.f32 %v2828, %v3015
      %v3092 = vadd.f32 %v2829, %v3020
      %v3093 = vadd.f32 %v2830, %v3023
      %v3094 = vadd.f32 %v2831, %v3028
      %v3095 = vadd.f32 %v2832, %v3031
      %v3096 = vadd.f32 %v2833, %v3036
      %v3097 = vadd.f32 %v2834, %v3039
      %v3098 = vadd.f32 %v2835, %v3044
      %v3099 = vadd.f32 %v2836, %v3047
      %v3100 = vadd.f32 %v2837, %v3052
      %v3101 = vadd.f32 %v2838, %v3055
      %v3102 = vadd.f32 %v2839, %v3060
      %v3103 = vadd.f32 %v2840, %v3063
      %v3104 = vadd.f32 %v2841, %v3068
      %v3105 = vadd.f32 %v2842, %v3071
      %v3106 = vpack.c.bf16 %v3075, %v3074
      %v3107 = vpack.c.bf16 %v3077, %v3076
      %v3108 = vpack.c.bf16 %v3079, %v3078
      %v3109 = vpack.c.bf16 %v3081, %v3080
      %v3110 = vpack.c.bf16 %v3083, %v3082
      %v3111 = vpack.c.bf16 %v3085, %v3084
      %v3112 = vpack.c.bf16 %v3087, %v3086
      %v3113 = vpack.c.bf16 %v3089, %v3088
      %v3114 = vpack.c.bf16 %v3091, %v3090
      %v3115 = vpack.c.bf16 %v3093, %v3092
      %v3116 = vpack.c.bf16 %v3095, %v3094
      %v3117 = vpack.c.bf16 %v3097, %v3096
      %v3118 = vpack.c.bf16 %v3099, %v3098
      %v3119 = vpack.c.bf16 %v3101, %v3100
      %v3120 = vpack.c.bf16 %v3103, %v3102
      %v3121 = vpack.c.bf16 %v3105, %v3104
      %v3138 = vunpack.c.l.b16 %v3106
      %v3139 = vunpack.c.h.b16 %v3106
      %v3140 = vunpack.c.l.b16 %v3107
      %v3141 = vunpack.c.h.b16 %v3107
      %v3142 = vunpack.c.l.b16 %v3108
      %v3143 = vunpack.c.h.b16 %v3108
      %v3144 = vunpack.c.l.b16 %v3109
      %v3145 = vunpack.c.h.b16 %v3109
      %v3146 = vunpack.c.l.b16 %v3110
      %v3147 = vunpack.c.h.b16 %v3110
      %v3148 = vunpack.c.l.b16 %v3111
      %v3149 = vunpack.c.h.b16 %v3111
      %v3150 = vunpack.c.l.b16 %v3112
      %v3151 = vunpack.c.h.b16 %v3112
      %v3152 = vunpack.c.l.b16 %v3113
      %v3153 = vunpack.c.h.b16 %v3113
      %v3154 = vunpack.c.l.b16 %v3114
      %v3155 = vunpack.c.h.b16 %v3114
      %v3156 = vunpack.c.l.b16 %v3115
      %v3157 = vunpack.c.h.b16 %v3115
      %v3158 = vunpack.c.l.b16 %v3116
      %v3159 = vunpack.c.h.b16 %v3116
      %v3160 = vunpack.c.l.b16 %v3117
      %v3161 = vunpack.c.h.b16 %v3117
      %v3162 = vunpack.c.l.b16 %v3118
      %v3163 = vunpack.c.h.b16 %v3118
      %v3164 = vunpack.c.l.b16 %v3119
      %v3165 = vunpack.c.h.b16 %v3119
      %v3166 = vunpack.c.l.b16 %v3120
      %v3167 = vunpack.c.h.b16 %v3120
      %v3168 = vunpack.c.l.b16 %v3121
      %v3169 = vunpack.c.h.b16 %v3121
      %v3170 = vpack.c.b16 %v3138, %v3138
      %v3171 = vpack.c.b16 %v3139, %v3139
      %v3172 = vpack.c.b16 %v3140, %v3140
      %v3173 = vpack.c.b16 %v3141, %v3141
      %v3174 = vpack.c.b16 %v3142, %v3142
      %v3175 = vpack.c.b16 %v3143, %v3143
      %v3176 = vpack.c.b16 %v3144, %v3144
      %v3177 = vpack.c.b16 %v3145, %v3145
      %v3178 = vpack.c.b16 %v3146, %v3146
      %v3179 = vpack.c.b16 %v3147, %v3147
      %v3180 = vpack.c.b16 %v3148, %v3148
      %v3181 = vpack.c.b16 %v3149, %v3149
      %v3182 = vpack.c.b16 %v3150, %v3150
      %v3183 = vpack.c.b16 %v3151, %v3151
      %v3184 = vpack.c.b16 %v3152, %v3152
      %v3185 = vpack.c.b16 %v3153, %v3153
      %v3186 = vpack.c.b16 %v3154, %v3154
      %v3187 = vpack.c.b16 %v3155, %v3155
      %v3188 = vpack.c.b16 %v3156, %v3156
      %v3189 = vpack.c.b16 %v3157, %v3157
      %v3190 = vpack.c.b16 %v3158, %v3158
      %v3191 = vpack.c.b16 %v3159, %v3159
      %v3192 = vpack.c.b16 %v3160, %v3160
      %v3193 = vpack.c.b16 %v3161, %v3161
      %v3194 = vpack.c.b16 %v3162, %v3162
      %v3195 = vpack.c.b16 %v3163, %v3163
      %v3196 = vpack.c.b16 %v3164, %v3164
      %v3197 = vpack.c.b16 %v3165, %v3165
      %v3198 = vpack.c.b16 %v3166, %v3166
      %v3199 = vpack.c.b16 %v3167, %v3167
      %v3200 = vpack.c.b16 %v3168, %v3168
      %v3201 = vpack.c.b16 %v3169, %v3169
      %3234 = vst [vmem:[%s197] sm:$0xf] %v3170
      %3235 = vst [vmem:[%s197 + $0x4] sm:$0xf] %v3171
      %3236 = vst [vmem:[%s197 + $0x8] sm:$0xf] %v3172
      %3237 = vst [vmem:[%s197 + $0xc] sm:$0xf] %v3173
      %3238 = vst [vmem:[%s197 + $0x10] sm:$0xf] %v3174
      %3239 = vst [vmem:[%s197 + $0x14] sm:$0xf] %v3175
      %3240 = vst [vmem:[%s197 + $0x18] sm:$0xf] %v3176
      %3241 = vst [vmem:[%s197 + $0x1c] sm:$0xf] %v3177
      %3242 = vst [vmem:[%s197 + $0x20] sm:$0xf] %v3178
      %3243 = vst [vmem:[%s197 + $0x24] sm:$0xf] %v3179
      %3244 = vst [vmem:[%s197 + $0x28] sm:$0xf] %v3180
      %3245 = vst [vmem:[%s197 + $0x2c] sm:$0xf] %v3181
      %3246 = vst [vmem:[%s197 + $0x30] sm:$0xf] %v3182
      %3247 = vst [vmem:[%s197 + $0x34] sm:$0xf] %v3183
      %3248 = vst [vmem:[%s197 + $0x38] sm:$0xf] %v3184
      %3249 = vst [vmem:[%s197 + $0x3c] sm:$0xf] %v3185
      %3250 = vst [vmem:[%s197 + $0x40] sm:$0xf] %v3186
      %3251 = vst [vmem:[%s197 + $0x44] sm:$0xf] %v3187
      %3252 = vst [vmem:[%s197 + $0x48] sm:$0xf] %v3188
      %3253 = vst [vmem:[%s197 + $0x4c] sm:$0xf] %v3189
      %3254 = vst [vmem:[%s197 + $0x50] sm:$0xf] %v3190
      %3255 = vst [vmem:[%s197 + $0x54] sm:$0xf] %v3191
      %3256 = vst [vmem:[%s197 + $0x58] sm:$0xf] %v3192
      %3257 = vst [vmem:[%s197 + $0x5c] sm:$0xf] %v3193
      %3258 = vst [vmem:[%s197 + $0x60] sm:$0xf] %v3194
      %3259 = vst [vmem:[%s197 + $0x64] sm:$0xf] %v3195
      %3260 = vst [vmem:[%s197 + $0x68] sm:$0xf] %v3196
      %3261 = vst [vmem:[%s197 + $0x6c] sm:$0xf] %v3197
      %3262 = vst [vmem:[%s197 + $0x70] sm:$0xf] %v3198
      %3263 = vst [vmem:[%s197 + $0x74] sm:$0xf] %v3199
      %3264 = vst [vmem:[%s197 + $0x78] sm:$0xf] %v3200
      %3265 = vst [vmem:[%s197 + $0x7c] sm:$0xf] %v3201
      %v3266 = vadd.f32 %v3074, %v3075
      %v3267 = vadd.f32 %v3266, %v3076
      %v3268 = vadd.f32 %v3267, %v3077
      %v3269 = vadd.f32 %v3268, %v3078
      %v3270 = vadd.f32 %v3269, %v3079
      %v3271 = vadd.f32 %v3270, %v3080
      %v3272 = vadd.f32 %v3271, %v3081
      %v3273 = vadd.f32 %v3272, %v3082
      %v3274 = vadd.f32 %v3273, %v3083
      %v3275 = vadd.f32 %v3274, %v3084
      %v3276 = vadd.f32 %v3275, %v3085
      %v3277 = vadd.f32 %v3276, %v3086
      %v3278 = vadd.f32 %v3277, %v3087
      %v3279 = vadd.f32 %v3278, %v3088
      %v3280 = vadd.f32 %v3279, %v3089
      %v3281 = vadd.f32 %v3280, %v3090
      %v3282 = vadd.f32 %v3281, %v3091
      %v3283 = vadd.f32 %v3282, %v3092
      %v3284 = vadd.f32 %v3283, %v3093
      %v3285 = vadd.f32 %v3284, %v3094
      %v3286 = vadd.f32 %v3285, %v3095
      %v3287 = vadd.f32 %v3286, %v3096
      %v3288 = vadd.f32 %v3287, %v3097
      %v3289 = vadd.f32 %v3288, %v3098
      %v3290 = vadd.f32 %v3289, %v3099
      %v3291 = vadd.f32 %v3290, %v3100
      %v3292 = vadd.f32 %v3291, %v3101
      %v3293 = vadd.f32 %v3292, %v3102
      %v3294 = vadd.f32 %v3293, %v3103
      %v3295 = vadd.f32 %v3294, %v3104
      %v3296 = vadd.f32 %v3295, %v3105
      %v3297 = vrot.slane %v3296, 4
      %v3298 = vadd.f32 %v3296, %v3297
      %v3299 = vrot.slane %v3298, 2
      %v3300 = vadd.f32 %v3298, %v3299
      %v3301 = vrot.slane %v3300, 1
      %v3302 = vadd.f32 %v3300, %v3301
      %v3303 = vmul.f32 %v3302, 0.00390625
      %v3304 = vsub.f32 %v3074, %v3303
      %v3305 = vsub.f32 %v3075, %v3303
      %v3306 = vsub.f32 %v3076, %v3303
      %v3307 = vsub.f32 %v3077, %v3303
      %v3308 = vsub.f32 %v3078, %v3303
      %v3309 = vsub.f32 %v3079, %v3303
      %v3310 = vsub.f32 %v3080, %v3303
      %v3311 = vsub.f32 %v3081, %v3303
      %v3312 = vsub.f32 %v3082, %v3303
      %v3313 = vsub.f32 %v3083, %v3303
      %v3314 = vsub.f32 %v3084, %v3303
      %v3315 = vsub.f32 %v3085, %v3303
      %v3316 = vsub.f32 %v3086, %v3303
      %v3317 = vsub.f32 %v3087, %v3303
      %v3318 = vsub.f32 %v3088, %v3303
      %v3319 = vsub.f32 %v3089, %v3303
      %v3320 = vsub.f32 %v3090, %v3303
      %v3321 = vsub.f32 %v3091, %v3303
      %v3322 = vsub.f32 %v3092, %v3303
      %v3323 = vsub.f32 %v3093, %v3303
      %v3324 = vsub.f32 %v3094, %v3303
      %v3325 = vsub.f32 %v3095, %v3303
      %v3326 = vsub.f32 %v3096, %v3303
      %v3327 = vsub.f32 %v3097, %v3303
      %v3328 = vsub.f32 %v3098, %v3303
      %v3329 = vsub.f32 %v3099, %v3303
      %v3330 = vsub.f32 %v3100, %v3303
      %v3331 = vsub.f32 %v3101, %v3303
      %v3332 = vsub.f32 %v3102, %v3303
      %v3333 = vsub.f32 %v3103, %v3303
      %v3334 = vsub.f32 %v3104, %v3303
      %v3335 = vsub.f32 %v3105, %v3303
      %v3336 = vmul.f32 %v3304, %v3304
      %v3337 = vmul.f32 %v3305, %v3305
      %v3338 = vmul.f32 %v3306, %v3306
      %v3339 = vmul.f32 %v3307, %v3307
      %v3340 = vmul.f32 %v3308, %v3308
      %v3341 = vmul.f32 %v3309, %v3309
      %v3342 = vmul.f32 %v3310, %v3310
      %v3343 = vmul.f32 %v3311, %v3311
      %v3344 = vmul.f32 %v3312, %v3312
      %v3345 = vmul.f32 %v3313, %v3313
      %v3346 = vmul.f32 %v3314, %v3314
      %v3347 = vmul.f32 %v3315, %v3315
      %v3348 = vmul.f32 %v3316, %v3316
      %v3349 = vmul.f32 %v3317, %v3317
      %v3350 = vmul.f32 %v3318, %v3318
      %v3351 = vmul.f32 %v3319, %v3319
      %v3352 = vmul.f32 %v3320, %v3320
      %v3353 = vmul.f32 %v3321, %v3321
      %v3354 = vmul.f32 %v3322, %v3322
      %v3355 = vmul.f32 %v3323, %v3323
      %v3356 = vmul.f32 %v3324, %v3324
      %v3357 = vmul.f32 %v3325, %v3325
      %v3358 = vmul.f32 %v3326, %v3326
      %v3359 = vmul.f32 %v3327, %v3327
      %v3360 = vmul.f32 %v3328, %v3328
      %v3361 = vmul.f32 %v3329, %v3329
      %v3362 = vmul.f32 %v3330, %v3330
      %v3363 = vmul.f32 %v3331, %v3331
      %v3364 = vmul.f32 %v3332, %v3332
      %v3365 = vmul.f32 %v3333, %v3333
      %v3366 = vmul.f32 %v3334, %v3334
      %v3367 = vmul.f32 %v3335, %v3335
      %v3368 = vadd.f32 %v3336, %v3337
      %v3369 = vadd.f32 %v3368, %v3338
      %v3370 = vadd.f32 %v3369, %v3339
      %v3371 = vadd.f32 %v3370, %v3340
      %v3372 = vadd.f32 %v3371, %v3341
      %v3373 = vadd.f32 %v3372, %v3342
      %v3374 = vadd.f32 %v3373, %v3343
      %v3375 = vadd.f32 %v3374, %v3344
      %v3376 = vadd.f32 %v3375, %v3345
      %v3377 = vadd.f32 %v3376, %v3346
      %v3378 = vadd.f32 %v3377, %v3347
      %v3379 = vadd.f32 %v3378, %v3348
      %v3380 = vadd.f32 %v3379, %v3349
      %v3381 = vadd.f32 %v3380, %v3350
      %v3382 = vadd.f32 %v3381, %v3351
      %v3383 = vadd.f32 %v3382, %v3352
      %v3384 = vadd.f32 %v3383, %v3353
      %v3385 = vadd.f32 %v3384, %v3354
      %v3386 = vadd.f32 %v3385, %v3355
      %v3387 = vadd.f32 %v3386, %v3356
      %v3388 = vadd.f32 %v3387, %v3357
      %v3389 = vadd.f32 %v3388, %v3358
      %v3390 = vadd.f32 %v3389, %v3359
      %v3391 = vadd.f32 %v3390, %v3360
      %v3392 = vadd.f32 %v3391, %v3361
      %v3393 = vadd.f32 %v3392, %v3362
      %v3394 = vadd.f32 %v3393, %v3363
      %v3395 = vadd.f32 %v3394, %v3364
      %v3396 = vadd.f32 %v3395, %v3365
      %v3397 = vadd.f32 %v3396, %v3366
      %v3398 = vadd.f32 %v3397, %v3367
      %v3399 = vrot.slane %v3398, 4
      %v3400 = vadd.f32 %v3398, %v3399
      %v3401 = vrot.slane %v3400, 2
      %v3402 = vadd.f32 %v3400, %v3401
      %v3403 = vrot.slane %v3402, 1
      %v3404 = vadd.f32 %v3402, %v3403
      %vm3405 = vcmask 1040384
      %v3406 = vsel %vm3405, %v3302, %v3404
      %3407 = vst [vmem:[%s208] sm:$0x3] %v3406
      %s3408 = smul.u32 16, %s21
      %p3409 = scmp.lt.s32.totalorder %s20, 1
      %s3410 = scalar_select %p3409, %s20, 1
      %p3411 = scmp.lt.s32.totalorder %s3408, 15
      %s3412 = scalar_select %p3411, %s3408, 15
      %p3413 = scmp.lt.s32.totalorder %s22, 0
      %s3414 = scalar_select %p3413, %s22, 0
      %s3415 = smul.addr %s3412, 2
      %s3416 = sadd.s32 %s3414, %s3415
      %s3417 = smul.addr %s3410, 32
      %s3418 = sadd.s32 %s3416, %s3417
      %s3419 = smul.addr %s3418, 4
      %s3420 = scalar_lea.vmem %s2, %s3419
      %p3421 = scmp.lt.s32.totalorder %s20, 1
      %s3422 = scalar_select %p3421, %s20, 1
      %p3423 = scmp.lt.s32.totalorder %s21, 0
      %s3424 = scalar_select %p3423, %s21, 0
      %p3425 = scmp.lt.s32.totalorder %s22, 0
      %s3426 = scalar_select %p3425, %s22, 0
      %s3427 = sadd.s32 %s3426, %s3424
      %s3428 = sadd.s32 %s3427, %s3422
      %s3429 = smul.addr %s3428, 2
      %s3430 = scalar_lea.vmem %s3, %s3429
      // Predicated region
      $region59: #{double_conv.3} parent=23 // pred_check
        %p3431 = pneg %p82
      $region60: #{double_conv.3} parent=23 // pred_check_branch
        %3433 = sbr.rel (%p3431) target = $region62
      $region61: #{double_conv.3} parent=23 // pred_region
        %s3434 = smul.u32 16, %s21
      $region62: #{double_conv.3} parent=23 // pred_fallthru
        _
      // Predicated region
      $region63: #{double_conv.3} parent=23 // pred_check
        %p3435 = pneg %p112
      $region64: #{double_conv.3} parent=23 // pred_check_branch
        %3437 = sbr.rel (%p3435) target = $region66
      $region65: #{double_conv.3} parent=23 // pred_region
        _
      $region66: #{double_conv.3} parent=23 // pred_fallthru
        _
    $region24: #{double_conv.3} parent=5 // pred_fallthru
      _
    %p3438 = scmp.le.s32.totalorder 2, %s10
    // Predicated region
    $region67: #{double_conv.3} parent=5 // pred_check
      %p3439 = pneg %p3438
    $region68: #{double_conv.3} parent=5 // pred_check_branch
      %3441 = sbr.rel (%p3439) target = $region70
    $region69: #{double_conv.3} parent=5 // pred_region
      %s3442 = ssub.s32 %s10, 2
      // Predicated region
      $region71: #{double_conv.3} parent=69 // pred_check
        %p3443 = pneg %p88
      $region72: #{double_conv.3} parent=69 // pred_check_branch
        %3445 = sbr.rel (%p3443) target = $region74
      $region73: #{double_conv.3} parent=69 // pred_region
        %s3446 = smul.u32 16, %s24
        %p3447 = scmp.lt.s32.totalorder %s23, 1
        %s3448 = scalar_select %p3447, %s23, 1
        %p3449 = scmp.lt.s32.totalorder %s3446, 15
        %s3450 = scalar_select %p3449, %s3446, 15
        %p3451 = scmp.lt.s32.totalorder %s25, 0
        %s3452 = scalar_select %p3451, %s25, 0
        %s3453 = smul.addr %s3450, 2
        %s3454 = sadd.s32 %s3452, %s3453
        %s3455 = smul.addr %s3448, 32
        %s3456 = sadd.s32 %s3454, %s3455
        %s3457 = smul.addr %s3456, 4
        %s3458 = scalar_lea.vmem %s2, %s3457
      $region74: #{double_conv.3} parent=69 // pred_fallthru
        _
      // Predicated region
      $region75: #{double_conv.3} parent=69 // pred_check
        %p3459 = pneg %p118
      $region76: #{double_conv.3} parent=69 // pred_check_branch
        %3461 = sbr.rel (%p3459) target = $region78
      $region77: #{double_conv.3} parent=69 // pred_region
        %p3462 = scmp.lt.s32.totalorder %s23, 1
        %s3463 = scalar_select %p3462, %s23, 1
        %p3464 = scmp.lt.s32.totalorder %s24, 0
        %s3465 = scalar_select %p3464, %s24, 0
        %p3466 = scmp.lt.s32.totalorder %s25, 0
        %s3467 = scalar_select %p3466, %s25, 0
        %s3468 = sadd.s32 %s3467, %s3465
        %s3469 = sadd.s32 %s3468, %s3463
        %s3470 = smul.addr %s3469, 2
        %s3471 = scalar_lea.vmem %s3, %s3470
      $region78: #{double_conv.3} parent=69 // pred_fallthru
        _
    $region70: #{double_conv.3} parent=5 // pred_fallthru
      _
  $region6: #{double_conv.3} parent=0 // loop_footer
    %s14 = sadd.s32 1, %s10
  $region7: #{double_conv.3} parent=0 // loop_footer_branch
    %9 = sbr.rel target = $region3
  $region8: #{double_conv.3} parent=0 // loop_exit
    _
  %3472 = vsyncmov [#allocation3]
  %s3473 = vpop.sfrf %3472
  %p3474 = scmp.eq.s32.totalorder %s3473, 0
  %p3475 = pneg %p3474
  %3477 = shalt.err (%p3475)

// kernel: double_conv.4
$region0: #{double_conv.4}
  #allocation0 [shape = 'u32[]', space=smem, size = 0x4, offset = 0x4, fixed_abs, tag = 'smem constant byte address 0x4 - core index']
  #allocation1 [shape = 'u32[144,128]{1,0:T(1,128)}', space=vmem, size = 0x12000, scoped, tag = 'internal scratch']
  #allocation2 [shape = 'bf16[18,16,128]{2,1,0:T(16,128)(2,1)}', space=vmem, size = 0x12000, scoped, tag = 'scratch operand']
  #allocation3 [shape = 's32[1]{0}', space=sflag, size = 0x4, scoped, tag = 'scratch operand']
  #allocation4 [shape = 's32[]', space=sflag, size = 0x4, offset = 0, fixed_abs, tag = 'sflag constant byte address 0x0 - dummy sync flag']
  %s0 = inlined_call_operand.vmem [shape: bf16[2,16,16,128], index: 0, kind: input, shape index: {}]
  %s1 = inlined_call_operand.vmem [shape: bf16[1152,128], index: 1, kind: input, shape index: {}]
  %s2 = inlined_call_operand.vmem [shape: f32[1,128], index: 2, kind: input, shape index: {}]
  %s3 = inlined_call_operand.vmem [shape: f32[1,128], index: 3, kind: input, shape index: {}]
  %s4 = inlined_call_operand.vmem [shape: bf16[2,16,16,128], index: 4, kind: output, shape index: {0}]
  %s5 = inlined_call_operand.vmem [shape: f32[2,1,2,128], index: 5, kind: output, shape index: {1}]
  %6 = xla_tuple %s4, %s5
  %s7 = sld [smem:[#allocation0]]
  $region87: #{double_conv.4} parent=0
    _
  %s9 = ssub.s32 1, %s7
  %s10 = scalar_select 0, %s9, %s7
  loop: start=0, step=1, limit=4
  $region2: #{double_conv.4} parent=0 // loop_pre_header
    _
  $region3: #{double_conv.4} parent=0 // loop_header
    %s12 = sphi 0, %s16
    %p13 = scmp.ge.s32.totalorder %s12, 4
    %s19 = sphi 0, %s38
    %s20 = sphi 0, %s34
    %s21 = sphi 0, %s30
    %s22 = sphi 0, %s19
    %s23 = sphi 0, %s20
    %s24 = sphi 0, %s21
    %s25 = sphi 0, %s22
    %s26 = sphi 0, %s23
    %s27 = sphi 0, %s24
    %s41 = sphi 0, %s43
    %s44 = sphi 0, %s41
    %s45 = sphi 0, %s44
    %s61 = sphi 0, %s45
    %s65 = sphi 0, %s65
    %s67 = sphi 0, %s65
    %s68 = sphi 0, %s67
    %s82 = sphi 0, %s68
    %s86 = sphi 0, %s86
    %s88 = sphi 0, %s86
    %s89 = sphi 0, %s88
    %s103 = sphi 0, %s89
    %s113 = sphi 0, %s115
    %s116 = sphi 0, %s113
    %s117 = sphi 0, %s116
    %s133 = sphi 0, %s117
    %s143 = sphi 0, %s145
    %s146 = sphi 0, %s143
    %s147 = sphi 0, %s146
    %s163 = sphi 0, %s147
  $region4: #{double_conv.4} parent=0 // loop_header_branch
    %15 = sbr.rel (%p13) target = $region8
  $region5: #{double_conv.4} parent=0 // loop_body
    %s17 = ssub.s32 %s12, 1
    %s18 = ssub.s32 %s12, 2
    %s28 = sadd.s32 1, %s21
    %p29 = scmp.ge.s32.totalorder %s28, 1
    %s30 = scalar_select %p29, 0, %s28
    %s31 = sadd.s32 1, %s20
    %s32 = scalar_select %p29, %s31, %s20
    %p33 = scmp.ge.s32.totalorder %s32, 1
    %s34 = scalar_select %p33, 0, %s32
    %s35 = sadd.s32 1, %s19
    %s36 = scalar_select %p33, %s35, %s19
    %p37 = scmp.ge.s32.totalorder %s36, 2
    %s38 = scalar_select %p37, 0, %s36
    %s39 = ssub.s32 %s21, %s30
    %p40 = scmp.eq.s32.totalorder %s39, 0
    %s42 = sadd.s32 %s41, 1
    %s43 = scalar_select %p40, %s41, %s42
    %p46 = pneg %p40
    %p47 = scmp.eq.s32.totalorder %s12, 1
    %p48 = por %p46, %p47
    %p49 = scmp.ne.s32.totalorder %s41, %s44
    %p50 = scmp.eq.s32.totalorder %s12, 0
    %p51 = por %p49, %p50
    %p52 = scmp.ne.s32.totalorder %s41, %s44
    %p53 = scmp.eq.s32.totalorder %s17, 1
    %p54 = por %p52, %p53
    %p55 = scmp.ne.s32.totalorder %s44, %s45
    %p56 = scmp.eq.s32.totalorder %s17, 0
    %p57 = por %p55, %p56
    %p58 = scmp.ne.s32.totalorder %s44, %s45
    %p59 = scmp.eq.s32.totalorder %s18, 1
    %p60 = por %p58, %p59
    %p62 = scmp.ne.s32.totalorder %s45, %s61
    %p63 = scmp.eq.s32.totalorder %s18, 0
    %p64 = por %p62, %p63
    %s66 = sadd.s32 %s65, 1
    %p69 = scmp.eq.s32.totalorder %s12, 1
    %p70 = scmp.ne.s32.totalorder %s65, %s67
    %p71 = scmp.eq.s32.totalorder %s12, 0
    %p72 = por %p70, %p71
    %p73 = scmp.ne.s32.totalorder %s65, %s67
    %p74 = scmp.eq.s32.totalorder %s17, 1
    %p75 = por %p73, %p74
    %p76 = scmp.ne.s32.totalorder %s67, %s68
    %p77 = scmp.eq.s32.totalorder %s17, 0
    %p78 = por %p76, %p77
    %p79 = scmp.ne.s32.totalorder %s67, %s68
    %p80 = scmp.eq.s32.totalorder %s18, 1
    %p81 = por %p79, %p80
    %p83 = scmp.ne.s32.totalorder %s68, %s82
    %p84 = scmp.eq.s32.totalorder %s18, 0
    %p85 = por %p83, %p84
    %s87 = sadd.s32 %s86, 1
    %p90 = scmp.eq.s32.totalorder %s12, 1
    %p91 = scmp.ne.s32.totalorder %s86, %s88
    %p92 = scmp.eq.s32.totalorder %s12, 0
    %p93 = por %p91, %p92
    %p94 = scmp.ne.s32.totalorder %s86, %s88
    %p95 = scmp.eq.s32.totalorder %s17, 1
    %p96 = por %p94, %p95
    %p97 = scmp.ne.s32.totalorder %s88, %s89
    %p98 = scmp.eq.s32.totalorder %s17, 0
    %p99 = por %p97, %p98
    %p100 = scmp.ne.s32.totalorder %s88, %s89
    %p101 = scmp.eq.s32.totalorder %s18, 1
    %p102 = por %p100, %p101
    %p104 = scmp.ne.s32.totalorder %s89, %s103
    %p105 = scmp.eq.s32.totalorder %s18, 0
    %p106 = por %p104, %p105
    %s107 = ssub.s32 %s19, %s38
    %s108 = ssub.s32 %s20, %s34
    %s109 = sor.u32 %s107, %s108
    %s110 = ssub.s32 %s21, %s30
    %s111 = sor.u32 %s109, %s110
    %p112 = scmp.eq.s32.totalorder %s111, 0
    %s114 = sadd.s32 %s113, 1
    %s115 = scalar_select %p112, %s113, %s114
    %p118 = pneg %p112
    %p119 = scmp.eq.s32.totalorder %s12, 1
    %p120 = por %p118, %p119
    %p121 = scmp.ne.s32.totalorder %s113, %s116
    %p122 = scmp.eq.s32.totalorder %s12, 0
    %p123 = por %p121, %p122
    %p124 = scmp.ne.s32.totalorder %s113, %s116
    %p125 = scmp.eq.s32.totalorder %s17, 1
    %p126 = por %p124, %p125
    %p127 = scmp.ne.s32.totalorder %s116, %s117
    %p128 = scmp.eq.s32.totalorder %s17, 0
    %p129 = por %p127, %p128
    %p130 = scmp.ne.s32.totalorder %s116, %s117
    %p131 = scmp.eq.s32.totalorder %s18, 1
    %p132 = por %p130, %p131
    %p134 = scmp.ne.s32.totalorder %s117, %s133
    %p135 = scmp.eq.s32.totalorder %s18, 0
    %p136 = por %p134, %p135
    %s137 = ssub.s32 %s19, %s38
    %s138 = ssub.s32 %s20, %s34
    %s139 = sor.u32 %s137, %s138
    %s140 = ssub.s32 %s21, %s30
    %s141 = sor.u32 %s139, %s140
    %p142 = scmp.eq.s32.totalorder %s141, 0
    %s144 = sadd.s32 %s143, 1
    %s145 = scalar_select %p142, %s143, %s144
    %p148 = pneg %p142
    %p149 = scmp.eq.s32.totalorder %s12, 1
    %p150 = por %p148, %p149
    %p151 = scmp.ne.s32.totalorder %s143, %s146
    %p152 = scmp.eq.s32.totalorder %s12, 0
    %p153 = por %p151, %p152
    %p154 = scmp.ne.s32.totalorder %s143, %s146
    %p155 = scmp.eq.s32.totalorder %s17, 1
    %p156 = por %p154, %p155
    %p157 = scmp.ne.s32.totalorder %s146, %s147
    %p158 = scmp.eq.s32.totalorder %s17, 0
    %p159 = por %p157, %p158
    %p160 = scmp.ne.s32.totalorder %s146, %s147
    %p161 = scmp.eq.s32.totalorder %s18, 1
    %p162 = por %p160, %p161
    %p164 = scmp.ne.s32.totalorder %s147, %s163
    %p165 = scmp.eq.s32.totalorder %s18, 0
    %p166 = por %p164, %p165
    %p167 = scmp.le.s32.totalorder 1, %s12
    %p168 = scmp.lt.s32.totalorder %s12, 3
    %p169 = pnand %p167, %p168
    %p170 = pneg %p169
    // Predicated region
    $region9: #{double_conv.4} parent=5 // pred_check
      _
    $region10: #{double_conv.4} parent=5 // pred_check_branch
      %172 = sbr.rel (%p169) target = $region12
    $region11: #{double_conv.4} parent=5 // pred_region
      %s173 = ssub.s32 %s12, 1
      // Predicated region
      $region13: #{double_conv.4} parent=11 // pred_check
        %p174 = pneg %p57
      $region14: #{double_conv.4} parent=11 // pred_check_branch
        %176 = sbr.rel (%p174) target = $region16
      $region15: #{double_conv.4} parent=11 // pred_region
        %p177 = scmp.lt.s32.totalorder %s24, 0
        %s178 = scalar_select %p177, %s24, 0
        %s179 = smul.addr %s178, 4
        %s180 = scalar_lea.vmem %s1, %s179
      $region16: #{double_conv.4} parent=11 // pred_fallthru
        _
      // Predicated region
      $region17: #{double_conv.4} parent=11 // pred_check
        %p181 = pneg %p78
      $region18: #{double_conv.4} parent=11 // pred_check_branch
        %183 = sbr.rel (%p181) target = $region20
      $region19: #{double_conv.4} parent=11 // pred_region
        _
      $region20: #{double_conv.4} parent=11 // pred_fallthru
        _
      // Predicated region
      $region21: #{double_conv.4} parent=11 // pred_check
        %p184 = pneg %p99
      $region22: #{double_conv.4} parent=11 // pred_check_branch
        %186 = sbr.rel (%p184) target = $region24
      $region23: #{double_conv.4} parent=11 // pred_region
        _
      $region24: #{double_conv.4} parent=11 // pred_fallthru
        _
    $region12: #{double_conv.4} parent=5 // pred_fallthru
      _
    %p187 = scmp.lt.s32.totalorder %s12, 2
    // Predicated region
    $region25: #{double_conv.4} parent=5 // pred_check
      %p188 = pneg %p187
    $region26: #{double_conv.4} parent=5 // pred_check_branch
      %190 = sbr.rel (%p188) target = $region28
    $region27: #{double_conv.4} parent=5 // pred_region
      _
    $region28: #{double_conv.4} parent=5 // pred_fallthru
      _
    %p191 = scmp.le.s32.totalorder 1, %s12
    %p192 = scmp.lt.s32.totalorder %s12, 3
    %p193 = pnand %p191, %p192
    %p194 = pneg %p193
    // Predicated region
    $region29: #{double_conv.4} parent=5 // pred_check
      _
    $region30: #{double_conv.4} parent=5 // pred_check_branch
      %196 = sbr.rel (%p193) target = $region32
    $region31: #{double_conv.4} parent=5 // pred_region
      %s197 = ssub.s32 %s12, 1
      %p198 = scmp.lt.s32.totalorder %s24, 0
      %s199 = scalar_select %p198, %s24, 0
      %s200 = smul.addr %s199, 4
      %s201 = scalar_lea.vmem %s1, %s200
      %p202 = pneg %p57
      %p203 = pneg %p54
      %p204 = pneg %p78
      %p205 = pneg %p75
      %p206 = pneg %p99
      %p207 = pneg %p96
      %p208 = pneg %p129
      %p209 = pneg %p126
      %s210 = smul.u32 16, %s23
      %p211 = scmp.lt.s32.totalorder %s22, 1
      %s212 = scalar_select %p211, %s22, 1
      %p213 = scmp.lt.s32.totalorder %s210, 15
      %s214 = scalar_select %p213, %s210, 15
      %p215 = scmp.lt.s32.totalorder %s24, 0
      %s216 = scalar_select %p215, %s24, 0
      %s217 = smul.addr %s214, 2
      %s218 = sadd.s32 %s216, %s217
      %s219 = smul.addr %s212, 32
      %s220 = sadd.s32 %s218, %s219
      %s221 = smul.addr %s220, 4
      %s222 = scalar_lea.vmem %s4, %s221
      %p223 = pneg %p159
      %p224 = pneg %p156
      %p225 = scmp.lt.s32.totalorder %s22, 1
      %s226 = scalar_select %p225, %s22, 1
      %p227 = scmp.lt.s32.totalorder %s23, 0
      %s228 = scalar_select %p227, %s23, 0
      %p229 = scmp.lt.s32.totalorder %s24, 0
      %s230 = scalar_select %p229, %s24, 0
      %s231 = sadd.s32 %s230, %s228
      %s232 = sadd.s32 %s231, %s226
      %s233 = smul.addr %s232, 2
      %s234 = scalar_lea.vmem %s5, %s233
      %p235 = scmp.lt.s32.totalorder %s24, 0
      %s236 = scalar_select %p235, %s24, 0
      %s237 = smul.addr %s236, 4
      %s238 = scalar_lea.vmem %s1, %s237
      %s239 = smul.u32 16, %s23
      %p240 = scmp.lt.s32.totalorder %s22, 1
      %s241 = scalar_select %p240, %s22, 1
      %p242 = scmp.lt.s32.totalorder %s239, 15
      %s243 = scalar_select %p242, %s239, 15
      %p244 = scmp.lt.s32.totalorder %s24, 0
      %s245 = scalar_select %p244, %s24, 0
      %s246 = smul.addr %s243, 2
      %s247 = sadd.s32 %s245, %s246
      %s248 = smul.addr %s241, 32
      %s249 = sadd.s32 %s247, %s248
      %s250 = smul.addr %s249, 4
      %s251 = scalar_lea.vmem %s4, %s250
      %s252 = smul.u32 16, %s23
      %p253 = scmp.lt.s32.totalorder %s22, 1
      %s254 = scalar_select %p253, %s22, 1
      %p255 = scmp.lt.s32.totalorder %s23, 0
      %s256 = scalar_select %p255, %s23, 0
      %p257 = scmp.lt.s32.totalorder %s24, 0
      %s258 = scalar_select %p257, %s24, 0
      %s259 = sadd.s32 %s258, %s256
      %s260 = sadd.s32 %s259, %s254
      %s261 = smul.addr %s260, 2
      %s262 = scalar_lea.vmem %s5, %s261
      %264 = vst [vmem:[#allocation2] sm:$0xff] 0
      %s265 = scalar_lea.vmem [#allocation2], 136
      %266 = vst [vmem:[%s265] sm:$0xff] 0
      %s267 = smul.u32 %s22, 32
      %s268 = smul.addr %s267, 4
      %s269 = scalar_lea.vmem %s0, %s268
      %s270 = scalar_lea.vmem [#allocation2], 8
      %p272 = scmp.lt.u32.totalorder 128, 8
      %p273 = pneg %p272
      // Predicated region
      $region33: #{double_conv.4} parent=31 // pred_check
        _
      $region34: #{double_conv.4} parent=31 // pred_check_branch
        %275 = sbr.rel (%p272) target = $region36
      $region35: #{double_conv.4} parent=31 // pred_region
        %s290 = sand.u32 128, 7
        %p291 = scmp.eq.s32.totalorder %s290, 0
        // Predicated region
        $region48: #{double_conv.4} parent=35 // pred_check
          %p292 = pneg %p291
        $region49: #{double_conv.4} parent=35 // pred_check_branch
          %294 = sbr.rel (%p292) target = $region51
        $region50: #{double_conv.4} parent=35 // pred_region
          loop: start=0, step=1, limit=1
          $region52: #{double_conv.4} parent=50 // loop_pre_header
            _
          $region53: #{double_conv.4} parent=50 // loop_header
            %s296 = sphi 0, %s300
            %p297 = scmp.ge.s32.totalorder %s296, 1
            %s301 = sphi %s269, %s269
            %s302 = sphi %s270, %s270
          $region54: #{double_conv.4} parent=50 // loop_header_branch
            %299 = sbr.rel (%p297) target = $region58
          $region55: #{double_conv.4} parent=50 // loop_body
            %v303 = vld [vmem:[%s301] sm:$0xff]
            %304 = vst [vmem:[%s302] sm:$0xff] %v303
            %v305 = vld [vmem:[%s301 + $0x8] sm:$0xff]
            %306 = vst [vmem:[%s302 + $0x8] sm:$0xff] %v305
            %v307 = vld [vmem:[%s301 + $0x10] sm:$0xff]
            %308 = vst [vmem:[%s302 + $0x10] sm:$0xff] %v307
            %v309 = vld [vmem:[%s301 + $0x18] sm:$0xff]
            %310 = vst [vmem:[%s302 + $0x18] sm:$0xff] %v309
            %v311 = vld [vmem:[%s301 + $0x20] sm:$0xff]
            %312 = vst [vmem:[%s302 + $0x20] sm:$0xff] %v311
            %v313 = vld [vmem:[%s301 + $0x28] sm:$0xff]
            %314 = vst [vmem:[%s302 + $0x28] sm:$0xff] %v313
            %v315 = vld [vmem:[%s301 + $0x30] sm:$0xff]
            %316 = vst [vmem:[%s302 + $0x30] sm:$0xff] %v315
            %v317 = vld [vmem:[%s301 + $0x38] sm:$0xff]
            %318 = vst [vmem:[%s302 + $0x38] sm:$0xff] %v317
            %v319 = vld [vmem:[%s301 + $0x40] sm:$0xff]
            %320 = vst [vmem:[%s302 + $0x40] sm:$0xff] %v319
            %v321 = vld [vmem:[%s301 + $0x48] sm:$0xff]
            %322 = vst [vmem:[%s302 + $0x48] sm:$0xff] %v321
            %v323 = vld [vmem:[%s301 + $0x50] sm:$0xff]
            %324 = vst [vmem:[%s302 + $0x50] sm:$0xff] %v323
            %v325 = vld [vmem:[%s301 + $0x58] sm:$0xff]
            %326 = vst [vmem:[%s302 + $0x58] sm:$0xff] %v325
            %v327 = vld [vmem:[%s301 + $0x60] sm:$0xff]
            %328 = vst [vmem:[%s302 + $0x60] sm:$0xff] %v327
            %v329 = vld [vmem:[%s301 + $0x68] sm:$0xff]
            %330 = vst [vmem:[%s302 + $0x68] sm:$0xff] %v329
            %v331 = vld [vmem:[%s301 + $0x70] sm:$0xff]
            %332 = vst [vmem:[%s302 + $0x70] sm:$0xff] %v331
            %v333 = vld [vmem:[%s301 + $0x78] sm:$0xff]
            %334 = vst [vmem:[%s302 + $0x78] sm:$0xff] %v333
          $region56: #{double_conv.4} parent=50 // loop_footer
            %s300 = sadd.s32 1, %s296
          $region57: #{double_conv.4} parent=50 // loop_footer_branch
            %295 = sbr.rel target = $region53
          $region58: #{double_conv.4} parent=50 // loop_exit
            _
        $region51: #{double_conv.4} parent=35 // pred_fallthru
          _
        %p335 = pneg %p291
        // Predicated region
        $region59: #{double_conv.4} parent=35 // pred_check
          _
        $region60: #{double_conv.4} parent=35 // pred_check_branch
          %337 = sbr.rel (%p291) target = $region62
        $region61: #{double_conv.4} parent=35 // pred_region
          %s338 = sand.u32 128, 7
        $region62: #{double_conv.4} parent=35 // pred_fallthru
          _
      $region36: #{double_conv.4} parent=31 // pred_fallthru
        _
      // Predicated region
      $region37: #{double_conv.4} parent=31 // pred_check
        %p276 = pneg %p272
      $region38: #{double_conv.4} parent=31 // pred_check_branch
        %278 = sbr.rel (%p276) target = $region40
      $region39: #{double_conv.4} parent=31 // pred_region
        %s279 = sshllo.u32 0, 128
        loop: start=0, step=1, limit=1
        $region41: #{double_conv.4} parent=39 // loop_pre_header
          _
        $region42: #{double_conv.4} parent=39 // loop_header
          %s281 = sphi 0, %s285
          %p282 = scmp.ge.s32.totalorder %s281, 1
          %s286 = sphi %s269, %s269
          %s287 = sphi %s270, %s270
        $region43: #{double_conv.4} parent=39 // loop_header_branch
          %284 = sbr.rel (%p282) target = $region47
        $region44: #{double_conv.4} parent=39 // loop_body
          %v288 = vld [vmem:[%s286] sm:%s279]
          %289 = vst [vmem:[%s287] sm:%s279] %v288
        $region45: #{double_conv.4} parent=39 // loop_footer
          %s285 = sadd.s32 1, %s281
        $region46: #{double_conv.4} parent=39 // loop_footer_branch
          %280 = sbr.rel target = $region42
        $region47: #{double_conv.4} parent=39 // loop_exit
          _
      $region40: #{double_conv.4} parent=31 // pred_fallthru
        _
      // Predicated region
      $region63: #{double_conv.4} parent=31 // pred_check
        _
      $region64: #{double_conv.4} parent=31 // pred_check_branch
        %341 = sbr.rel (0) target = $region66
      $region65: #{double_conv.4} parent=31 // pred_region
        %342 = vsyncadd [#allocation3], 2048
      $region66: #{double_conv.4} parent=31 // pred_fallthru
        _
      %s343 = smul.u32 4, 16
      %s344 = smul.u32 %s343, 2
      %s345 = smul.u32 %s344, 1
      %s346 = sshll.u32 %s345, 4
      %347 = dma.done [#allocation3], %s346
      %v348 = vld [vmem:[#allocation2] sm:$0xff]
      %v349 = vld [vmem:[#allocation2 + $0x8] sm:$0xff]
      %v350 = vld [vmem:[#allocation2 + $0x10] sm:$0xff]
      %v351 = vld [vmem:[#allocation2 + $0x18] sm:$0xff]
      %v352 = vld [vmem:[#allocation2 + $0x20] sm:$0xff]
      %v353 = vld [vmem:[#allocation2 + $0x28] sm:$0xff]
      %v354 = vld [vmem:[#allocation2 + $0x30] sm:$0xff]
      %v355 = vld [vmem:[#allocation2 + $0x38] sm:$0xff]
      %v356 = vld [vmem:[#allocation2 + $0x40] sm:$0xff]
      %v357 = vld [vmem:[#allocation2 + $0x48] sm:$0xff]
      %v358 = vld [vmem:[#allocation2 + $0x50] sm:$0xff]
      %v359 = vld [vmem:[#allocation2 + $0x58] sm:$0xff]
      %v360 = vld [vmem:[#allocation2 + $0x60] sm:$0xff]
      %v361 = vld [vmem:[#allocation2 + $0x68] sm:$0xff]
      %v362 = vld [vmem:[#allocation2 + $0x70] sm:$0xff]
      %v363 = vld [vmem:[#allocation2 + $0x78] sm:$0xff]
      %v364 = vld [vmem:[#allocation2 + $0x80] sm:$0xff]
      %v365 = vld [vmem:[#allocation2 + $0x88] sm:$0xff]
      %v366 = vld [vmem:[%s2] sm:$0x1]
      %v367 = vld [vmem:[%s3] sm:$0x1]
      %v368 = vunpack.c.l.bf16 %v348
      %v369 = vunpack.c.h.bf16 %v348
      %v370 = vunpack.c.l.bf16 %v349
      %v371 = vunpack.c.h.bf16 %v349
      %v372 = vunpack.c.l.bf16 %v350
      %v373 = vunpack.c.h.bf16 %v350
      %v374 = vunpack.c.l.bf16 %v351
      %v375 = vunpack.c.h.bf16 %v351
      %v376 = vunpack.c.l.bf16 %v352
      %v377 = vunpack.c.h.bf16 %v352
      %v378 = vunpack.c.l.bf16 %v353
      %v379 = vunpack.c.h.bf16 %v353
      %v380 = vunpack.c.l.bf16 %v354
      %v381 = vunpack.c.h.bf16 %v354
      %v382 = vunpack.c.l.bf16 %v355
      %v383 = vunpack.c.h.bf16 %v355
      %v384 = vunpack.c.l.bf16 %v356
      %v385 = vunpack.c.h.bf16 %v356
      %v386 = vunpack.c.l.bf16 %v357
      %v387 = vunpack.c.h.bf16 %v357
      %v388 = vunpack.c.l.bf16 %v358
      %v389 = vunpack.c.h.bf16 %v358
      %v390 = vunpack.c.l.bf16 %v359
      %v391 = vunpack.c.h.bf16 %v359
      %v392 = vunpack.c.l.bf16 %v360
      %v393 = vunpack.c.h.bf16 %v360
      %v394 = vunpack.c.l.bf16 %v361
      %v395 = vunpack.c.h.bf16 %v361
      %v396 = vunpack.c.l.bf16 %v362
      %v397 = vunpack.c.h.bf16 %v362
      %v398 = vunpack.c.l.bf16 %v363
      %v399 = vunpack.c.h.bf16 %v363
      %v400 = vunpack.c.l.bf16 %v364
      %v401 = vunpack.c.h.bf16 %v364
      %v402 = vunpack.c.l.bf16 %v365
      %v403 = vunpack.c.h.bf16 %v365
      %v405 = vlaneseq
      %v406 = vshrl.u32 %v405, 7
      %v407 = vsub.s32 0, %v406
      %v408 = vrot.slane %v366, %v407
      %v410 = vmul.f32 %v368, %v408
      %v411 = vmul.f32 %v369, %v408
      %v412 = vmul.f32 %v370, %v408
      %v413 = vmul.f32 %v371, %v408
      %v414 = vmul.f32 %v372, %v408
      %v415 = vmul.f32 %v373, %v408
      %v416 = vmul.f32 %v374, %v408
      %v417 = vmul.f32 %v375, %v408
      %v418 = vmul.f32 %v376, %v408
      %v419 = vmul.f32 %v377, %v408
      %v420 = vmul.f32 %v378, %v408
      %v421 = vmul.f32 %v379, %v408
      %v422 = vmul.f32 %v380, %v408
      %v423 = vmul.f32 %v381, %v408
      %v424 = vmul.f32 %v382, %v408
      %v425 = vmul.f32 %v383, %v408
      %v426 = vmul.f32 %v384, %v408
      %v427 = vmul.f32 %v385, %v408
      %v428 = vmul.f32 %v386, %v408
      %v429 = vmul.f32 %v387, %v408
      %v430 = vmul.f32 %v388, %v408
      %v431 = vmul.f32 %v389, %v408
      %v432 = vmul.f32 %v390, %v408
      %v433 = vmul.f32 %v391, %v408
      %v434 = vmul.f32 %v392, %v408
      %v435 = vmul.f32 %v393, %v408
      %v436 = vmul.f32 %v394, %v408
      %v437 = vmul.f32 %v395, %v408
      %v438 = vmul.f32 %v396, %v408
      %v439 = vmul.f32 %v397, %v408
      %v440 = vmul.f32 %v398, %v408
      %v441 = vmul.f32 %v399, %v408
      %v442 = vmul.f32 %v400, %v408
      %v443 = vmul.f32 %v401, %v408
      %v444 = vmul.f32 %v402, %v408
      %v445 = vmul.f32 %v403, %v408
      %v447 = vlaneseq
      %v448 = vshrl.u32 %v447, 7
      %v449 = vsub.s32 0, %v448
      %v450 = vrot.slane %v367, %v449
      %v452 = vadd.f32 %v410, %v450
      %v453 = vadd.f32 %v411, %v450
      %v454 = vadd.f32 %v412, %v450
      %v455 = vadd.f32 %v413, %v450
      %v456 = vadd.f32 %v414, %v450
      %v457 = vadd.f32 %v415, %v450
      %v458 = vadd.f32 %v416, %v450
      %v459 = vadd.f32 %v417, %v450
      %v460 = vadd.f32 %v418, %v450
      %v461 = vadd.f32 %v419, %v450
      %v462 = vadd.f32 %v420, %v450
      %v463 = vadd.f32 %v421, %v450
      %v464 = vadd.f32 %v422, %v450
      %v465 = vadd.f32 %v423, %v450
      %v466 = vadd.f32 %v424, %v450
      %v467 = vadd.f32 %v425, %v450
      %v468 = vadd.f32 %v426, %v450
      %v469 = vadd.f32 %v427, %v450
      %v470 = vadd.f32 %v428, %v450
      %v471 = vadd.f32 %v429, %v450
      %v472 = vadd.f32 %v430, %v450
      %v473 = vadd.f32 %v431, %v450
      %v474 = vadd.f32 %v432, %v450
      %v475 = vadd.f32 %v433, %v450
      %v476 = vadd.f32 %v434, %v450
      %v477 = vadd.f32 %v435, %v450
      %v478 = vadd.f32 %v436, %v450
      %v479 = vadd.f32 %v437, %v450
      %v480 = vadd.f32 %v438, %v450
      %v481 = vadd.f32 %v439, %v450
      %v482 = vadd.f32 %v440, %v450
      %v483 = vadd.f32 %v441, %v450
      %v484 = vadd.f32 %v442, %v450
      %v485 = vadd.f32 %v443, %v450
      %v486 = vadd.f32 %v444, %v450
      %v487 = vadd.f32 %v445, %v450
      %v488 = vmax.f32 %v452, 0.0
      %v489 = vmax.f32 %v453, 0.0
      %v490 = vmax.f32 %v454, 0.0
      %v491 = vmax.f32 %v455, 0.0
      %v492 = vmax.f32 %v456, 0.0
      %v493 = vmax.f32 %v457, 0.0
      %v494 = vmax.f32 %v458, 0.0
      %v495 = vmax.f32 %v459, 0.0
      %v496 = vmax.f32 %v460, 0.0
      %v497 = vmax.f32 %v461, 0.0
      %v498 = vmax.f32 %v462, 0.0
      %v499 = vmax.f32 %v463, 0.0
      %v500 = vmax.f32 %v464, 0.0
      %v501 = vmax.f32 %v465, 0.0
      %v502 = vmax.f32 %v466, 0.0
      %v503 = vmax.f32 %v467, 0.0
      %v504 = vmax.f32 %v468, 0.0
      %v505 = vmax.f32 %v469, 0.0
      %v506 = vmax.f32 %v470, 0.0
      %v507 = vmax.f32 %v471, 0.0
      %v508 = vmax.f32 %v472, 0.0
      %v509 = vmax.f32 %v473, 0.0
      %v510 = vmax.f32 %v474, 0.0
      %v511 = vmax.f32 %v475, 0.0
      %v512 = vmax.f32 %v476, 0.0
      %v513 = vmax.f32 %v477, 0.0
      %v514 = vmax.f32 %v478, 0.0
      %v515 = vmax.f32 %v479, 0.0
      %v516 = vmax.f32 %v480, 0.0
      %v517 = vmax.f32 %v481, 0.0
      %v518 = vmax.f32 %v482, 0.0
      %v519 = vmax.f32 %v483, 0.0
      %v520 = vmax.f32 %v484, 0.0
      %v521 = vmax.f32 %v485, 0.0
      %v522 = vmax.f32 %v486, 0.0
      %v523 = vmax.f32 %v487, 0.0
      %p524 = scmp.gt.s32.totalorder %s23, 0
      %s525 = scalar_select %p524, 1, 0
      %v526 = vstv %s525
      %vm527 = vcmp.eq.s32.totalorder %v526, 1
      %p528 = scmp.lt.s32.totalorder %s23, 0
      %s529 = scalar_select %p528, 1, 0
      %v530 = vstv %s529
      %vm531 = vcmp.eq.s32.totalorder %v530, 1
      %v532 = vsel %vm527, %v488, 0.0
      %v533 = vsel %vm527, %v489, 0.0
      %v534 = vsel 1, %v490, 0.0
      %v535 = vsel 1, %v491, 0.0
      %v536 = vsel 1, %v492, 0.0
      %v537 = vsel 1, %v493, 0.0
      %v538 = vsel 1, %v494, 0.0
      %v539 = vsel 1, %v495, 0.0
      %v540 = vsel 1, %v496, 0.0
      %v541 = vsel 1, %v497, 0.0
      %v542 = vsel 1, %v498, 0.0
      %v543 = vsel 1, %v499, 0.0
      %v544 = vsel 1, %v500, 0.0
      %v545 = vsel 1, %v501, 0.0
      %v546 = vsel 1, %v502, 0.0
      %v547 = vsel 1, %v503, 0.0
      %v548 = vsel 1, %v504, 0.0
      %v549 = vsel 1, %v505, 0.0
      %v550 = vsel 1, %v506, 0.0
      %v551 = vsel 1, %v507, 0.0
      %v552 = vsel 1, %v508, 0.0
      %v553 = vsel 1, %v509, 0.0
      %v554 = vsel 1, %v510, 0.0
      %v555 = vsel 1, %v511, 0.0
      %v556 = vsel 1, %v512, 0.0
      %v557 = vsel 1, %v513, 0.0
      %v558 = vsel 1, %v514, 0.0
      %v559 = vsel 1, %v515, 0.0
      %v560 = vsel 1, %v516, 0.0
      %v561 = vsel 1, %v517, 0.0
      %v562 = vsel 1, %v518, 0.0
      %v563 = vsel 1, %v519, 0.0
      %v564 = vsel 1, %v520, 0.0
      %v565 = vsel 1, %v521, 0.0
      %v566 = vsel %vm531, %v522, 0.0
      %v567 = vsel %vm531, %v523, 0.0
      %v568 = vpack.c.bf16 %v533, %v532
      %v569 = vpack.c.bf16 %v535, %v534
      %v570 = vpack.c.bf16 %v537, %v536
      %v571 = vpack.c.bf16 %v539, %v538
      %v572 = vpack.c.bf16 %v541, %v540
      %v573 = vpack.c.bf16 %v543, %v542
      %v574 = vpack.c.bf16 %v545, %v544
      %v575 = vpack.c.bf16 %v547, %v546
      %v576 = vpack.c.bf16 %v549, %v548
      %v577 = vpack.c.bf16 %v551, %v550
      %v578 = vpack.c.bf16 %v553, %v552
      %v579 = vpack.c.bf16 %v555, %v554
      %v580 = vpack.c.bf16 %v557, %v556
      %v581 = vpack.c.bf16 %v559, %v558
      %v582 = vpack.c.bf16 %v561, %v560
      %v583 = vpack.c.bf16 %v563, %v562
      %v584 = vpack.c.bf16 %v565, %v564
      %v585 = vpack.c.bf16 %v567, %v566
      %v587 = vshrl.u32 %v568, 16
      %v589 = vrot.slane %v587, 7
      %v590 = vshll.u32 %v568, 16
      %v592 = vor.u32 %v589, %v590
      %v594 = vshrl.u32 %v569, 16
      %v596 = vrot.slane %v594, 7
      %v597 = vshll.u32 %v569, 16
      %v599 = vor.u32 %v596, %v597
      %v601 = vshrl.u32 %v570, 16
      %v603 = vrot.slane %v601, 7
      %v604 = vshll.u32 %v570, 16
      %v606 = vor.u32 %v603, %v604
      %v608 = vshrl.u32 %v571, 16
      %v610 = vrot.slane %v608, 7
      %v611 = vshll.u32 %v571, 16
      %v613 = vor.u32 %v610, %v611
      %v615 = vshrl.u32 %v572, 16
      %v617 = vrot.slane %v615, 7
      %v618 = vshll.u32 %v572, 16
      %v620 = vor.u32 %v617, %v618
      %v622 = vshrl.u32 %v573, 16
      %v624 = vrot.slane %v622, 7
      %v625 = vshll.u32 %v573, 16
      %v627 = vor.u32 %v624, %v625
      %v629 = vshrl.u32 %v574, 16
      %v631 = vrot.slane %v629, 7
      %v632 = vshll.u32 %v574, 16
      %v634 = vor.u32 %v631, %v632
      %v636 = vshrl.u32 %v575, 16
      %v638 = vrot.slane %v636, 7
      %v639 = vshll.u32 %v575, 16
      %v641 = vor.u32 %v638, %v639
      %v643 = vshrl.u32 %v576, 16
      %v645 = vrot.slane %v643, 7
      %v646 = vshll.u32 %v576, 16
      %v648 = vor.u32 %v645, %v646
      %v650 = vshrl.u32 %v577, 16
      %v652 = vrot.slane %v650, 7
      %v653 = vshll.u32 %v577, 16
      %v655 = vor.u32 %v652, %v653
      %v657 = vshrl.u32 %v578, 16
      %v659 = vrot.slane %v657, 7
      %v660 = vshll.u32 %v578, 16
      %v662 = vor.u32 %v659, %v660
      %v664 = vshrl.u32 %v579, 16
      %v666 = vrot.slane %v664, 7
      %v667 = vshll.u32 %v579, 16
      %v669 = vor.u32 %v666, %v667
      %v671 = vshrl.u32 %v580, 16
      %v673 = vrot.slane %v671, 7
      %v674 = vshll.u32 %v580, 16
      %v676 = vor.u32 %v673, %v674
      %v678 = vshrl.u32 %v581, 16
      %v680 = vrot.slane %v678, 7
      %v681 = vshll.u32 %v581, 16
      %v683 = vor.u32 %v680, %v681
      %v685 = vshrl.u32 %v582, 16
      %v687 = vrot.slane %v685, 7
      %v688 = vshll.u32 %v582, 16
      %v690 = vor.u32 %v687, %v688
      %v692 = vshrl.u32 %v583, 16
      %v694 = vrot.slane %v692, 7
      %v695 = vshll.u32 %v583, 16
      %v697 = vor.u32 %v694, %v695
      %v699 = vshrl.u32 %v584, 16
      %v701 = vrot.slane %v699, 7
      %v702 = vshll.u32 %v584, 16
      %v704 = vor.u32 %v701, %v702
      %v706 = vshrl.u32 %v585, 16
      %v708 = vrot.slane %v706, 7
      %v709 = vshll.u32 %v585, 16
      %v711 = vor.u32 %v708, %v709
      %vm748 = vcmask 1040384
      %vm749 = vsmask.f32 256
      %vm750 = vmand %vm748, %vm749
      %v751 = vsel %vm750, 0, %v592
      %v752 = vsel %vm750, 0, %v599
      %v753 = vsel %vm750, 0, %v606
      %v754 = vsel %vm750, 0, %v613
      %v755 = vsel %vm750, 0, %v620
      %v756 = vsel %vm750, 0, %v627
      %v757 = vsel %vm750, 0, %v634
      %v758 = vsel %vm750, 0, %v641
      %v759 = vsel %vm750, 0, %v648
      %v760 = vsel %vm750, 0, %v655
      %v761 = vsel %vm750, 0, %v662
      %v762 = vsel %vm750, 0, %v669
      %v763 = vsel %vm750, 0, %v676
      %v764 = vsel %vm750, 0, %v683
      %v765 = vsel %vm750, 0, %v690
      %v766 = vsel %vm750, 0, %v697
      %v767 = vsel %vm750, 0, %v704
      %v768 = vsel %vm750, 0, %v711
      %v769 = vsel %vm750, %v589, 0
      %v770 = vsel %vm750, %v596, 0
      %v771 = vsel %vm750, %v603, 0
      %v772 = vsel %vm750, %v610, 0
      %v773 = vsel %vm750, %v617, 0
      %v774 = vsel %vm750, %v624, 0
      %v775 = vsel %vm750, %v631, 0
      %v776 = vsel %vm750, %v638, 0
      %v777 = vsel %vm750, %v645, 0
      %v778 = vsel %vm750, %v652, 0
      %v779 = vsel %vm750, %v659, 0
      %v780 = vsel %vm750, %v666, 0
      %v781 = vsel %vm750, %v673, 0
      %v782 = vsel %vm750, %v680, 0
      %v783 = vsel %vm750, %v687, 0
      %v784 = vsel %vm750, %v694, 0
      %v785 = vsel %vm750, %v701, 0
      %v786 = vsel %vm750, %v708, 0
      %v787 = vld [vmem:[%s238] sm:$0xf]
      %v788 = vld [vmem:[%s238 + $0x4] sm:$0xf]
      %v789 = vld [vmem:[%s238 + $0x8] sm:$0xf]
      %v790 = vld [vmem:[%s238 + $0xc] sm:$0xf]
      %v791 = vld [vmem:[%s238 + $0x10] sm:$0xf]
      %v792 = vld [vmem:[%s238 + $0x14] sm:$0xf]
      %v793 = vld [vmem:[%s238 + $0x18] sm:$0xf]
      %v794 = vld [vmem:[%s238 + $0x1c] sm:$0xf]
      %v795 = vld [vmem:[%s238 + $0x20] sm:$0xf]
      %v796 = vld [vmem:[%s238 + $0x24] sm:$0xf]
      %v797 = vld [vmem:[%s238 + $0x28] sm:$0xf]
      %v798 = vld [vmem:[%s238 + $0x2c] sm:$0xf]
      %v799 = vld [vmem:[%s238 + $0x30] sm:$0xf]
      %v800 = vld [vmem:[%s238 + $0x34] sm:$0xf]
      %v801 = vld [vmem:[%s238 + $0x38] sm:$0xf]
      %v802 = vld [vmem:[%s238 + $0x3c] sm:$0xf]
      %vm803 = vsmask.f32 7424
      %v805 = vshrl.u32 %v751, 16
      %v807 = vshll.u32 %v751, 16
      %v809 = vrot.slane %v807, 1
      %v810 = vor.u32 %v805, %v809
      %v812 = vshll.u32 %v769, 16
      %v814 = vrot.slane %v812, 1
      %v815 = vsel %vm803, %v810, %v814
      %v817 = vshrl.u32 %v752, 16
      %v819 = vshll.u32 %v752, 16
      %v821 = vrot.slane %v819, 1
      %v822 = vor.u32 %v817, %v821
      %v824 = vshll.u32 %v770, 16
      %v826 = vrot.slane %v824, 1
      %v827 = vsel %vm803, %v822, %v826
      %v829 = vshrl.u32 %v753, 16
      %v831 = vshll.u32 %v753, 16
      %v833 = vrot.slane %v831, 1
      %v834 = vor.u32 %v829, %v833
      %v836 = vshll.u32 %v771, 16
      %v838 = vrot.slane %v836, 1
      %v839 = vsel %vm803, %v834, %v838
      %v841 = vshrl.u32 %v754, 16
      %v843 = vshll.u32 %v754, 16
      %v845 = vrot.slane %v843, 1
      %v846 = vor.u32 %v841, %v845
      %v848 = vshll.u32 %v772, 16
      %v850 = vrot.slane %v848, 1
      %v851 = vsel %vm803, %v846, %v850
      %v853 = vshrl.u32 %v755, 16
      %v855 = vshll.u32 %v755, 16
      %v857 = vrot.slane %v855, 1
      %v858 = vor.u32 %v853, %v857
      %v860 = vshll.u32 %v773, 16
      %v862 = vrot.slane %v860, 1
      %v863 = vsel %vm803, %v858, %v862
      %v865 = vshrl.u32 %v756, 16
      %v867 = vshll.u32 %v756, 16
      %v869 = vrot.slane %v867, 1
      %v870 = vor.u32 %v865, %v869
      %v872 = vshll.u32 %v774, 16
      %v874 = vrot.slane %v872, 1
      %v875 = vsel %vm803, %v870, %v874
      %v877 = vshrl.u32 %v757, 16
      %v879 = vshll.u32 %v757, 16
      %v881 = vrot.slane %v879, 1
      %v882 = vor.u32 %v877, %v881
      %v884 = vshll.u32 %v775, 16
      %v886 = vrot.slane %v884, 1
      %v887 = vsel %vm803, %v882, %v886
      %v889 = vshrl.u32 %v758, 16
      %v891 = vshll.u32 %v758, 16
      %v893 = vrot.slane %v891, 1
      %v894 = vor.u32 %v889, %v893
      %v896 = vshll.u32 %v776, 16
      %v898 = vrot.slane %v896, 1
      %v899 = vsel %vm803, %v894, %v898
      %v901 = vshrl.u32 %v759, 16
      %v903 = vshll.u32 %v759, 16
      %v905 = vrot.slane %v903, 1
      %v906 = vor.u32 %v901, %v905
      %v908 = vshll.u32 %v777, 16
      %v910 = vrot.slane %v908, 1
      %v911 = vsel %vm803, %v906, %v910
      %v913 = vshrl.u32 %v760, 16
      %v915 = vshll.u32 %v760, 16
      %v917 = vrot.slane %v915, 1
      %v918 = vor.u32 %v913, %v917
      %v920 = vshll.u32 %v778, 16
      %v922 = vrot.slane %v920, 1
      %v923 = vsel %vm803, %v918, %v922
      %v925 = vshrl.u32 %v761, 16
      %v927 = vshll.u32 %v761, 16
      %v929 = vrot.slane %v927, 1
      %v930 = vor.u32 %v925, %v929
      %v932 = vshll.u32 %v779, 16
      %v934 = vrot.slane %v932, 1
      %v935 = vsel %vm803, %v930, %v934
      %v937 = vshrl.u32 %v762, 16
      %v939 = vshll.u32 %v762, 16
      %v941 = vrot.slane %v939, 1
      %v942 = vor.u32 %v937, %v941
      %v944 = vshll.u32 %v780, 16
      %v946 = vrot.slane %v944, 1
      %v947 = vsel %vm803, %v942, %v946
      %v949 = vshrl.u32 %v763, 16
      %v951 = vshll.u32 %v763, 16
      %v953 = vrot.slane %v951, 1
      %v954 = vor.u32 %v949, %v953
      %v956 = vshll.u32 %v781, 16
      %v958 = vrot.slane %v956, 1
      %v959 = vsel %vm803, %v954, %v958
      %v961 = vshrl.u32 %v764, 16
      %v963 = vshll.u32 %v764, 16
      %v965 = vrot.slane %v963, 1
      %v966 = vor.u32 %v961, %v965
      %v968 = vshll.u32 %v782, 16
      %v970 = vrot.slane %v968, 1
      %v971 = vsel %vm803, %v966, %v970
      %v973 = vshrl.u32 %v765, 16
      %v975 = vshll.u32 %v765, 16
      %v977 = vrot.slane %v975, 1
      %v978 = vor.u32 %v973, %v977
      %v980 = vshll.u32 %v783, 16
      %v982 = vrot.slane %v980, 1
      %v983 = vsel %vm803, %v978, %v982
      %v985 = vshrl.u32 %v766, 16
      %v987 = vshll.u32 %v766, 16
      %v989 = vrot.slane %v987, 1
      %v990 = vor.u32 %v985, %v989
      %v992 = vshll.u32 %v784, 16
      %v994 = vrot.slane %v992, 1
      %v995 = vsel %vm803, %v990, %v994
      %v1012 = vld [vmem:[%s238 + $0x40] sm:$0xf]
      %v1013 = vld [vmem:[%s238 + $0x44] sm:$0xf]
      %v1014 = vld [vmem:[%s238 + $0x48] sm:$0xf]
      %v1015 = vld [vmem:[%s238 + $0x4c] sm:$0xf]
      %v1016 = vld [vmem:[%s238 + $0x50] sm:$0xf]
      %v1017 = vld [vmem:[%s238 + $0x54] sm:$0xf]
      %v1018 = vld [vmem:[%s238 + $0x58] sm:$0xf]
      %v1019 = vld [vmem:[%s238 + $0x5c] sm:$0xf]
      %v1020 = vld [vmem:[%s238 + $0x60] sm:$0xf]
      %v1021 = vld [vmem:[%s238 + $0x64] sm:$0xf]
      %v1022 = vld [vmem:[%s238 + $0x68] sm:$0xf]
      %v1023 = vld [vmem:[%s238 + $0x6c] sm:$0xf]
      %v1024 = vld [vmem:[%s238 + $0x70] sm:$0xf]
      %v1025 = vld [vmem:[%s238 + $0x74] sm:$0xf]
      %v1026 = vld [vmem:[%s238 + $0x78] sm:$0xf]
      %v1027 = vld [vmem:[%s238 + $0x7c] sm:$0xf]
      %v1044 = vunpack.c.l.b16 %v1012
      %v1045 = vunpack.c.l.b16 %v1013
      %v1046 = vunpack.c.l.b16 %v1014
      %v1047 = vunpack.c.l.b16 %v1015
      %v1048 = vunpack.c.l.b16 %v1016
      %v1049 = vunpack.c.l.b16 %v1017
      %v1050 = vunpack.c.l.b16 %v1018
      %v1051 = vunpack.c.l.b16 %v1019
      %v1052 = vunpack.c.l.b16 %v1020
      %v1053 = vunpack.c.l.b16 %v1021
      %v1054 = vunpack.c.l.b16 %v1022
      %v1055 = vunpack.c.l.b16 %v1023
      %v1056 = vunpack.c.l.b16 %v1024
      %v1057 = vunpack.c.l.b16 %v1025
      %v1058 = vunpack.c.l.b16 %v1026
      %v1059 = vunpack.c.l.b16 %v1027
      %v1060 = vpack.c.b16 %v1045, %v1044
      %v1061 = vpack.c.b16 %v1047, %v1046
      %v1062 = vpack.c.b16 %v1049, %v1048
      %v1063 = vpack.c.b16 %v1051, %v1050
      %v1064 = vpack.c.b16 %v1053, %v1052
      %v1065 = vpack.c.b16 %v1055, %v1054
      %v1066 = vpack.c.b16 %v1057, %v1056
      %v1067 = vpack.c.b16 %v1059, %v1058
      %1076 = vmatprep.subr.bf16.mxu0 0
      %1077 = vmatpush1.bf16.msra.mxu0 %v1060
      %1078 = vmatprep.subr.bf16.mxu0 0
      %1079 = vmatpush1.bf16.msra.mxu0 %v1061
      %1080 = vmatprep.subr.bf16.mxu0 0
      %1081 = vmatpush1.bf16.msra.mxu0 %v1062
      %1082 = vmatprep.subr.bf16.mxu0 0
      %1083 = vmatpush1.bf16.msra.mxu0 %v1063
      %1084 = vmatprep.subr.bf16.mxu0 0
      %1085 = vmatpush1.bf16.msra.mxu0 %v1064
      %1086 = vmatprep.subr.bf16.mxu0 0
      %1087 = vmatpush1.bf16.msra.mxu0 %v1065
      %1088 = vmatprep.subr.bf16.mxu0 0
      %1089 = vmatpush1.bf16.msra.mxu0 %v1066
      %1090 = vmatprep.subr.bf16.mxu0 0
      %1091 = vmatpush1.bf16.msra.mxu0 %v1067
      %1092 = vmatprep.subr.bf16.mxu0 0
      %1093 = vmatpush1.bf16.msra.mxu0 0
      %1094 = vmatprep.subr.bf16.mxu0 0
      %1095 = vmatpush1.bf16.msra.mxu0 0
      %1096 = vmatprep.subr.bf16.mxu0 0
      %1097 = vmatpush1.bf16.msra.mxu0 0
      %1098 = vmatprep.subr.bf16.mxu0 0
      %1099 = vmatpush1.bf16.msra.mxu0 0
      %1100 = vmatprep.subr.bf16.mxu0 0
      %1101 = vmatpush1.bf16.msra.mxu0 0
      %1102 = vmatprep.subr.bf16.mxu0 0
      %1103 = vmatpush1.bf16.msra.mxu0 0
      %1104 = vmatprep.subr.bf16.mxu0 0
      %1105 = vmatpush1.bf16.msra.mxu0 0
      %1106 = vmatprep.subr.bf16.mxu0 0
      %1107 = vmatpush1.bf16.msra.mxu0 0
      %1108 = vmatprep.mubr.bf16.mxu0 0
      %1109 = vmatmul.mubr.bf16.gmra.mrb[0].mxu0 %v815
      %v1110 = vpop.f32.mrb[0].mxu0
      %v1111 = vadd.f32 0.0, %v1110
      %v1112 = vpop.f32.mrb[0].mxu0
      %v1113 = vpop.f32.mrb[0].mxu0
      %v1114 = vadd.f32 0.0, %v1113
      %v1115 = vpop.f32.mrb[0].mxu0
      %1116 = vmatprep.mubr.bf16.mxu0 0
      %1117 = vmatmul.mubr.bf16.gmra.mrb[0].mxu0 %v827
      %v1118 = vpop.f32.mrb[0].mxu0
      %v1119 = vadd.f32 0.0, %v1118
      %v1120 = vpop.f32.mrb[0].mxu0
      %v1121 = vpop.f32.mrb[0].mxu0
      %v1122 = vadd.f32 0.0, %v1121
      %v1123 = vpop.f32.mrb[0].mxu0
      %1124 = vmatprep.mubr.bf16.mxu0 0
      %1125 = vmatmul.mubr.bf16.gmra.mrb[0].mxu0 %v839
      %v1126 = vpop.f32.mrb[0].mxu0
      %v1127 = vadd.f32 0.0, %v1126
      %v1128 = vpop.f32.mrb[0].mxu0
      %v1129 = vpop.f32.mrb[0].mxu0
      %v1130 = vadd.f32 0.0, %v1129
      %v1131 = vpop.f32.mrb[0].mxu0
      %1132 = vmatprep.mubr.bf16.mxu0 0
      %1133 = vmatmul.mubr.bf16.gmra.mrb[0].mxu0 %v851
      %v1134 = vpop.f32.mrb[0].mxu0
      %v1135 = vadd.f32 0.0, %v1134
      %v1136 = vpop.f32.mrb[0].mxu0
      %v1137 = vpop.f32.mrb[0].mxu0
      %v1138 = vadd.f32 0.0, %v1137
      %v1139 = vpop.f32.mrb[0].mxu0
      %1140 = vmatprep.mubr.bf16.mxu0 0
      %1141 = vmatmul.mubr.bf16.gmra.mrb[0].mxu0 %v863
      %v1142 = vpop.f32.mrb[0].mxu0
      %v1143 = vadd.f32 0.0, %v1142
      %v1144 = vpop.f32.mrb[0].mxu0
      %v1145 = vpop.f32.mrb[0].mxu0
      %v1146 = vadd.f32 0.0, %v1145
      %v1147 = vpop.f32.mrb[0].mxu0
      %1148 = vmatprep.mubr.bf16.mxu0 0
      %1149 = vmatmul.mubr.bf16.gmra.mrb[0].mxu0 %v875
      %v1150 = vpop.f32.mrb[0].mxu0
      %v1151 = vadd.f32 0.0, %v1150
      %v1152 = vpop.f32.mrb[0].mxu0
      %v1153 = vpop.f32.mrb[0].mxu0
      %v1154 = vadd.f32 0.0, %v1153
      %v1155 = vpop.f32.mrb[0].mxu0
      %1156 = vmatprep.mubr.bf16.mxu0 0
      %1157 = vmatmul.mubr.bf16.gmra.mrb[0].mxu0 %v887
      %v1158 = vpop.f32.mrb[0].mxu0
      %v1159 = vadd.f32 0.0, %v1158
      %v1160 = vpop.f32.mrb[0].mxu0
      %v1161 = vpop.f32.mrb[0].mxu0
      %v1162 = vadd.f32 0.0, %v1161
      %v1163 = vpop.f32.mrb[0].mxu0
      %1164 = vmatprep.mubr.bf16.mxu0 0
      %1165 = vmatmul.mubr.bf16.gmra.mrb[0].mxu0 %v899
      %v1166 = vpop.f32.mrb[0].mxu0
      %v1167 = vadd.f32 0.0, %v1166
      %v1168 = vpop.f32.mrb[0].mxu0
      %v1169 = vpop.f32.mrb[0].mxu0
      %v1170 = vadd.f32 0.0, %v1169
      %v1171 = vpop.f32.mrb[0].mxu0
      %1172 = vmatprep.mubr.bf16.mxu0 0
      %1173 = vmatmul.mubr.bf16.gmra.mrb[0].mxu0 %v911
      %v1174 = vpop.f32.mrb[0].mxu0
      %v1175 = vadd.f32 0.0, %v1174
      %v1176 = vpop.f32.mrb[0].mxu0
      %v1177 = vpop.f32.mrb[0].mxu0
      %v1178 = vadd.f32 0.0, %v1177
      %v1179 = vpop.f32.mrb[0].mxu0
      %1180 = vmatprep.mubr.bf16.mxu0 0
      %1181 = vmatmul.mubr.bf16.gmra.mrb[0].mxu0 %v923
      %v1182 = vpop.f32.mrb[0].mxu0
      %v1183 = vadd.f32 0.0, %v1182
      %v1184 = vpop.f32.mrb[0].mxu0
      %v1185 = vpop.f32.mrb[0].mxu0
      %v1186 = vadd.f32 0.0, %v1185
      %v1187 = vpop.f32.mrb[0].mxu0
      %1188 = vmatprep.mubr.bf16.mxu0 0
      %1189 = vmatmul.mubr.bf16.gmra.mrb[0].mxu0 %v935
      %v1190 = vpop.f32.mrb[0].mxu0
      %v1191 = vadd.f32 0.0, %v1190
      %v1192 = vpop.f32.mrb[0].mxu0
      %v1193 = vpop.f32.mrb[0].mxu0
      %v1194 = vadd.f32 0.0, %v1193
      %v1195 = vpop.f32.mrb[0].mxu0
      %1196 = vmatprep.mubr.bf16.mxu0 0
      %1197 = vmatmul.mubr.bf16.gmra.mrb[0].mxu0 %v947
      %v1198 = vpop.f32.mrb[0].mxu0
      %v1199 = vadd.f32 0.0, %v1198
      %v1200 = vpop.f32.mrb[0].mxu0
      %v1201 = vpop.f32.mrb[0].mxu0
      %v1202 = vadd.f32 0.0, %v1201
      %v1203 = vpop.f32.mrb[0].mxu0
      %1204 = vmatprep.mubr.bf16.mxu0 0
      %1205 = vmatmul.mubr.bf16.gmra.mrb[0].mxu0 %v959
      %v1206 = vpop.f32.mrb[0].mxu0
      %v1207 = vadd.f32 0.0, %v1206
      %v1208 = vpop.f32.mrb[0].mxu0
      %v1209 = vpop.f32.mrb[0].mxu0
      %v1210 = vadd.f32 0.0, %v1209
      %v1211 = vpop.f32.mrb[0].mxu0
      %1212 = vmatprep.mubr.bf16.mxu0 0
      %1213 = vmatmul.mubr.bf16.gmra.mrb[0].mxu0 %v971
      %v1214 = vpop.f32.mrb[0].mxu0
      %v1215 = vadd.f32 0.0, %v1214
      %v1216 = vpop.f32.mrb[0].mxu0
      %v1217 = vpop.f32.mrb[0].mxu0
      %v1218 = vadd.f32 0.0, %v1217
      %v1219 = vpop.f32.mrb[0].mxu0
      %1220 = vmatprep.mubr.bf16.mxu0 0
      %1221 = vmatmul.mubr.bf16.gmra.mrb[0].mxu0 %v983
      %v1222 = vpop.f32.mrb[0].mxu0
      %v1223 = vadd.f32 0.0, %v1222
      %v1224 = vpop.f32.mrb[0].mxu0
      %v1225 = vpop.f32.mrb[0].mxu0
      %v1226 = vadd.f32 0.0, %v1225
      %v1227 = vpop.f32.mrb[0].mxu0
      %1228 = vmatprep.mubr.bf16.mxu0 0
      %1229 = vmatmul.mubr.bf16.gmra.mrb[0].mxu0 %v995
      %v1230 = vpop.f32.mrb[0].mxu0
      %v1231 = vadd.f32 0.0, %v1230
      %v1232 = vpop.f32.mrb[0].mxu0
      %v1233 = vpop.f32.mrb[0].mxu0
      %v1234 = vadd.f32 0.0, %v1233
      %v1235 = vpop.f32.mrb[0].mxu0
      %1236 = vdwg.mxu0
      %v1253 = vunpack.c.l.b16 %v787
      %v1254 = vunpack.c.l.b16 %v788
      %v1255 = vunpack.c.l.b16 %v789
      %v1256 = vunpack.c.l.b16 %v790
      %v1257 = vunpack.c.l.b16 %v791
      %v1258 = vunpack.c.l.b16 %v792
      %v1259 = vunpack.c.l.b16 %v793
      %v1260 = vunpack.c.l.b16 %v794
      %v1261 = vunpack.c.l.b16 %v795
      %v1262 = vunpack.c.l.b16 %v796
      %v1263 = vunpack.c.l.b16 %v797
      %v1264 = vunpack.c.l.b16 %v798
      %v1265 = vunpack.c.l.b16 %v799
      %v1266 = vunpack.c.l.b16 %v800
      %v1267 = vunpack.c.l.b16 %v801
      %v1268 = vunpack.c.l.b16 %v802
      %v1269 = vpack.c.b16 %v1254, %v1253
      %v1270 = vpack.c.b16 %v1256, %v1255
      %v1271 = vpack.c.b16 %v1258, %v1257
      %v1272 = vpack.c.b16 %v1260, %v1259
      %v1273 = vpack.c.b16 %v1262, %v1261
      %v1274 = vpack.c.b16 %v1264, %v1263
      %v1275 = vpack.c.b16 %v1266, %v1265
      %v1276 = vpack.c.b16 %v1268, %v1267
      %1285 = vmatprep.subr.bf16.mxu0 0
      %1286 = vmatpush1.bf16.msra.mxu0 %v1269
      %1287 = vmatprep.subr.bf16.mxu0 0
      %1288 = vmatpush1.bf16.msra.mxu0 %v1270
      %1289 = vmatprep.subr.bf16.mxu0 0
      %1290 = vmatpush1.bf16.msra.mxu0 %v1271
      %1291 = vmatprep.subr.bf16.mxu0 0
      %1292 = vmatpush1.bf16.msra.mxu0 %v1272
      %1293 = vmatprep.subr.bf16.mxu0 0
      %1294 = vmatpush1.bf16.msra.mxu0 %v1273
      %1295 = vmatprep.subr.bf16.mxu0 0
      %1296 = vmatpush1.bf16.msra.mxu0 %v1274
      %1297 = vmatprep.subr.bf16.mxu0 0
      %1298 = vmatpush1.bf16.msra.mxu0 %v1275
      %1299 = vmatprep.subr.bf16.mxu0 0
      %1300 = vmatpush1.bf16.msra.mxu0 %v1276
      %1301 = vmatprep.subr.bf16.mxu0 0
      %1302 = vmatpush1.bf16.msra.mxu0 0
      %1303 = vmatprep.subr.bf16.mxu0 0
      %1304 = vmatpush1.bf16.msra.mxu0 0
      %1305 = vmatprep.subr.bf16.mxu0 0
      %1306 = vmatpush1.bf16.msra.mxu0 0
      %1307 = vmatprep.subr.bf16.mxu0 0
      %1308 = vmatpush1.bf16.msra.mxu0 0
      %1309 = vmatprep.subr.bf16.mxu0 0
      %1310 = vmatpush1.bf16.msra.mxu0 0
      %1311 = vmatprep.subr.bf16.mxu0 0
      %1312 = vmatpush1.bf16.msra.mxu0 0
      %1313 = vmatprep.subr.bf16.mxu0 0
      %1314 = vmatpush1.bf16.msra.mxu0 0
      %1315 = vmatprep.subr.bf16.mxu0 0
      %1316 = vmatpush1.bf16.msra.mxu0 0
      %1317 = vmatprep.mubr.bf16.mxu0 0
      %1318 = vmatmul.mubr.bf16.gmra.mrb[0].mxu0 %v751
      %v1319 = vpop.f32.mrb[0].mxu0
      %v1320 = vadd.f32 %v1111, %v1319
      %v1321 = vpop.f32.mrb[0].mxu0
      %v1322 = vpop.f32.mrb[0].mxu0
      %v1323 = vadd.f32 %v1114, %v1322
      %v1324 = vpop.f32.mrb[0].mxu0
      %1325 = vmatprep.mubr.bf16.mxu0 0
      %1326 = vmatmul.mubr.bf16.gmra.mrb[0].mxu0 %v752
      %v1327 = vpop.f32.mrb[0].mxu0
      %v1328 = vadd.f32 %v1119, %v1327
      %v1329 = vpop.f32.mrb[0].mxu0
      %v1330 = vpop.f32.mrb[0].mxu0
      %v1331 = vadd.f32 %v1122, %v1330
      %v1332 = vpop.f32.mrb[0].mxu0
      %1333 = vmatprep.mubr.bf16.mxu0 0
      %1334 = vmatmul.mubr.bf16.gmra.mrb[0].mxu0 %v753
      %v1335 = vpop.f32.mrb[0].mxu0
      %v1336 = vadd.f32 %v1127, %v1335
      %v1337 = vpop.f32.mrb[0].mxu0
      %v1338 = vpop.f32.mrb[0].mxu0
      %v1339 = vadd.f32 %v1130, %v1338
      %v1340 = vpop.f32.mrb[0].mxu0
      %1341 = vmatprep.mubr.bf16.mxu0 0
      %1342 = vmatmul.mubr.bf16.gmra.mrb[0].mxu0 %v754
      %v1343 = vpop.f32.mrb[0].mxu0
      %v1344 = vadd.f32 %v1135, %v1343
      %v1345 = vpop.f32.mrb[0].mxu0
      %v1346 = vpop.f32.mrb[0].mxu0
      %v1347 = vadd.f32 %v1138, %v1346
      %v1348 = vpop.f32.mrb[0].mxu0
      %1349 = vmatprep.mubr.bf16.mxu0 0
      %1350 = vmatmul.mubr.bf16.gmra.mrb[0].mxu0 %v755
      %v1351 = vpop.f32.mrb[0].mxu0
      %v1352 = vadd.f32 %v1143, %v1351
      %v1353 = vpop.f32.mrb[0].mxu0
      %v1354 = vpop.f32.mrb[0].mxu0
      %v1355 = vadd.f32 %v1146, %v1354
      %v1356 = vpop.f32.mrb[0].mxu0
      %1357 = vmatprep.mubr.bf16.mxu0 0
      %1358 = vmatmul.mubr.bf16.gmra.mrb[0].mxu0 %v756
      %v1359 = vpop.f32.mrb[0].mxu0
      %v1360 = vadd.f32 %v1151, %v1359
      %v1361 = vpop.f32.mrb[0].mxu0
      %v1362 = vpop.f32.mrb[0].mxu0
      %v1363 = vadd.f32 %v1154, %v1362
      %v1364 = vpop.f32.mrb[0].mxu0
      %1365 = vmatprep.mubr.bf16.mxu0 0
      %1366 = vmatmul.mubr.bf16.gmra.mrb[0].mxu0 %v757
      %v1367 = vpop.f32.mrb[0].mxu0
      %v1368 = vadd.f32 %v1159, %v1367
      %v1369 = vpop.f32.mrb[0].mxu0
      %v1370 = vpop.f32.mrb[0].mxu0
      %v1371 = vadd.f32 %v1162, %v1370
      %v1372 = vpop.f32.mrb[0].mxu0
      %1373 = vmatprep.mubr.bf16.mxu0 0
      %1374 = vmatmul.mubr.bf16.gmra.mrb[0].mxu0 %v758
      %v1375 = vpop.f32.mrb[0].mxu0
      %v1376 = vadd.f32 %v1167, %v1375
      %v1377 = vpop.f32.mrb[0].mxu0
      %v1378 = vpop.f32.mrb[0].mxu0
      %v1379 = vadd.f32 %v1170, %v1378
      %v1380 = vpop.f32.mrb[0].mxu0
      %1381 = vmatprep.mubr.bf16.mxu0 0
      %1382 = vmatmul.mubr.bf16.gmra.mrb[0].mxu0 %v759
      %v1383 = vpop.f32.mrb[0].mxu0
      %v1384 = vadd.f32 %v1175, %v1383
      %v1385 = vpop.f32.mrb[0].mxu0
      %v1386 = vpop.f32.mrb[0].mxu0
      %v1387 = vadd.f32 %v1178, %v1386
      %v1388 = vpop.f32.mrb[0].mxu0
      %1389 = vmatprep.mubr.bf16.mxu0 0
      %1390 = vmatmul.mubr.bf16.gmra.mrb[0].mxu0 %v760
      %v1391 = vpop.f32.mrb[0].mxu0
      %v1392 = vadd.f32 %v1183, %v1391
      %v1393 = vpop.f32.mrb[0].mxu0
      %v1394 = vpop.f32.mrb[0].mxu0
      %v1395 = vadd.f32 %v1186, %v1394
      %v1396 = vpop.f32.mrb[0].mxu0
      %1397 = vmatprep.mubr.bf16.mxu0 0
      %1398 = vmatmul.mubr.bf16.gmra.mrb[0].mxu0 %v761
      %v1399 = vpop.f32.mrb[0].mxu0
      %v1400 = vadd.f32 %v1191, %v1399
      %v1401 = vpop.f32.mrb[0].mxu0
      %v1402 = vpop.f32.mrb[0].mxu0
      %v1403 = vadd.f32 %v1194, %v1402
      %v1404 = vpop.f32.mrb[0].mxu0
      %1405 = vmatprep.mubr.bf16.mxu0 0
      %1406 = vmatmul.mubr.bf16.gmra.mrb[0].mxu0 %v762
      %v1407 = vpop.f32.mrb[0].mxu0
      %v1408 = vadd.f32 %v1199, %v1407
      %v1409 = vpop.f32.mrb[0].mxu0
      %v1410 = vpop.f32.mrb[0].mxu0
      %v1411 = vadd.f32 %v1202, %v1410
      %v1412 = vpop.f32.mrb[0].mxu0
      %1413 = vmatprep.mubr.bf16.mxu0 0
      %1414 = vmatmul.mubr.bf16.gmra.mrb[0].mxu0 %v763
      %v1415 = vpop.f32.mrb[0].mxu0
      %v1416 = vadd.f32 %v1207, %v1415
      %v1417 = vpop.f32.mrb[0].mxu0
      %v1418 = vpop.f32.mrb[0].mxu0
      %v1419 = vadd.f32 %v1210, %v1418
      %v1420 = vpop.f32.mrb[0].mxu0
      %1421 = vmatprep.mubr.bf16.mxu0 0
      %1422 = vmatmul.mubr.bf16.gmra.mrb[0].mxu0 %v764
      %v1423 = vpop.f32.mrb[0].mxu0
      %v1424 = vadd.f32 %v1215, %v1423
      %v1425 = vpop.f32.mrb[0].mxu0
      %v1426 = vpop.f32.mrb[0].mxu0
      %v1427 = vadd.f32 %v1218, %v1426
      %v1428 = vpop.f32.mrb[0].mxu0
      %1429 = vmatprep.mubr.bf16.mxu0 0
      %1430 = vmatmul.mubr.bf16.gmra.mrb[0].mxu0 %v765
      %v1431 = vpop.f32.mrb[0].mxu0
      %v1432 = vadd.f32 %v1223, %v1431
      %v1433 = vpop.f32.mrb[0].mxu0
      %v1434 = vpop.f32.mrb[0].mxu0
      %v1435 = vadd.f32 %v1226, %v1434
      %v1436 = vpop.f32.mrb[0].mxu0
      %1437 = vmatprep.mubr.bf16.mxu0 0
      %1438 = vmatmul.mubr.bf16.gmra.mrb[0].mxu0 %v766
      %v1439 = vpop.f32.mrb[0].mxu0
      %v1440 = vadd.f32 %v1231, %v1439
      %v1441 = vpop.f32.mrb[0].mxu0
      %v1442 = vpop.f32.mrb[0].mxu0
      %v1443 = vadd.f32 %v1234, %v1442
      %v1444 = vpop.f32.mrb[0].mxu0
      %1445 = vdwg.mxu0
      %vm1478 = vcmask 1046528
      %v1479 = vrot.slane %v751, 1
      %v1480 = vrot.slane %v769, 1
      %v1481 = vsel %vm1478, %v1479, %v1480
      %v1482 = vrot.slane %v752, 1
      %v1483 = vrot.slane %v770, 1
      %v1484 = vsel %vm1478, %v1482, %v1483
      %v1485 = vrot.slane %v753, 1
      %v1486 = vrot.slane %v771, 1
      %v1487 = vsel %vm1478, %v1485, %v1486
      %v1488 = vrot.slane %v754, 1
      %v1489 = vrot.slane %v772, 1
      %v1490 = vsel %vm1478, %v1488, %v1489
      %v1491 = vrot.slane %v755, 1
      %v1492 = vrot.slane %v773, 1
      %v1493 = vsel %vm1478, %v1491, %v1492
      %v1494 = vrot.slane %v756, 1
      %v1495 = vrot.slane %v774, 1
      %v1496 = vsel %vm1478, %v1494, %v1495
      %v1497 = vrot.slane %v757, 1
      %v1498 = vrot.slane %v775, 1
      %v1499 = vsel %vm1478, %v1497, %v1498
      %v1500 = vrot.slane %v758, 1
      %v1501 = vrot.slane %v776, 1
      %v1502 = vsel %vm1478, %v1500, %v1501
      %v1503 = vrot.slane %v759, 1
      %v1504 = vrot.slane %v777, 1
      %v1505 = vsel %vm1478, %v1503, %v1504
      %v1506 = vrot.slane %v760, 1
      %v1507 = vrot.slane %v778, 1
      %v1508 = vsel %vm1478, %v1506, %v1507
      %v1509 = vrot.slane %v761, 1
      %v1510 = vrot.slane %v779, 1
      %v1511 = vsel %vm1478, %v1509, %v1510
      %v1512 = vrot.slane %v762, 1
      %v1513 = vrot.slane %v780, 1
      %v1514 = vsel %vm1478, %v1512, %v1513
      %v1515 = vrot.slane %v763, 1
      %v1516 = vrot.slane %v781, 1
      %v1517 = vsel %vm1478, %v1515, %v1516
      %v1518 = vrot.slane %v764, 1
      %v1519 = vrot.slane %v782, 1
      %v1520 = vsel %vm1478, %v1518, %v1519
      %v1521 = vrot.slane %v765, 1
      %v1522 = vrot.slane %v783, 1
      %v1523 = vsel %vm1478, %v1521, %v1522
      %v1524 = vrot.slane %v766, 1
      %v1525 = vrot.slane %v784, 1
      %v1526 = vsel %vm1478, %v1524, %v1525
      %v1543 = vld [vmem:[%s238 + $0x80] sm:$0xf]
      %v1544 = vld [vmem:[%s238 + $0x84] sm:$0xf]
      %v1545 = vld [vmem:[%s238 + $0x88] sm:$0xf]
      %v1546 = vld [vmem:[%s238 + $0x8c] sm:$0xf]
      %v1547 = vld [vmem:[%s238 + $0x90] sm:$0xf]
      %v1548 = vld [vmem:[%s238 + $0x94] sm:$0xf]
      %v1549 = vld [vmem:[%s238 + $0x98] sm:$0xf]
      %v1550 = vld [vmem:[%s238 + $0x9c] sm:$0xf]
      %v1551 = vld [vmem:[%s238 + $0xa0] sm:$0xf]
      %v1552 = vld [vmem:[%s238 + $0xa4] sm:$0xf]
      %v1553 = vld [vmem:[%s238 + $0xa8] sm:$0xf]
      %v1554 = vld [vmem:[%s238 + $0xac] sm:$0xf]
      %v1555 = vld [vmem:[%s238 + $0xb0] sm:$0xf]
      %v1556 = vld [vmem:[%s238 + $0xb4] sm:$0xf]
      %v1557 = vld [vmem:[%s238 + $0xb8] sm:$0xf]
      %v1558 = vld [vmem:[%s238 + $0xbc] sm:$0xf]
      %v1575 = vunpack.c.l.b16 %v1543
      %v1576 = vunpack.c.l.b16 %v1544
      %v1577 = vunpack.c.l.b16 %v1545
      %v1578 = vunpack.c.l.b16 %v1546
      %v1579 = vunpack.c.l.b16 %v1547
      %v1580 = vunpack.c.l.b16 %v1548
      %v1581 = vunpack.c.l.b16 %v1549
      %v1582 = vunpack.c.l.b16 %v1550
      %v1583 = vunpack.c.l.b16 %v1551
      %v1584 = vunpack.c.l.b16 %v1552
      %v1585 = vunpack.c.l.b16 %v1553
      %v1586 = vunpack.c.l.b16 %v1554
      %v1587 = vunpack.c.l.b16 %v1555
      %v1588 = vunpack.c.l.b16 %v1556
      %v1589 = vunpack.c.l.b16 %v1557
      %v1590 = vunpack.c.l.b16 %v1558
      %v1591 = vpack.c.b16 %v1576, %v1575
      %v1592 = vpack.c.b16 %v1578, %v1577
      %v1593 = vpack.c.b16 %v1580, %v1579
      %v1594 = vpack.c.b16 %v1582, %v1581
      %v1595 = vpack.c.b16 %v1584, %v1583
      %v1596 = vpack.c.b16 %v1586, %v1585
      %v1597 = vpack.c.b16 %v1588, %v1587
      %v1598 = vpack.c.b16 %v1590, %v1589
      %1607 = vmatprep.subr.bf16.mxu0 0
      %1608 = vmatpush1.bf16.msra.mxu0 %v1591
      %1609 = vmatprep.subr.bf16.mxu0 0
      %1610 = vmatpush1.bf16.msra.mxu0 %v1592
      %1611 = vmatprep.subr.bf16.mxu0 0
      %1612 = vmatpush1.bf16.msra.mxu0 %v1593
      %1613 = vmatprep.subr.bf16.mxu0 0
      %1614 = vmatpush1.bf16.msra.mxu0 %v1594
      %1615 = vmatprep.subr.bf16.mxu0 0
      %1616 = vmatpush1.bf16.msra.mxu0 %v1595
      %1617 = vmatprep.subr.bf16.mxu0 0
      %1618 = vmatpush1.bf16.msra.mxu0 %v1596
      %1619 = vmatprep.subr.bf16.mxu0 0
      %1620 = vmatpush1.bf16.msra.mxu0 %v1597
      %1621 = vmatprep.subr.bf16.mxu0 0
      %1622 = vmatpush1.bf16.msra.mxu0 %v1598
      %1623 = vmatprep.subr.bf16.mxu0 0
      %1624 = vmatpush1.bf16.msra.mxu0 0
      %1625 = vmatprep.subr.bf16.mxu0 0
      %1626 = vmatpush1.bf16.msra.mxu0 0
      %1627 = vmatprep.subr.bf16.mxu0 0
      %1628 = vmatpush1.bf16.msra.mxu0 0
      %1629 = vmatprep.subr.bf16.mxu0 0
      %1630 = vmatpush1.bf16.msra.mxu0 0
      %1631 = vmatprep.subr.bf16.mxu0 0
      %1632 = vmatpush1.bf16.msra.mxu0 0
      %1633 = vmatprep.subr.bf16.mxu0 0
      %1634 = vmatpush1.bf16.msra.mxu0 0
      %1635 = vmatprep.subr.bf16.mxu0 0
      %1636 = vmatpush1.bf16.msra.mxu0 0
      %1637 = vmatprep.subr.bf16.mxu0 0
      %1638 = vmatpush1.bf16.msra.mxu0 0
      %1639 = vmatprep.mubr.bf16.mxu0 0
      %1640 = vmatmul.mubr.bf16.gmra.mrb[0].mxu0 %v1481
      %v1641 = vpop.f32.mrb[0].mxu0
      %v1642 = vadd.f32 0.0, %v1641
      %v1643 = vpop.f32.mrb[0].mxu0
      %v1644 = vpop.f32.mrb[0].mxu0
      %v1645 = vadd.f32 0.0, %v1644
      %v1646 = vpop.f32.mrb[0].mxu0
      %1647 = vmatprep.mubr.bf16.mxu0 0
      %1648 = vmatmul.mubr.bf16.gmra.mrb[0].mxu0 %v1484
      %v1649 = vpop.f32.mrb[0].mxu0
      %v1650 = vadd.f32 0.0, %v1649
      %v1651 = vpop.f32.mrb[0].mxu0
      %v1652 = vpop.f32.mrb[0].mxu0
      %v1653 = vadd.f32 0.0, %v1652
      %v1654 = vpop.f32.mrb[0].mxu0
      %1655 = vmatprep.mubr.bf16.mxu0 0
      %1656 = vmatmul.mubr.bf16.gmra.mrb[0].mxu0 %v1487
      %v1657 = vpop.f32.mrb[0].mxu0
      %v1658 = vadd.f32 0.0, %v1657
      %v1659 = vpop.f32.mrb[0].mxu0
      %v1660 = vpop.f32.mrb[0].mxu0
      %v1661 = vadd.f32 0.0, %v1660
      %v1662 = vpop.f32.mrb[0].mxu0
      %1663 = vmatprep.mubr.bf16.mxu0 0
      %1664 = vmatmul.mubr.bf16.gmra.mrb[0].mxu0 %v1490
      %v1665 = vpop.f32.mrb[0].mxu0
      %v1666 = vadd.f32 0.0, %v1665
      %v1667 = vpop.f32.mrb[0].mxu0
      %v1668 = vpop.f32.mrb[0].mxu0
      %v1669 = vadd.f32 0.0, %v1668
      %v1670 = vpop.f32.mrb[0].mxu0
      %1671 = vmatprep.mubr.bf16.mxu0 0
      %1672 = vmatmul.mubr.bf16.gmra.mrb[0].mxu0 %v1493
      %v1673 = vpop.f32.mrb[0].mxu0
      %v1674 = vadd.f32 0.0, %v1673
      %v1675 = vpop.f32.mrb[0].mxu0
      %v1676 = vpop.f32.mrb[0].mxu0
      %v1677 = vadd.f32 0.0, %v1676
      %v1678 = vpop.f32.mrb[0].mxu0
      %1679 = vmatprep.mubr.bf16.mxu0 0
      %1680 = vmatmul.mubr.bf16.gmra.mrb[0].mxu0 %v1496
      %v1681 = vpop.f32.mrb[0].mxu0
      %v1682 = vadd.f32 0.0, %v1681
      %v1683 = vpop.f32.mrb[0].mxu0
      %v1684 = vpop.f32.mrb[0].mxu0
      %v1685 = vadd.f32 0.0, %v1684
      %v1686 = vpop.f32.mrb[0].mxu0
      %1687 = vmatprep.mubr.bf16.mxu0 0
      %1688 = vmatmul.mubr.bf16.gmra.mrb[0].mxu0 %v1499
      %v1689 = vpop.f32.mrb[0].mxu0
      %v1690 = vadd.f32 0.0, %v1689
      %v1691 = vpop.f32.mrb[0].mxu0
      %v1692 = vpop.f32.mrb[0].mxu0
      %v1693 = vadd.f32 0.0, %v1692
      %v1694 = vpop.f32.mrb[0].mxu0
      %1695 = vmatprep.mubr.bf16.mxu0 0
      %1696 = vmatmul.mubr.bf16.gmra.mrb[0].mxu0 %v1502
      %v1697 = vpop.f32.mrb[0].mxu0
      %v1698 = vadd.f32 0.0, %v1697
      %v1699 = vpop.f32.mrb[0].mxu0
      %v1700 = vpop.f32.mrb[0].mxu0
      %v1701 = vadd.f32 0.0, %v1700
      %v1702 = vpop.f32.mrb[0].mxu0
      %1703 = vmatprep.mubr.bf16.mxu0 0
      %1704 = vmatmul.mubr.bf16.gmra.mrb[0].mxu0 %v1505
      %v1705 = vpop.f32.mrb[0].mxu0
      %v1706 = vadd.f32 0.0, %v1705
      %v1707 = vpop.f32.mrb[0].mxu0
      %v1708 = vpop.f32.mrb[0].mxu0
      %v1709 = vadd.f32 0.0, %v1708
      %v1710 = vpop.f32.mrb[0].mxu0
      %1711 = vmatprep.mubr.bf16.mxu0 0
      %1712 = vmatmul.mubr.bf16.gmra.mrb[0].mxu0 %v1508
      %v1713 = vpop.f32.mrb[0].mxu0
      %v1714 = vadd.f32 0.0, %v1713
      %v1715 = vpop.f32.mrb[0].mxu0
      %v1716 = vpop.f32.mrb[0].mxu0
      %v1717 = vadd.f32 0.0, %v1716
      %v1718 = vpop.f32.mrb[0].mxu0
      %1719 = vmatprep.mubr.bf16.mxu0 0
      %1720 = vmatmul.mubr.bf16.gmra.mrb[0].mxu0 %v1511
      %v1721 = vpop.f32.mrb[0].mxu0
      %v1722 = vadd.f32 0.0, %v1721
      %v1723 = vpop.f32.mrb[0].mxu0
      %v1724 = vpop.f32.mrb[0].mxu0
      %v1725 = vadd.f32 0.0, %v1724
      %v1726 = vpop.f32.mrb[0].mxu0
      %1727 = vmatprep.mubr.bf16.mxu0 0
      %1728 = vmatmul.mubr.bf16.gmra.mrb[0].mxu0 %v1514
      %v1729 = vpop.f32.mrb[0].mxu0
      %v1730 = vadd.f32 0.0, %v1729
      %v1731 = vpop.f32.mrb[0].mxu0
      %v1732 = vpop.f32.mrb[0].mxu0
      %v1733 = vadd.f32 0.0, %v1732
      %v1734 = vpop.f32.mrb[0].mxu0
      %1735 = vmatprep.mubr.bf16.mxu0 0
      %1736 = vmatmul.mubr.bf16.gmra.mrb[0].mxu0 %v1517
      %v1737 = vpop.f32.mrb[0].mxu0
      %v1738 = vadd.f32 0.0, %v1737
      %v1739 = vpop.f32.mrb[0].mxu0
      %v1740 = vpop.f32.mrb[0].mxu0
      %v1741 = vadd.f32 0.0, %v1740
      %v1742 = vpop.f32.mrb[0].mxu0
      %1743 = vmatprep.mubr.bf16.mxu0 0
      %1744 = vmatmul.mubr.bf16.gmra.mrb[0].mxu0 %v1520
      %v1745 = vpop.f32.mrb[0].mxu0
      %v1746 = vadd.f32 0.0, %v1745
      %v1747 = vpop.f32.mrb[0].mxu0
      %v1748 = vpop.f32.mrb[0].mxu0
      %v1749 = vadd.f32 0.0, %v1748
      %v1750 = vpop.f32.mrb[0].mxu0
      %1751 = vmatprep.mubr.bf16.mxu0 0
      %1752 = vmatmul.mubr.bf16.gmra.mrb[0].mxu0 %v1523
      %v1753 = vpop.f32.mrb[0].mxu0
      %v1754 = vadd.f32 0.0, %v1753
      %v1755 = vpop.f32.mrb[0].mxu0
      %v1756 = vpop.f32.mrb[0].mxu0
      %v1757 = vadd.f32 0.0, %v1756
      %v1758 = vpop.f32.mrb[0].mxu0
      %1759 = vmatprep.mubr.bf16.mxu0 0
      %1760 = vmatmul.mubr.bf16.gmra.mrb[0].mxu0 %v1526
      %v1761 = vpop.f32.mrb[0].mxu0
      %v1762 = vadd.f32 0.0, %v1761
      %v1763 = vpop.f32.mrb[0].mxu0
      %v1764 = vpop.f32.mrb[0].mxu0
      %v1765 = vadd.f32 0.0, %v1764
      %v1766 = vpop.f32.mrb[0].mxu0
      %1767 = vdwg.mxu0
      %v1768 = vadd.f32 %v1320, %v1642
      %v1769 = vadd.f32 %v1323, %v1645
      %v1770 = vadd.f32 %v1328, %v1650
      %v1771 = vadd.f32 %v1331, %v1653
      %v1772 = vadd.f32 %v1336, %v1658
      %v1773 = vadd.f32 %v1339, %v1661
      %v1774 = vadd.f32 %v1344, %v1666
      %v1775 = vadd.f32 %v1347, %v1669
      %v1776 = vadd.f32 %v1352, %v1674
      %v1777 = vadd.f32 %v1355, %v1677
      %v1778 = vadd.f32 %v1360, %v1682
      %v1779 = vadd.f32 %v1363, %v1685
      %v1780 = vadd.f32 %v1368, %v1690
      %v1781 = vadd.f32 %v1371, %v1693
      %v1782 = vadd.f32 %v1376, %v1698
      %v1783 = vadd.f32 %v1379, %v1701
      %v1784 = vadd.f32 %v1384, %v1706
      %v1785 = vadd.f32 %v1387, %v1709
      %v1786 = vadd.f32 %v1392, %v1714
      %v1787 = vadd.f32 %v1395, %v1717
      %v1788 = vadd.f32 %v1400, %v1722
      %v1789 = vadd.f32 %v1403, %v1725
      %v1790 = vadd.f32 %v1408, %v1730
      %v1791 = vadd.f32 %v1411, %v1733
      %v1792 = vadd.f32 %v1416, %v1738
      %v1793 = vadd.f32 %v1419, %v1741
      %v1794 = vadd.f32 %v1424, %v1746
      %v1795 = vadd.f32 %v1427, %v1749
      %v1796 = vadd.f32 %v1432, %v1754
      %v1797 = vadd.f32 %v1435, %v1757
      %v1798 = vadd.f32 %v1440, %v1762
      %v1799 = vadd.f32 %v1443, %v1765
      %v1800 = vld [vmem:[%s238 + $0xc0] sm:$0xf]
      %v1801 = vld [vmem:[%s238 + $0xc4] sm:$0xf]
      %v1802 = vld [vmem:[%s238 + $0xc8] sm:$0xf]
      %v1803 = vld [vmem:[%s238 + $0xcc] sm:$0xf]
      %v1804 = vld [vmem:[%s238 + $0xd0] sm:$0xf]
      %v1805 = vld [vmem:[%s238 + $0xd4] sm:$0xf]
      %v1806 = vld [vmem:[%s238 + $0xd8] sm:$0xf]
      %v1807 = vld [vmem:[%s238 + $0xdc] sm:$0xf]
      %v1808 = vld [vmem:[%s238 + $0xe0] sm:$0xf]
      %v1809 = vld [vmem:[%s238 + $0xe4] sm:$0xf]
      %v1810 = vld [vmem:[%s238 + $0xe8] sm:$0xf]
      %v1811 = vld [vmem:[%s238 + $0xec] sm:$0xf]
      %v1812 = vld [vmem:[%s238 + $0xf0] sm:$0xf]
      %v1813 = vld [vmem:[%s238 + $0xf4] sm:$0xf]
      %v1814 = vld [vmem:[%s238 + $0xf8] sm:$0xf]
      %v1815 = vld [vmem:[%s238 + $0xfc] sm:$0xf]
      %v1832 = vunpack.c.l.b16 %v1800
      %v1833 = vunpack.c.l.b16 %v1801
      %v1834 = vunpack.c.l.b16 %v1802
      %v1835 = vunpack.c.l.b16 %v1803
      %v1836 = vunpack.c.l.b16 %v1804
      %v1837 = vunpack.c.l.b16 %v1805
      %v1838 = vunpack.c.l.b16 %v1806
      %v1839 = vunpack.c.l.b16 %v1807
      %v1840 = vunpack.c.l.b16 %v1808
      %v1841 = vunpack.c.l.b16 %v1809
      %v1842 = vunpack.c.l.b16 %v1810
      %v1843 = vunpack.c.l.b16 %v1811
      %v1844 = vunpack.c.l.b16 %v1812
      %v1845 = vunpack.c.l.b16 %v1813
      %v1846 = vunpack.c.l.b16 %v1814
      %v1847 = vunpack.c.l.b16 %v1815
      %v1848 = vpack.c.b16 %v1833, %v1832
      %v1849 = vpack.c.b16 %v1835, %v1834
      %v1850 = vpack.c.b16 %v1837, %v1836
      %v1851 = vpack.c.b16 %v1839, %v1838
      %v1852 = vpack.c.b16 %v1841, %v1840
      %v1853 = vpack.c.b16 %v1843, %v1842
      %v1854 = vpack.c.b16 %v1845, %v1844
      %v1855 = vpack.c.b16 %v1847, %v1846
      %1864 = vmatprep.subr.bf16.mxu0 0
      %1865 = vmatpush1.bf16.msra.mxu0 %v1848
      %1866 = vmatprep.subr.bf16.mxu0 0
      %1867 = vmatpush1.bf16.msra.mxu0 %v1849
      %1868 = vmatprep.subr.bf16.mxu0 0
      %1869 = vmatpush1.bf16.msra.mxu0 %v1850
      %1870 = vmatprep.subr.bf16.mxu0 0
      %1871 = vmatpush1.bf16.msra.mxu0 %v1851
      %1872 = vmatprep.subr.bf16.mxu0 0
      %1873 = vmatpush1.bf16.msra.mxu0 %v1852
      %1874 = vmatprep.subr.bf16.mxu0 0
      %1875 = vmatpush1.bf16.msra.mxu0 %v1853
      %1876 = vmatprep.subr.bf16.mxu0 0
      %1877 = vmatpush1.bf16.msra.mxu0 %v1854
      %1878 = vmatprep.subr.bf16.mxu0 0
      %1879 = vmatpush1.bf16.msra.mxu0 %v1855
      %1880 = vmatprep.subr.bf16.mxu0 0
      %1881 = vmatpush1.bf16.msra.mxu0 0
      %1882 = vmatprep.subr.bf16.mxu0 0
      %1883 = vmatpush1.bf16.msra.mxu0 0
      %1884 = vmatprep.subr.bf16.mxu0 0
      %1885 = vmatpush1.bf16.msra.mxu0 0
      %1886 = vmatprep.subr.bf16.mxu0 0
      %1887 = vmatpush1.bf16.msra.mxu0 0
      %1888 = vmatprep.subr.bf16.mxu0 0
      %1889 = vmatpush1.bf16.msra.mxu0 0
      %1890 = vmatprep.subr.bf16.mxu0 0
      %1891 = vmatpush1.bf16.msra.mxu0 0
      %1892 = vmatprep.subr.bf16.mxu0 0
      %1893 = vmatpush1.bf16.msra.mxu0 0
      %1894 = vmatprep.subr.bf16.mxu0 0
      %1895 = vmatpush1.bf16.msra.mxu0 0
      %1896 = vmatprep.mubr.bf16.mxu0 0
      %1897 = vmatmul.mubr.bf16.gmra.mrb[0].mxu0 %v752
      %v1898 = vpop.f32.mrb[0].mxu0
      %v1899 = vadd.f32 0.0, %v1898
      %v1900 = vpop.f32.mrb[0].mxu0
      %v1901 = vpop.f32.mrb[0].mxu0
      %v1902 = vadd.f32 0.0, %v1901
      %v1903 = vpop.f32.mrb[0].mxu0
      %1904 = vmatprep.mubr.bf16.mxu0 0
      %1905 = vmatmul.mubr.bf16.gmra.mrb[0].mxu0 %v753
      %v1906 = vpop.f32.mrb[0].mxu0
      %v1907 = vadd.f32 0.0, %v1906
      %v1908 = vpop.f32.mrb[0].mxu0
      %v1909 = vpop.f32.mrb[0].mxu0
      %v1910 = vadd.f32 0.0, %v1909
      %v1911 = vpop.f32.mrb[0].mxu0
      %1912 = vmatprep.mubr.bf16.mxu0 0
      %1913 = vmatmul.mubr.bf16.gmra.mrb[0].mxu0 %v754
      %v1914 = vpop.f32.mrb[0].mxu0
      %v1915 = vadd.f32 0.0, %v1914
      %v1916 = vpop.f32.mrb[0].mxu0
      %v1917 = vpop.f32.mrb[0].mxu0
      %v1918 = vadd.f32 0.0, %v1917
      %v1919 = vpop.f32.mrb[0].mxu0
      %1920 = vmatprep.mubr.bf16.mxu0 0
      %1921 = vmatmul.mubr.bf16.gmra.mrb[0].mxu0 %v755
      %v1922 = vpop.f32.mrb[0].mxu0
      %v1923 = vadd.f32 0.0, %v1922
      %v1924 = vpop.f32.mrb[0].mxu0
      %v1925 = vpop.f32.mrb[0].mxu0
      %v1926 = vadd.f32 0.0, %v1925
      %v1927 = vpop.f32.mrb[0].mxu0
      %1928 = vmatprep.mubr.bf16.mxu0 0
      %1929 = vmatmul.mubr.bf16.gmra.mrb[0].mxu0 %v756
      %v1930 = vpop.f32.mrb[0].mxu0
      %v1931 = vadd.f32 0.0, %v1930
      %v1932 = vpop.f32.mrb[0].mxu0
      %v1933 = vpop.f32.mrb[0].mxu0
      %v1934 = vadd.f32 0.0, %v1933
      %v1935 = vpop.f32.mrb[0].mxu0
      %1936 = vmatprep.mubr.bf16.mxu0 0
      %1937 = vmatmul.mubr.bf16.gmra.mrb[0].mxu0 %v757
      %v1938 = vpop.f32.mrb[0].mxu0
      %v1939 = vadd.f32 0.0, %v1938
      %v1940 = vpop.f32.mrb[0].mxu0
      %v1941 = vpop.f32.mrb[0].mxu0
      %v1942 = vadd.f32 0.0, %v1941
      %v1943 = vpop.f32.mrb[0].mxu0
      %1944 = vmatprep.mubr.bf16.mxu0 0
      %1945 = vmatmul.mubr.bf16.gmra.mrb[0].mxu0 %v758
      %v1946 = vpop.f32.mrb[0].mxu0
      %v1947 = vadd.f32 0.0, %v1946
      %v1948 = vpop.f32.mrb[0].mxu0
      %v1949 = vpop.f32.mrb[0].mxu0
      %v1950 = vadd.f32 0.0, %v1949
      %v1951 = vpop.f32.mrb[0].mxu0
      %1952 = vmatprep.mubr.bf16.mxu0 0
      %1953 = vmatmul.mubr.bf16.gmra.mrb[0].mxu0 %v759
      %v1954 = vpop.f32.mrb[0].mxu0
      %v1955 = vadd.f32 0.0, %v1954
      %v1956 = vpop.f32.mrb[0].mxu0
      %v1957 = vpop.f32.mrb[0].mxu0
      %v1958 = vadd.f32 0.0, %v1957
      %v1959 = vpop.f32.mrb[0].mxu0
      %1960 = vmatprep.mubr.bf16.mxu0 0
      %1961 = vmatmul.mubr.bf16.gmra.mrb[0].mxu0 %v760
      %v1962 = vpop.f32.mrb[0].mxu0
      %v1963 = vadd.f32 0.0, %v1962
      %v1964 = vpop.f32.mrb[0].mxu0
      %v1965 = vpop.f32.mrb[0].mxu0
      %v1966 = vadd.f32 0.0, %v1965
      %v1967 = vpop.f32.mrb[0].mxu0
      %1968 = vmatprep.mubr.bf16.mxu0 0
      %1969 = vmatmul.mubr.bf16.gmra.mrb[0].mxu0 %v761
      %v1970 = vpop.f32.mrb[0].mxu0
      %v1971 = vadd.f32 0.0, %v1970
      %v1972 = vpop.f32.mrb[0].mxu0
      %v1973 = vpop.f32.mrb[0].mxu0
      %v1974 = vadd.f32 0.0, %v1973
      %v1975 = vpop.f32.mrb[0].mxu0
      %1976 = vmatprep.mubr.bf16.mxu0 0
      %1977 = vmatmul.mubr.bf16.gmra.mrb[0].mxu0 %v762
      %v1978 = vpop.f32.mrb[0].mxu0
      %v1979 = vadd.f32 0.0, %v1978
      %v1980 = vpop.f32.mrb[0].mxu0
      %v1981 = vpop.f32.mrb[0].mxu0
      %v1982 = vadd.f32 0.0, %v1981
      %v1983 = vpop.f32.mrb[0].mxu0
      %1984 = vmatprep.mubr.bf16.mxu0 0
      %1985 = vmatmul.mubr.bf16.gmra.mrb[0].mxu0 %v763
      %v1986 = vpop.f32.mrb[0].mxu0
      %v1987 = vadd.f32 0.0, %v1986
      %v1988 = vpop.f32.mrb[0].mxu0
      %v1989 = vpop.f32.mrb[0].mxu0
      %v1990 = vadd.f32 0.0, %v1989
      %v1991 = vpop.f32.mrb[0].mxu0
      %1992 = vmatprep.mubr.bf16.mxu0 0
      %1993 = vmatmul.mubr.bf16.gmra.mrb[0].mxu0 %v764
      %v1994 = vpop.f32.mrb[0].mxu0
      %v1995 = vadd.f32 0.0, %v1994
      %v1996 = vpop.f32.mrb[0].mxu0
      %v1997 = vpop.f32.mrb[0].mxu0
      %v1998 = vadd.f32 0.0, %v1997
      %v1999 = vpop.f32.mrb[0].mxu0
      %2000 = vmatprep.mubr.bf16.mxu0 0
      %2001 = vmatmul.mubr.bf16.gmra.mrb[0].mxu0 %v765
      %v2002 = vpop.f32.mrb[0].mxu0
      %v2003 = vadd.f32 0.0, %v2002
      %v2004 = vpop.f32.mrb[0].mxu0
      %v2005 = vpop.f32.mrb[0].mxu0
      %v2006 = vadd.f32 0.0, %v2005
      %v2007 = vpop.f32.mrb[0].mxu0
      %2008 = vmatprep.mubr.bf16.mxu0 0
      %2009 = vmatmul.mubr.bf16.gmra.mrb[0].mxu0 %v766
      %v2010 = vpop.f32.mrb[0].mxu0
      %v2011 = vadd.f32 0.0, %v2010
      %v2012 = vpop.f32.mrb[0].mxu0
      %v2013 = vpop.f32.mrb[0].mxu0
      %v2014 = vadd.f32 0.0, %v2013
      %v2015 = vpop.f32.mrb[0].mxu0
      %2016 = vmatprep.mubr.bf16.mxu0 0
      %2017 = vmatmul.mubr.bf16.gmra.mrb[0].mxu0 %v767
      %v2018 = vpop.f32.mrb[0].mxu0
      %v2019 = vadd.f32 0.0, %v2018
      %v2020 = vpop.f32.mrb[0].mxu0
      %v2021 = vpop.f32.mrb[0].mxu0
      %v2022 = vadd.f32 0.0, %v2021
      %v2023 = vpop.f32.mrb[0].mxu0
      %2024 = vdwg.mxu0
      %v2025 = vadd.f32 %v1768, %v1899
      %v2026 = vadd.f32 %v1769, %v1902
      %v2027 = vadd.f32 %v1770, %v1907
      %v2028 = vadd.f32 %v1771, %v1910
      %v2029 = vadd.f32 %v1772, %v1915
      %v2030 = vadd.f32 %v1773, %v1918
      %v2031 = vadd.f32 %v1774, %v1923
      %v2032 = vadd.f32 %v1775, %v1926
      %v2033 = vadd.f32 %v1776, %v1931
      %v2034 = vadd.f32 %v1777, %v1934
      %v2035 = vadd.f32 %v1778, %v1939
      %v2036 = vadd.f32 %v1779, %v1942
      %v2037 = vadd.f32 %v1780, %v1947
      %v2038 = vadd.f32 %v1781, %v1950
      %v2039 = vadd.f32 %v1782, %v1955
      %v2040 = vadd.f32 %v1783, %v1958
      %v2041 = vadd.f32 %v1784, %v1963
      %v2042 = vadd.f32 %v1785, %v1966
      %v2043 = vadd.f32 %v1786, %v1971
      %v2044 = vadd.f32 %v1787, %v1974
      %v2045 = vadd.f32 %v1788, %v1979
      %v2046 = vadd.f32 %v1789, %v1982
      %v2047 = vadd.f32 %v1790, %v1987
      %v2048 = vadd.f32 %v1791, %v1990
      %v2049 = vadd.f32 %v1792, %v1995
      %v2050 = vadd.f32 %v1793, %v1998
      %v2051 = vadd.f32 %v1794, %v2003
      %v2052 = vadd.f32 %v1795, %v2006
      %v2053 = vadd.f32 %v1796, %v2011
      %v2054 = vadd.f32 %v1797, %v2014
      %v2055 = vadd.f32 %v1798, %v2019
      %v2056 = vadd.f32 %v1799, %v2022
      %v2058 = vshrl.u32 %v767, 16
      %v2060 = vshll.u32 %v767, 16
      %v2062 = vrot.slane %v2060, 1
      %v2063 = vor.u32 %v2058, %v2062
      %v2065 = vshll.u32 %v785, 16
      %v2067 = vrot.slane %v2065, 1
      %v2068 = vsel %vm803, %v2063, %v2067
      %v2070 = vld [vmem:[%s238 + $0x100] sm:$0xf]
      %v2071 = vld [vmem:[%s238 + $0x104] sm:$0xf]
      %v2072 = vld [vmem:[%s238 + $0x108] sm:$0xf]
      %v2073 = vld [vmem:[%s238 + $0x10c] sm:$0xf]
      %v2074 = vld [vmem:[%s238 + $0x110] sm:$0xf]
      %v2075 = vld [vmem:[%s238 + $0x114] sm:$0xf]
      %v2076 = vld [vmem:[%s238 + $0x118] sm:$0xf]
      %v2077 = vld [vmem:[%s238 + $0x11c] sm:$0xf]
      %v2078 = vld [vmem:[%s238 + $0x120] sm:$0xf]
      %v2079 = vld [vmem:[%s238 + $0x124] sm:$0xf]
      %v2080 = vld [vmem:[%s238 + $0x128] sm:$0xf]
      %v2081 = vld [vmem:[%s238 + $0x12c] sm:$0xf]
      %v2082 = vld [vmem:[%s238 + $0x130] sm:$0xf]
      %v2083 = vld [vmem:[%s238 + $0x134] sm:$0xf]
      %v2084 = vld [vmem:[%s238 + $0x138] sm:$0xf]
      %v2085 = vld [vmem:[%s238 + $0x13c] sm:$0xf]
      %v2102 = vunpack.c.l.b16 %v2070
      %v2103 = vunpack.c.l.b16 %v2071
      %v2104 = vunpack.c.l.b16 %v2072
      %v2105 = vunpack.c.l.b16 %v2073
      %v2106 = vunpack.c.l.b16 %v2074
      %v2107 = vunpack.c.l.b16 %v2075
      %v2108 = vunpack.c.l.b16 %v2076
      %v2109 = vunpack.c.l.b16 %v2077
      %v2110 = vunpack.c.l.b16 %v2078
      %v2111 = vunpack.c.l.b16 %v2079
      %v2112 = vunpack.c.l.b16 %v2080
      %v2113 = vunpack.c.l.b16 %v2081
      %v2114 = vunpack.c.l.b16 %v2082
      %v2115 = vunpack.c.l.b16 %v2083
      %v2116 = vunpack.c.l.b16 %v2084
      %v2117 = vunpack.c.l.b16 %v2085
      %v2118 = vpack.c.b16 %v2103, %v2102
      %v2119 = vpack.c.b16 %v2105, %v2104
      %v2120 = vpack.c.b16 %v2107, %v2106
      %v2121 = vpack.c.b16 %v2109, %v2108
      %v2122 = vpack.c.b16 %v2111, %v2110
      %v2123 = vpack.c.b16 %v2113, %v2112
      %v2124 = vpack.c.b16 %v2115, %v2114
      %v2125 = vpack.c.b16 %v2117, %v2116
      %2134 = vmatprep.subr.bf16.mxu0 0
      %2135 = vmatpush1.bf16.msra.mxu0 %v2118
      %2136 = vmatprep.subr.bf16.mxu0 0
      %2137 = vmatpush1.bf16.msra.mxu0 %v2119
      %2138 = vmatprep.subr.bf16.mxu0 0
      %2139 = vmatpush1.bf16.msra.mxu0 %v2120
      %2140 = vmatprep.subr.bf16.mxu0 0
      %2141 = vmatpush1.bf16.msra.mxu0 %v2121
      %2142 = vmatprep.subr.bf16.mxu0 0
      %2143 = vmatpush1.bf16.msra.mxu0 %v2122
      %2144 = vmatprep.subr.bf16.mxu0 0
      %2145 = vmatpush1.bf16.msra.mxu0 %v2123
      %2146 = vmatprep.subr.bf16.mxu0 0
      %2147 = vmatpush1.bf16.msra.mxu0 %v2124
      %2148 = vmatprep.subr.bf16.mxu0 0
      %2149 = vmatpush1.bf16.msra.mxu0 %v2125
      %2150 = vmatprep.subr.bf16.mxu0 0
      %2151 = vmatpush1.bf16.msra.mxu0 0
      %2152 = vmatprep.subr.bf16.mxu0 0
      %2153 = vmatpush1.bf16.msra.mxu0 0
      %2154 = vmatprep.subr.bf16.mxu0 0
      %2155 = vmatpush1.bf16.msra.mxu0 0
      %2156 = vmatprep.subr.bf16.mxu0 0
      %2157 = vmatpush1.bf16.msra.mxu0 0
      %2158 = vmatprep.subr.bf16.mxu0 0
      %2159 = vmatpush1.bf16.msra.mxu0 0
      %2160 = vmatprep.subr.bf16.mxu0 0
      %2161 = vmatpush1.bf16.msra.mxu0 0
      %2162 = vmatprep.subr.bf16.mxu0 0
      %2163 = vmatpush1.bf16.msra.mxu0 0
      %2164 = vmatprep.subr.bf16.mxu0 0
      %2165 = vmatpush1.bf16.msra.mxu0 0
      %2166 = vmatprep.mubr.bf16.mxu0 0
      %2167 = vmatmul.mubr.bf16.gmra.mrb[0].mxu0 %v827
      %v2168 = vpop.f32.mrb[0].mxu0
      %v2169 = vadd.f32 0.0, %v2168
      %v2170 = vpop.f32.mrb[0].mxu0
      %v2171 = vpop.f32.mrb[0].mxu0
      %v2172 = vadd.f32 0.0, %v2171
      %v2173 = vpop.f32.mrb[0].mxu0
      %2174 = vmatprep.mubr.bf16.mxu0 0
      %2175 = vmatmul.mubr.bf16.gmra.mrb[0].mxu0 %v839
      %v2176 = vpop.f32.mrb[0].mxu0
      %v2177 = vadd.f32 0.0, %v2176
      %v2178 = vpop.f32.mrb[0].mxu0
      %v2179 = vpop.f32.mrb[0].mxu0
      %v2180 = vadd.f32 0.0, %v2179
      %v2181 = vpop.f32.mrb[0].mxu0
      %2182 = vmatprep.mubr.bf16.mxu0 0
      %2183 = vmatmul.mubr.bf16.gmra.mrb[0].mxu0 %v851
      %v2184 = vpop.f32.mrb[0].mxu0
      %v2185 = vadd.f32 0.0, %v2184
      %v2186 = vpop.f32.mrb[0].mxu0
      %v2187 = vpop.f32.mrb[0].mxu0
      %v2188 = vadd.f32 0.0, %v2187
      %v2189 = vpop.f32.mrb[0].mxu0
      %2190 = vmatprep.mubr.bf16.mxu0 0
      %2191 = vmatmul.mubr.bf16.gmra.mrb[0].mxu0 %v863
      %v2192 = vpop.f32.mrb[0].mxu0
      %v2193 = vadd.f32 0.0, %v2192
      %v2194 = vpop.f32.mrb[0].mxu0
      %v2195 = vpop.f32.mrb[0].mxu0
      %v2196 = vadd.f32 0.0, %v2195
      %v2197 = vpop.f32.mrb[0].mxu0
      %2198 = vmatprep.mubr.bf16.mxu0 0
      %2199 = vmatmul.mubr.bf16.gmra.mrb[0].mxu0 %v875
      %v2200 = vpop.f32.mrb[0].mxu0
      %v2201 = vadd.f32 0.0, %v2200
      %v2202 = vpop.f32.mrb[0].mxu0
      %v2203 = vpop.f32.mrb[0].mxu0
      %v2204 = vadd.f32 0.0, %v2203
      %v2205 = vpop.f32.mrb[0].mxu0
      %2206 = vmatprep.mubr.bf16.mxu0 0
      %2207 = vmatmul.mubr.bf16.gmra.mrb[0].mxu0 %v887
      %v2208 = vpop.f32.mrb[0].mxu0
      %v2209 = vadd.f32 0.0, %v2208
      %v2210 = vpop.f32.mrb[0].mxu0
      %v2211 = vpop.f32.mrb[0].mxu0
      %v2212 = vadd.f32 0.0, %v2211
      %v2213 = vpop.f32.mrb[0].mxu0
      %2214 = vmatprep.mubr.bf16.mxu0 0
      %2215 = vmatmul.mubr.bf16.gmra.mrb[0].mxu0 %v899
      %v2216 = vpop.f32.mrb[0].mxu0
      %v2217 = vadd.f32 0.0, %v2216
      %v2218 = vpop.f32.mrb[0].mxu0
      %v2219 = vpop.f32.mrb[0].mxu0
      %v2220 = vadd.f32 0.0, %v2219
      %v2221 = vpop.f32.mrb[0].mxu0
      %2222 = vmatprep.mubr.bf16.mxu0 0
      %2223 = vmatmul.mubr.bf16.gmra.mrb[0].mxu0 %v911
      %v2224 = vpop.f32.mrb[0].mxu0
      %v2225 = vadd.f32 0.0, %v2224
      %v2226 = vpop.f32.mrb[0].mxu0
      %v2227 = vpop.f32.mrb[0].mxu0
      %v2228 = vadd.f32 0.0, %v2227
      %v2229 = vpop.f32.mrb[0].mxu0
      %2230 = vmatprep.mubr.bf16.mxu0 0
      %2231 = vmatmul.mubr.bf16.gmra.mrb[0].mxu0 %v923
      %v2232 = vpop.f32.mrb[0].mxu0
      %v2233 = vadd.f32 0.0, %v2232
      %v2234 = vpop.f32.mrb[0].mxu0
      %v2235 = vpop.f32.mrb[0].mxu0
      %v2236 = vadd.f32 0.0, %v2235
      %v2237 = vpop.f32.mrb[0].mxu0
      %2238 = vmatprep.mubr.bf16.mxu0 0
      %2239 = vmatmul.mubr.bf16.gmra.mrb[0].mxu0 %v935
      %v2240 = vpop.f32.mrb[0].mxu0
      %v2241 = vadd.f32 0.0, %v2240
      %v2242 = vpop.f32.mrb[0].mxu0
      %v2243 = vpop.f32.mrb[0].mxu0
      %v2244 = vadd.f32 0.0, %v2243
      %v2245 = vpop.f32.mrb[0].mxu0
      %2246 = vmatprep.mubr.bf16.mxu0 0
      %2247 = vmatmul.mubr.bf16.gmra.mrb[0].mxu0 %v947
      %v2248 = vpop.f32.mrb[0].mxu0
      %v2249 = vadd.f32 0.0, %v2248
      %v2250 = vpop.f32.mrb[0].mxu0
      %v2251 = vpop.f32.mrb[0].mxu0
      %v2252 = vadd.f32 0.0, %v2251
      %v2253 = vpop.f32.mrb[0].mxu0
      %2254 = vmatprep.mubr.bf16.mxu0 0
      %2255 = vmatmul.mubr.bf16.gmra.mrb[0].mxu0 %v959
      %v2256 = vpop.f32.mrb[0].mxu0
      %v2257 = vadd.f32 0.0, %v2256
      %v2258 = vpop.f32.mrb[0].mxu0
      %v2259 = vpop.f32.mrb[0].mxu0
      %v2260 = vadd.f32 0.0, %v2259
      %v2261 = vpop.f32.mrb[0].mxu0
      %2262 = vmatprep.mubr.bf16.mxu0 0
      %2263 = vmatmul.mubr.bf16.gmra.mrb[0].mxu0 %v971
      %v2264 = vpop.f32.mrb[0].mxu0
      %v2265 = vadd.f32 0.0, %v2264
      %v2266 = vpop.f32.mrb[0].mxu0
      %v2267 = vpop.f32.mrb[0].mxu0
      %v2268 = vadd.f32 0.0, %v2267
      %v2269 = vpop.f32.mrb[0].mxu0
      %2270 = vmatprep.mubr.bf16.mxu0 0
      %2271 = vmatmul.mubr.bf16.gmra.mrb[0].mxu0 %v983
      %v2272 = vpop.f32.mrb[0].mxu0
      %v2273 = vadd.f32 0.0, %v2272
      %v2274 = vpop.f32.mrb[0].mxu0
      %v2275 = vpop.f32.mrb[0].mxu0
      %v2276 = vadd.f32 0.0, %v2275
      %v2277 = vpop.f32.mrb[0].mxu0
      %2278 = vmatprep.mubr.bf16.mxu0 0
      %2279 = vmatmul.mubr.bf16.gmra.mrb[0].mxu0 %v995
      %v2280 = vpop.f32.mrb[0].mxu0
      %v2281 = vadd.f32 0.0, %v2280
      %v2282 = vpop.f32.mrb[0].mxu0
      %v2283 = vpop.f32.mrb[0].mxu0
      %v2284 = vadd.f32 0.0, %v2283
      %v2285 = vpop.f32.mrb[0].mxu0
      %2286 = vmatprep.mubr.bf16.mxu0 0
      %2287 = vmatmul.mubr.bf16.gmra.mrb[0].mxu0 %v2068
      %v2288 = vpop.f32.mrb[0].mxu0
      %v2289 = vadd.f32 0.0, %v2288
      %v2290 = vpop.f32.mrb[0].mxu0
      %v2291 = vpop.f32.mrb[0].mxu0
      %v2292 = vadd.f32 0.0, %v2291
      %v2293 = vpop.f32.mrb[0].mxu0
      %2294 = vdwg.mxu0
      %v2295 = vadd.f32 %v2025, %v2169
      %v2296 = vadd.f32 %v2026, %v2172
      %v2297 = vadd.f32 %v2027, %v2177
      %v2298 = vadd.f32 %v2028, %v2180
      %v2299 = vadd.f32 %v2029, %v2185
      %v2300 = vadd.f32 %v2030, %v2188
      %v2301 = vadd.f32 %v2031, %v2193
      %v2302 = vadd.f32 %v2032, %v2196
      %v2303 = vadd.f32 %v2033, %v2201
      %v2304 = vadd.f32 %v2034, %v2204
      %v2305 = vadd.f32 %v2035, %v2209
      %v2306 = vadd.f32 %v2036, %v2212
      %v2307 = vadd.f32 %v2037, %v2217
      %v2308 = vadd.f32 %v2038, %v2220
      %v2309 = vadd.f32 %v2039, %v2225
      %v2310 = vadd.f32 %v2040, %v2228
      %v2311 = vadd.f32 %v2041, %v2233
      %v2312 = vadd.f32 %v2042, %v2236
      %v2313 = vadd.f32 %v2043, %v2241
      %v2314 = vadd.f32 %v2044, %v2244
      %v2315 = vadd.f32 %v2045, %v2249
      %v2316 = vadd.f32 %v2046, %v2252
      %v2317 = vadd.f32 %v2047, %v2257
      %v2318 = vadd.f32 %v2048, %v2260
      %v2319 = vadd.f32 %v2049, %v2265
      %v2320 = vadd.f32 %v2050, %v2268
      %v2321 = vadd.f32 %v2051, %v2273
      %v2322 = vadd.f32 %v2052, %v2276
      %v2323 = vadd.f32 %v2053, %v2281
      %v2324 = vadd.f32 %v2054, %v2284
      %v2325 = vadd.f32 %v2055, %v2289
      %v2326 = vadd.f32 %v2056, %v2292
      %v2329 = vrot.slane %v767, 1
      %v2330 = vrot.slane %v785, 1
      %v2331 = vsel %vm1478, %v2329, %v2330
      %v2333 = vld [vmem:[%s238 + $0x140] sm:$0xf]
      %v2334 = vld [vmem:[%s238 + $0x144] sm:$0xf]
      %v2335 = vld [vmem:[%s238 + $0x148] sm:$0xf]
      %v2336 = vld [vmem:[%s238 + $0x14c] sm:$0xf]
      %v2337 = vld [vmem:[%s238 + $0x150] sm:$0xf]
      %v2338 = vld [vmem:[%s238 + $0x154] sm:$0xf]
      %v2339 = vld [vmem:[%s238 + $0x158] sm:$0xf]
      %v2340 = vld [vmem:[%s238 + $0x15c] sm:$0xf]
      %v2341 = vld [vmem:[%s238 + $0x160] sm:$0xf]
      %v2342 = vld [vmem:[%s238 + $0x164] sm:$0xf]
      %v2343 = vld [vmem:[%s238 + $0x168] sm:$0xf]
      %v2344 = vld [vmem:[%s238 + $0x16c] sm:$0xf]
      %v2345 = vld [vmem:[%s238 + $0x170] sm:$0xf]
      %v2346 = vld [vmem:[%s238 + $0x174] sm:$0xf]
      %v2347 = vld [vmem:[%s238 + $0x178] sm:$0xf]
      %v2348 = vld [vmem:[%s238 + $0x17c] sm:$0xf]
      %v2365 = vunpack.c.l.b16 %v2333
      %v2366 = vunpack.c.l.b16 %v2334
      %v2367 = vunpack.c.l.b16 %v2335
      %v2368 = vunpack.c.l.b16 %v2336
      %v2369 = vunpack.c.l.b16 %v2337
      %v2370 = vunpack.c.l.b16 %v2338
      %v2371 = vunpack.c.l.b16 %v2339
      %v2372 = vunpack.c.l.b16 %v2340
      %v2373 = vunpack.c.l.b16 %v2341
      %v2374 = vunpack.c.l.b16 %v2342
      %v2375 = vunpack.c.l.b16 %v2343
      %v2376 = vunpack.c.l.b16 %v2344
      %v2377 = vunpack.c.l.b16 %v2345
      %v2378 = vunpack.c.l.b16 %v2346
      %v2379 = vunpack.c.l.b16 %v2347
      %v2380 = vunpack.c.l.b16 %v2348
      %v2381 = vpack.c.b16 %v2366, %v2365
      %v2382 = vpack.c.b16 %v2368, %v2367
      %v2383 = vpack.c.b16 %v2370, %v2369
      %v2384 = vpack.c.b16 %v2372, %v2371
      %v2385 = vpack.c.b16 %v2374, %v2373
      %v2386 = vpack.c.b16 %v2376, %v2375
      %v2387 = vpack.c.b16 %v2378, %v2377
      %v2388 = vpack.c.b16 %v2380, %v2379
      %2397 = vmatprep.subr.bf16.mxu0 0
      %2398 = vmatpush1.bf16.msra.mxu0 %v2381
      %2399 = vmatprep.subr.bf16.mxu0 0
      %2400 = vmatpush1.bf16.msra.mxu0 %v2382
      %2401 = vmatprep.subr.bf16.mxu0 0
      %2402 = vmatpush1.bf16.msra.mxu0 %v2383
      %2403 = vmatprep.subr.bf16.mxu0 0
      %2404 = vmatpush1.bf16.msra.mxu0 %v2384
      %2405 = vmatprep.subr.bf16.mxu0 0
      %2406 = vmatpush1.bf16.msra.mxu0 %v2385
      %2407 = vmatprep.subr.bf16.mxu0 0
      %2408 = vmatpush1.bf16.msra.mxu0 %v2386
      %2409 = vmatprep.subr.bf16.mxu0 0
      %2410 = vmatpush1.bf16.msra.mxu0 %v2387
      %2411 = vmatprep.subr.bf16.mxu0 0
      %2412 = vmatpush1.bf16.msra.mxu0 %v2388
      %2413 = vmatprep.subr.bf16.mxu0 0
      %2414 = vmatpush1.bf16.msra.mxu0 0
      %2415 = vmatprep.subr.bf16.mxu0 0
      %2416 = vmatpush1.bf16.msra.mxu0 0
      %2417 = vmatprep.subr.bf16.mxu0 0
      %2418 = vmatpush1.bf16.msra.mxu0 0
      %2419 = vmatprep.subr.bf16.mxu0 0
      %2420 = vmatpush1.bf16.msra.mxu0 0
      %2421 = vmatprep.subr.bf16.mxu0 0
      %2422 = vmatpush1.bf16.msra.mxu0 0
      %2423 = vmatprep.subr.bf16.mxu0 0
      %2424 = vmatpush1.bf16.msra.mxu0 0
      %2425 = vmatprep.subr.bf16.mxu0 0
      %2426 = vmatpush1.bf16.msra.mxu0 0
      %2427 = vmatprep.subr.bf16.mxu0 0
      %2428 = vmatpush1.bf16.msra.mxu0 0
      %2429 = vmatprep.mubr.bf16.mxu0 0
      %2430 = vmatmul.mubr.bf16.gmra.mrb[0].mxu0 %v1484
      %v2431 = vpop.f32.mrb[0].mxu0
      %v2432 = vadd.f32 0.0, %v2431
      %v2433 = vpop.f32.mrb[0].mxu0
      %v2434 = vpop.f32.mrb[0].mxu0
      %v2435 = vadd.f32 0.0, %v2434
      %v2436 = vpop.f32.mrb[0].mxu0
      %2437 = vmatprep.mubr.bf16.mxu0 0
      %2438 = vmatmul.mubr.bf16.gmra.mrb[0].mxu0 %v1487
      %v2439 = vpop.f32.mrb[0].mxu0
      %v2440 = vadd.f32 0.0, %v2439
      %v2441 = vpop.f32.mrb[0].mxu0
      %v2442 = vpop.f32.mrb[0].mxu0
      %v2443 = vadd.f32 0.0, %v2442
      %v2444 = vpop.f32.mrb[0].mxu0
      %2445 = vmatprep.mubr.bf16.mxu0 0
      %2446 = vmatmul.mubr.bf16.gmra.mrb[0].mxu0 %v1490
      %v2447 = vpop.f32.mrb[0].mxu0
      %v2448 = vadd.f32 0.0, %v2447
      %v2449 = vpop.f32.mrb[0].mxu0
      %v2450 = vpop.f32.mrb[0].mxu0
      %v2451 = vadd.f32 0.0, %v2450
      %v2452 = vpop.f32.mrb[0].mxu0
      %2453 = vmatprep.mubr.bf16.mxu0 0
      %2454 = vmatmul.mubr.bf16.gmra.mrb[0].mxu0 %v1493
      %v2455 = vpop.f32.mrb[0].mxu0
      %v2456 = vadd.f32 0.0, %v2455
      %v2457 = vpop.f32.mrb[0].mxu0
      %v2458 = vpop.f32.mrb[0].mxu0
      %v2459 = vadd.f32 0.0, %v2458
      %v2460 = vpop.f32.mrb[0].mxu0
      %2461 = vmatprep.mubr.bf16.mxu0 0
      %2462 = vmatmul.mubr.bf16.gmra.mrb[0].mxu0 %v1496
      %v2463 = vpop.f32.mrb[0].mxu0
      %v2464 = vadd.f32 0.0, %v2463
      %v2465 = vpop.f32.mrb[0].mxu0
      %v2466 = vpop.f32.mrb[0].mxu0
      %v2467 = vadd.f32 0.0, %v2466
      %v2468 = vpop.f32.mrb[0].mxu0
      %2469 = vmatprep.mubr.bf16.mxu0 0
      %2470 = vmatmul.mubr.bf16.gmra.mrb[0].mxu0 %v1499
      %v2471 = vpop.f32.mrb[0].mxu0
      %v2472 = vadd.f32 0.0, %v2471
      %v2473 = vpop.f32.mrb[0].mxu0
      %v2474 = vpop.f32.mrb[0].mxu0
      %v2475 = vadd.f32 0.0, %v2474
      %v2476 = vpop.f32.mrb[0].mxu0
      %2477 = vmatprep.mubr.bf16.mxu0 0
      %2478 = vmatmul.mubr.bf16.gmra.mrb[0].mxu0 %v1502
      %v2479 = vpop.f32.mrb[0].mxu0
      %v2480 = vadd.f32 0.0, %v2479
      %v2481 = vpop.f32.mrb[0].mxu0
      %v2482 = vpop.f32.mrb[0].mxu0
      %v2483 = vadd.f32 0.0, %v2482
      %v2484 = vpop.f32.mrb[0].mxu0
      %2485 = vmatprep.mubr.bf16.mxu0 0
      %2486 = vmatmul.mubr.bf16.gmra.mrb[0].mxu0 %v1505
      %v2487 = vpop.f32.mrb[0].mxu0
      %v2488 = vadd.f32 0.0, %v2487
      %v2489 = vpop.f32.mrb[0].mxu0
      %v2490 = vpop.f32.mrb[0].mxu0
      %v2491 = vadd.f32 0.0, %v2490
      %v2492 = vpop.f32.mrb[0].mxu0
      %2493 = vmatprep.mubr.bf16.mxu0 0
      %2494 = vmatmul.mubr.bf16.gmra.mrb[0].mxu0 %v1508
      %v2495 = vpop.f32.mrb[0].mxu0
      %v2496 = vadd.f32 0.0, %v2495
      %v2497 = vpop.f32.mrb[0].mxu0
      %v2498 = vpop.f32.mrb[0].mxu0
      %v2499 = vadd.f32 0.0, %v2498
      %v2500 = vpop.f32.mrb[0].mxu0
      %2501 = vmatprep.mubr.bf16.mxu0 0
      %2502 = vmatmul.mubr.bf16.gmra.mrb[0].mxu0 %v1511
      %v2503 = vpop.f32.mrb[0].mxu0
      %v2504 = vadd.f32 0.0, %v2503
      %v2505 = vpop.f32.mrb[0].mxu0
      %v2506 = vpop.f32.mrb[0].mxu0
      %v2507 = vadd.f32 0.0, %v2506
      %v2508 = vpop.f32.mrb[0].mxu0
      %2509 = vmatprep.mubr.bf16.mxu0 0
      %2510 = vmatmul.mubr.bf16.gmra.mrb[0].mxu0 %v1514
      %v2511 = vpop.f32.mrb[0].mxu0
      %v2512 = vadd.f32 0.0, %v2511
      %v2513 = vpop.f32.mrb[0].mxu0
      %v2514 = vpop.f32.mrb[0].mxu0
      %v2515 = vadd.f32 0.0, %v2514
      %v2516 = vpop.f32.mrb[0].mxu0
      %2517 = vmatprep.mubr.bf16.mxu0 0
      %2518 = vmatmul.mubr.bf16.gmra.mrb[0].mxu0 %v1517
      %v2519 = vpop.f32.mrb[0].mxu0
      %v2520 = vadd.f32 0.0, %v2519
      %v2521 = vpop.f32.mrb[0].mxu0
      %v2522 = vpop.f32.mrb[0].mxu0
      %v2523 = vadd.f32 0.0, %v2522
      %v2524 = vpop.f32.mrb[0].mxu0
      %2525 = vmatprep.mubr.bf16.mxu0 0
      %2526 = vmatmul.mubr.bf16.gmra.mrb[0].mxu0 %v1520
      %v2527 = vpop.f32.mrb[0].mxu0
      %v2528 = vadd.f32 0.0, %v2527
      %v2529 = vpop.f32.mrb[0].mxu0
      %v2530 = vpop.f32.mrb[0].mxu0
      %v2531 = vadd.f32 0.0, %v2530
      %v2532 = vpop.f32.mrb[0].mxu0
      %2533 = vmatprep.mubr.bf16.mxu0 0
      %2534 = vmatmul.mubr.bf16.gmra.mrb[0].mxu0 %v1523
      %v2535 = vpop.f32.mrb[0].mxu0
      %v2536 = vadd.f32 0.0, %v2535
      %v2537 = vpop.f32.mrb[0].mxu0
      %v2538 = vpop.f32.mrb[0].mxu0
      %v2539 = vadd.f32 0.0, %v2538
      %v2540 = vpop.f32.mrb[0].mxu0
      %2541 = vmatprep.mubr.bf16.mxu0 0
      %2542 = vmatmul.mubr.bf16.gmra.mrb[0].mxu0 %v1526
      %v2543 = vpop.f32.mrb[0].mxu0
      %v2544 = vadd.f32 0.0, %v2543
      %v2545 = vpop.f32.mrb[0].mxu0
      %v2546 = vpop.f32.mrb[0].mxu0
      %v2547 = vadd.f32 0.0, %v2546
      %v2548 = vpop.f32.mrb[0].mxu0
      %2549 = vmatprep.mubr.bf16.mxu0 0
      %2550 = vmatmul.mubr.bf16.gmra.mrb[0].mxu0 %v2331
      %v2551 = vpop.f32.mrb[0].mxu0
      %v2552 = vadd.f32 0.0, %v2551
      %v2553 = vpop.f32.mrb[0].mxu0
      %v2554 = vpop.f32.mrb[0].mxu0
      %v2555 = vadd.f32 0.0, %v2554
      %v2556 = vpop.f32.mrb[0].mxu0
      %2557 = vdwg.mxu0
      %v2558 = vadd.f32 %v2295, %v2432
      %v2559 = vadd.f32 %v2296, %v2435
      %v2560 = vadd.f32 %v2297, %v2440
      %v2561 = vadd.f32 %v2298, %v2443
      %v2562 = vadd.f32 %v2299, %v2448
      %v2563 = vadd.f32 %v2300, %v2451
      %v2564 = vadd.f32 %v2301, %v2456
      %v2565 = vadd.f32 %v2302, %v2459
      %v2566 = vadd.f32 %v2303, %v2464
      %v2567 = vadd.f32 %v2304, %v2467
      %v2568 = vadd.f32 %v2305, %v2472
      %v2569 = vadd.f32 %v2306, %v2475
      %v2570 = vadd.f32 %v2307, %v2480
      %v2571 = vadd.f32 %v2308, %v2483
      %v2572 = vadd.f32 %v2309, %v2488
      %v2573 = vadd.f32 %v2310, %v2491
      %v2574 = vadd.f32 %v2311, %v2496
      %v2575 = vadd.f32 %v2312, %v2499
      %v2576 = vadd.f32 %v2313, %v2504
      %v2577 = vadd.f32 %v2314, %v2507
      %v2578 = vadd.f32 %v2315, %v2512
      %v2579 = vadd.f32 %v2316, %v2515
      %v2580 = vadd.f32 %v2317, %v2520
      %v2581 = vadd.f32 %v2318, %v2523
      %v2582 = vadd.f32 %v2319, %v2528
      %v2583 = vadd.f32 %v2320, %v2531
      %v2584 = vadd.f32 %v2321, %v2536
      %v2585 = vadd.f32 %v2322, %v2539
      %v2586 = vadd.f32 %v2323, %v2544
      %v2587 = vadd.f32 %v2324, %v2547
      %v2588 = vadd.f32 %v2325, %v2552
      %v2589 = vadd.f32 %v2326, %v2555
      %v2590 = vld [vmem:[%s238 + $0x180] sm:$0xf]
      %v2591 = vld [vmem:[%s238 + $0x184] sm:$0xf]
      %v2592 = vld [vmem:[%s238 + $0x188] sm:$0xf]
      %v2593 = vld [vmem:[%s238 + $0x18c] sm:$0xf]
      %v2594 = vld [vmem:[%s238 + $0x190] sm:$0xf]
      %v2595 = vld [vmem:[%s238 + $0x194] sm:$0xf]
      %v2596 = vld [vmem:[%s238 + $0x198] sm:$0xf]
      %v2597 = vld [vmem:[%s238 + $0x19c] sm:$0xf]
      %v2598 = vld [vmem:[%s238 + $0x1a0] sm:$0xf]
      %v2599 = vld [vmem:[%s238 + $0x1a4] sm:$0xf]
      %v2600 = vld [vmem:[%s238 + $0x1a8] sm:$0xf]
      %v2601 = vld [vmem:[%s238 + $0x1ac] sm:$0xf]
      %v2602 = vld [vmem:[%s238 + $0x1b0] sm:$0xf]
      %v2603 = vld [vmem:[%s238 + $0x1b4] sm:$0xf]
      %v2604 = vld [vmem:[%s238 + $0x1b8] sm:$0xf]
      %v2605 = vld [vmem:[%s238 + $0x1bc] sm:$0xf]
      %v2622 = vunpack.c.l.b16 %v2590
      %v2623 = vunpack.c.l.b16 %v2591
      %v2624 = vunpack.c.l.b16 %v2592
      %v2625 = vunpack.c.l.b16 %v2593
      %v2626 = vunpack.c.l.b16 %v2594
      %v2627 = vunpack.c.l.b16 %v2595
      %v2628 = vunpack.c.l.b16 %v2596
      %v2629 = vunpack.c.l.b16 %v2597
      %v2630 = vunpack.c.l.b16 %v2598
      %v2631 = vunpack.c.l.b16 %v2599
      %v2632 = vunpack.c.l.b16 %v2600
      %v2633 = vunpack.c.l.b16 %v2601
      %v2634 = vunpack.c.l.b16 %v2602
      %v2635 = vunpack.c.l.b16 %v2603
      %v2636 = vunpack.c.l.b16 %v2604
      %v2637 = vunpack.c.l.b16 %v2605
      %v2638 = vpack.c.b16 %v2623, %v2622
      %v2639 = vpack.c.b16 %v2625, %v2624
      %v2640 = vpack.c.b16 %v2627, %v2626
      %v2641 = vpack.c.b16 %v2629, %v2628
      %v2642 = vpack.c.b16 %v2631, %v2630
      %v2643 = vpack.c.b16 %v2633, %v2632
      %v2644 = vpack.c.b16 %v2635, %v2634
      %v2645 = vpack.c.b16 %v2637, %v2636
      %2654 = vmatprep.subr.bf16.mxu0 0
      %2655 = vmatpush1.bf16.msra.mxu0 %v2638
      %2656 = vmatprep.subr.bf16.mxu0 0
      %2657 = vmatpush1.bf16.msra.mxu0 %v2639
      %2658 = vmatprep.subr.bf16.mxu0 0
      %2659 = vmatpush1.bf16.msra.mxu0 %v2640
      %2660 = vmatprep.subr.bf16.mxu0 0
      %2661 = vmatpush1.bf16.msra.mxu0 %v2641
      %2662 = vmatprep.subr.bf16.mxu0 0
      %2663 = vmatpush1.bf16.msra.mxu0 %v2642
      %2664 = vmatprep.subr.bf16.mxu0 0
      %2665 = vmatpush1.bf16.msra.mxu0 %v2643
      %2666 = vmatprep.subr.bf16.mxu0 0
      %2667 = vmatpush1.bf16.msra.mxu0 %v2644
      %2668 = vmatprep.subr.bf16.mxu0 0
      %2669 = vmatpush1.bf16.msra.mxu0 %v2645
      %2670 = vmatprep.subr.bf16.mxu0 0
      %2671 = vmatpush1.bf16.msra.mxu0 0
      %2672 = vmatprep.subr.bf16.mxu0 0
      %2673 = vmatpush1.bf16.msra.mxu0 0
      %2674 = vmatprep.subr.bf16.mxu0 0
      %2675 = vmatpush1.bf16.msra.mxu0 0
      %2676 = vmatprep.subr.bf16.mxu0 0
      %2677 = vmatpush1.bf16.msra.mxu0 0
      %2678 = vmatprep.subr.bf16.mxu0 0
      %2679 = vmatpush1.bf16.msra.mxu0 0
      %2680 = vmatprep.subr.bf16.mxu0 0
      %2681 = vmatpush1.bf16.msra.mxu0 0
      %2682 = vmatprep.subr.bf16.mxu0 0
      %2683 = vmatpush1.bf16.msra.mxu0 0
      %2684 = vmatprep.subr.bf16.mxu0 0
      %2685 = vmatpush1.bf16.msra.mxu0 0
      %2686 = vmatprep.mubr.bf16.mxu0 0
      %2687 = vmatmul.mubr.bf16.gmra.mrb[0].mxu0 %v753
      %v2688 = vpop.f32.mrb[0].mxu0
      %v2689 = vadd.f32 0.0, %v2688
      %v2690 = vpop.f32.mrb[0].mxu0
      %v2691 = vpop.f32.mrb[0].mxu0
      %v2692 = vadd.f32 0.0, %v2691
      %v2693 = vpop.f32.mrb[0].mxu0
      %2694 = vmatprep.mubr.bf16.mxu0 0
      %2695 = vmatmul.mubr.bf16.gmra.mrb[0].mxu0 %v754
      %v2696 = vpop.f32.mrb[0].mxu0
      %v2697 = vadd.f32 0.0, %v2696
      %v2698 = vpop.f32.mrb[0].mxu0
      %v2699 = vpop.f32.mrb[0].mxu0
      %v2700 = vadd.f32 0.0, %v2699
      %v2701 = vpop.f32.mrb[0].mxu0
      %2702 = vmatprep.mubr.bf16.mxu0 0
      %2703 = vmatmul.mubr.bf16.gmra.mrb[0].mxu0 %v755
      %v2704 = vpop.f32.mrb[0].mxu0
      %v2705 = vadd.f32 0.0, %v2704
      %v2706 = vpop.f32.mrb[0].mxu0
      %v2707 = vpop.f32.mrb[0].mxu0
      %v2708 = vadd.f32 0.0, %v2707
      %v2709 = vpop.f32.mrb[0].mxu0
      %2710 = vmatprep.mubr.bf16.mxu0 0
      %2711 = vmatmul.mubr.bf16.gmra.mrb[0].mxu0 %v756
      %v2712 = vpop.f32.mrb[0].mxu0
      %v2713 = vadd.f32 0.0, %v2712
      %v2714 = vpop.f32.mrb[0].mxu0
      %v2715 = vpop.f32.mrb[0].mxu0
      %v2716 = vadd.f32 0.0, %v2715
      %v2717 = vpop.f32.mrb[0].mxu0
      %2718 = vmatprep.mubr.bf16.mxu0 0
      %2719 = vmatmul.mubr.bf16.gmra.mrb[0].mxu0 %v757
      %v2720 = vpop.f32.mrb[0].mxu0
      %v2721 = vadd.f32 0.0, %v2720
      %v2722 = vpop.f32.mrb[0].mxu0
      %v2723 = vpop.f32.mrb[0].mxu0
      %v2724 = vadd.f32 0.0, %v2723
      %v2725 = vpop.f32.mrb[0].mxu0
      %2726 = vmatprep.mubr.bf16.mxu0 0
      %2727 = vmatmul.mubr.bf16.gmra.mrb[0].mxu0 %v758
      %v2728 = vpop.f32.mrb[0].mxu0
      %v2729 = vadd.f32 0.0, %v2728
      %v2730 = vpop.f32.mrb[0].mxu0
      %v2731 = vpop.f32.mrb[0].mxu0
      %v2732 = vadd.f32 0.0, %v2731
      %v2733 = vpop.f32.mrb[0].mxu0
      %2734 = vmatprep.mubr.bf16.mxu0 0
      %2735 = vmatmul.mubr.bf16.gmra.mrb[0].mxu0 %v759
      %v2736 = vpop.f32.mrb[0].mxu0
      %v2737 = vadd.f32 0.0, %v2736
      %v2738 = vpop.f32.mrb[0].mxu0
      %v2739 = vpop.f32.mrb[0].mxu0
      %v2740 = vadd.f32 0.0, %v2739
      %v2741 = vpop.f32.mrb[0].mxu0
      %2742 = vmatprep.mubr.bf16.mxu0 0
      %2743 = vmatmul.mubr.bf16.gmra.mrb[0].mxu0 %v760
      %v2744 = vpop.f32.mrb[0].mxu0
      %v2745 = vadd.f32 0.0, %v2744
      %v2746 = vpop.f32.mrb[0].mxu0
      %v2747 = vpop.f32.mrb[0].mxu0
      %v2748 = vadd.f32 0.0, %v2747
      %v2749 = vpop.f32.mrb[0].mxu0
      %2750 = vmatprep.mubr.bf16.mxu0 0
      %2751 = vmatmul.mubr.bf16.gmra.mrb[0].mxu0 %v761
      %v2752 = vpop.f32.mrb[0].mxu0
      %v2753 = vadd.f32 0.0, %v2752
      %v2754 = vpop.f32.mrb[0].mxu0
      %v2755 = vpop.f32.mrb[0].mxu0
      %v2756 = vadd.f32 0.0, %v2755
      %v2757 = vpop.f32.mrb[0].mxu0
      %2758 = vmatprep.mubr.bf16.mxu0 0
      %2759 = vmatmul.mubr.bf16.gmra.mrb[0].mxu0 %v762
      %v2760 = vpop.f32.mrb[0].mxu0
      %v2761 = vadd.f32 0.0, %v2760
      %v2762 = vpop.f32.mrb[0].mxu0
      %v2763 = vpop.f32.mrb[0].mxu0
      %v2764 = vadd.f32 0.0, %v2763
      %v2765 = vpop.f32.mrb[0].mxu0
      %2766 = vmatprep.mubr.bf16.mxu0 0
      %2767 = vmatmul.mubr.bf16.gmra.mrb[0].mxu0 %v763
      %v2768 = vpop.f32.mrb[0].mxu0
      %v2769 = vadd.f32 0.0, %v2768
      %v2770 = vpop.f32.mrb[0].mxu0
      %v2771 = vpop.f32.mrb[0].mxu0
      %v2772 = vadd.f32 0.0, %v2771
      %v2773 = vpop.f32.mrb[0].mxu0
      %2774 = vmatprep.mubr.bf16.mxu0 0
      %2775 = vmatmul.mubr.bf16.gmra.mrb[0].mxu0 %v764
      %v2776 = vpop.f32.mrb[0].mxu0
      %v2777 = vadd.f32 0.0, %v2776
      %v2778 = vpop.f32.mrb[0].mxu0
      %v2779 = vpop.f32.mrb[0].mxu0
      %v2780 = vadd.f32 0.0, %v2779
      %v2781 = vpop.f32.mrb[0].mxu0
      %2782 = vmatprep.mubr.bf16.mxu0 0
      %2783 = vmatmul.mubr.bf16.gmra.mrb[0].mxu0 %v765
      %v2784 = vpop.f32.mrb[0].mxu0
      %v2785 = vadd.f32 0.0, %v2784
      %v2786 = vpop.f32.mrb[0].mxu0
      %v2787 = vpop.f32.mrb[0].mxu0
      %v2788 = vadd.f32 0.0, %v2787
      %v2789 = vpop.f32.mrb[0].mxu0
      %2790 = vmatprep.mubr.bf16.mxu0 0
      %2791 = vmatmul.mubr.bf16.gmra.mrb[0].mxu0 %v766
      %v2792 = vpop.f32.mrb[0].mxu0
      %v2793 = vadd.f32 0.0, %v2792
      %v2794 = vpop.f32.mrb[0].mxu0
      %v2795 = vpop.f32.mrb[0].mxu0
      %v2796 = vadd.f32 0.0, %v2795
      %v2797 = vpop.f32.mrb[0].mxu0
      %2798 = vmatprep.mubr.bf16.mxu0 0
      %2799 = vmatmul.mubr.bf16.gmra.mrb[0].mxu0 %v767
      %v2800 = vpop.f32.mrb[0].mxu0
      %v2801 = vadd.f32 0.0, %v2800
      %v2802 = vpop.f32.mrb[0].mxu0
      %v2803 = vpop.f32.mrb[0].mxu0
      %v2804 = vadd.f32 0.0, %v2803
      %v2805 = vpop.f32.mrb[0].mxu0
      %2806 = vmatprep.mubr.bf16.mxu0 0
      %2807 = vmatmul.mubr.bf16.gmra.mrb[0].mxu0 %v768
      %v2808 = vpop.f32.mrb[0].mxu0
      %v2809 = vadd.f32 0.0, %v2808
      %v2810 = vpop.f32.mrb[0].mxu0
      %v2811 = vpop.f32.mrb[0].mxu0
      %v2812 = vadd.f32 0.0, %v2811
      %v2813 = vpop.f32.mrb[0].mxu0
      %2814 = vdwg.mxu0
      %v2815 = vadd.f32 %v2558, %v2689
      %v2816 = vadd.f32 %v2559, %v2692
      %v2817 = vadd.f32 %v2560, %v2697
      %v2818 = vadd.f32 %v2561, %v2700
      %v2819 = vadd.f32 %v2562, %v2705
      %v2820 = vadd.f32 %v2563, %v2708
      %v2821 = vadd.f32 %v2564, %v2713
      %v2822 = vadd.f32 %v2565, %v2716
      %v2823 = vadd.f32 %v2566, %v2721
      %v2824 = vadd.f32 %v2567, %v2724
      %v2825 = vadd.f32 %v2568, %v2729
      %v2826 = vadd.f32 %v2569, %v2732
      %v2827 = vadd.f32 %v2570, %v2737
      %v2828 = vadd.f32 %v2571, %v2740
      %v2829 = vadd.f32 %v2572, %v2745
      %v2830 = vadd.f32 %v2573, %v2748
      %v2831 = vadd.f32 %v2574, %v2753
      %v2832 = vadd.f32 %v2575, %v2756
      %v2833 = vadd.f32 %v2576, %v2761
      %v2834 = vadd.f32 %v2577, %v2764
      %v2835 = vadd.f32 %v2578, %v2769
      %v2836 = vadd.f32 %v2579, %v2772
      %v2837 = vadd.f32 %v2580, %v2777
      %v2838 = vadd.f32 %v2581, %v2780
      %v2839 = vadd.f32 %v2582, %v2785
      %v2840 = vadd.f32 %v2583, %v2788
      %v2841 = vadd.f32 %v2584, %v2793
      %v2842 = vadd.f32 %v2585, %v2796
      %v2843 = vadd.f32 %v2586, %v2801
      %v2844 = vadd.f32 %v2587, %v2804
      %v2845 = vadd.f32 %v2588, %v2809
      %v2846 = vadd.f32 %v2589, %v2812
      %v2848 = vshrl.u32 %v768, 16
      %v2850 = vshll.u32 %v768, 16
      %v2852 = vrot.slane %v2850, 1
      %v2853 = vor.u32 %v2848, %v2852
      %v2855 = vshll.u32 %v786, 16
      %v2857 = vrot.slane %v2855, 1
      %v2858 = vsel %vm803, %v2853, %v2857
      %v2860 = vld [vmem:[%s238 + $0x1c0] sm:$0xf]
      %v2861 = vld [vmem:[%s238 + $0x1c4] sm:$0xf]
      %v2862 = vld [vmem:[%s238 + $0x1c8] sm:$0xf]
      %v2863 = vld [vmem:[%s238 + $0x1cc] sm:$0xf]
      %v2864 = vld [vmem:[%s238 + $0x1d0] sm:$0xf]
      %v2865 = vld [vmem:[%s238 + $0x1d4] sm:$0xf]
      %v2866 = vld [vmem:[%s238 + $0x1d8] sm:$0xf]
      %v2867 = vld [vmem:[%s238 + $0x1dc] sm:$0xf]
      %v2868 = vld [vmem:[%s238 + $0x1e0] sm:$0xf]
      %v2869 = vld [vmem:[%s238 + $0x1e4] sm:$0xf]
      %v2870 = vld [vmem:[%s238 + $0x1e8] sm:$0xf]
      %v2871 = vld [vmem:[%s238 + $0x1ec] sm:$0xf]
      %v2872 = vld [vmem:[%s238 + $0x1f0] sm:$0xf]
      %v2873 = vld [vmem:[%s238 + $0x1f4] sm:$0xf]
      %v2874 = vld [vmem:[%s238 + $0x1f8] sm:$0xf]
      %v2875 = vld [vmem:[%s238 + $0x1fc] sm:$0xf]
      %v2892 = vunpack.c.l.b16 %v2860
      %v2893 = vunpack.c.l.b16 %v2861
      %v2894 = vunpack.c.l.b16 %v2862
      %v2895 = vunpack.c.l.b16 %v2863
      %v2896 = vunpack.c.l.b16 %v2864
      %v2897 = vunpack.c.l.b16 %v2865
      %v2898 = vunpack.c.l.b16 %v2866
      %v2899 = vunpack.c.l.b16 %v2867
      %v2900 = vunpack.c.l.b16 %v2868
      %v2901 = vunpack.c.l.b16 %v2869
      %v2902 = vunpack.c.l.b16 %v2870
      %v2903 = vunpack.c.l.b16 %v2871
      %v2904 = vunpack.c.l.b16 %v2872
      %v2905 = vunpack.c.l.b16 %v2873
      %v2906 = vunpack.c.l.b16 %v2874
      %v2907 = vunpack.c.l.b16 %v2875
      %v2908 = vpack.c.b16 %v2893, %v2892
      %v2909 = vpack.c.b16 %v2895, %v2894
      %v2910 = vpack.c.b16 %v2897, %v2896
      %v2911 = vpack.c.b16 %v2899, %v2898
      %v2912 = vpack.c.b16 %v2901, %v2900
      %v2913 = vpack.c.b16 %v2903, %v2902
      %v2914 = vpack.c.b16 %v2905, %v2904
      %v2915 = vpack.c.b16 %v2907, %v2906
      %2924 = vmatprep.subr.bf16.mxu0 0
      %2925 = vmatpush1.bf16.msra.mxu0 %v2908
      %2926 = vmatprep.subr.bf16.mxu0 0
      %2927 = vmatpush1.bf16.msra.mxu0 %v2909
      %2928 = vmatprep.subr.bf16.mxu0 0
      %2929 = vmatpush1.bf16.msra.mxu0 %v2910
      %2930 = vmatprep.subr.bf16.mxu0 0
      %2931 = vmatpush1.bf16.msra.mxu0 %v2911
      %2932 = vmatprep.subr.bf16.mxu0 0
      %2933 = vmatpush1.bf16.msra.mxu0 %v2912
      %2934 = vmatprep.subr.bf16.mxu0 0
      %2935 = vmatpush1.bf16.msra.mxu0 %v2913
      %2936 = vmatprep.subr.bf16.mxu0 0
      %2937 = vmatpush1.bf16.msra.mxu0 %v2914
      %2938 = vmatprep.subr.bf16.mxu0 0
      %2939 = vmatpush1.bf16.msra.mxu0 %v2915
      %2940 = vmatprep.subr.bf16.mxu0 0
      %2941 = vmatpush1.bf16.msra.mxu0 0
      %2942 = vmatprep.subr.bf16.mxu0 0
      %2943 = vmatpush1.bf16.msra.mxu0 0
      %2944 = vmatprep.subr.bf16.mxu0 0
      %2945 = vmatpush1.bf16.msra.mxu0 0
      %2946 = vmatprep.subr.bf16.mxu0 0
      %2947 = vmatpush1.bf16.msra.mxu0 0
      %2948 = vmatprep.subr.bf16.mxu0 0
      %2949 = vmatpush1.bf16.msra.mxu0 0
      %2950 = vmatprep.subr.bf16.mxu0 0
      %2951 = vmatpush1.bf16.msra.mxu0 0
      %2952 = vmatprep.subr.bf16.mxu0 0
      %2953 = vmatpush1.bf16.msra.mxu0 0
      %2954 = vmatprep.subr.bf16.mxu0 0
      %2955 = vmatpush1.bf16.msra.mxu0 0
      %2956 = vmatprep.mubr.bf16.mxu0 0
      %2957 = vmatmul.mubr.bf16.gmra.mrb[0].mxu0 %v839
      %v2958 = vpop.f32.mrb[0].mxu0
      %v2959 = vadd.f32 0.0, %v2958
      %v2960 = vpop.f32.mrb[0].mxu0
      %v2961 = vpop.f32.mrb[0].mxu0
      %v2962 = vadd.f32 0.0, %v2961
      %v2963 = vpop.f32.mrb[0].mxu0
      %2964 = vmatprep.mubr.bf16.mxu0 0
      %2965 = vmatmul.mubr.bf16.gmra.mrb[0].mxu0 %v851
      %v2966 = vpop.f32.mrb[0].mxu0
      %v2967 = vadd.f32 0.0, %v2966
      %v2968 = vpop.f32.mrb[0].mxu0
      %v2969 = vpop.f32.mrb[0].mxu0
      %v2970 = vadd.f32 0.0, %v2969
      %v2971 = vpop.f32.mrb[0].mxu0
      %2972 = vmatprep.mubr.bf16.mxu0 0
      %2973 = vmatmul.mubr.bf16.gmra.mrb[0].mxu0 %v863
      %v2974 = vpop.f32.mrb[0].mxu0
      %v2975 = vadd.f32 0.0, %v2974
      %v2976 = vpop.f32.mrb[0].mxu0
      %v2977 = vpop.f32.mrb[0].mxu0
      %v2978 = vadd.f32 0.0, %v2977
      %v2979 = vpop.f32.mrb[0].mxu0
      %2980 = vmatprep.mubr.bf16.mxu0 0
      %2981 = vmatmul.mubr.bf16.gmra.mrb[0].mxu0 %v875
      %v2982 = vpop.f32.mrb[0].mxu0
      %v2983 = vadd.f32 0.0, %v2982
      %v2984 = vpop.f32.mrb[0].mxu0
      %v2985 = vpop.f32.mrb[0].mxu0
      %v2986 = vadd.f32 0.0, %v2985
      %v2987 = vpop.f32.mrb[0].mxu0
      %2988 = vmatprep.mubr.bf16.mxu0 0
      %2989 = vmatmul.mubr.bf16.gmra.mrb[0].mxu0 %v887
      %v2990 = vpop.f32.mrb[0].mxu0
      %v2991 = vadd.f32 0.0, %v2990
      %v2992 = vpop.f32.mrb[0].mxu0
      %v2993 = vpop.f32.mrb[0].mxu0
      %v2994 = vadd.f32 0.0, %v2993
      %v2995 = vpop.f32.mrb[0].mxu0
      %2996 = vmatprep.mubr.bf16.mxu0 0
      %2997 = vmatmul.mubr.bf16.gmra.mrb[0].mxu0 %v899
      %v2998 = vpop.f32.mrb[0].mxu0
      %v2999 = vadd.f32 0.0, %v2998
      %v3000 = vpop.f32.mrb[0].mxu0
      %v3001 = vpop.f32.mrb[0].mxu0
      %v3002 = vadd.f32 0.0, %v3001
      %v3003 = vpop.f32.mrb[0].mxu0
      %3004 = vmatprep.mubr.bf16.mxu0 0
      %3005 = vmatmul.mubr.bf16.gmra.mrb[0].mxu0 %v911
      %v3006 = vpop.f32.mrb[0].mxu0
      %v3007 = vadd.f32 0.0, %v3006
      %v3008 = vpop.f32.mrb[0].mxu0
      %v3009 = vpop.f32.mrb[0].mxu0
      %v3010 = vadd.f32 0.0, %v3009
      %v3011 = vpop.f32.mrb[0].mxu0
      %3012 = vmatprep.mubr.bf16.mxu0 0
      %3013 = vmatmul.mubr.bf16.gmra.mrb[0].mxu0 %v923
      %v3014 = vpop.f32.mrb[0].mxu0
      %v3015 = vadd.f32 0.0, %v3014
      %v3016 = vpop.f32.mrb[0].mxu0
      %v3017 = vpop.f32.mrb[0].mxu0
      %v3018 = vadd.f32 0.0, %v3017
      %v3019 = vpop.f32.mrb[0].mxu0
      %3020 = vmatprep.mubr.bf16.mxu0 0
      %3021 = vmatmul.mubr.bf16.gmra.mrb[0].mxu0 %v935
      %v3022 = vpop.f32.mrb[0].mxu0
      %v3023 = vadd.f32 0.0, %v3022
      %v3024 = vpop.f32.mrb[0].mxu0
      %v3025 = vpop.f32.mrb[0].mxu0
      %v3026 = vadd.f32 0.0, %v3025
      %v3027 = vpop.f32.mrb[0].mxu0
      %3028 = vmatprep.mubr.bf16.mxu0 0
      %3029 = vmatmul.mubr.bf16.gmra.mrb[0].mxu0 %v947
      %v3030 = vpop.f32.mrb[0].mxu0
      %v3031 = vadd.f32 0.0, %v3030
      %v3032 = vpop.f32.mrb[0].mxu0
      %v3033 = vpop.f32.mrb[0].mxu0
      %v3034 = vadd.f32 0.0, %v3033
      %v3035 = vpop.f32.mrb[0].mxu0
      %3036 = vmatprep.mubr.bf16.mxu0 0
      %3037 = vmatmul.mubr.bf16.gmra.mrb[0].mxu0 %v959
      %v3038 = vpop.f32.mrb[0].mxu0
      %v3039 = vadd.f32 0.0, %v3038
      %v3040 = vpop.f32.mrb[0].mxu0
      %v3041 = vpop.f32.mrb[0].mxu0
      %v3042 = vadd.f32 0.0, %v3041
      %v3043 = vpop.f32.mrb[0].mxu0
      %3044 = vmatprep.mubr.bf16.mxu0 0
      %3045 = vmatmul.mubr.bf16.gmra.mrb[0].mxu0 %v971
      %v3046 = vpop.f32.mrb[0].mxu0
      %v3047 = vadd.f32 0.0, %v3046
      %v3048 = vpop.f32.mrb[0].mxu0
      %v3049 = vpop.f32.mrb[0].mxu0
      %v3050 = vadd.f32 0.0, %v3049
      %v3051 = vpop.f32.mrb[0].mxu0
      %3052 = vmatprep.mubr.bf16.mxu0 0
      %3053 = vmatmul.mubr.bf16.gmra.mrb[0].mxu0 %v983
      %v3054 = vpop.f32.mrb[0].mxu0
      %v3055 = vadd.f32 0.0, %v3054
      %v3056 = vpop.f32.mrb[0].mxu0
      %v3057 = vpop.f32.mrb[0].mxu0
      %v3058 = vadd.f32 0.0, %v3057
      %v3059 = vpop.f32.mrb[0].mxu0
      %3060 = vmatprep.mubr.bf16.mxu0 0
      %3061 = vmatmul.mubr.bf16.gmra.mrb[0].mxu0 %v995
      %v3062 = vpop.f32.mrb[0].mxu0
      %v3063 = vadd.f32 0.0, %v3062
      %v3064 = vpop.f32.mrb[0].mxu0
      %v3065 = vpop.f32.mrb[0].mxu0
      %v3066 = vadd.f32 0.0, %v3065
      %v3067 = vpop.f32.mrb[0].mxu0
      %3068 = vmatprep.mubr.bf16.mxu0 0
      %3069 = vmatmul.mubr.bf16.gmra.mrb[0].mxu0 %v2068
      %v3070 = vpop.f32.mrb[0].mxu0
      %v3071 = vadd.f32 0.0, %v3070
      %v3072 = vpop.f32.mrb[0].mxu0
      %v3073 = vpop.f32.mrb[0].mxu0
      %v3074 = vadd.f32 0.0, %v3073
      %v3075 = vpop.f32.mrb[0].mxu0
      %3076 = vmatprep.mubr.bf16.mxu0 0
      %3077 = vmatmul.mubr.bf16.gmra.mrb[0].mxu0 %v2858
      %v3078 = vpop.f32.mrb[0].mxu0
      %v3079 = vadd.f32 0.0, %v3078
      %v3080 = vpop.f32.mrb[0].mxu0
      %v3081 = vpop.f32.mrb[0].mxu0
      %v3082 = vadd.f32 0.0, %v3081
      %v3083 = vpop.f32.mrb[0].mxu0
      %3084 = vdwg.mxu0
      %v3085 = vadd.f32 %v2815, %v2959
      %v3086 = vadd.f32 %v2816, %v2962
      %v3087 = vadd.f32 %v2817, %v2967
      %v3088 = vadd.f32 %v2818, %v2970
      %v3089 = vadd.f32 %v2819, %v2975
      %v3090 = vadd.f32 %v2820, %v2978
      %v3091 = vadd.f32 %v2821, %v2983
      %v3092 = vadd.f32 %v2822, %v2986
      %v3093 = vadd.f32 %v2823, %v2991
      %v3094 = vadd.f32 %v2824, %v2994
      %v3095 = vadd.f32 %v2825, %v2999
      %v3096 = vadd.f32 %v2826, %v3002
      %v3097 = vadd.f32 %v2827, %v3007
      %v3098 = vadd.f32 %v2828, %v3010
      %v3099 = vadd.f32 %v2829, %v3015
      %v3100 = vadd.f32 %v2830, %v3018
      %v3101 = vadd.f32 %v2831, %v3023
      %v3102 = vadd.f32 %v2832, %v3026
      %v3103 = vadd.f32 %v2833, %v3031
      %v3104 = vadd.f32 %v2834, %v3034
      %v3105 = vadd.f32 %v2835, %v3039
      %v3106 = vadd.f32 %v2836, %v3042
      %v3107 = vadd.f32 %v2837, %v3047
      %v3108 = vadd.f32 %v2838, %v3050
      %v3109 = vadd.f32 %v2839, %v3055
      %v3110 = vadd.f32 %v2840, %v3058
      %v3111 = vadd.f32 %v2841, %v3063
      %v3112 = vadd.f32 %v2842, %v3066
      %v3113 = vadd.f32 %v2843, %v3071
      %v3114 = vadd.f32 %v2844, %v3074
      %v3115 = vadd.f32 %v2845, %v3079
      %v3116 = vadd.f32 %v2846, %v3082
      %v3119 = vrot.slane %v768, 1
      %v3120 = vrot.slane %v786, 1
      %v3121 = vsel %vm1478, %v3119, %v3120
      %v3123 = vld [vmem:[%s238 + $0x200] sm:$0xf]
      %v3124 = vld [vmem:[%s238 + $0x204] sm:$0xf]
      %v3125 = vld [vmem:[%s238 + $0x208] sm:$0xf]
      %v3126 = vld [vmem:[%s238 + $0x20c] sm:$0xf]
      %v3127 = vld [vmem:[%s238 + $0x210] sm:$0xf]
      %v3128 = vld [vmem:[%s238 + $0x214] sm:$0xf]
      %v3129 = vld [vmem:[%s238 + $0x218] sm:$0xf]
      %v3130 = vld [vmem:[%s238 + $0x21c] sm:$0xf]
      %v3131 = vld [vmem:[%s238 + $0x220] sm:$0xf]
      %v3132 = vld [vmem:[%s238 + $0x224] sm:$0xf]
      %v3133 = vld [vmem:[%s238 + $0x228] sm:$0xf]
      %v3134 = vld [vmem:[%s238 + $0x22c] sm:$0xf]
      %v3135 = vld [vmem:[%s238 + $0x230] sm:$0xf]
      %v3136 = vld [vmem:[%s238 + $0x234] sm:$0xf]
      %v3137 = vld [vmem:[%s238 + $0x238] sm:$0xf]
      %v3138 = vld [vmem:[%s238 + $0x23c] sm:$0xf]
      %v3155 = vunpack.c.l.b16 %v3123
      %v3156 = vunpack.c.l.b16 %v3124
      %v3157 = vunpack.c.l.b16 %v3125
      %v3158 = vunpack.c.l.b16 %v3126
      %v3159 = vunpack.c.l.b16 %v3127
      %v3160 = vunpack.c.l.b16 %v3128
      %v3161 = vunpack.c.l.b16 %v3129
      %v3162 = vunpack.c.l.b16 %v3130
      %v3163 = vunpack.c.l.b16 %v3131
      %v3164 = vunpack.c.l.b16 %v3132
      %v3165 = vunpack.c.l.b16 %v3133
      %v3166 = vunpack.c.l.b16 %v3134
      %v3167 = vunpack.c.l.b16 %v3135
      %v3168 = vunpack.c.l.b16 %v3136
      %v3169 = vunpack.c.l.b16 %v3137
      %v3170 = vunpack.c.l.b16 %v3138
      %v3171 = vpack.c.b16 %v3156, %v3155
      %v3172 = vpack.c.b16 %v3158, %v3157
      %v3173 = vpack.c.b16 %v3160, %v3159
      %v3174 = vpack.c.b16 %v3162, %v3161
      %v3175 = vpack.c.b16 %v3164, %v3163
      %v3176 = vpack.c.b16 %v3166, %v3165
      %v3177 = vpack.c.b16 %v3168, %v3167
      %v3178 = vpack.c.b16 %v3170, %v3169
      %3187 = vmatprep.subr.bf16.mxu0 0
      %3188 = vmatpush1.bf16.msra.mxu0 %v3171
      %3189 = vmatprep.subr.bf16.mxu0 0
      %3190 = vmatpush1.bf16.msra.mxu0 %v3172
      %3191 = vmatprep.subr.bf16.mxu0 0
      %3192 = vmatpush1.bf16.msra.mxu0 %v3173
      %3193 = vmatprep.subr.bf16.mxu0 0
      %3194 = vmatpush1.bf16.msra.mxu0 %v3174
      %3195 = vmatprep.subr.bf16.mxu0 0
      %3196 = vmatpush1.bf16.msra.mxu0 %v3175
      %3197 = vmatprep.subr.bf16.mxu0 0
      %3198 = vmatpush1.bf16.msra.mxu0 %v3176
      %3199 = vmatprep.subr.bf16.mxu0 0
      %3200 = vmatpush1.bf16.msra.mxu0 %v3177
      %3201 = vmatprep.subr.bf16.mxu0 0
      %3202 = vmatpush1.bf16.msra.mxu0 %v3178
      %3203 = vmatprep.subr.bf16.mxu0 0
      %3204 = vmatpush1.bf16.msra.mxu0 0
      %3205 = vmatprep.subr.bf16.mxu0 0
      %3206 = vmatpush1.bf16.msra.mxu0 0
      %3207 = vmatprep.subr.bf16.mxu0 0
      %3208 = vmatpush1.bf16.msra.mxu0 0
      %3209 = vmatprep.subr.bf16.mxu0 0
      %3210 = vmatpush1.bf16.msra.mxu0 0
      %3211 = vmatprep.subr.bf16.mxu0 0
      %3212 = vmatpush1.bf16.msra.mxu0 0
      %3213 = vmatprep.subr.bf16.mxu0 0
      %3214 = vmatpush1.bf16.msra.mxu0 0
      %3215 = vmatprep.subr.bf16.mxu0 0
      %3216 = vmatpush1.bf16.msra.mxu0 0
      %3217 = vmatprep.subr.bf16.mxu0 0
      %3218 = vmatpush1.bf16.msra.mxu0 0
      %3219 = vmatprep.mubr.bf16.mxu0 0
      %3220 = vmatmul.mubr.bf16.gmra.mrb[0].mxu0 %v1487
      %v3221 = vpop.f32.mrb[0].mxu0
      %v3222 = vadd.f32 0.0, %v3221
      %v3223 = vpop.f32.mrb[0].mxu0
      %v3224 = vpop.f32.mrb[0].mxu0
      %v3225 = vadd.f32 0.0, %v3224
      %v3226 = vpop.f32.mrb[0].mxu0
      %3227 = vmatprep.mubr.bf16.mxu0 0
      %3228 = vmatmul.mubr.bf16.gmra.mrb[0].mxu0 %v1490
      %v3229 = vpop.f32.mrb[0].mxu0
      %v3230 = vadd.f32 0.0, %v3229
      %v3231 = vpop.f32.mrb[0].mxu0
      %v3232 = vpop.f32.mrb[0].mxu0
      %v3233 = vadd.f32 0.0, %v3232
      %v3234 = vpop.f32.mrb[0].mxu0
      %3235 = vmatprep.mubr.bf16.mxu0 0
      %3236 = vmatmul.mubr.bf16.gmra.mrb[0].mxu0 %v1493
      %v3237 = vpop.f32.mrb[0].mxu0
      %v3238 = vadd.f32 0.0, %v3237
      %v3239 = vpop.f32.mrb[0].mxu0
      %v3240 = vpop.f32.mrb[0].mxu0
      %v3241 = vadd.f32 0.0, %v3240
      %v3242 = vpop.f32.mrb[0].mxu0
      %3243 = vmatprep.mubr.bf16.mxu0 0
      %3244 = vmatmul.mubr.bf16.gmra.mrb[0].mxu0 %v1496
      %v3245 = vpop.f32.mrb[0].mxu0
      %v3246 = vadd.f32 0.0, %v3245
      %v3247 = vpop.f32.mrb[0].mxu0
      %v3248 = vpop.f32.mrb[0].mxu0
      %v3249 = vadd.f32 0.0, %v3248
      %v3250 = vpop.f32.mrb[0].mxu0
      %3251 = vmatprep.mubr.bf16.mxu0 0
      %3252 = vmatmul.mubr.bf16.gmra.mrb[0].mxu0 %v1499
      %v3253 = vpop.f32.mrb[0].mxu0
      %v3254 = vadd.f32 0.0, %v3253
      %v3255 = vpop.f32.mrb[0].mxu0
      %v3256 = vpop.f32.mrb[0].mxu0
      %v3257 = vadd.f32 0.0, %v3256
      %v3258 = vpop.f32.mrb[0].mxu0
      %3259 = vmatprep.mubr.bf16.mxu0 0
      %3260 = vmatmul.mubr.bf16.gmra.mrb[0].mxu0 %v1502
      %v3261 = vpop.f32.mrb[0].mxu0
      %v3262 = vadd.f32 0.0, %v3261
      %v3263 = vpop.f32.mrb[0].mxu0
      %v3264 = vpop.f32.mrb[0].mxu0
      %v3265 = vadd.f32 0.0, %v3264
      %v3266 = vpop.f32.mrb[0].mxu0
      %3267 = vmatprep.mubr.bf16.mxu0 0
      %3268 = vmatmul.mubr.bf16.gmra.mrb[0].mxu0 %v1505
      %v3269 = vpop.f32.mrb[0].mxu0
      %v3270 = vadd.f32 0.0, %v3269
      %v3271 = vpop.f32.mrb[0].mxu0
      %v3272 = vpop.f32.mrb[0].mxu0
      %v3273 = vadd.f32 0.0, %v3272
      %v3274 = vpop.f32.mrb[0].mxu0
      %3275 = vmatprep.mubr.bf16.mxu0 0
      %3276 = vmatmul.mubr.bf16.gmra.mrb[0].mxu0 %v1508
      %v3277 = vpop.f32.mrb[0].mxu0
      %v3278 = vadd.f32 0.0, %v3277
      %v3279 = vpop.f32.mrb[0].mxu0
      %v3280 = vpop.f32.mrb[0].mxu0
      %v3281 = vadd.f32 0.0, %v3280
      %v3282 = vpop.f32.mrb[0].mxu0
      %3283 = vmatprep.mubr.bf16.mxu0 0
      %3284 = vmatmul.mubr.bf16.gmra.mrb[0].mxu0 %v1511
      %v3285 = vpop.f32.mrb[0].mxu0
      %v3286 = vadd.f32 0.0, %v3285
      %v3287 = vpop.f32.mrb[0].mxu0
      %v3288 = vpop.f32.mrb[0].mxu0
      %v3289 = vadd.f32 0.0, %v3288
      %v3290 = vpop.f32.mrb[0].mxu0
      %3291 = vmatprep.mubr.bf16.mxu0 0
      %3292 = vmatmul.mubr.bf16.gmra.mrb[0].mxu0 %v1514
      %v3293 = vpop.f32.mrb[0].mxu0
      %v3294 = vadd.f32 0.0, %v3293
      %v3295 = vpop.f32.mrb[0].mxu0
      %v3296 = vpop.f32.mrb[0].mxu0
      %v3297 = vadd.f32 0.0, %v3296
      %v3298 = vpop.f32.mrb[0].mxu0
      %3299 = vmatprep.mubr.bf16.mxu0 0
      %3300 = vmatmul.mubr.bf16.gmra.mrb[0].mxu0 %v1517
      %v3301 = vpop.f32.mrb[0].mxu0
      %v3302 = vadd.f32 0.0, %v3301
      %v3303 = vpop.f32.mrb[0].mxu0
      %v3304 = vpop.f32.mrb[0].mxu0
      %v3305 = vadd.f32 0.0, %v3304
      %v3306 = vpop.f32.mrb[0].mxu0
      %3307 = vmatprep.mubr.bf16.mxu0 0
      %3308 = vmatmul.mubr.bf16.gmra.mrb[0].mxu0 %v1520
      %v3309 = vpop.f32.mrb[0].mxu0
      %v3310 = vadd.f32 0.0, %v3309
      %v3311 = vpop.f32.mrb[0].mxu0
      %v3312 = vpop.f32.mrb[0].mxu0
      %v3313 = vadd.f32 0.0, %v3312
      %v3314 = vpop.f32.mrb[0].mxu0
      %3315 = vmatprep.mubr.bf16.mxu0 0
      %3316 = vmatmul.mubr.bf16.gmra.mrb[0].mxu0 %v1523
      %v3317 = vpop.f32.mrb[0].mxu0
      %v3318 = vadd.f32 0.0, %v3317
      %v3319 = vpop.f32.mrb[0].mxu0
      %v3320 = vpop.f32.mrb[0].mxu0
      %v3321 = vadd.f32 0.0, %v3320
      %v3322 = vpop.f32.mrb[0].mxu0
      %3323 = vmatprep.mubr.bf16.mxu0 0
      %3324 = vmatmul.mubr.bf16.gmra.mrb[0].mxu0 %v1526
      %v3325 = vpop.f32.mrb[0].mxu0
      %v3326 = vadd.f32 0.0, %v3325
      %v3327 = vpop.f32.mrb[0].mxu0
      %v3328 = vpop.f32.mrb[0].mxu0
      %v3329 = vadd.f32 0.0, %v3328
      %v3330 = vpop.f32.mrb[0].mxu0
      %3331 = vmatprep.mubr.bf16.mxu0 0
      %3332 = vmatmul.mubr.bf16.gmra.mrb[0].mxu0 %v2331
      %v3333 = vpop.f32.mrb[0].mxu0
      %v3334 = vadd.f32 0.0, %v3333
      %v3335 = vpop.f32.mrb[0].mxu0
      %v3336 = vpop.f32.mrb[0].mxu0
      %v3337 = vadd.f32 0.0, %v3336
      %v3338 = vpop.f32.mrb[0].mxu0
      %3339 = vmatprep.mubr.bf16.mxu0 0
      %3340 = vmatmul.mubr.bf16.gmra.mrb[0].mxu0 %v3121
      %v3341 = vpop.f32.mrb[0].mxu0
      %v3342 = vadd.f32 0.0, %v3341
      %v3343 = vpop.f32.mrb[0].mxu0
      %v3344 = vpop.f32.mrb[0].mxu0
      %v3345 = vadd.f32 0.0, %v3344
      %v3346 = vpop.f32.mrb[0].mxu0
      %3347 = vdwg.mxu0
      %v3348 = vadd.f32 %v3085, %v3222
      %v3349 = vadd.f32 %v3086, %v3225
      %v3350 = vadd.f32 %v3087, %v3230
      %v3351 = vadd.f32 %v3088, %v3233
      %v3352 = vadd.f32 %v3089, %v3238
      %v3353 = vadd.f32 %v3090, %v3241
      %v3354 = vadd.f32 %v3091, %v3246
      %v3355 = vadd.f32 %v3092, %v3249
      %v3356 = vadd.f32 %v3093, %v3254
      %v3357 = vadd.f32 %v3094, %v3257
      %v3358 = vadd.f32 %v3095, %v3262
      %v3359 = vadd.f32 %v3096, %v3265
      %v3360 = vadd.f32 %v3097, %v3270
      %v3361 = vadd.f32 %v3098, %v3273
      %v3362 = vadd.f32 %v3099, %v3278
      %v3363 = vadd.f32 %v3100, %v3281
      %v3364 = vadd.f32 %v3101, %v3286
      %v3365 = vadd.f32 %v3102, %v3289
      %v3366 = vadd.f32 %v3103, %v3294
      %v3367 = vadd.f32 %v3104, %v3297
      %v3368 = vadd.f32 %v3105, %v3302
      %v3369 = vadd.f32 %v3106, %v3305
      %v3370 = vadd.f32 %v3107, %v3310
      %v3371 = vadd.f32 %v3108, %v3313
      %v3372 = vadd.f32 %v3109, %v3318
      %v3373 = vadd.f32 %v3110, %v3321
      %v3374 = vadd.f32 %v3111, %v3326
      %v3375 = vadd.f32 %v3112, %v3329
      %v3376 = vadd.f32 %v3113, %v3334
      %v3377 = vadd.f32 %v3114, %v3337
      %v3378 = vadd.f32 %v3115, %v3342
      %v3379 = vadd.f32 %v3116, %v3345
      %v3380 = vpack.c.bf16 %v3349, %v3348
      %v3381 = vpack.c.bf16 %v3351, %v3350
      %v3382 = vpack.c.bf16 %v3353, %v3352
      %v3383 = vpack.c.bf16 %v3355, %v3354
      %v3384 = vpack.c.bf16 %v3357, %v3356
      %v3385 = vpack.c.bf16 %v3359, %v3358
      %v3386 = vpack.c.bf16 %v3361, %v3360
      %v3387 = vpack.c.bf16 %v3363, %v3362
      %v3388 = vpack.c.bf16 %v3365, %v3364
      %v3389 = vpack.c.bf16 %v3367, %v3366
      %v3390 = vpack.c.bf16 %v3369, %v3368
      %v3391 = vpack.c.bf16 %v3371, %v3370
      %v3392 = vpack.c.bf16 %v3373, %v3372
      %v3393 = vpack.c.bf16 %v3375, %v3374
      %v3394 = vpack.c.bf16 %v3377, %v3376
      %v3395 = vpack.c.bf16 %v3379, %v3378
      %v3412 = vunpack.c.l.b16 %v3380
      %v3413 = vunpack.c.h.b16 %v3380
      %v3414 = vunpack.c.l.b16 %v3381
      %v3415 = vunpack.c.h.b16 %v3381
      %v3416 = vunpack.c.l.b16 %v3382
      %v3417 = vunpack.c.h.b16 %v3382
      %v3418 = vunpack.c.l.b16 %v3383
      %v3419 = vunpack.c.h.b16 %v3383
      %v3420 = vunpack.c.l.b16 %v3384
      %v3421 = vunpack.c.h.b16 %v3384
      %v3422 = vunpack.c.l.b16 %v3385
      %v3423 = vunpack.c.h.b16 %v3385
      %v3424 = vunpack.c.l.b16 %v3386
      %v3425 = vunpack.c.h.b16 %v3386
      %v3426 = vunpack.c.l.b16 %v3387
      %v3427 = vunpack.c.h.b16 %v3387
      %v3428 = vunpack.c.l.b16 %v3388
      %v3429 = vunpack.c.h.b16 %v3388
      %v3430 = vunpack.c.l.b16 %v3389
      %v3431 = vunpack.c.h.b16 %v3389
      %v3432 = vunpack.c.l.b16 %v3390
      %v3433 = vunpack.c.h.b16 %v3390
      %v3434 = vunpack.c.l.b16 %v3391
      %v3435 = vunpack.c.h.b16 %v3391
      %v3436 = vunpack.c.l.b16 %v3392
      %v3437 = vunpack.c.h.b16 %v3392
      %v3438 = vunpack.c.l.b16 %v3393
      %v3439 = vunpack.c.h.b16 %v3393
      %v3440 = vunpack.c.l.b16 %v3394
      %v3441 = vunpack.c.h.b16 %v3394
      %v3442 = vunpack.c.l.b16 %v3395
      %v3443 = vunpack.c.h.b16 %v3395
      %v3444 = vpack.c.b16 %v3412, %v3412
      %v3445 = vpack.c.b16 %v3413, %v3413
      %v3446 = vpack.c.b16 %v3414, %v3414
      %v3447 = vpack.c.b16 %v3415, %v3415
      %v3448 = vpack.c.b16 %v3416, %v3416
      %v3449 = vpack.c.b16 %v3417, %v3417
      %v3450 = vpack.c.b16 %v3418, %v3418
      %v3451 = vpack.c.b16 %v3419, %v3419
      %v3452 = vpack.c.b16 %v3420, %v3420
      %v3453 = vpack.c.b16 %v3421, %v3421
      %v3454 = vpack.c.b16 %v3422, %v3422
      %v3455 = vpack.c.b16 %v3423, %v3423
      %v3456 = vpack.c.b16 %v3424, %v3424
      %v3457 = vpack.c.b16 %v3425, %v3425
      %v3458 = vpack.c.b16 %v3426, %v3426
      %v3459 = vpack.c.b16 %v3427, %v3427
      %v3460 = vpack.c.b16 %v3428, %v3428
      %v3461 = vpack.c.b16 %v3429, %v3429
      %v3462 = vpack.c.b16 %v3430, %v3430
      %v3463 = vpack.c.b16 %v3431, %v3431
      %v3464 = vpack.c.b16 %v3432, %v3432
      %v3465 = vpack.c.b16 %v3433, %v3433
      %v3466 = vpack.c.b16 %v3434, %v3434
      %v3467 = vpack.c.b16 %v3435, %v3435
      %v3468 = vpack.c.b16 %v3436, %v3436
      %v3469 = vpack.c.b16 %v3437, %v3437
      %v3470 = vpack.c.b16 %v3438, %v3438
      %v3471 = vpack.c.b16 %v3439, %v3439
      %v3472 = vpack.c.b16 %v3440, %v3440
      %v3473 = vpack.c.b16 %v3441, %v3441
      %v3474 = vpack.c.b16 %v3442, %v3442
      %v3475 = vpack.c.b16 %v3443, %v3443
      %3508 = vst [vmem:[%s251] sm:$0xf] %v3444
      %3509 = vst [vmem:[%s251 + $0x4] sm:$0xf] %v3445
      %3510 = vst [vmem:[%s251 + $0x8] sm:$0xf] %v3446
      %3511 = vst [vmem:[%s251 + $0xc] sm:$0xf] %v3447
      %3512 = vst [vmem:[%s251 + $0x10] sm:$0xf] %v3448
      %3513 = vst [vmem:[%s251 + $0x14] sm:$0xf] %v3449
      %3514 = vst [vmem:[%s251 + $0x18] sm:$0xf] %v3450
      %3515 = vst [vmem:[%s251 + $0x1c] sm:$0xf] %v3451
      %3516 = vst [vmem:[%s251 + $0x20] sm:$0xf] %v3452
      %3517 = vst [vmem:[%s251 + $0x24] sm:$0xf] %v3453
      %3518 = vst [vmem:[%s251 + $0x28] sm:$0xf] %v3454
      %3519 = vst [vmem:[%s251 + $0x2c] sm:$0xf] %v3455
      %3520 = vst [vmem:[%s251 + $0x30] sm:$0xf] %v3456
      %3521 = vst [vmem:[%s251 + $0x34] sm:$0xf] %v3457
      %3522 = vst [vmem:[%s251 + $0x38] sm:$0xf] %v3458
      %3523 = vst [vmem:[%s251 + $0x3c] sm:$0xf] %v3459
      %3524 = vst [vmem:[%s251 + $0x40] sm:$0xf] %v3460
      %3525 = vst [vmem:[%s251 + $0x44] sm:$0xf] %v3461
      %3526 = vst [vmem:[%s251 + $0x48] sm:$0xf] %v3462
      %3527 = vst [vmem:[%s251 + $0x4c] sm:$0xf] %v3463
      %3528 = vst [vmem:[%s251 + $0x50] sm:$0xf] %v3464
      %3529 = vst [vmem:[%s251 + $0x54] sm:$0xf] %v3465
      %3530 = vst [vmem:[%s251 + $0x58] sm:$0xf] %v3466
      %3531 = vst [vmem:[%s251 + $0x5c] sm:$0xf] %v3467
      %3532 = vst [vmem:[%s251 + $0x60] sm:$0xf] %v3468
      %3533 = vst [vmem:[%s251 + $0x64] sm:$0xf] %v3469
      %3534 = vst [vmem:[%s251 + $0x68] sm:$0xf] %v3470
      %3535 = vst [vmem:[%s251 + $0x6c] sm:$0xf] %v3471
      %3536 = vst [vmem:[%s251 + $0x70] sm:$0xf] %v3472
      %3537 = vst [vmem:[%s251 + $0x74] sm:$0xf] %v3473
      %3538 = vst [vmem:[%s251 + $0x78] sm:$0xf] %v3474
      %3539 = vst [vmem:[%s251 + $0x7c] sm:$0xf] %v3475
      %v3540 = vadd.f32 %v3348, %v3349
      %v3541 = vadd.f32 %v3540, %v3350
      %v3542 = vadd.f32 %v3541, %v3351
      %v3543 = vadd.f32 %v3542, %v3352
      %v3544 = vadd.f32 %v3543, %v3353
      %v3545 = vadd.f32 %v3544, %v3354
      %v3546 = vadd.f32 %v3545, %v3355
      %v3547 = vadd.f32 %v3546, %v3356
      %v3548 = vadd.f32 %v3547, %v3357
      %v3549 = vadd.f32 %v3548, %v3358
      %v3550 = vadd.f32 %v3549, %v3359
      %v3551 = vadd.f32 %v3550, %v3360
      %v3552 = vadd.f32 %v3551, %v3361
      %v3553 = vadd.f32 %v3552, %v3362
      %v3554 = vadd.f32 %v3553, %v3363
      %v3555 = vadd.f32 %v3554, %v3364
      %v3556 = vadd.f32 %v3555, %v3365
      %v3557 = vadd.f32 %v3556, %v3366
      %v3558 = vadd.f32 %v3557, %v3367
      %v3559 = vadd.f32 %v3558, %v3368
      %v3560 = vadd.f32 %v3559, %v3369
      %v3561 = vadd.f32 %v3560, %v3370
      %v3562 = vadd.f32 %v3561, %v3371
      %v3563 = vadd.f32 %v3562, %v3372
      %v3564 = vadd.f32 %v3563, %v3373
      %v3565 = vadd.f32 %v3564, %v3374
      %v3566 = vadd.f32 %v3565, %v3375
      %v3567 = vadd.f32 %v3566, %v3376
      %v3568 = vadd.f32 %v3567, %v3377
      %v3569 = vadd.f32 %v3568, %v3378
      %v3570 = vadd.f32 %v3569, %v3379
      %v3571 = vrot.slane %v3570, 4
      %v3572 = vadd.f32 %v3570, %v3571
      %v3573 = vrot.slane %v3572, 2
      %v3574 = vadd.f32 %v3572, %v3573
      %v3575 = vrot.slane %v3574, 1
      %v3576 = vadd.f32 %v3574, %v3575
      %v3577 = vmul.f32 %v3576, 0.00390625
      %v3578 = vsub.f32 %v3348, %v3577
      %v3579 = vsub.f32 %v3349, %v3577
      %v3580 = vsub.f32 %v3350, %v3577
      %v3581 = vsub.f32 %v3351, %v3577
      %v3582 = vsub.f32 %v3352, %v3577
      %v3583 = vsub.f32 %v3353, %v3577
      %v3584 = vsub.f32 %v3354, %v3577
      %v3585 = vsub.f32 %v3355, %v3577
      %v3586 = vsub.f32 %v3356, %v3577
      %v3587 = vsub.f32 %v3357, %v3577
      %v3588 = vsub.f32 %v3358, %v3577
      %v3589 = vsub.f32 %v3359, %v3577
      %v3590 = vsub.f32 %v3360, %v3577
      %v3591 = vsub.f32 %v3361, %v3577
      %v3592 = vsub.f32 %v3362, %v3577
      %v3593 = vsub.f32 %v3363, %v3577
      %v3594 = vsub.f32 %v3364, %v3577
      %v3595 = vsub.f32 %v3365, %v3577
      %v3596 = vsub.f32 %v3366, %v3577
      %v3597 = vsub.f32 %v3367, %v3577
      %v3598 = vsub.f32 %v3368, %v3577
      %v3599 = vsub.f32 %v3369, %v3577
      %v3600 = vsub.f32 %v3370, %v3577
      %v3601 = vsub.f32 %v3371, %v3577
      %v3602 = vsub.f32 %v3372, %v3577
      %v3603 = vsub.f32 %v3373, %v3577
      %v3604 = vsub.f32 %v3374, %v3577
      %v3605 = vsub.f32 %v3375, %v3577
      %v3606 = vsub.f32 %v3376, %v3577
      %v3607 = vsub.f32 %v3377, %v3577
      %v3608 = vsub.f32 %v3378, %v3577
      %v3609 = vsub.f32 %v3379, %v3577
      %v3610 = vmul.f32 %v3578, %v3578
      %v3611 = vmul.f32 %v3579, %v3579
      %v3612 = vmul.f32 %v3580, %v3580
      %v3613 = vmul.f32 %v3581, %v3581
      %v3614 = vmul.f32 %v3582, %v3582
      %v3615 = vmul.f32 %v3583, %v3583
      %v3616 = vmul.f32 %v3584, %v3584
      %v3617 = vmul.f32 %v3585, %v3585
      %v3618 = vmul.f32 %v3586, %v3586
      %v3619 = vmul.f32 %v3587, %v3587
      %v3620 = vmul.f32 %v3588, %v3588
      %v3621 = vmul.f32 %v3589, %v3589
      %v3622 = vmul.f32 %v3590, %v3590
      %v3623 = vmul.f32 %v3591, %v3591
      %v3624 = vmul.f32 %v3592, %v3592
      %v3625 = vmul.f32 %v3593, %v3593
      %v3626 = vmul.f32 %v3594, %v3594
      %v3627 = vmul.f32 %v3595, %v3595
      %v3628 = vmul.f32 %v3596, %v3596
      %v3629 = vmul.f32 %v3597, %v3597
      %v3630 = vmul.f32 %v3598, %v3598
      %v3631 = vmul.f32 %v3599, %v3599
      %v3632 = vmul.f32 %v3600, %v3600
      %v3633 = vmul.f32 %v3601, %v3601
      %v3634 = vmul.f32 %v3602, %v3602
      %v3635 = vmul.f32 %v3603, %v3603
      %v3636 = vmul.f32 %v3604, %v3604
      %v3637 = vmul.f32 %v3605, %v3605
      %v3638 = vmul.f32 %v3606, %v3606
      %v3639 = vmul.f32 %v3607, %v3607
      %v3640 = vmul.f32 %v3608, %v3608
      %v3641 = vmul.f32 %v3609, %v3609
      %v3642 = vadd.f32 %v3610, %v3611
      %v3643 = vadd.f32 %v3642, %v3612
      %v3644 = vadd.f32 %v3643, %v3613
      %v3645 = vadd.f32 %v3644, %v3614
      %v3646 = vadd.f32 %v3645, %v3615
      %v3647 = vadd.f32 %v3646, %v3616
      %v3648 = vadd.f32 %v3647, %v3617
      %v3649 = vadd.f32 %v3648, %v3618
      %v3650 = vadd.f32 %v3649, %v3619
      %v3651 = vadd.f32 %v3650, %v3620
      %v3652 = vadd.f32 %v3651, %v3621
      %v3653 = vadd.f32 %v3652, %v3622
      %v3654 = vadd.f32 %v3653, %v3623
      %v3655 = vadd.f32 %v3654, %v3624
      %v3656 = vadd.f32 %v3655, %v3625
      %v3657 = vadd.f32 %v3656, %v3626
      %v3658 = vadd.f32 %v3657, %v3627
      %v3659 = vadd.f32 %v3658, %v3628
      %v3660 = vadd.f32 %v3659, %v3629
      %v3661 = vadd.f32 %v3660, %v3630
      %v3662 = vadd.f32 %v3661, %v3631
      %v3663 = vadd.f32 %v3662, %v3632
      %v3664 = vadd.f32 %v3663, %v3633
      %v3665 = vadd.f32 %v3664, %v3634
      %v3666 = vadd.f32 %v3665, %v3635
      %v3667 = vadd.f32 %v3666, %v3636
      %v3668 = vadd.f32 %v3667, %v3637
      %v3669 = vadd.f32 %v3668, %v3638
      %v3670 = vadd.f32 %v3669, %v3639
      %v3671 = vadd.f32 %v3670, %v3640
      %v3672 = vadd.f32 %v3671, %v3641
      %v3673 = vrot.slane %v3672, 4
      %v3674 = vadd.f32 %v3672, %v3673
      %v3675 = vrot.slane %v3674, 2
      %v3676 = vadd.f32 %v3674, %v3675
      %v3677 = vrot.slane %v3676, 1
      %v3678 = vadd.f32 %v3676, %v3677
      %vm3679 = vcmask 1040384
      %v3680 = vsel %vm3679, %v3576, %v3678
      %3681 = vst [vmem:[%s262] sm:$0x3] %v3680
      %s3682 = smul.u32 16, %s23
      %p3683 = scmp.lt.s32.totalorder %s22, 1
      %s3684 = scalar_select %p3683, %s22, 1
      %p3685 = scmp.lt.s32.totalorder %s3682, 15
      %s3686 = scalar_select %p3685, %s3682, 15
      %p3687 = scmp.lt.s32.totalorder %s24, 0
      %s3688 = scalar_select %p3687, %s24, 0
      %s3689 = smul.addr %s3686, 2
      %s3690 = sadd.s32 %s3688, %s3689
      %s3691 = smul.addr %s3684, 32
      %s3692 = sadd.s32 %s3690, %s3691
      %s3693 = smul.addr %s3692, 4
      %s3694 = scalar_lea.vmem %s4, %s3693
      %p3695 = scmp.lt.s32.totalorder %s22, 1
      %s3696 = scalar_select %p3695, %s22, 1
      %p3697 = scmp.lt.s32.totalorder %s23, 0
      %s3698 = scalar_select %p3697, %s23, 0
      %p3699 = scmp.lt.s32.totalorder %s24, 0
      %s3700 = scalar_select %p3699, %s24, 0
      %s3701 = sadd.s32 %s3700, %s3698
      %s3702 = sadd.s32 %s3701, %s3696
      %s3703 = smul.addr %s3702, 2
      %s3704 = scalar_lea.vmem %s5, %s3703
      // Predicated region
      $region67: #{double_conv.4} parent=31 // pred_check
        %p3705 = pneg %p126
      $region68: #{double_conv.4} parent=31 // pred_check_branch
        %3707 = sbr.rel (%p3705) target = $region70
      $region69: #{double_conv.4} parent=31 // pred_region
        %s3708 = smul.u32 16, %s23
      $region70: #{double_conv.4} parent=31 // pred_fallthru
        _
      // Predicated region
      $region71: #{double_conv.4} parent=31 // pred_check
        %p3709 = pneg %p156
      $region72: #{double_conv.4} parent=31 // pred_check_branch
        %3711 = sbr.rel (%p3709) target = $region74
      $region73: #{double_conv.4} parent=31 // pred_region
        _
      $region74: #{double_conv.4} parent=31 // pred_fallthru
        _
    $region32: #{double_conv.4} parent=5 // pred_fallthru
      _
    %p3712 = scmp.le.s32.totalorder 2, %s12
    // Predicated region
    $region75: #{double_conv.4} parent=5 // pred_check
      %p3713 = pneg %p3712
    $region76: #{double_conv.4} parent=5 // pred_check_branch
      %3715 = sbr.rel (%p3713) target = $region78
    $region77: #{double_conv.4} parent=5 // pred_region
      %s3716 = ssub.s32 %s12, 2
      // Predicated region
      $region79: #{double_conv.4} parent=77 // pred_check
        %p3717 = pneg %p132
      $region80: #{double_conv.4} parent=77 // pred_check_branch
        %3719 = sbr.rel (%p3717) target = $region82
      $region81: #{double_conv.4} parent=77 // pred_region
        %s3720 = smul.u32 16, %s26
        %p3721 = scmp.lt.s32.totalorder %s25, 1
        %s3722 = scalar_select %p3721, %s25, 1
        %p3723 = scmp.lt.s32.totalorder %s3720, 15
        %s3724 = scalar_select %p3723, %s3720, 15
        %p3725 = scmp.lt.s32.totalorder %s27, 0
        %s3726 = scalar_select %p3725, %s27, 0
        %s3727 = smul.addr %s3724, 2
        %s3728 = sadd.s32 %s3726, %s3727
        %s3729 = smul.addr %s3722, 32
        %s3730 = sadd.s32 %s3728, %s3729
        %s3731 = smul.addr %s3730, 4
        %s3732 = scalar_lea.vmem %s4, %s3731
      $region82: #{double_conv.4} parent=77 // pred_fallthru
        _
      // Predicated region
      $region83: #{double_conv.4} parent=77 // pred_check
        %p3733 = pneg %p162
      $region84: #{double_conv.4} parent=77 // pred_check_branch
        %3735 = sbr.rel (%p3733) target = $region86
      $region85: #{double_conv.4} parent=77 // pred_region
        %p3736 = scmp.lt.s32.totalorder %s25, 1
        %s3737 = scalar_select %p3736, %s25, 1
        %p3738 = scmp.lt.s32.totalorder %s26, 0
        %s3739 = scalar_select %p3738, %s26, 0
        %p3740 = scmp.lt.s32.totalorder %s27, 0
        %s3741 = scalar_select %p3740, %s27, 0
        %s3742 = sadd.s32 %s3741, %s3739
        %s3743 = sadd.s32 %s3742, %s3737
        %s3744 = smul.addr %s3743, 2
        %s3745 = scalar_lea.vmem %s5, %s3744
      $region86: #{double_conv.4} parent=77 // pred_fallthru
        _
    $region78: #{double_conv.4} parent=5 // pred_fallthru
      _
  $region6: #{double_conv.4} parent=0 // loop_footer
    %s16 = sadd.s32 1, %s12
  $region7: #{double_conv.4} parent=0 // loop_footer_branch
    %11 = sbr.rel target = $region3
  $region8: #{double_conv.4} parent=0 // loop_exit
    _
  %3746 = vsyncmov [#allocation3]
  %s3747 = vpop.sfrf %3746
  %p3748 = scmp.eq.s32.totalorder %s3747, 0
  %p3749 = pneg %p3748
  %3751 = shalt.err (%p3749)

</llo_original>
